<compile_context>
chip_gen: v5e
topology: v5e:2x2
jax: 0.10.0
libtpu: 0.0.40
codegen_flags: <defaults>
</compile_context>

<pallas_src>
import jax
import jax.numpy as jnp
from jax.experimental import pallas as pl
from jax.experimental.pallas import tpu as pltpu

K = 12    # Conv1d kernel_size
PAD = 6   # Conv1d padding


def _pooled_len(n):
    conv = n + 2 * PAD - K + 1
    return (conv - 2) // 2 + 1


# ----------------------------------------------------------------------------
# Fused encoder kernel (one grid step == Bblk batch samples)
# ----------------------------------------------------------------------------
def _make_encoder_kernel(n1, n2, n3, bblk, cond):
    """n1/n2/n3: pooled sequence lengths after conv blocks 1/2/3."""
    f32, bf16 = jnp.float32, jnp.bfloat16
    se2, so2 = n2 + 7, n2 + 6          # padded (de-interleaved) scratch lengths, layer 2
    se3, so3 = n3 + 7, n3 + 6          # padded (de-interleaved) scratch lengths, layer 3

    def kernel(xcol_ref, c_ref, w1_ref, w2_ref, w3_ref, convbn_ref,
               wfc_ref, bn0h_ref, bn0c_ref, wmlh_ref, wmlcb_ref,
               out_ref, e2_ref, o2_ref, e3_ref, o3_ref):

        def bn_pool_relu(y, half, layer):
            # conv bias + BatchNorm(eval) folded into scale/shift; MaxPool(2,2) is the
            # elementwise max of the even/odd conv-position halves; then ReLU.
            s = convbn_ref[layer:layer + 1, :]
            t = convbn_ref[layer + 3:layer + 4, :]
            y = y * s + t
            return jnp.maximum(jnp.maximum(y[:half], y[half:]), 0.0)

        def scatter_parity(a, n_act, e_ref, o_ref, se, so):
            # `a` is (n_act*bblk, 128) f32, time-major (row = t*bblk + b).  Drop even/odd
            # time rows into sublane-aligned bf16 scratches (data starts at row 4*bblk),
            # re-zeroing only the pad rows that the conv taps actually read.
            zlead = jnp.zeros((4 * bblk, 128), bf16)
            e_ref[0:4 * bblk, :] = zlead
            o_ref[0:4 * bblk, :] = zlead
            d_end = (4 + n_act // 2) * bblk
            e_ref[d_end:se * bblk, :] = jnp.zeros(((se - 4 - n_act // 2) * bblk, 128), bf16)
            o_ref[d_end:so * bblk, :] = jnp.zeros(((so - 4 - n_act // 2) * bblk, 128), bf16)
            for j in range(n_act // 2):
                dst = (4 + j) * bblk
                e_ref[dst:dst + bblk, :] = a[2 * j * bblk:(2 * j + 1) * bblk, :].astype(bf16)
                o_ref[dst:dst + bblk, :] = a[(2 * j + 1) * bblk:(2 * j + 2) * bblk, :].astype(bf16)

        def conv_block(e_ref, o_ref, m, w_ref, layer):
            # One fused (even||odd conv positions) im2col matmul.  Because the input is
            # parity de-interleaved, every tap is a contiguous unit-stride slice.
            taps_e, taps_o = [], []
            for k in range(K):
                j = k // 2
                if k % 2 == 0:
                    taps_e.append(e_ref[(j + 1) * bblk:(j + 1 + m) * bblk, :])
                    taps_o.append(o_ref[(j + 1) * bblk:(j + 1 + m) * bblk, :])
                else:
                    taps_e.append(o_ref[(j + 1) * bblk:(j + 1 + m) * bblk, :])
                    taps_o.append(e_ref[(j + 2) * bblk:(j + 2 + m) * bblk, :])
            lhs = jnp.concatenate([jnp.concatenate(taps_e, axis=1),
                                   jnp.concatenate(taps_o, axis=1)], axis=0)
            y = jnp.dot(lhs, w_ref[...], preferred_element_type=f32)
            return bn_pool_relu(y, m * bblk, layer)

        # ---- conv block 1 (im2col pre-built by the wrapper: even rows then odd rows,
        #      each group time-major (position, sample)) ----
        y1 = jnp.dot(xcol_ref[...], w1_ref[...], preferred_element_type=f32)
        a1 = bn_pool_relu(y1, n1 * bblk, 0)                 # (n1*bblk, 128)

        # ---- conv block 2 ----
        scatter_parity(a1, n1, e2_ref, o2_ref, se2, so2)
        a2 = conv_block(e2_ref, o2_ref, n2, w2_ref, 1)      # (n2*bblk, 128)

        # ---- conv block 3 ----
        scatter_parity(a2, n2, e3_ref, o3_ref, se3, so3)
        a3 = conv_block(e3_ref, o3_ref, n3, w3_ref, 2)      # (n3*bblk, 128)

        # ---- head: flatten (channels-last) -> fc -> bn0(eval) -> relu -> [mu|logvar] ----
        # wfc rows were permuted at init to the channels-last flatten order (t*128 + c),
        # so the flatten is just a lane-concat of the n3 time-blocks of a3.
        xf = jnp.concatenate([a3[t * bblk:(t + 1) * bblk, :] for t in range(n3)],
                             axis=1)                        # (bblk, n3*128)
        h = jnp.dot(xf.astype(bf16), wfc_ref[...], preferred_element_type=f32)
        ah = jnp.maximum(h * bn0h_ref[0:1, :] + bn0h_ref[1:2, :], 0.0)   # fc half of bn0
        cb = jnp.maximum(c_ref[...] * bn0c_ref[0:1, :] + bn0c_ref[1:2, :], 0.0)  # cond half
        ml = jnp.dot(ah.astype(bf16), wmlh_ref[...], preferred_element_type=f32)
        for j in range(cond):                               # K=4 condition term on the VPU
            ml = ml + cb[:, j:j + 1] * wmlcb_ref[j:j + 1, :]
        out_ref[...] = ml + wmlcb_ref[cond:cond + 1, :]     # (bblk, 2*latent), lane dense

    return kernel


# ----------------------------------------------------------------------------
# Forward wrapper
# ----------------------------------------------------------------------------
def encoder_forward(x_ncw, c, params, bblk=16):
    """x_ncw: (B, input_dim, seq_len) (PyTorch NCW);  c: (B, condition_dim)."""
    B, cin, L0 = x_ncw.shape
    n1 = _pooled_len(L0)
    n2 = _pooled_len(n1)
    n3 = _pooled_len(n2)
    assert n1 % 2 == 0 and n2 % 2 == 0, "in-kernel parity split assumes even lengths"
    cond = c.shape[1]
    two_latent = params["wmlcb"].shape[1]

    num_steps = -(-B // bblk)
    Bp = num_steps * bblk
    if Bp != B:
        x_ncw = jnp.pad(x_ncw, ((0, Bp - B), (0, 0), (0, 0)))
        c = jnp.pad(c, ((0, Bp - B), (0, 0)))

    # Layer-1 im2col on the raw input (Cin=14 not lane-aligned, so it is built once
    # here; layers 2/3 are padded + unfolded fully in-kernel).  Per step the rows are
    # ordered [conv-parity, position, sample] so MaxPool in the kernel is a half-split max.
    x_nlc = jnp.transpose(x_ncw, (0, 2, 1)).astype(jnp.float32)
    xpad = jnp.pad(x_nlc, ((0, 0), (PAD, PAD), (0, 0)))
    cols = jnp.concatenate([xpad[:, k:k + 2 * n1, :] for k in range(K)], axis=-1)
    even = cols[:, 0::2, :].reshape(num_steps, bblk, n1, K * cin).transpose(0, 2, 1, 3)
    odd = cols[:, 1::2, :].reshape(num_steps, bblk, n1, K * cin).transpose(0, 2, 1, 3)
    xcol = jnp.stack([even, odd], axis=1)                     # (S, 2, n1, bblk, K*cin)
    xcol = xcol.reshape(num_steps * 2 * n1 * bblk, K * cin).astype(jnp.bfloat16)

    rows1 = 2 * n1 * bblk
    cf = c.astype(jnp.float32)

    out = pl.pallas_call(
        _make_encoder_kernel(n1, n2, n3, bblk, cond),
        out_shape=jax.ShapeDtypeStruct((Bp, two_latent), jnp.float32),
        grid_spec=pltpu.PrefetchScalarGridSpec(
            num_scalar_prefetch=0,
            grid=(num_steps,),
            in_specs=[
                pl.BlockSpec((rows1, K * cin), lambda s: (s, 0)),        # layer-1 im2col
                pl.BlockSpec((bblk, cond), lambda s: (s, 0)),            # condition c
                pl.BlockSpec((K * cin, 128), lambda s: (0, 0)),          # w1
                pl.BlockSpec((K * 128, 128), lambda s: (0, 0)),          # w2
                pl.BlockSpec((K * 128, 128), lambda s: (0, 0)),          # w3
                pl.BlockSpec((6, 128), lambda s: (0, 0)),                # conv BN scale/shift
                pl.BlockSpec((128 * n3, 512), lambda s: (0, 0)),         # wfc
                pl.BlockSpec((2, 512), lambda s: (0, 0)),                # bn0 (fc half)
                pl.BlockSpec((2, cond), lambda s: (0, 0)),               # bn0 (cond half)
                pl.BlockSpec((512, two_latent), lambda s: (0, 0)),       # [wmu|wlv] fc part
                pl.BlockSpec((cond + 1, two_latent), lambda s: (0, 0)),  # [wmu|wlv] cond + bias
            ],
            out_specs=pl.BlockSpec((bblk, two_latent), lambda s: (s, 0)),
            scratch_shapes=[
                pltpu.VMEM(((n2 + 7) * bblk, 128), jnp.bfloat16),   # even-time rows, layer-2 in
                pltpu.VMEM(((n2 + 6) * bblk, 128), jnp.bfloat16),   # odd-time rows,  layer-2 in
                pltpu.VMEM(((n3 + 7) * bblk, 128), jnp.bfloat16),   # even-time rows, layer-3 in
                pltpu.VMEM(((n3 + 6) * bblk, 128), jnp.bfloat16),   # odd-time rows,  layer-3 in
            ],
        ),
        compiler_params=pltpu.CompilerParams(
            dimension_semantics=("parallel",),
            vmem_limit_bytes=32 * 1024 * 1024),
    )(xcol, cf,
      params["w1"], params["w2"], params["w3"], params["convbn"],
      params["wfc"], params["bn0h"], params["bn0c"],
      params["wml_h"], params["wmlcb"])

    out = out[:B]
    half = two_latent // 2
    return out[:, :half], out[:, half:]


# ----------------------------------------------------------------------------
# Parameter init (deterministic, synthetic), pre-packed in kernel layout
# ----------------------------------------------------------------------------
def init_params(key, input_dim, seq_len, latent_dim, condition_dim):
    """Conv weights stored as (K*Cin, Cout) (== torch weight.permute(2,1,0) flattened);
    fc weight rows are in channels-last flatten order (t*128 + c); BatchNorm (eval:
    running_mean=0, running_var=1, eps=1e-5) + conv/linear biases folded into
    per-channel scale/shift; mu/logvar weights concatenated along the output axis,
    with the condition-part weights and bias packed into one f32 array."""
    eps = 1e-5
    ks = iter(jax.random.split(key, 24))

    def nrm(shape, scale=0.05):
        return scale * jax.random.normal(next(ks), shape, jnp.float32)

    p = {}
    cin = input_dim
    scales, shifts = [], []
    for i in (1, 2, 3):
        cout = 128
        w = nrm((K, cin, cout))
        bias = nrm((cout,))
        gamma = 1.0 + nrm((cout,))
        beta = nrm((cout,))
        scale = gamma / jnp.sqrt(1.0 + eps)       # running_var = 1
        shift = beta + bias * scale               # running_mean = 0
        p[f"w{i}"] = w.reshape(K * cin, cout).astype(jnp.bfloat16)
        scales.append(scale)
        shifts.append(shift)
        cin = cout
    p["convbn"] = jnp.concatenate([jnp.stack(scales), jnp.stack(shifts)], axis=0)  # (6,128)

    L = seq_len
    for _ in range(3):
        L = _pooled_len(L)                        # matches calc_seq_len in torch
    feat = 128 * L

    wfc = nrm((feat, 512))                        # rows in (t*128 + c) order
    bfc = nrm((512,))
    gamma0 = 1.0 + nrm((512 + condition_dim,))
    beta0 = nrm((512 + condition_dim,))
    scale0 = gamma0 / jnp.sqrt(1.0 + eps)
    p["wfc"] = wfc.astype(jnp.bfloat16)
    sh = scale0[:512]
    th = beta0[:512] + bfc * sh                   # fc bias folded
    p["bn0h"] = jnp.stack([sh, th])               # (2, 512)
    p["bn0c"] = jnp.stack([scale0[512:], beta0[512:]])  # (2, cond)

    wmu = nrm((512 + condition_dim, latent_dim))
    bmu = nrm((latent_dim,))
    wlv = nrm((512 + condition_dim, latent_dim))
    blv = nrm((latent_dim,))
    p["wml_h"] = jnp.concatenate([wmu[:512], wlv[:512]], axis=1).astype(jnp.bfloat16)
    wml_c = jnp.concatenate([wmu[512:], wlv[512:]], axis=1)          # (cond, 2*latent)
    bml = jnp.concatenate([bmu, blv]).reshape(1, 2 * latent_dim)
    p["wmlcb"] = jnp.concatenate([wml_c, bml], axis=0)               # (cond+1, 2*latent)
    return p, L


if __name__ == "__main__":
    B, input_dim, seq_len, condition_dim, latent_dim = 32, 14, 32, 4, 128
    key = jax.random.PRNGKey(0)
    kx, kc, kp = jax.random.split(key, 3)
    x = jax.random.normal(kx, (B, input_dim, seq_len), jnp.float32)
    c = jax.random.normal(kc, (B, condition_dim), jnp.float32)
    params, final_len = init_params(kp, input_dim, seq_len, latent_dim,
                                    condition_dim)

    fwd = jax.jit(lambda x, c: encoder_forward(x, c, params))
    mu, logvar = fwd(x, c)
    jax.block_until_ready((mu, logvar))
    assert mu.shape == (B, latent_dim), mu.shape
    assert logvar.shape == (B, latent_dim), logvar.shape
    assert final_len == 4
    print("KERNEL_OK")
</pallas_src>

<mosaic_0001>
module attributes {stable_mosaic.version = 11 : i64} {
  func.func @kernel(%arg0: i32, %arg1: memref<512x168xbf16, #tpu.memory_space<vmem>>, %arg2: memref<16x4xf32, #tpu.memory_space<vmem>>, %arg3: memref<168x128xbf16, #tpu.memory_space<vmem>>, %arg4: memref<1536x128xbf16, #tpu.memory_space<vmem>>, %arg5: memref<1536x128xbf16, #tpu.memory_space<vmem>>, %arg6: memref<6x128xf32, #tpu.memory_space<vmem>>, %arg7: memref<512x512xbf16, #tpu.memory_space<vmem>>, %arg8: memref<2x512xf32, #tpu.memory_space<vmem>>, %arg9: memref<2x4xf32, #tpu.memory_space<vmem>>, %arg10: memref<512x256xbf16, #tpu.memory_space<vmem>>, %arg11: memref<5x256xf32, #tpu.memory_space<vmem>>, %arg12: memref<16x256xf32, #tpu.memory_space<vmem>>, %arg13: memref<240x128xbf16, #tpu.memory_space<vmem>>, %arg14: memref<224x128xbf16, #tpu.memory_space<vmem>>, %arg15: memref<176x128xbf16, #tpu.memory_space<vmem>>, %arg16: memref<160x128xbf16, #tpu.memory_space<vmem>>) attributes {dimension_semantics = [#tpu.dimension_semantics<parallel>], iteration_bounds = array<i64: 2>, scalar_prefetch = 0 : i64, scratch_operands = 4 : i64, tpu.core_type = #tpu.core_type<tc>, window_params = [{transform_indices = @transform_0, window_bounds = array<i64: 512, 168>}, {transform_indices = @transform_1, window_bounds = array<i64: 16, 4>}, {pipeline_mode = #tpu.pipeline_mode<synchronous>, transform_indices = @transform_2, window_bounds = array<i64: 168, 128>}, {pipeline_mode = #tpu.pipeline_mode<synchronous>, transform_indices = @transform_3, window_bounds = array<i64: 1536, 128>}, {pipeline_mode = #tpu.pipeline_mode<synchronous>, transform_indices = @transform_4, window_bounds = array<i64: 1536, 128>}, {pipeline_mode = #tpu.pipeline_mode<synchronous>, transform_indices = @transform_5, window_bounds = array<i64: 6, 128>}, {pipeline_mode = #tpu.pipeline_mode<synchronous>, transform_indices = @transform_6, window_bounds = array<i64: 512, 512>}, {pipeline_mode = #tpu.pipeline_mode<synchronous>, transform_indices = @transform_7, window_bounds = array<i64: 2, 512>}, {pipeline_mode = #tpu.pipeline_mode<synchronous>, transform_indices = @transform_8, window_bounds = array<i64: 2, 4>}, {pipeline_mode = #tpu.pipeline_mode<synchronous>, transform_indices = @transform_9, window_bounds = array<i64: 512, 256>}, {pipeline_mode = #tpu.pipeline_mode<synchronous>, transform_indices = @transform_10, window_bounds = array<i64: 5, 256>}, {transform_indices = @transform_11, window_bounds = array<i64: 16, 256>}]} {
    %c0 = arith.constant 0 : index
    %c0_0 = arith.constant 0 : index
    %0 = vector.load %arg1[%c0, %c0_0] : memref<512x168xbf16, #tpu.memory_space<vmem>>, vector<512x168xbf16>
    %c0_1 = arith.constant 0 : index
    %c0_2 = arith.constant 0 : index
    %1 = vector.load %arg3[%c0_1, %c0_2] : memref<168x128xbf16, #tpu.memory_space<vmem>>, vector<168x128xbf16>
    %cst = arith.constant dense<0.000000e+00> : vector<512x128xf32>
    %2 = tpu.matmul %0, %1, %cst {dimension_numbers = #tpu.dot_dimension_numbers<[1], [0], [0], [1], [0, 0, 1, 1], [], []>} : vector<512x168xbf16>, vector<168x128xbf16>, vector<512x128xf32> -> vector<512x128xf32>
    %c0_3 = arith.constant 0 : index
    %c0_4 = arith.constant 0 : index
    %3 = vector.load %arg6[%c0_3, %c0_4] : memref<6x128xf32, #tpu.memory_space<vmem>>, vector<1x128xf32>
    %c3 = arith.constant 3 : index
    %c0_5 = arith.constant 0 : index
    %4 = vector.load %arg6[%c3, %c0_5] : memref<6x128xf32, #tpu.memory_space<vmem>>, vector<1x128xf32>
    %5 = vector.broadcast %3 : vector<1x128xf32> to vector<512x128xf32>
    %6 = arith.mulf %2, %5 : vector<512x128xf32>
    %7 = vector.broadcast %4 : vector<1x128xf32> to vector<512x128xf32>
    %8 = arith.addf %6, %7 : vector<512x128xf32>
    %9 = vector.extract_strided_slice %8 {offsets = [0, 0], sizes = [256, 128], strides = [1, 1]} : vector<512x128xf32> to vector<256x128xf32>
    %10 = vector.extract_strided_slice %8 {offsets = [256, 0], sizes = [256, 128], strides = [1, 1]} : vector<512x128xf32> to vector<256x128xf32>
    %11 = arith.maximumf %9, %10 : vector<256x128xf32>
    %cst_6 = arith.constant 0.000000e+00 : f32
    %12 = vector.broadcast %cst_6 : f32 to vector<256x128xf32>
    %13 = arith.maximumf %11, %12 : vector<256x128xf32>
    %cst_7 = arith.constant 0.000000e+00 : bf16
    %14 = vector.broadcast %cst_7 : bf16 to vector<64x128xbf16>
    %c0_8 = arith.constant 0 : index
    %c0_9 = arith.constant 0 : index
    %15 = vector.load %arg13[%c0_8, %c0_9] : memref<240x128xbf16, #tpu.memory_space<vmem>>, vector<64x128xbf16>
    tpu.vector_store %arg13[%c0_8, %c0_9], %14 {strides = array<i32>} : memref<240x128xbf16, #tpu.memory_space<vmem>>, vector<64x128xbf16>,
    %c0_10 = arith.constant 0 : index
    %c0_11 = arith.constant 0 : index
    %16 = vector.load %arg14[%c0_10, %c0_11] : memref<224x128xbf16, #tpu.memory_space<vmem>>, vector<64x128xbf16>
    tpu.vector_store %arg14[%c0_10, %c0_11], %14 {strides = array<i32>} : memref<224x128xbf16, #tpu.memory_space<vmem>>, vector<64x128xbf16>,
    %cst_12 = arith.constant 0.000000e+00 : bf16
    %17 = vector.broadcast %cst_12 : bf16 to vector<48x128xbf16>
    %c192 = arith.constant 192 : index
    %c0_13 = arith.constant 0 : index
    %18 = vector.load %arg13[%c192, %c0_13] : memref<240x128xbf16, #tpu.memory_space<vmem>>, vector<48x128xbf16>
    tpu.vector_store %arg13[%c192, %c0_13], %17 {strides = array<i32>} : memref<240x128xbf16, #tpu.memory_space<vmem>>, vector<48x128xbf16>,
    %cst_14 = arith.constant 0.000000e+00 : bf16
    %19 = vector.broadcast %cst_14 : bf16 to vector<32x128xbf16>
    %c192_15 = arith.constant 192 : index
    %c0_16 = arith.constant 0 : index
    %20 = vector.load %arg14[%c192_15, %c0_16] : memref<224x128xbf16, #tpu.memory_space<vmem>>, vector<32x128xbf16>
    tpu.vector_store %arg14[%c192_15, %c0_16], %19 {strides = array<i32>} : memref<224x128xbf16, #tpu.memory_space<vmem>>, vector<32x128xbf16>,
    %21 = vector.extract_strided_slice %13 {offsets = [0, 0], sizes = [16, 128], strides = [1, 1]} : vector<256x128xf32> to vector<16x128xf32>
    %22 = arith.truncf %21 : vector<16x128xf32> to vector<16x128xbf16>
    %c64 = arith.constant 64 : index
    %c0_17 = arith.constant 0 : index
    %23 = vector.load %arg13[%c64, %c0_17] : memref<240x128xbf16, #tpu.memory_space<vmem>>, vector<16x128xbf16>
    tpu.vector_store %arg13[%c64, %c0_17], %22 {strides = array<i32>} : memref<240x128xbf16, #tpu.memory_space<vmem>>, vector<16x128xbf16>,
    %24 = vector.extract_strided_slice %13 {offsets = [16, 0], sizes = [16, 128], strides = [1, 1]} : vector<256x128xf32> to vector<16x128xf32>
    %25 = arith.truncf %24 : vector<16x128xf32> to vector<16x128xbf16>
    %c64_18 = arith.constant 64 : index
    %c0_19 = arith.constant 0 : index
    %26 = vector.load %arg14[%c64_18, %c0_19] : memref<224x128xbf16, #tpu.memory_space<vmem>>, vector<16x128xbf16>
    tpu.vector_store %arg14[%c64_18, %c0_19], %25 {strides = array<i32>} : memref<224x128xbf16, #tpu.memory_space<vmem>>, vector<16x128xbf16>,
    %27 = vector.extract_strided_slice %13 {offsets = [32, 0], sizes = [16, 128], strides = [1, 1]} : vector<256x128xf32> to vector<16x128xf32>
    %28 = arith.truncf %27 : vector<16x128xf32> to vector<16x128xbf16>
    %c80 = arith.constant 80 : index
    %c0_20 = arith.constant 0 : index
    %29 = vector.load %arg13[%c80, %c0_20] : memref<240x128xbf16, #tpu.memory_space<vmem>>, vector<16x128xbf16>
    tpu.vector_store %arg13[%c80, %c0_20], %28 {strides = array<i32>} : memref<240x128xbf16, #tpu.memory_space<vmem>>, vector<16x128xbf16>,
    %30 = vector.extract_strided_slice %13 {offsets = [48, 0], sizes = [16, 128], strides = [1, 1]} : vector<256x128xf32> to vector<16x128xf32>
    %31 = arith.truncf %30 : vector<16x128xf32> to vector<16x128xbf16>
    %c80_21 = arith.constant 80 : index
    %c0_22 = arith.constant 0 : index
    %32 = vector.load %arg14[%c80_21, %c0_22] : memref<224x128xbf16, #tpu.memory_space<vmem>>, vector<16x128xbf16>
    tpu.vector_store %arg14[%c80_21, %c0_22], %31 {strides = array<i32>} : memref<224x128xbf16, #tpu.memory_space<vmem>>, vector<16x128xbf16>,
    %33 = vector.extract_strided_slice %13 {offsets = [64, 0], sizes = [16, 128], strides = [1, 1]} : vector<256x128xf32> to vector<16x128xf32>
    %34 = arith.truncf %33 : vector<16x128xf32> to vector<16x128xbf16>
    %c96 = arith.constant 96 : index
    %c0_23 = arith.constant 0 : index
    %35 = vector.load %arg13[%c96, %c0_23] : memref<240x128xbf16, #tpu.memory_space<vmem>>, vector<16x128xbf16>
    tpu.vector_store %arg13[%c96, %c0_23], %34 {strides = array<i32>} : memref<240x128xbf16, #tpu.memory_space<vmem>>, vector<16x128xbf16>,
    %36 = vector.extract_strided_slice %13 {offsets = [80, 0], sizes = [16, 128], strides = [1, 1]} : vector<256x128xf32> to vector<16x128xf32>
    %37 = arith.truncf %36 : vector<16x128xf32> to vector<16x128xbf16>
    %c96_24 = arith.constant 96 : index
    %c0_25 = arith.constant 0 : index
    %38 = vector.load %arg14[%c96_24, %c0_25] : memref<224x128xbf16, #tpu.memory_space<vmem>>, vector<16x128xbf16>
    tpu.vector_store %arg14[%c96_24, %c0_25], %37 {strides = array<i32>} : memref<224x128xbf16, #tpu.memory_space<vmem>>, vector<16x128xbf16>,
    %39 = vector.extract_strided_slice %13 {offsets = [96, 0], sizes = [16, 128], strides = [1, 1]} : vector<256x128xf32> to vector<16x128xf32>
    %40 = arith.truncf %39 : vector<16x128xf32> to vector<16x128xbf16>
    %c112 = arith.constant 112 : index
    %c0_26 = arith.constant 0 : index
    %41 = vector.load %arg13[%c112, %c0_26] : memref<240x128xbf16, #tpu.memory_space<vmem>>, vector<16x128xbf16>
    tpu.vector_store %arg13[%c112, %c0_26], %40 {strides = array<i32>} : memref<240x128xbf16, #tpu.memory_space<vmem>>, vector<16x128xbf16>,
    %42 = vector.extract_strided_slice %13 {offsets = [112, 0], sizes = [16, 128], strides = [1, 1]} : vector<256x128xf32> to vector<16x128xf32>
    %43 = arith.truncf %42 : vector<16x128xf32> to vector<16x128xbf16>
    %c112_27 = arith.constant 112 : index
    %c0_28 = arith.constant 0 : index
    %44 = vector.load %arg14[%c112_27, %c0_28] : memref<224x128xbf16, #tpu.memory_space<vmem>>, vector<16x128xbf16>
    tpu.vector_store %arg14[%c112_27, %c0_28], %43 {strides = array<i32>} : memref<224x128xbf16, #tpu.memory_space<vmem>>, vector<16x128xbf16>,
    %45 = vector.extract_strided_slice %13 {offsets = [128, 0], sizes = [16, 128], strides = [1, 1]} : vector<256x128xf32> to vector<16x128xf32>
    %46 = arith.truncf %45 : vector<16x128xf32> to vector<16x128xbf16>
    %c128 = arith.constant 128 : index
    %c0_29 = arith.constant 0 : index
    %47 = vector.load %arg13[%c128, %c0_29] : memref<240x128xbf16, #tpu.memory_space<vmem>>, vector<16x128xbf16>
    tpu.vector_store %arg13[%c128, %c0_29], %46 {strides = array<i32>} : memref<240x128xbf16, #tpu.memory_space<vmem>>, vector<16x128xbf16>,
    %48 = vector.extract_strided_slice %13 {offsets = [144, 0], sizes = [16, 128], strides = [1, 1]} : vector<256x128xf32> to vector<16x128xf32>
    %49 = arith.truncf %48 : vector<16x128xf32> to vector<16x128xbf16>
    %c128_30 = arith.constant 128 : index
    %c0_31 = arith.constant 0 : index
    %50 = vector.load %arg14[%c128_30, %c0_31] : memref<224x128xbf16, #tpu.memory_space<vmem>>, vector<16x128xbf16>
    tpu.vector_store %arg14[%c128_30, %c0_31], %49 {strides = array<i32>} : memref<224x128xbf16, #tpu.memory_space<vmem>>, vector<16x128xbf16>,
    %51 = vector.extract_strided_slice %13 {offsets = [160, 0], sizes = [16, 128], strides = [1, 1]} : vector<256x128xf32> to vector<16x128xf32>
    %52 = arith.truncf %51 : vector<16x128xf32> to vector<16x128xbf16>
    %c144 = arith.constant 144 : index
    %c0_32 = arith.constant 0 : index
    %53 = vector.load %arg13[%c144, %c0_32] : memref<240x128xbf16, #tpu.memory_space<vmem>>, vector<16x128xbf16>
    tpu.vector_store %arg13[%c144, %c0_32], %52 {strides = array<i32>} : memref<240x128xbf16, #tpu.memory_space<vmem>>, vector<16x128xbf16>,
    %54 = vector.extract_strided_slice %13 {offsets = [176, 0], sizes = [16, 128], strides = [1, 1]} : vector<256x128xf32> to vector<16x128xf32>
    %55 = arith.truncf %54 : vector<16x128xf32> to vector<16x128xbf16>
    %c144_33 = arith.constant 144 : index
    %c0_34 = arith.constant 0 : index
    %56 = vector.load %arg14[%c144_33, %c0_34] : memref<224x128xbf16, #tpu.memory_space<vmem>>, vector<16x128xbf16>
    tpu.vector_store %arg14[%c144_33, %c0_34], %55 {strides = array<i32>} : memref<224x128xbf16, #tpu.memory_space<vmem>>, vector<16x128xbf16>,
    %57 = vector.extract_strided_slice %13 {offsets = [192, 0], sizes = [16, 128], strides = [1, 1]} : vector<256x128xf32> to vector<16x128xf32>
    %58 = arith.truncf %57 : vector<16x128xf32> to vector<16x128xbf16>
    %c160 = arith.constant 160 : index
    %c0_35 = arith.constant 0 : index
    %59 = vector.load %arg13[%c160, %c0_35] : memref<240x128xbf16, #tpu.memory_space<vmem>>, vector<16x128xbf16>
    tpu.vector_store %arg13[%c160, %c0_35], %58 {strides = array<i32>} : memref<240x128xbf16, #tpu.memory_space<vmem>>, vector<16x128xbf16>,
    %60 = vector.extract_strided_slice %13 {offsets = [208, 0], sizes = [16, 128], strides = [1, 1]} : vector<256x128xf32> to vector<16x128xf32>
    %61 = arith.truncf %60 : vector<16x128xf32> to vector<16x128xbf16>
    %c160_36 = arith.constant 160 : index
    %c0_37 = arith.constant 0 : index
    %62 = vector.load %arg14[%c160_36, %c0_37] : memref<224x128xbf16, #tpu.memory_space<vmem>>, vector<16x128xbf16>
    tpu.vector_store %arg14[%c160_36, %c0_37], %61 {strides = array<i32>} : memref<224x128xbf16, #tpu.memory_space<vmem>>, vector<16x128xbf16>,
    %63 = vector.extract_strided_slice %13 {offsets = [224, 0], sizes = [16, 128], strides = [1, 1]} : vector<256x128xf32> to vector<16x128xf32>
    %64 = arith.truncf %63 : vector<16x128xf32> to vector<16x128xbf16>
    %c176 = arith.constant 176 : index
    %c0_38 = arith.constant 0 : index
    %65 = vector.load %arg13[%c176, %c0_38] : memref<240x128xbf16, #tpu.memory_space<vmem>>, vector<16x128xbf16>
    tpu.vector_store %arg13[%c176, %c0_38], %64 {strides = array<i32>} : memref<240x128xbf16, #tpu.memory_space<vmem>>, vector<16x128xbf16>,
    %66 = vector.extract_strided_slice %13 {offsets = [240, 0], sizes = [16, 128], strides = [1, 1]} : vector<256x128xf32> to vector<16x128xf32>
    %67 = arith.truncf %66 : vector<16x128xf32> to vector<16x128xbf16>
    %c176_39 = arith.constant 176 : index
    %c0_40 = arith.constant 0 : index
    %68 = vector.load %arg14[%c176_39, %c0_40] : memref<224x128xbf16, #tpu.memory_space<vmem>>, vector<16x128xbf16>
    tpu.vector_store %arg14[%c176_39, %c0_40], %67 {strides = array<i32>} : memref<224x128xbf16, #tpu.memory_space<vmem>>, vector<16x128xbf16>,
    %c16 = arith.constant 16 : index
    %c0_41 = arith.constant 0 : index
    %69 = vector.load %arg13[%c16, %c0_41] : memref<240x128xbf16, #tpu.memory_space<vmem>>, vector<128x128xbf16>
    %c16_42 = arith.constant 16 : index
    %c0_43 = arith.constant 0 : index
    %70 = vector.load %arg14[%c16_42, %c0_43] : memref<224x128xbf16, #tpu.memory_space<vmem>>, vector<128x128xbf16>
    %c16_44 = arith.constant 16 : index
    %c0_45 = arith.constant 0 : index
    %71 = vector.load %arg14[%c16_44, %c0_45] : memref<224x128xbf16, #tpu.memory_space<vmem>>, vector<128x128xbf16>
    %c32 = arith.constant 32 : index
    %c0_46 = arith.constant 0 : index
    %72 = vector.load %arg13[%c32, %c0_46] : memref<240x128xbf16, #tpu.memory_space<vmem>>, vector<128x128xbf16>
    %c32_47 = arith.constant 32 : index
    %c0_48 = arith.constant 0 : index
    %73 = vector.load %arg13[%c32_47, %c0_48] : memref<240x128xbf16, #tpu.memory_space<vmem>>, vector<128x128xbf16>
    %c32_49 = arith.constant 32 : index
    %c0_50 = arith.constant 0 : index
    %74 = vector.load %arg14[%c32_49, %c0_50] : memref<224x128xbf16, #tpu.memory_space<vmem>>, vector<128x128xbf16>
    %c32_51 = arith.constant 32 : index
    %c0_52 = arith.constant 0 : index
    %75 = vector.load %arg14[%c32_51, %c0_52] : memref<224x128xbf16, #tpu.memory_space<vmem>>, vector<128x128xbf16>
    %c48 = arith.constant 48 : index
    %c0_53 = arith.constant 0 : index
    %76 = vector.load %arg13[%c48, %c0_53] : memref<240x128xbf16, #tpu.memory_space<vmem>>, vector<128x128xbf16>
    %c48_54 = arith.constant 48 : index
    %c0_55 = arith.constant 0 : index
    %77 = vector.load %arg13[%c48_54, %c0_55] : memref<240x128xbf16, #tpu.memory_space<vmem>>, vector<128x128xbf16>
    %c48_56 = arith.constant 48 : index
    %c0_57 = arith.constant 0 : index
    %78 = vector.load %arg14[%c48_56, %c0_57] : memref<224x128xbf16, #tpu.memory_space<vmem>>, vector<128x128xbf16>
    %c48_58 = arith.constant 48 : index
    %c0_59 = arith.constant 0 : index
    %79 = vector.load %arg14[%c48_58, %c0_59] : memref<224x128xbf16, #tpu.memory_space<vmem>>, vector<128x128xbf16>
    %c64_60 = arith.constant 64 : index
    %c0_61 = arith.constant 0 : index
    %80 = vector.load %arg13[%c64_60, %c0_61] : memref<240x128xbf16, #tpu.memory_space<vmem>>, vector<128x128xbf16>
    %c64_62 = arith.constant 64 : index
    %c0_63 = arith.constant 0 : index
    %81 = vector.load %arg13[%c64_62, %c0_63] : memref<240x128xbf16, #tpu.memory_space<vmem>>, vector<128x128xbf16>
    %c64_64 = arith.constant 64 : index
    %c0_65 = arith.constant 0 : index
    %82 = vector.load %arg14[%c64_64, %c0_65] : memref<224x128xbf16, #tpu.memory_space<vmem>>, vector<128x128xbf16>
    %c64_66 = arith.constant 64 : index
    %c0_67 = arith.constant 0 : index
    %83 = vector.load %arg14[%c64_66, %c0_67] : memref<224x128xbf16, #tpu.memory_space<vmem>>, vector<128x128xbf16>
    %c80_68 = arith.constant 80 : index
    %c0_69 = arith.constant 0 : index
    %84 = vector.load %arg13[%c80_68, %c0_69] : memref<240x128xbf16, #tpu.memory_space<vmem>>, vector<128x128xbf16>
    %c80_70 = arith.constant 80 : index
    %c0_71 = arith.constant 0 : index
    %85 = vector.load %arg13[%c80_70, %c0_71] : memref<240x128xbf16, #tpu.memory_space<vmem>>, vector<128x128xbf16>
    %c80_72 = arith.constant 80 : index
    %c0_73 = arith.constant 0 : index
    %86 = vector.load %arg14[%c80_72, %c0_73] : memref<224x128xbf16, #tpu.memory_space<vmem>>, vector<128x128xbf16>
    %c80_74 = arith.constant 80 : index
    %c0_75 = arith.constant 0 : index
    %87 = vector.load %arg14[%c80_74, %c0_75] : memref<224x128xbf16, #tpu.memory_space<vmem>>, vector<128x128xbf16>
    %c96_76 = arith.constant 96 : index
    %c0_77 = arith.constant 0 : index
    %88 = vector.load %arg13[%c96_76, %c0_77] : memref<240x128xbf16, #tpu.memory_space<vmem>>, vector<128x128xbf16>
    %c96_78 = arith.constant 96 : index
    %c0_79 = arith.constant 0 : index
    %89 = vector.load %arg13[%c96_78, %c0_79] : memref<240x128xbf16, #tpu.memory_space<vmem>>, vector<128x128xbf16>
    %c96_80 = arith.constant 96 : index
    %c0_81 = arith.constant 0 : index
    %90 = vector.load %arg14[%c96_80, %c0_81] : memref<224x128xbf16, #tpu.memory_space<vmem>>, vector<128x128xbf16>
    %c96_82 = arith.constant 96 : index
    %c0_83 = arith.constant 0 : index
    %91 = vector.load %arg14[%c96_82, %c0_83] : memref<224x128xbf16, #tpu.memory_space<vmem>>, vector<128x128xbf16>
    %c112_84 = arith.constant 112 : index
    %c0_85 = arith.constant 0 : index
    %92 = vector.load %arg13[%c112_84, %c0_85] : memref<240x128xbf16, #tpu.memory_space<vmem>>, vector<128x128xbf16>
    %93 = tpu.concatenate %69, %71, %73, %75, %77, %79, %81, %83, %85, %87, %89, %91 in 1 : vector<128x128xbf16>, vector<128x128xbf16>, vector<128x128xbf16>, vector<128x128xbf16>, vector<128x128xbf16>, vector<128x128xbf16>, vector<128x128xbf16>, vector<128x128xbf16>, vector<128x128xbf16>, vector<128x128xbf16>, vector<128x128xbf16>, vector<128x128xbf16> -> vector<128x1536xbf16>
    %94 = tpu.concatenate %70, %72, %74, %76, %78, %80, %82, %84, %86, %88, %90, %92 in 1 : vector<128x128xbf16>, vector<128x128xbf16>, vector<128x128xbf16>, vector<128x128xbf16>, vector<128x128xbf16>, vector<128x128xbf16>, vector<128x128xbf16>, vector<128x128xbf16>, vector<128x128xbf16>, vector<128x128xbf16>, vector<128x128xbf16>, vector<128x128xbf16> -> vector<128x1536xbf16>
    %95 = tpu.concatenate %93, %94 in 0 : vector<128x1536xbf16>, vector<128x1536xbf16> -> vector<256x1536xbf16>
    %c0_86 = arith.constant 0 : index
    %c0_87 = arith.constant 0 : index
    %96 = vector.load %arg4[%c0_86, %c0_87] : memref<1536x128xbf16, #tpu.memory_space<vmem>>, vector<1536x128xbf16>
    %cst_88 = arith.constant dense<0.000000e+00> : vector<256x128xf32>
    %97 = tpu.matmul %95, %96, %cst_88 {dimension_numbers = #tpu.dot_dimension_numbers<[1], [0], [0], [1], [0, 0, 1, 1], [], []>} : vector<256x1536xbf16>, vector<1536x128xbf16>, vector<256x128xf32> -> vector<256x128xf32>
    %c1 = arith.constant 1 : index
    %c0_89 = arith.constant 0 : index
    %98 = vector.load %arg6[%c1, %c0_89] : memref<6x128xf32, #tpu.memory_space<vmem>>, vector<1x128xf32>
    %c4 = arith.constant 4 : index
    %c0_90 = arith.constant 0 : index
    %99 = vector.load %arg6[%c4, %c0_90] : memref<6x128xf32, #tpu.memory_space<vmem>>, vector<1x128xf32>
    %100 = vector.broadcast %98 : vector<1x128xf32> to vector<256x128xf32>
    %101 = arith.mulf %97, %100 : vector<256x128xf32>
    %102 = vector.broadcast %99 : vector<1x128xf32> to vector<256x128xf32>
    %103 = arith.addf %101, %102 : vector<256x128xf32>
    %104 = vector.extract_strided_slice %103 {offsets = [0, 0], sizes = [128, 128], strides = [1, 1]} : vector<256x128xf32> to vector<128x128xf32>
    %105 = vector.extract_strided_slice %103 {offsets = [128, 0], sizes = [128, 128], strides = [1, 1]} : vector<256x128xf32> to vector<128x128xf32>
    %106 = arith.maximumf %104, %105 : vector<128x128xf32>
    %cst_91 = arith.constant 0.000000e+00 : f32
    %107 = vector.broadcast %cst_91 : f32 to vector<128x128xf32>
    %108 = arith.maximumf %106, %107 : vector<128x128xf32>
    %cst_92 = arith.constant 0.000000e+00 : bf16
    %109 = vector.broadcast %cst_92 : bf16 to vector<64x128xbf16>
    %c0_93 = arith.constant 0 : index
    %c0_94 = arith.constant 0 : index
    %110 = vector.load %arg15[%c0_93, %c0_94] : memref<176x128xbf16, #tpu.memory_space<vmem>>, vector<64x128xbf16>
    tpu.vector_store %arg15[%c0_93, %c0_94], %109 {strides = array<i32>} : memref<176x128xbf16, #tpu.memory_space<vmem>>, vector<64x128xbf16>,
    %c0_95 = arith.constant 0 : index
    %c0_96 = arith.constant 0 : index
    %111 = vector.load %arg16[%c0_95, %c0_96] : memref<160x128xbf16, #tpu.memory_space<vmem>>, vector<64x128xbf16>
    tpu.vector_store %arg16[%c0_95, %c0_96], %109 {strides = array<i32>} : memref<160x128xbf16, #tpu.memory_space<vmem>>, vector<64x128xbf16>,
    %cst_97 = arith.constant 0.000000e+00 : bf16
    %112 = vector.broadcast %cst_97 : bf16 to vector<48x128xbf16>
    %c128_98 = arith.constant 128 : index
    %c0_99 = arith.constant 0 : index
    %113 = vector.load %arg15[%c128_98, %c0_99] : memref<176x128xbf16, #tpu.memory_space<vmem>>, vector<48x128xbf16>
    tpu.vector_store %arg15[%c128_98, %c0_99], %112 {strides = array<i32>} : memref<176x128xbf16, #tpu.memory_space<vmem>>, vector<48x128xbf16>,
    %cst_100 = arith.constant 0.000000e+00 : bf16
    %114 = vector.broadcast %cst_100 : bf16 to vector<32x128xbf16>
    %c128_101 = arith.constant 128 : index
    %c0_102 = arith.constant 0 : index
    %115 = vector.load %arg16[%c128_101, %c0_102] : memref<160x128xbf16, #tpu.memory_space<vmem>>, vector<32x128xbf16>
    tpu.vector_store %arg16[%c128_101, %c0_102], %114 {strides = array<i32>} : memref<160x128xbf16, #tpu.memory_space<vmem>>, vector<32x128xbf16>,
    %116 = vector.extract_strided_slice %108 {offsets = [0, 0], sizes = [16, 128], strides = [1, 1]} : vector<128x128xf32> to vector<16x128xf32>
    %117 = arith.truncf %116 : vector<16x128xf32> to vector<16x128xbf16>
    %c64_103 = arith.constant 64 : index
    %c0_104 = arith.constant 0 : index
    %118 = vector.load %arg15[%c64_103, %c0_104] : memref<176x128xbf16, #tpu.memory_space<vmem>>, vector<16x128xbf16>
    tpu.vector_store %arg15[%c64_103, %c0_104], %117 {strides = array<i32>} : memref<176x128xbf16, #tpu.memory_space<vmem>>, vector<16x128xbf16>,
    %119 = vector.extract_strided_slice %108 {offsets = [16, 0], sizes = [16, 128], strides = [1, 1]} : vector<128x128xf32> to vector<16x128xf32>
    %120 = arith.truncf %119 : vector<16x128xf32> to vector<16x128xbf16>
    %c64_105 = arith.constant 64 : index
    %c0_106 = arith.constant 0 : index
    %121 = vector.load %arg16[%c64_105, %c0_106] : memref<160x128xbf16, #tpu.memory_space<vmem>>, vector<16x128xbf16>
    tpu.vector_store %arg16[%c64_105, %c0_106], %120 {strides = array<i32>} : memref<160x128xbf16, #tpu.memory_space<vmem>>, vector<16x128xbf16>,
    %122 = vector.extract_strided_slice %108 {offsets = [32, 0], sizes = [16, 128], strides = [1, 1]} : vector<128x128xf32> to vector<16x128xf32>
    %123 = arith.truncf %122 : vector<16x128xf32> to vector<16x128xbf16>
    %c80_107 = arith.constant 80 : index
    %c0_108 = arith.constant 0 : index
    %124 = vector.load %arg15[%c80_107, %c0_108] : memref<176x128xbf16, #tpu.memory_space<vmem>>, vector<16x128xbf16>
    tpu.vector_store %arg15[%c80_107, %c0_108], %123 {strides = array<i32>} : memref<176x128xbf16, #tpu.memory_space<vmem>>, vector<16x128xbf16>,
    %125 = vector.extract_strided_slice %108 {offsets = [48, 0], sizes = [16, 128], strides = [1, 1]} : vector<128x128xf32> to vector<16x128xf32>
    %126 = arith.truncf %125 : vector<16x128xf32> to vector<16x128xbf16>
    %c80_109 = arith.constant 80 : index
    %c0_110 = arith.constant 0 : index
    %127 = vector.load %arg16[%c80_109, %c0_110] : memref<160x128xbf16, #tpu.memory_space<vmem>>, vector<16x128xbf16>
    tpu.vector_store %arg16[%c80_109, %c0_110], %126 {strides = array<i32>} : memref<160x128xbf16, #tpu.memory_space<vmem>>, vector<16x128xbf16>,
    %128 = vector.extract_strided_slice %108 {offsets = [64, 0], sizes = [16, 128], strides = [1, 1]} : vector<128x128xf32> to vector<16x128xf32>
    %129 = arith.truncf %128 : vector<16x128xf32> to vector<16x128xbf16>
    %c96_111 = arith.constant 96 : index
    %c0_112 = arith.constant 0 : index
    %130 = vector.load %arg15[%c96_111, %c0_112] : memref<176x128xbf16, #tpu.memory_space<vmem>>, vector<16x128xbf16>
    tpu.vector_store %arg15[%c96_111, %c0_112], %129 {strides = array<i32>} : memref<176x128xbf16, #tpu.memory_space<vmem>>, vector<16x128xbf16>,
    %131 = vector.extract_strided_slice %108 {offsets = [80, 0], sizes = [16, 128], strides = [1, 1]} : vector<128x128xf32> to vector<16x128xf32>
    %132 = arith.truncf %131 : vector<16x128xf32> to vector<16x128xbf16>
    %c96_113 = arith.constant 96 : index
    %c0_114 = arith.constant 0 : index
    %133 = vector.load %arg16[%c96_113, %c0_114] : memref<160x128xbf16, #tpu.memory_space<vmem>>, vector<16x128xbf16>
    tpu.vector_store %arg16[%c96_113, %c0_114], %132 {strides = array<i32>} : memref<160x128xbf16, #tpu.memory_space<vmem>>, vector<16x128xbf16>,
    %134 = vector.extract_strided_slice %108 {offsets = [96, 0], sizes = [16, 128], strides = [1, 1]} : vector<128x128xf32> to vector<16x128xf32>
    %135 = arith.truncf %134 : vector<16x128xf32> to vector<16x128xbf16>
    %c112_115 = arith.constant 112 : index
    %c0_116 = arith.constant 0 : index
    %136 = vector.load %arg15[%c112_115, %c0_116] : memref<176x128xbf16, #tpu.memory_space<vmem>>, vector<16x128xbf16>
    tpu.vector_store %arg15[%c112_115, %c0_116], %135 {strides = array<i32>} : memref<176x128xbf16, #tpu.memory_space<vmem>>, vector<16x128xbf16>,
    %137 = vector.extract_strided_slice %108 {offsets = [112, 0], sizes = [16, 128], strides = [1, 1]} : vector<128x128xf32> to vector<16x128xf32>
    %138 = arith.truncf %137 : vector<16x128xf32> to vector<16x128xbf16>
    %c112_117 = arith.constant 112 : index
    %c0_118 = arith.constant 0 : index
    %139 = vector.load %arg16[%c112_117, %c0_118] : memref<160x128xbf16, #tpu.memory_space<vmem>>, vector<16x128xbf16>
    tpu.vector_store %arg16[%c112_117, %c0_118], %138 {strides = array<i32>} : memref<160x128xbf16, #tpu.memory_space<vmem>>, vector<16x128xbf16>,
    %c16_119 = arith.constant 16 : index
    %c0_120 = arith.constant 0 : index
    %140 = vector.load %arg15[%c16_119, %c0_120] : memref<176x128xbf16, #tpu.memory_space<vmem>>, vector<64x128xbf16>
    %c16_121 = arith.constant 16 : index
    %c0_122 = arith.constant 0 : index
    %141 = vector.load %arg16[%c16_121, %c0_122] : memref<160x128xbf16, #tpu.memory_space<vmem>>, vector<64x128xbf16>
    %c16_123 = arith.constant 16 : index
    %c0_124 = arith.constant 0 : index
    %142 = vector.load %arg16[%c16_123, %c0_124] : memref<160x128xbf16, #tpu.memory_space<vmem>>, vector<64x128xbf16>
    %c32_125 = arith.constant 32 : index
    %c0_126 = arith.constant 0 : index
    %143 = vector.load %arg15[%c32_125, %c0_126] : memref<176x128xbf16, #tpu.memory_space<vmem>>, vector<64x128xbf16>
    %c32_127 = arith.constant 32 : index
    %c0_128 = arith.constant 0 : index
    %144 = vector.load %arg15[%c32_127, %c0_128] : memref<176x128xbf16, #tpu.memory_space<vmem>>, vector<64x128xbf16>
    %c32_129 = arith.constant 32 : index
    %c0_130 = arith.constant 0 : index
    %145 = vector.load %arg16[%c32_129, %c0_130] : memref<160x128xbf16, #tpu.memory_space<vmem>>, vector<64x128xbf16>
    %c32_131 = arith.constant 32 : index
    %c0_132 = arith.constant 0 : index
    %146 = vector.load %arg16[%c32_131, %c0_132] : memref<160x128xbf16, #tpu.memory_space<vmem>>, vector<64x128xbf16>
    %c48_133 = arith.constant 48 : index
    %c0_134 = arith.constant 0 : index
    %147 = vector.load %arg15[%c48_133, %c0_134] : memref<176x128xbf16, #tpu.memory_space<vmem>>, vector<64x128xbf16>
    %c48_135 = arith.constant 48 : index
    %c0_136 = arith.constant 0 : index
    %148 = vector.load %arg15[%c48_135, %c0_136] : memref<176x128xbf16, #tpu.memory_space<vmem>>, vector<64x128xbf16>
    %c48_137 = arith.constant 48 : index
    %c0_138 = arith.constant 0 : index
    %149 = vector.load %arg16[%c48_137, %c0_138] : memref<160x128xbf16, #tpu.memory_space<vmem>>, vector<64x128xbf16>
    %c48_139 = arith.constant 48 : index
    %c0_140 = arith.constant 0 : index
    %150 = vector.load %arg16[%c48_139, %c0_140] : memref<160x128xbf16, #tpu.memory_space<vmem>>, vector<64x128xbf16>
    %c64_141 = arith.constant 64 : index
    %c0_142 = arith.constant 0 : index
    %151 = vector.load %arg15[%c64_141, %c0_142] : memref<176x128xbf16, #tpu.memory_space<vmem>>, vector<64x128xbf16>
    %c64_143 = arith.constant 64 : index
    %c0_144 = arith.constant 0 : index
    %152 = vector.load %arg15[%c64_143, %c0_144] : memref<176x128xbf16, #tpu.memory_space<vmem>>, vector<64x128xbf16>
    %c64_145 = arith.constant 64 : index
    %c0_146 = arith.constant 0 : index
    %153 = vector.load %arg16[%c64_145, %c0_146] : memref<160x128xbf16, #tpu.memory_space<vmem>>, vector<64x128xbf16>
    %c64_147 = arith.constant 64 : index
    %c0_148 = arith.constant 0 : index
    %154 = vector.load %arg16[%c64_147, %c0_148] : memref<160x128xbf16, #tpu.memory_space<vmem>>, vector<64x128xbf16>
    %c80_149 = arith.constant 80 : index
    %c0_150 = arith.constant 0 : index
    %155 = vector.load %arg15[%c80_149, %c0_150] : memref<176x128xbf16, #tpu.memory_space<vmem>>, vector<64x128xbf16>
    %c80_151 = arith.constant 80 : index
    %c0_152 = arith.constant 0 : index
    %156 = vector.load %arg15[%c80_151, %c0_152] : memref<176x128xbf16, #tpu.memory_space<vmem>>, vector<64x128xbf16>
    %c80_153 = arith.constant 80 : index
    %c0_154 = arith.constant 0 : index
    %157 = vector.load %arg16[%c80_153, %c0_154] : memref<160x128xbf16, #tpu.memory_space<vmem>>, vector<64x128xbf16>
    %c80_155 = arith.constant 80 : index
    %c0_156 = arith.constant 0 : index
    %158 = vector.load %arg16[%c80_155, %c0_156] : memref<160x128xbf16, #tpu.memory_space<vmem>>, vector<64x128xbf16>
    %c96_157 = arith.constant 96 : index
    %c0_158 = arith.constant 0 : index
    %159 = vector.load %arg15[%c96_157, %c0_158] : memref<176x128xbf16, #tpu.memory_space<vmem>>, vector<64x128xbf16>
    %c96_159 = arith.constant 96 : index
    %c0_160 = arith.constant 0 : index
    %160 = vector.load %arg15[%c96_159, %c0_160] : memref<176x128xbf16, #tpu.memory_space<vmem>>, vector<64x128xbf16>
    %c96_161 = arith.constant 96 : index
    %c0_162 = arith.constant 0 : index
    %161 = vector.load %arg16[%c96_161, %c0_162] : memref<160x128xbf16, #tpu.memory_space<vmem>>, vector<64x128xbf16>
    %c96_163 = arith.constant 96 : index
    %c0_164 = arith.constant 0 : index
    %162 = vector.load %arg16[%c96_163, %c0_164] : memref<160x128xbf16, #tpu.memory_space<vmem>>, vector<64x128xbf16>
    %c112_165 = arith.constant 112 : index
    %c0_166 = arith.constant 0 : index
    %163 = vector.load %arg15[%c112_165, %c0_166] : memref<176x128xbf16, #tpu.memory_space<vmem>>, vector<64x128xbf16>
    %164 = tpu.concatenate %140, %142, %144, %146, %148, %150, %152, %154, %156, %158, %160, %162 in 1 : vector<64x128xbf16>, vector<64x128xbf16>, vector<64x128xbf16>, vector<64x128xbf16>, vector<64x128xbf16>, vector<64x128xbf16>, vector<64x128xbf16>, vector<64x128xbf16>, vector<64x128xbf16>, vector<64x128xbf16>, vector<64x128xbf16>, vector<64x128xbf16> -> vector<64x1536xbf16>
    %165 = tpu.concatenate %141, %143, %145, %147, %149, %151, %153, %155, %157, %159, %161, %163 in 1 : vector<64x128xbf16>, vector<64x128xbf16>, vector<64x128xbf16>, vector<64x128xbf16>, vector<64x128xbf16>, vector<64x128xbf16>, vector<64x128xbf16>, vector<64x128xbf16>, vector<64x128xbf16>, vector<64x128xbf16>, vector<64x128xbf16>, vector<64x128xbf16> -> vector<64x1536xbf16>
    %166 = tpu.concatenate %164, %165 in 0 : vector<64x1536xbf16>, vector<64x1536xbf16> -> vector<128x1536xbf16>
    %c0_167 = arith.constant 0 : index
    %c0_168 = arith.constant 0 : index
    %167 = vector.load %arg5[%c0_167, %c0_168] : memref<1536x128xbf16, #tpu.memory_space<vmem>>, vector<1536x128xbf16>
    %cst_169 = arith.constant dense<0.000000e+00> : vector<128x128xf32>
    %168 = tpu.matmul %166, %167, %cst_169 {dimension_numbers = #tpu.dot_dimension_numbers<[1], [0], [0], [1], [0, 0, 1, 1], [], []>} : vector<128x1536xbf16>, vector<1536x128xbf16>, vector<128x128xf32> -> vector<128x128xf32>
    %c2 = arith.constant 2 : index
    %c0_170 = arith.constant 0 : index
    %169 = vector.load %arg6[%c2, %c0_170] : memref<6x128xf32, #tpu.memory_space<vmem>>, vector<1x128xf32>
    %c5 = arith.constant 5 : index
    %c0_171 = arith.constant 0 : index
    %170 = vector.load %arg6[%c5, %c0_171] : memref<6x128xf32, #tpu.memory_space<vmem>>, vector<1x128xf32>
    %171 = vector.broadcast %169 : vector<1x128xf32> to vector<128x128xf32>
    %172 = arith.mulf %168, %171 : vector<128x128xf32>
    %173 = vector.broadcast %170 : vector<1x128xf32> to vector<128x128xf32>
    %174 = arith.addf %172, %173 : vector<128x128xf32>
    %175 = vector.extract_strided_slice %174 {offsets = [0, 0], sizes = [64, 128], strides = [1, 1]} : vector<128x128xf32> to vector<64x128xf32>
    %176 = vector.extract_strided_slice %174 {offsets = [64, 0], sizes = [64, 128], strides = [1, 1]} : vector<128x128xf32> to vector<64x128xf32>
    %177 = arith.maximumf %175, %176 : vector<64x128xf32>
    %cst_172 = arith.constant 0.000000e+00 : f32
    %178 = vector.broadcast %cst_172 : f32 to vector<64x128xf32>
    %179 = arith.maximumf %177, %178 : vector<64x128xf32>
    %180 = vector.extract_strided_slice %179 {offsets = [0, 0], sizes = [16, 128], strides = [1, 1]} : vector<64x128xf32> to vector<16x128xf32>
    %181 = vector.extract_strided_slice %179 {offsets = [16, 0], sizes = [16, 128], strides = [1, 1]} : vector<64x128xf32> to vector<16x128xf32>
    %182 = vector.extract_strided_slice %179 {offsets = [32, 0], sizes = [16, 128], strides = [1, 1]} : vector<64x128xf32> to vector<16x128xf32>
    %183 = vector.extract_strided_slice %179 {offsets = [48, 0], sizes = [16, 128], strides = [1, 1]} : vector<64x128xf32> to vector<16x128xf32>
    %184 = tpu.concatenate %180, %181, %182, %183 in 1 : vector<16x128xf32>, vector<16x128xf32>, vector<16x128xf32>, vector<16x128xf32> -> vector<16x512xf32>
    %185 = arith.truncf %184 : vector<16x512xf32> to vector<16x512xbf16>
    %c0_173 = arith.constant 0 : index
    %c0_174 = arith.constant 0 : index
    %186 = vector.load %arg7[%c0_173, %c0_174] : memref<512x512xbf16, #tpu.memory_space<vmem>>, vector<512x512xbf16>
    %cst_175 = arith.constant dense<0.000000e+00> : vector<16x512xf32>
    %187 = tpu.matmul %185, %186, %cst_175 {dimension_numbers = #tpu.dot_dimension_numbers<[1], [0], [0], [1], [0, 0, 1, 1], [], []>} : vector<16x512xbf16>, vector<512x512xbf16>, vector<16x512xf32> -> vector<16x512xf32>
    %c0_176 = arith.constant 0 : index
    %c0_177 = arith.constant 0 : index
    %188 = vector.load %arg8[%c0_176, %c0_177] : memref<2x512xf32, #tpu.memory_space<vmem>>, vector<1x512xf32>
    %189 = vector.broadcast %188 : vector<1x512xf32> to vector<16x512xf32>
    %190 = arith.mulf %187, %189 : vector<16x512xf32>
    %c1_178 = arith.constant 1 : index
    %c0_179 = arith.constant 0 : index
    %191 = vector.load %arg8[%c1_178, %c0_179] : memref<2x512xf32, #tpu.memory_space<vmem>>, vector<1x512xf32>
    %192 = vector.broadcast %191 : vector<1x512xf32> to vector<16x512xf32>
    %193 = arith.addf %190, %192 : vector<16x512xf32>
    %cst_180 = arith.constant 0.000000e+00 : f32
    %194 = vector.broadcast %cst_180 : f32 to vector<16x512xf32>
    %195 = arith.maximumf %193, %194 : vector<16x512xf32>
    %c0_181 = arith.constant 0 : index
    %c0_182 = arith.constant 0 : index
    %196 = vector.load %arg2[%c0_181, %c0_182] : memref<16x4xf32, #tpu.memory_space<vmem>>, vector<16x4xf32>
    %c0_183 = arith.constant 0 : index
    %c0_184 = arith.constant 0 : index
    %197 = vector.load %arg9[%c0_183, %c0_184] : memref<2x4xf32, #tpu.memory_space<vmem>>, vector<1x4xf32>
    %198 = vector.broadcast %197 : vector<1x4xf32> to vector<16x4xf32>
    %199 = arith.mulf %196, %198 : vector<16x4xf32>
    %c1_185 = arith.constant 1 : index
    %c0_186 = arith.constant 0 : index
    %200 = vector.load %arg9[%c1_185, %c0_186] : memref<2x4xf32, #tpu.memory_space<vmem>>, vector<1x4xf32>
    %201 = vector.broadcast %200 : vector<1x4xf32> to vector<16x4xf32>
    %202 = arith.addf %199, %201 : vector<16x4xf32>
    %cst_187 = arith.constant 0.000000e+00 : f32
    %203 = vector.broadcast %cst_187 : f32 to vector<16x4xf32>
    %204 = arith.maximumf %202, %203 : vector<16x4xf32>
    %205 = arith.truncf %195 : vector<16x512xf32> to vector<16x512xbf16>
    %c0_188 = arith.constant 0 : index
    %c0_189 = arith.constant 0 : index
    %206 = vector.load %arg10[%c0_188, %c0_189] : memref<512x256xbf16, #tpu.memory_space<vmem>>, vector<512x256xbf16>
    %cst_190 = arith.constant dense<0.000000e+00> : vector<16x256xf32>
    %207 = tpu.matmul %205, %206, %cst_190 {dimension_numbers = #tpu.dot_dimension_numbers<[1], [0], [0], [1], [0, 0, 1, 1], [], []>} : vector<16x512xbf16>, vector<512x256xbf16>, vector<16x256xf32> -> vector<16x256xf32>
    %208 = vector.extract_strided_slice %204 {offsets = [0, 0], sizes = [16, 1], strides = [1, 1]} : vector<16x4xf32> to vector<16x1xf32>
    %c0_191 = arith.constant 0 : index
    %c0_192 = arith.constant 0 : index
    %209 = vector.load %arg11[%c0_191, %c0_192] : memref<5x256xf32, #tpu.memory_space<vmem>>, vector<1x256xf32>
    %210 = vector.broadcast %208 : vector<16x1xf32> to vector<16x256xf32>
    %211 = vector.broadcast %209 : vector<1x256xf32> to vector<16x256xf32>
    %212 = arith.mulf %210, %211 : vector<16x256xf32>
    %213 = arith.addf %207, %212 : vector<16x256xf32>
    %214 = vector.extract_strided_slice %204 {offsets = [0, 1], sizes = [16, 1], strides = [1, 1]} : vector<16x4xf32> to vector<16x1xf32>
    %c1_193 = arith.constant 1 : index
    %c0_194 = arith.constant 0 : index
    %215 = vector.load %arg11[%c1_193, %c0_194] : memref<5x256xf32, #tpu.memory_space<vmem>>, vector<1x256xf32>
    %216 = vector.broadcast %214 : vector<16x1xf32> to vector<16x256xf32>
    %217 = vector.broadcast %215 : vector<1x256xf32> to vector<16x256xf32>
    %218 = arith.mulf %216, %217 : vector<16x256xf32>
    %219 = arith.addf %213, %218 : vector<16x256xf32>
    %220 = vector.extract_strided_slice %204 {offsets = [0, 2], sizes = [16, 1], strides = [1, 1]} : vector<16x4xf32> to vector<16x1xf32>
    %c2_195 = arith.constant 2 : index
    %c0_196 = arith.constant 0 : index
    %221 = vector.load %arg11[%c2_195, %c0_196] : memref<5x256xf32, #tpu.memory_space<vmem>>, vector<1x256xf32>
    %222 = vector.broadcast %220 : vector<16x1xf32> to vector<16x256xf32>
    %223 = vector.broadcast %221 : vector<1x256xf32> to vector<16x256xf32>
    %224 = arith.mulf %222, %223 : vector<16x256xf32>
    %225 = arith.addf %219, %224 : vector<16x256xf32>
    %226 = vector.extract_strided_slice %204 {offsets = [0, 3], sizes = [16, 1], strides = [1, 1]} : vector<16x4xf32> to vector<16x1xf32>
    %c3_197 = arith.constant 3 : index
    %c0_198 = arith.constant 0 : index
    %227 = vector.load %arg11[%c3_197, %c0_198] : memref<5x256xf32, #tpu.memory_space<vmem>>, vector<1x256xf32>
    %228 = vector.broadcast %226 : vector<16x1xf32> to vector<16x256xf32>
    %229 = vector.broadcast %227 : vector<1x256xf32> to vector<16x256xf32>
    %230 = arith.mulf %228, %229 : vector<16x256xf32>
    %231 = arith.addf %225, %230 : vector<16x256xf32>
    %c4_199 = arith.constant 4 : index
    %c0_200 = arith.constant 0 : index
    %232 = vector.load %arg11[%c4_199, %c0_200] : memref<5x256xf32, #tpu.memory_space<vmem>>, vector<1x256xf32>
    %233 = vector.broadcast %232 : vector<1x256xf32> to vector<16x256xf32>
    %234 = arith.addf %231, %233 : vector<16x256xf32>
    %c0_201 = arith.constant 0 : index
    %c0_202 = arith.constant 0 : index
    %235 = vector.load %arg12[%c0_201, %c0_202] : memref<16x256xf32, #tpu.memory_space<vmem>>, vector<16x256xf32>
    tpu.vector_store %arg12[%c0_201, %c0_202], %234 {strides = array<i32>} : memref<16x256xf32, #tpu.memory_space<vmem>>, vector<16x256xf32>,
    return
  }
  func.func @transform_0(%arg0: i32) -> (i32, i32) {
    %c0_i32 = arith.constant 0 : i32
    %c0_i32_0 = arith.constant 0 : i32
    return %arg0, %c0_i32 : i32, i32
  }
  func.func @transform_1(%arg0: i32) -> (i32, i32) {
    %c0_i32 = arith.constant 0 : i32
    %c0_i32_0 = arith.constant 0 : i32
    return %arg0, %c0_i32 : i32, i32
  }
  func.func @transform_2(%arg0: i32) -> (i32, i32) {
    %c0_i32 = arith.constant 0 : i32
    %c0_i32_0 = arith.constant 0 : i32
    %c0_i32_1 = arith.constant 0 : i32
    return %c0_i32, %c0_i32_0 : i32, i32
  }
  func.func @transform_3(%arg0: i32) -> (i32, i32) {
    %c0_i32 = arith.constant 0 : i32
    %c0_i32_0 = arith.constant 0 : i32
    %c0_i32_1 = arith.constant 0 : i32
    return %c0_i32, %c0_i32_0 : i32, i32
  }
  func.func @transform_4(%arg0: i32) -> (i32, i32) {
    %c0_i32 = arith.constant 0 : i32
    %c0_i32_0 = arith.constant 0 : i32
    %c0_i32_1 = arith.constant 0 : i32
    return %c0_i32, %c0_i32_0 : i32, i32
  }
  func.func @transform_5(%arg0: i32) -> (i32, i32) {
    %c0_i32 = arith.constant 0 : i32
    %c0_i32_0 = arith.constant 0 : i32
    %c0_i32_1 = arith.constant 0 : i32
    return %c0_i32, %c0_i32_0 : i32, i32
  }
  func.func @transform_6(%arg0: i32) -> (i32, i32) {
    %c0_i32 = arith.constant 0 : i32
    %c0_i32_0 = arith.constant 0 : i32
    %c0_i32_1 = arith.constant 0 : i32
    return %c0_i32, %c0_i32_0 : i32, i32
  }
  func.func @transform_7(%arg0: i32) -> (i32, i32) {
    %c0_i32 = arith.constant 0 : i32
    %c0_i32_0 = arith.constant 0 : i32
    %c0_i32_1 = arith.constant 0 : i32
    return %c0_i32, %c0_i32_0 : i32, i32
  }
  func.func @transform_8(%arg0: i32) -> (i32, i32) {
    %c0_i32 = arith.constant 0 : i32
    %c0_i32_0 = arith.constant 0 : i32
    %c0_i32_1 = arith.constant 0 : i32
    return %c0_i32, %c0_i32_0 : i32, i32
  }
  func.func @transform_9(%arg0: i32) -> (i32, i32) {
    %c0_i32 = arith.constant 0 : i32
    %c0_i32_0 = arith.constant 0 : i32
    %c0_i32_1 = arith.constant 0 : i32
    return %c0_i32, %c0_i32_0 : i32, i32
  }
  func.func @transform_10(%arg0: i32) -> (i32, i32) {
    %c0_i32 = arith.constant 0 : i32
    %c0_i32_0 = arith.constant 0 : i32
    %c0_i32_1 = arith.constant 0 : i32
    return %c0_i32, %c0_i32_0 : i32, i32
  }
  func.func @transform_11(%arg0: i32) -> (i32, i32) {
    %c0_i32 = arith.constant 0 : i32
    %c0_i32_0 = arith.constant 0 : i32
    return %arg0, %c0_i32 : i32, i32
  }
}

</mosaic_0001>

<llo_original>
// kernel: _lambda_.1
$region0: #{_lambda_.1}
  #allocation0 [shape = 'u32[]', space=smem, size = 0x4, offset = 0x4, fixed_abs, tag = 'smem constant byte address 0x4 - core index']
  #allocation1 [shape = 'u32[72,128]{1,0:T(1,128)}', space=vmem, size = 0x9000, scoped, tag = 'internal scratch']
  #allocation2 [shape = 'bf16[240,128]{1,0:T(8,128)(2,1)}', space=vmem, size = 0xf000, scoped, tag = 'scratch operand']
  #allocation3 [shape = 'bf16[224,128]{1,0:T(8,128)(2,1)}', space=vmem, size = 0xe000, scoped, tag = 'scratch operand']
  #allocation4 [shape = 'bf16[176,128]{1,0:T(8,128)(2,1)}', space=vmem, size = 0xb000, scoped, tag = 'scratch operand']
  #allocation5 [shape = 'bf16[160,128]{1,0:T(8,128)(2,1)}', space=vmem, size = 0xa000, scoped, tag = 'scratch operand']
  %s0 = inlined_call_operand.vmem [shape: bf16[1024,168], index: 0, kind: input, shape index: {}]
  %s1 = inlined_call_operand.vmem [shape: f32[32,4], index: 1, kind: input, shape index: {}]
  %s2 = inlined_call_operand.vmem [shape: bf16[168,128], index: 2, kind: input, shape index: {}]
  %s3 = inlined_call_operand.vmem [shape: bf16[1536,128], index: 3, kind: input, shape index: {}]
  %s4 = inlined_call_operand.vmem [shape: bf16[1536,128], index: 4, kind: input, shape index: {}]
  %s5 = inlined_call_operand.vmem [shape: f32[6,128], index: 5, kind: input, shape index: {}]
  %s6 = inlined_call_operand.vmem [shape: bf16[512,512], index: 6, kind: input, shape index: {}]
  %s7 = inlined_call_operand.vmem [shape: f32[2,512], index: 7, kind: input, shape index: {}]
  %s8 = inlined_call_operand.vmem [shape: f32[2,4], index: 8, kind: input, shape index: {}]
  %s9 = inlined_call_operand.vmem [shape: bf16[512,256], index: 9, kind: input, shape index: {}]
  %s10 = inlined_call_operand.vmem [shape: f32[5,256], index: 10, kind: input, shape index: {}]
  %s11 = inlined_call_operand.vmem [shape: f32[32,256], index: 11, kind: output, shape index: {}]
  %s12 = sld [smem:[#allocation0]]
  $region77: #{_lambda_.1} parent=0
    _
  %s14 = ssub.s32 1, %s12
  %s15 = scalar_select 0, %s14, %s12
  loop: start=0, step=1, limit=4
  $region2: #{_lambda_.1} parent=0 // loop_pre_header
    _
  $region3: #{_lambda_.1} parent=0 // loop_header
    %s17 = sphi 0, %s21
    %p18 = scmp.ge.s32.totalorder %s17, 4
    %s27 = sphi 0, %s29
    %s30 = sphi 0, %s27
    %s31 = sphi 0, %s30
    %s47 = sphi 0, %s31
    %s53 = sphi 0, %s55
    %s56 = sphi 0, %s53
    %s57 = sphi 0, %s56
    %s73 = sphi 0, %s57
    %s77 = sphi 0, %s77
    %s79 = sphi 0, %s77
    %s80 = sphi 0, %s79
    %s94 = sphi 0, %s80
    %s98 = sphi 0, %s98
    %s100 = sphi 0, %s98
    %s101 = sphi 0, %s100
    %s115 = sphi 0, %s101
    %s119 = sphi 0, %s119
    %s121 = sphi 0, %s119
    %s122 = sphi 0, %s121
    %s136 = sphi 0, %s122
    %s140 = sphi 0, %s140
    %s142 = sphi 0, %s140
    %s143 = sphi 0, %s142
    %s157 = sphi 0, %s143
    %s161 = sphi 0, %s161
    %s163 = sphi 0, %s161
    %s164 = sphi 0, %s163
    %s178 = sphi 0, %s164
    %s182 = sphi 0, %s182
    %s184 = sphi 0, %s182
    %s185 = sphi 0, %s184
    %s199 = sphi 0, %s185
    %s203 = sphi 0, %s203
    %s205 = sphi 0, %s203
    %s206 = sphi 0, %s205
    %s220 = sphi 0, %s206
    %s224 = sphi 0, %s224
    %s226 = sphi 0, %s224
    %s227 = sphi 0, %s226
    %s241 = sphi 0, %s227
    %s245 = sphi 0, %s245
    %s247 = sphi 0, %s245
    %s248 = sphi 0, %s247
    %s262 = sphi 0, %s248
    %s268 = sphi 0, %s270
    %s271 = sphi 0, %s268
    %s272 = sphi 0, %s271
    %s288 = sphi 0, %s272
  $region4: #{_lambda_.1} parent=0 // loop_header_branch
    %20 = sbr.rel (%p18) target = $region8
  $region5: #{_lambda_.1} parent=0 // loop_body
    %s22 = ssub.s32 %s17, 1
    %s23 = ssub.s32 %s17, 2
    %s24 = sadd.s32 %s17, 1
    %s25 = ssub.s32 %s17, %s24
    %p26 = scmp.eq.s32.totalorder %s25, 0
    %s28 = sadd.s32 %s27, 1
    %s29 = scalar_select %p26, %s27, %s28
    %p32 = pneg %p26
    %p33 = scmp.eq.s32.totalorder %s17, 1
    %p34 = por %p32, %p33
    %p35 = scmp.ne.s32.totalorder %s27, %s30
    %p36 = scmp.eq.s32.totalorder %s17, 0
    %p37 = por %p35, %p36
    %p38 = scmp.ne.s32.totalorder %s27, %s30
    %p39 = scmp.eq.s32.totalorder %s22, 1
    %p40 = por %p38, %p39
    %p41 = scmp.ne.s32.totalorder %s30, %s31
    %p42 = scmp.eq.s32.totalorder %s22, 0
    %p43 = por %p41, %p42
    %p44 = scmp.ne.s32.totalorder %s30, %s31
    %p45 = scmp.eq.s32.totalorder %s23, 1
    %p46 = por %p44, %p45
    %p48 = scmp.ne.s32.totalorder %s31, %s47
    %p49 = scmp.eq.s32.totalorder %s23, 0
    %p50 = por %p48, %p49
    %s51 = ssub.s32 %s17, %s24
    %p52 = scmp.eq.s32.totalorder %s51, 0
    %s54 = sadd.s32 %s53, 1
    %s55 = scalar_select %p52, %s53, %s54
    %p58 = pneg %p52
    %p59 = scmp.eq.s32.totalorder %s17, 1
    %p60 = por %p58, %p59
    %p61 = scmp.ne.s32.totalorder %s53, %s56
    %p62 = scmp.eq.s32.totalorder %s17, 0
    %p63 = por %p61, %p62
    %p64 = scmp.ne.s32.totalorder %s53, %s56
    %p65 = scmp.eq.s32.totalorder %s22, 1
    %p66 = por %p64, %p65
    %p67 = scmp.ne.s32.totalorder %s56, %s57
    %p68 = scmp.eq.s32.totalorder %s22, 0
    %p69 = por %p67, %p68
    %p70 = scmp.ne.s32.totalorder %s56, %s57
    %p71 = scmp.eq.s32.totalorder %s23, 1
    %p72 = por %p70, %p71
    %p74 = scmp.ne.s32.totalorder %s57, %s73
    %p75 = scmp.eq.s32.totalorder %s23, 0
    %p76 = por %p74, %p75
    %s78 = sadd.s32 %s77, 1
    %p81 = scmp.eq.s32.totalorder %s17, 1
    %p82 = scmp.ne.s32.totalorder %s77, %s79
    %p83 = scmp.eq.s32.totalorder %s17, 0
    %p84 = por %p82, %p83
    %p85 = scmp.ne.s32.totalorder %s77, %s79
    %p86 = scmp.eq.s32.totalorder %s22, 1
    %p87 = por %p85, %p86
    %p88 = scmp.ne.s32.totalorder %s79, %s80
    %p89 = scmp.eq.s32.totalorder %s22, 0
    %p90 = por %p88, %p89
    %p91 = scmp.ne.s32.totalorder %s79, %s80
    %p92 = scmp.eq.s32.totalorder %s23, 1
    %p93 = por %p91, %p92
    %p95 = scmp.ne.s32.totalorder %s80, %s94
    %p96 = scmp.eq.s32.totalorder %s23, 0
    %p97 = por %p95, %p96
    %s99 = sadd.s32 %s98, 1
    %p102 = scmp.eq.s32.totalorder %s17, 1
    %p103 = scmp.ne.s32.totalorder %s98, %s100
    %p104 = scmp.eq.s32.totalorder %s17, 0
    %p105 = por %p103, %p104
    %p106 = scmp.ne.s32.totalorder %s98, %s100
    %p107 = scmp.eq.s32.totalorder %s22, 1
    %p108 = por %p106, %p107
    %p109 = scmp.ne.s32.totalorder %s100, %s101
    %p110 = scmp.eq.s32.totalorder %s22, 0
    %p111 = por %p109, %p110
    %p112 = scmp.ne.s32.totalorder %s100, %s101
    %p113 = scmp.eq.s32.totalorder %s23, 1
    %p114 = por %p112, %p113
    %p116 = scmp.ne.s32.totalorder %s101, %s115
    %p117 = scmp.eq.s32.totalorder %s23, 0
    %p118 = por %p116, %p117
    %s120 = sadd.s32 %s119, 1
    %p123 = scmp.eq.s32.totalorder %s17, 1
    %p124 = scmp.ne.s32.totalorder %s119, %s121
    %p125 = scmp.eq.s32.totalorder %s17, 0
    %p126 = por %p124, %p125
    %p127 = scmp.ne.s32.totalorder %s119, %s121
    %p128 = scmp.eq.s32.totalorder %s22, 1
    %p129 = por %p127, %p128
    %p130 = scmp.ne.s32.totalorder %s121, %s122
    %p131 = scmp.eq.s32.totalorder %s22, 0
    %p132 = por %p130, %p131
    %p133 = scmp.ne.s32.totalorder %s121, %s122
    %p134 = scmp.eq.s32.totalorder %s23, 1
    %p135 = por %p133, %p134
    %p137 = scmp.ne.s32.totalorder %s122, %s136
    %p138 = scmp.eq.s32.totalorder %s23, 0
    %p139 = por %p137, %p138
    %s141 = sadd.s32 %s140, 1
    %p144 = scmp.eq.s32.totalorder %s17, 1
    %p145 = scmp.ne.s32.totalorder %s140, %s142
    %p146 = scmp.eq.s32.totalorder %s17, 0
    %p147 = por %p145, %p146
    %p148 = scmp.ne.s32.totalorder %s140, %s142
    %p149 = scmp.eq.s32.totalorder %s22, 1
    %p150 = por %p148, %p149
    %p151 = scmp.ne.s32.totalorder %s142, %s143
    %p152 = scmp.eq.s32.totalorder %s22, 0
    %p153 = por %p151, %p152
    %p154 = scmp.ne.s32.totalorder %s142, %s143
    %p155 = scmp.eq.s32.totalorder %s23, 1
    %p156 = por %p154, %p155
    %p158 = scmp.ne.s32.totalorder %s143, %s157
    %p159 = scmp.eq.s32.totalorder %s23, 0
    %p160 = por %p158, %p159
    %s162 = sadd.s32 %s161, 1
    %p165 = scmp.eq.s32.totalorder %s17, 1
    %p166 = scmp.ne.s32.totalorder %s161, %s163
    %p167 = scmp.eq.s32.totalorder %s17, 0
    %p168 = por %p166, %p167
    %p169 = scmp.ne.s32.totalorder %s161, %s163
    %p170 = scmp.eq.s32.totalorder %s22, 1
    %p171 = por %p169, %p170
    %p172 = scmp.ne.s32.totalorder %s163, %s164
    %p173 = scmp.eq.s32.totalorder %s22, 0
    %p174 = por %p172, %p173
    %p175 = scmp.ne.s32.totalorder %s163, %s164
    %p176 = scmp.eq.s32.totalorder %s23, 1
    %p177 = por %p175, %p176
    %p179 = scmp.ne.s32.totalorder %s164, %s178
    %p180 = scmp.eq.s32.totalorder %s23, 0
    %p181 = por %p179, %p180
    %s183 = sadd.s32 %s182, 1
    %p186 = scmp.eq.s32.totalorder %s17, 1
    %p187 = scmp.ne.s32.totalorder %s182, %s184
    %p188 = scmp.eq.s32.totalorder %s17, 0
    %p189 = por %p187, %p188
    %p190 = scmp.ne.s32.totalorder %s182, %s184
    %p191 = scmp.eq.s32.totalorder %s22, 1
    %p192 = por %p190, %p191
    %p193 = scmp.ne.s32.totalorder %s184, %s185
    %p194 = scmp.eq.s32.totalorder %s22, 0
    %p195 = por %p193, %p194
    %p196 = scmp.ne.s32.totalorder %s184, %s185
    %p197 = scmp.eq.s32.totalorder %s23, 1
    %p198 = por %p196, %p197
    %p200 = scmp.ne.s32.totalorder %s185, %s199
    %p201 = scmp.eq.s32.totalorder %s23, 0
    %p202 = por %p200, %p201
    %s204 = sadd.s32 %s203, 1
    %p207 = scmp.eq.s32.totalorder %s17, 1
    %p208 = scmp.ne.s32.totalorder %s203, %s205
    %p209 = scmp.eq.s32.totalorder %s17, 0
    %p210 = por %p208, %p209
    %p211 = scmp.ne.s32.totalorder %s203, %s205
    %p212 = scmp.eq.s32.totalorder %s22, 1
    %p213 = por %p211, %p212
    %p214 = scmp.ne.s32.totalorder %s205, %s206
    %p215 = scmp.eq.s32.totalorder %s22, 0
    %p216 = por %p214, %p215
    %p217 = scmp.ne.s32.totalorder %s205, %s206
    %p218 = scmp.eq.s32.totalorder %s23, 1
    %p219 = por %p217, %p218
    %p221 = scmp.ne.s32.totalorder %s206, %s220
    %p222 = scmp.eq.s32.totalorder %s23, 0
    %p223 = por %p221, %p222
    %s225 = sadd.s32 %s224, 1
    %p228 = scmp.eq.s32.totalorder %s17, 1
    %p229 = scmp.ne.s32.totalorder %s224, %s226
    %p230 = scmp.eq.s32.totalorder %s17, 0
    %p231 = por %p229, %p230
    %p232 = scmp.ne.s32.totalorder %s224, %s226
    %p233 = scmp.eq.s32.totalorder %s22, 1
    %p234 = por %p232, %p233
    %p235 = scmp.ne.s32.totalorder %s226, %s227
    %p236 = scmp.eq.s32.totalorder %s22, 0
    %p237 = por %p235, %p236
    %p238 = scmp.ne.s32.totalorder %s226, %s227
    %p239 = scmp.eq.s32.totalorder %s23, 1
    %p240 = por %p238, %p239
    %p242 = scmp.ne.s32.totalorder %s227, %s241
    %p243 = scmp.eq.s32.totalorder %s23, 0
    %p244 = por %p242, %p243
    %s246 = sadd.s32 %s245, 1
    %p249 = scmp.eq.s32.totalorder %s17, 1
    %p250 = scmp.ne.s32.totalorder %s245, %s247
    %p251 = scmp.eq.s32.totalorder %s17, 0
    %p252 = por %p250, %p251
    %p253 = scmp.ne.s32.totalorder %s245, %s247
    %p254 = scmp.eq.s32.totalorder %s22, 1
    %p255 = por %p253, %p254
    %p256 = scmp.ne.s32.totalorder %s247, %s248
    %p257 = scmp.eq.s32.totalorder %s22, 0
    %p258 = por %p256, %p257
    %p259 = scmp.ne.s32.totalorder %s247, %s248
    %p260 = scmp.eq.s32.totalorder %s23, 1
    %p261 = por %p259, %p260
    %p263 = scmp.ne.s32.totalorder %s248, %s262
    %p264 = scmp.eq.s32.totalorder %s23, 0
    %p265 = por %p263, %p264
    %s266 = ssub.s32 %s17, %s24
    %p267 = scmp.eq.s32.totalorder %s266, 0
    %s269 = sadd.s32 %s268, 1
    %s270 = scalar_select %p267, %s268, %s269
    %p273 = pneg %p267
    %p274 = scmp.eq.s32.totalorder %s17, 1
    %p275 = por %p273, %p274
    %p276 = scmp.ne.s32.totalorder %s268, %s271
    %p277 = scmp.eq.s32.totalorder %s17, 0
    %p278 = por %p276, %p277
    %p279 = scmp.ne.s32.totalorder %s268, %s271
    %p280 = scmp.eq.s32.totalorder %s22, 1
    %p281 = por %p279, %p280
    %p282 = scmp.ne.s32.totalorder %s271, %s272
    %p283 = scmp.eq.s32.totalorder %s22, 0
    %p284 = por %p282, %p283
    %p285 = scmp.ne.s32.totalorder %s271, %s272
    %p286 = scmp.eq.s32.totalorder %s23, 1
    %p287 = por %p285, %p286
    %p289 = scmp.ne.s32.totalorder %s272, %s288
    %p290 = scmp.eq.s32.totalorder %s23, 0
    %p291 = por %p289, %p290
    %p292 = scmp.le.s32.totalorder 1, %s17
    %p293 = scmp.lt.s32.totalorder %s17, 3
    %p294 = pnand %p292, %p293
    %p295 = pneg %p294
    // Predicated region
    $region9: #{_lambda_.1} parent=5 // pred_check
      _
    $region10: #{_lambda_.1} parent=5 // pred_check_branch
      %297 = sbr.rel (%p294) target = $region12
    $region11: #{_lambda_.1} parent=5 // pred_region
      %s298 = ssub.s32 %s17, 1
      // Predicated region
      $region13: #{_lambda_.1} parent=11 // pred_check
        %p299 = pneg %p90
      $region14: #{_lambda_.1} parent=11 // pred_check_branch
        %301 = sbr.rel (%p299) target = $region16
      $region15: #{_lambda_.1} parent=11 // pred_region
        _
      $region16: #{_lambda_.1} parent=11 // pred_fallthru
        _
      // Predicated region
      $region17: #{_lambda_.1} parent=11 // pred_check
        %p302 = pneg %p111
      $region18: #{_lambda_.1} parent=11 // pred_check_branch
        %304 = sbr.rel (%p302) target = $region20
      $region19: #{_lambda_.1} parent=11 // pred_region
        _
      $region20: #{_lambda_.1} parent=11 // pred_fallthru
        _
      // Predicated region
      $region21: #{_lambda_.1} parent=11 // pred_check
        %p305 = pneg %p132
      $region22: #{_lambda_.1} parent=11 // pred_check_branch
        %307 = sbr.rel (%p305) target = $region24
      $region23: #{_lambda_.1} parent=11 // pred_region
        _
      $region24: #{_lambda_.1} parent=11 // pred_fallthru
        _
      // Predicated region
      $region25: #{_lambda_.1} parent=11 // pred_check
        %p308 = pneg %p153
      $region26: #{_lambda_.1} parent=11 // pred_check_branch
        %310 = sbr.rel (%p308) target = $region28
      $region27: #{_lambda_.1} parent=11 // pred_region
        _
      $region28: #{_lambda_.1} parent=11 // pred_fallthru
        _
      // Predicated region
      $region29: #{_lambda_.1} parent=11 // pred_check
        %p311 = pneg %p174
      $region30: #{_lambda_.1} parent=11 // pred_check_branch
        %313 = sbr.rel (%p311) target = $region32
      $region31: #{_lambda_.1} parent=11 // pred_region
        _
      $region32: #{_lambda_.1} parent=11 // pred_fallthru
        _
      // Predicated region
      $region33: #{_lambda_.1} parent=11 // pred_check
        %p314 = pneg %p195
      $region34: #{_lambda_.1} parent=11 // pred_check_branch
        %316 = sbr.rel (%p314) target = $region36
      $region35: #{_lambda_.1} parent=11 // pred_region
        _
      $region36: #{_lambda_.1} parent=11 // pred_fallthru
        _
      // Predicated region
      $region37: #{_lambda_.1} parent=11 // pred_check
        %p317 = pneg %p216
      $region38: #{_lambda_.1} parent=11 // pred_check_branch
        %319 = sbr.rel (%p317) target = $region40
      $region39: #{_lambda_.1} parent=11 // pred_region
        _
      $region40: #{_lambda_.1} parent=11 // pred_fallthru
        _
      // Predicated region
      $region41: #{_lambda_.1} parent=11 // pred_check
        %p320 = pneg %p237
      $region42: #{_lambda_.1} parent=11 // pred_check_branch
        %322 = sbr.rel (%p320) target = $region44
      $region43: #{_lambda_.1} parent=11 // pred_region
        _
      $region44: #{_lambda_.1} parent=11 // pred_fallthru
        _
      // Predicated region
      $region45: #{_lambda_.1} parent=11 // pred_check
        %p323 = pneg %p258
      $region46: #{_lambda_.1} parent=11 // pred_check_branch
        %325 = sbr.rel (%p323) target = $region48
      $region47: #{_lambda_.1} parent=11 // pred_region
        _
      $region48: #{_lambda_.1} parent=11 // pred_fallthru
        _
    $region12: #{_lambda_.1} parent=5 // pred_fallthru
      _
    %p326 = scmp.lt.s32.totalorder %s17, 2
    // Predicated region
    $region49: #{_lambda_.1} parent=5 // pred_check
      %p327 = pneg %p326
    $region50: #{_lambda_.1} parent=5 // pred_check_branch
      %329 = sbr.rel (%p327) target = $region52
    $region51: #{_lambda_.1} parent=5 // pred_region
      // Predicated region
      $region53: #{_lambda_.1} parent=51 // pred_check
        %p330 = pneg %p37
      $region54: #{_lambda_.1} parent=51 // pred_check_branch
        %332 = sbr.rel (%p330) target = $region56
      $region55: #{_lambda_.1} parent=51 // pred_region
        %s333 = smul.u32 64, %s17
        %p334 = scmp.lt.s32.totalorder %s333, 127
        %s335 = scalar_select %p334, %s333, 127
        %s336 = smul.addr %s335, 2
        %s337 = smul.addr %s336, 4
        %s338 = scalar_lea.vmem %s0, %s337
        %s339 = smul.u32 64, %s17
      $region56: #{_lambda_.1} parent=51 // pred_fallthru
        _
      // Predicated region
      $region57: #{_lambda_.1} parent=51 // pred_check
        %p340 = pneg %p63
      $region58: #{_lambda_.1} parent=51 // pred_check_branch
        %342 = sbr.rel (%p340) target = $region60
      $region59: #{_lambda_.1} parent=51 // pred_region
        %s343 = smul.u32 2, %s17
        %p344 = scmp.lt.s32.totalorder %s343, 3
        %s345 = scalar_select %p344, %s343, 3
        %s346 = smul.addr %s345, 8
        %s347 = scalar_lea.vmem %s1, %s346
        %s348 = smul.u32 2, %s17
      $region60: #{_lambda_.1} parent=51 // pred_fallthru
        _
    $region52: #{_lambda_.1} parent=5 // pred_fallthru
      _
    %p349 = scmp.le.s32.totalorder 1, %s17
    %p350 = scmp.lt.s32.totalorder %s17, 3
    %p351 = pnand %p349, %p350
    %p352 = pneg %p351
    // Predicated region
    $region61: #{_lambda_.1} parent=5 // pred_check
      _
    $region62: #{_lambda_.1} parent=5 // pred_check_branch
      %354 = sbr.rel (%p351) target = $region64
    $region63: #{_lambda_.1} parent=5 // pred_region
      %s355 = ssub.s32 %s17, 1
      %s356 = smul.u32 64, %s22
      %p357 = scmp.lt.s32.totalorder %s356, 127
      %s358 = scalar_select %p357, %s356, 127
      %s359 = smul.addr %s358, 2
      %s360 = smul.addr %s359, 4
      %s361 = scalar_lea.vmem %s0, %s360
      %p362 = pneg %p43
      %p363 = pneg %p40
      %s364 = smul.u32 2, %s22
      %p365 = scmp.lt.s32.totalorder %s364, 3
      %s366 = scalar_select %p365, %s364, 3
      %s367 = smul.addr %s366, 8
      %s368 = scalar_lea.vmem %s1, %s367
      %p369 = pneg %p69
      %p370 = pneg %p66
      %p371 = pneg %p90
      %p372 = pneg %p87
      %p373 = pneg %p111
      %p374 = pneg %p108
      %p375 = pneg %p132
      %p376 = pneg %p129
      %p377 = pneg %p153
      %p378 = pneg %p150
      %p379 = pneg %p174
      %p380 = pneg %p171
      %p381 = pneg %p195
      %p382 = pneg %p192
      %p383 = pneg %p216
      %p384 = pneg %p213
      %p385 = pneg %p237
      %p386 = pneg %p234
      %p387 = pneg %p258
      %p388 = pneg %p255
      %p389 = pneg %p284
      %p390 = pneg %p281
      %s391 = smul.u32 2, %s22
      %p392 = scmp.lt.s32.totalorder %s391, 3
      %s393 = scalar_select %p392, %s391, 3
      %s394 = smul.addr %s393, 2
      %s395 = smul.addr %s394, 8
      %s396 = scalar_lea.vmem %s11, %s395
      %s397 = smul.u32 64, %s22
      %p398 = scmp.lt.s32.totalorder %s397, 127
      %s399 = scalar_select %p398, %s397, 127
      %s400 = smul.addr %s399, 2
      %s401 = smul.addr %s400, 4
      %s402 = scalar_lea.vmem %s0, %s401
      %s403 = smul.u32 64, %s22
      %s404 = smul.u32 2, %s22
      %p405 = scmp.lt.s32.totalorder %s404, 3
      %s406 = scalar_select %p405, %s404, 3
      %s407 = smul.addr %s406, 8
      %s408 = scalar_lea.vmem %s1, %s407
      %s409 = smul.u32 2, %s22
      %s410 = smul.u32 2, %s22
      %p411 = scmp.lt.s32.totalorder %s410, 3
      %s412 = scalar_select %p411, %s410, 3
      %s413 = smul.addr %s412, 2
      %s414 = smul.addr %s413, 8
      %s415 = scalar_lea.vmem %s11, %s414
      %s416 = smul.u32 2, %s22
      %v418 = vld [vmem:[%s402] sm:$0xff]
      %v419 = vld [vmem:[%s402 + $0x8] sm:$0xff]
      %v420 = vld [vmem:[%s402 + $0x10] sm:$0xff]
      %v421 = vld [vmem:[%s402 + $0x18] sm:$0xff]
      %v422 = vld [vmem:[%s402 + $0x20] sm:$0xff]
      %v423 = vld [vmem:[%s402 + $0x28] sm:$0xff]
      %v424 = vld [vmem:[%s402 + $0x30] sm:$0xff]
      %v425 = vld [vmem:[%s402 + $0x38] sm:$0xff]
      %v426 = vld [vmem:[%s402 + $0x40] sm:$0xff]
      %v427 = vld [vmem:[%s402 + $0x48] sm:$0xff]
      %v428 = vld [vmem:[%s402 + $0x50] sm:$0xff]
      %v429 = vld [vmem:[%s402 + $0x58] sm:$0xff]
      %v430 = vld [vmem:[%s402 + $0x60] sm:$0xff]
      %v431 = vld [vmem:[%s402 + $0x68] sm:$0xff]
      %v432 = vld [vmem:[%s402 + $0x70] sm:$0xff]
      %v433 = vld [vmem:[%s402 + $0x78] sm:$0xff]
      %v434 = vld [vmem:[%s402 + $0x80] sm:$0xff]
      %v435 = vld [vmem:[%s402 + $0x88] sm:$0xff]
      %v436 = vld [vmem:[%s402 + $0x90] sm:$0xff]
      %v437 = vld [vmem:[%s402 + $0x98] sm:$0xff]
      %v438 = vld [vmem:[%s402 + $0xa0] sm:$0xff]
      %v439 = vld [vmem:[%s402 + $0xa8] sm:$0xff]
      %v440 = vld [vmem:[%s402 + $0xb0] sm:$0xff]
      %v441 = vld [vmem:[%s402 + $0xb8] sm:$0xff]
      %v442 = vld [vmem:[%s402 + $0xc0] sm:$0xff]
      %v443 = vld [vmem:[%s402 + $0xc8] sm:$0xff]
      %v444 = vld [vmem:[%s402 + $0xd0] sm:$0xff]
      %v445 = vld [vmem:[%s402 + $0xd8] sm:$0xff]
      %v446 = vld [vmem:[%s402 + $0xe0] sm:$0xff]
      %v447 = vld [vmem:[%s402 + $0xe8] sm:$0xff]
      %v448 = vld [vmem:[%s402 + $0xf0] sm:$0xff]
      %v449 = vld [vmem:[%s402 + $0xf8] sm:$0xff]
      %v450 = vld [vmem:[%s402 + $0x100] sm:$0xff]
      %v451 = vld [vmem:[%s402 + $0x108] sm:$0xff]
      %v452 = vld [vmem:[%s402 + $0x110] sm:$0xff]
      %v453 = vld [vmem:[%s402 + $0x118] sm:$0xff]
      %v454 = vld [vmem:[%s402 + $0x120] sm:$0xff]
      %v455 = vld [vmem:[%s402 + $0x128] sm:$0xff]
      %v456 = vld [vmem:[%s402 + $0x130] sm:$0xff]
      %v457 = vld [vmem:[%s402 + $0x138] sm:$0xff]
      %v458 = vld [vmem:[%s402 + $0x140] sm:$0xff]
      %v459 = vld [vmem:[%s402 + $0x148] sm:$0xff]
      %v460 = vld [vmem:[%s402 + $0x150] sm:$0xff]
      %v461 = vld [vmem:[%s402 + $0x158] sm:$0xff]
      %v462 = vld [vmem:[%s402 + $0x160] sm:$0xff]
      %v463 = vld [vmem:[%s402 + $0x168] sm:$0xff]
      %v464 = vld [vmem:[%s402 + $0x170] sm:$0xff]
      %v465 = vld [vmem:[%s402 + $0x178] sm:$0xff]
      %v466 = vld [vmem:[%s402 + $0x180] sm:$0xff]
      %v467 = vld [vmem:[%s402 + $0x188] sm:$0xff]
      %v468 = vld [vmem:[%s402 + $0x190] sm:$0xff]
      %v469 = vld [vmem:[%s402 + $0x198] sm:$0xff]
      %v470 = vld [vmem:[%s402 + $0x1a0] sm:$0xff]
      %v471 = vld [vmem:[%s402 + $0x1a8] sm:$0xff]
      %v472 = vld [vmem:[%s402 + $0x1b0] sm:$0xff]
      %v473 = vld [vmem:[%s402 + $0x1b8] sm:$0xff]
      %v474 = vld [vmem:[%s402 + $0x1c0] sm:$0xff]
      %v475 = vld [vmem:[%s402 + $0x1c8] sm:$0xff]
      %v476 = vld [vmem:[%s402 + $0x1d0] sm:$0xff]
      %v477 = vld [vmem:[%s402 + $0x1d8] sm:$0xff]
      %v478 = vld [vmem:[%s402 + $0x1e0] sm:$0xff]
      %v479 = vld [vmem:[%s402 + $0x1e8] sm:$0xff]
      %v480 = vld [vmem:[%s402 + $0x1f0] sm:$0xff]
      %v481 = vld [vmem:[%s402 + $0x1f8] sm:$0xff]
      %v482 = vld [vmem:[%s2] sm:$0xf]
      %v483 = vld [vmem:[%s2 + $0x4] sm:$0xf]
      %v484 = vld [vmem:[%s2 + $0x8] sm:$0xf]
      %v485 = vld [vmem:[%s2 + $0xc] sm:$0xf]
      %v486 = vld [vmem:[%s2 + $0x10] sm:$0xf]
      %v487 = vld [vmem:[%s2 + $0x14] sm:$0xf]
      %v488 = vld [vmem:[%s2 + $0x18] sm:$0xf]
      %v489 = vld [vmem:[%s2 + $0x1c] sm:$0xf]
      %v490 = vld [vmem:[%s2 + $0x20] sm:$0xf]
      %v491 = vld [vmem:[%s2 + $0x24] sm:$0xf]
      %v492 = vld [vmem:[%s2 + $0x28] sm:$0xf]
      %v493 = vld [vmem:[%s2 + $0x2c] sm:$0xf]
      %v494 = vld [vmem:[%s2 + $0x30] sm:$0xf]
      %v495 = vld [vmem:[%s2 + $0x34] sm:$0xf]
      %v496 = vld [vmem:[%s2 + $0x38] sm:$0xf]
      %v497 = vld [vmem:[%s2 + $0x3c] sm:$0xf]
      %v498 = vld [vmem:[%s2 + $0x40] sm:$0xf]
      %v499 = vld [vmem:[%s2 + $0x44] sm:$0xf]
      %v500 = vld [vmem:[%s2 + $0x48] sm:$0xf]
      %v501 = vld [vmem:[%s2 + $0x4c] sm:$0xf]
      %v502 = vld [vmem:[%s2 + $0x50] sm:$0xf]
      %v567 = vunpack.c.l.b16 %v418
      %v568 = vunpack.c.h.b16 %v418
      %v569 = vunpack.c.l.b16 %v419
      %v570 = vunpack.c.h.b16 %v419
      %v571 = vunpack.c.l.b16 %v420
      %v572 = vunpack.c.h.b16 %v420
      %v573 = vunpack.c.l.b16 %v421
      %v574 = vunpack.c.h.b16 %v421
      %v575 = vunpack.c.l.b16 %v422
      %v576 = vunpack.c.h.b16 %v422
      %v577 = vunpack.c.l.b16 %v423
      %v578 = vunpack.c.h.b16 %v423
      %v579 = vunpack.c.l.b16 %v424
      %v580 = vunpack.c.h.b16 %v424
      %v581 = vunpack.c.l.b16 %v425
      %v582 = vunpack.c.h.b16 %v425
      %v583 = vunpack.c.l.b16 %v426
      %v584 = vunpack.c.h.b16 %v426
      %v585 = vunpack.c.l.b16 %v427
      %v586 = vunpack.c.h.b16 %v427
      %v587 = vunpack.c.l.b16 %v428
      %v588 = vunpack.c.h.b16 %v428
      %v589 = vunpack.c.l.b16 %v429
      %v590 = vunpack.c.h.b16 %v429
      %v591 = vunpack.c.l.b16 %v430
      %v592 = vunpack.c.h.b16 %v430
      %v593 = vunpack.c.l.b16 %v431
      %v594 = vunpack.c.h.b16 %v431
      %v595 = vunpack.c.l.b16 %v432
      %v596 = vunpack.c.h.b16 %v432
      %v597 = vunpack.c.l.b16 %v433
      %v598 = vunpack.c.h.b16 %v433
      %v599 = vunpack.c.l.b16 %v434
      %v600 = vunpack.c.h.b16 %v434
      %v601 = vunpack.c.l.b16 %v435
      %v602 = vunpack.c.h.b16 %v435
      %v603 = vunpack.c.l.b16 %v436
      %v604 = vunpack.c.h.b16 %v436
      %v605 = vunpack.c.l.b16 %v437
      %v606 = vunpack.c.h.b16 %v437
      %v607 = vunpack.c.l.b16 %v438
      %v608 = vunpack.c.h.b16 %v438
      %v609 = vunpack.c.l.b16 %v439
      %v610 = vunpack.c.h.b16 %v439
      %v611 = vunpack.c.l.b16 %v440
      %v612 = vunpack.c.h.b16 %v440
      %v613 = vunpack.c.l.b16 %v441
      %v614 = vunpack.c.h.b16 %v441
      %v615 = vunpack.c.l.b16 %v442
      %v616 = vunpack.c.h.b16 %v442
      %v617 = vunpack.c.l.b16 %v443
      %v618 = vunpack.c.h.b16 %v443
      %v619 = vunpack.c.l.b16 %v444
      %v620 = vunpack.c.h.b16 %v444
      %v621 = vunpack.c.l.b16 %v445
      %v622 = vunpack.c.h.b16 %v445
      %v623 = vunpack.c.l.b16 %v446
      %v624 = vunpack.c.h.b16 %v446
      %v625 = vunpack.c.l.b16 %v447
      %v626 = vunpack.c.h.b16 %v447
      %v627 = vunpack.c.l.b16 %v448
      %v628 = vunpack.c.h.b16 %v448
      %v629 = vunpack.c.l.b16 %v449
      %v630 = vunpack.c.h.b16 %v449
      %v631 = vunpack.c.l.b16 %v450
      %v632 = vunpack.c.h.b16 %v450
      %v633 = vunpack.c.l.b16 %v451
      %v634 = vunpack.c.h.b16 %v451
      %v635 = vunpack.c.l.b16 %v452
      %v636 = vunpack.c.h.b16 %v452
      %v637 = vunpack.c.l.b16 %v453
      %v638 = vunpack.c.h.b16 %v453
      %v639 = vunpack.c.l.b16 %v454
      %v640 = vunpack.c.h.b16 %v454
      %v641 = vunpack.c.l.b16 %v455
      %v642 = vunpack.c.h.b16 %v455
      %v643 = vunpack.c.l.b16 %v456
      %v644 = vunpack.c.h.b16 %v456
      %v645 = vunpack.c.l.b16 %v457
      %v646 = vunpack.c.h.b16 %v457
      %v647 = vunpack.c.l.b16 %v458
      %v648 = vunpack.c.h.b16 %v458
      %v649 = vunpack.c.l.b16 %v459
      %v650 = vunpack.c.h.b16 %v459
      %v651 = vunpack.c.l.b16 %v460
      %v652 = vunpack.c.h.b16 %v460
      %v653 = vunpack.c.l.b16 %v461
      %v654 = vunpack.c.h.b16 %v461
      %v655 = vunpack.c.l.b16 %v462
      %v656 = vunpack.c.h.b16 %v462
      %v657 = vunpack.c.l.b16 %v463
      %v658 = vunpack.c.h.b16 %v463
      %v659 = vunpack.c.l.b16 %v464
      %v660 = vunpack.c.h.b16 %v464
      %v661 = vunpack.c.l.b16 %v465
      %v662 = vunpack.c.h.b16 %v465
      %v663 = vunpack.c.l.b16 %v466
      %v664 = vunpack.c.h.b16 %v466
      %v665 = vunpack.c.l.b16 %v467
      %v666 = vunpack.c.h.b16 %v467
      %v667 = vunpack.c.l.b16 %v468
      %v668 = vunpack.c.h.b16 %v468
      %v669 = vunpack.c.l.b16 %v469
      %v670 = vunpack.c.h.b16 %v469
      %v671 = vunpack.c.l.b16 %v470
      %v672 = vunpack.c.h.b16 %v470
      %v673 = vunpack.c.l.b16 %v471
      %v674 = vunpack.c.h.b16 %v471
      %v675 = vunpack.c.l.b16 %v472
      %v676 = vunpack.c.h.b16 %v472
      %v677 = vunpack.c.l.b16 %v473
      %v678 = vunpack.c.h.b16 %v473
      %v679 = vunpack.c.l.b16 %v474
      %v680 = vunpack.c.h.b16 %v474
      %v681 = vunpack.c.l.b16 %v475
      %v682 = vunpack.c.h.b16 %v475
      %v683 = vunpack.c.l.b16 %v476
      %v684 = vunpack.c.h.b16 %v476
      %v685 = vunpack.c.l.b16 %v477
      %v686 = vunpack.c.h.b16 %v477
      %v687 = vunpack.c.l.b16 %v478
      %v688 = vunpack.c.h.b16 %v478
      %v689 = vunpack.c.l.b16 %v479
      %v690 = vunpack.c.h.b16 %v479
      %v691 = vunpack.c.l.b16 %v480
      %v692 = vunpack.c.h.b16 %v480
      %v693 = vunpack.c.l.b16 %v481
      %v694 = vunpack.c.h.b16 %v481
      %v695 = vpack.c.b16 %v569, %v567
      %v696 = vpack.c.b16 %v570, %v568
      %v697 = vpack.c.b16 %v573, %v571
      %v698 = vpack.c.b16 %v574, %v572
      %v699 = vpack.c.b16 %v577, %v575
      %v700 = vpack.c.b16 %v578, %v576
      %v701 = vpack.c.b16 %v581, %v579
      %v702 = vpack.c.b16 %v582, %v580
      %v703 = vpack.c.b16 %v585, %v583
      %v704 = vpack.c.b16 %v586, %v584
      %v705 = vpack.c.b16 %v589, %v587
      %v706 = vpack.c.b16 %v590, %v588
      %v707 = vpack.c.b16 %v593, %v591
      %v708 = vpack.c.b16 %v594, %v592
      %v709 = vpack.c.b16 %v597, %v595
      %v710 = vpack.c.b16 %v598, %v596
      %v711 = vpack.c.b16 %v601, %v599
      %v712 = vpack.c.b16 %v602, %v600
      %v713 = vpack.c.b16 %v605, %v603
      %v714 = vpack.c.b16 %v606, %v604
      %v715 = vpack.c.b16 %v609, %v607
      %v716 = vpack.c.b16 %v610, %v608
      %v717 = vpack.c.b16 %v613, %v611
      %v718 = vpack.c.b16 %v614, %v612
      %v719 = vpack.c.b16 %v617, %v615
      %v720 = vpack.c.b16 %v618, %v616
      %v721 = vpack.c.b16 %v621, %v619
      %v722 = vpack.c.b16 %v622, %v620
      %v723 = vpack.c.b16 %v625, %v623
      %v724 = vpack.c.b16 %v626, %v624
      %v725 = vpack.c.b16 %v629, %v627
      %v726 = vpack.c.b16 %v630, %v628
      %v727 = vpack.c.b16 %v633, %v631
      %v728 = vpack.c.b16 %v634, %v632
      %v729 = vpack.c.b16 %v637, %v635
      %v730 = vpack.c.b16 %v638, %v636
      %v731 = vpack.c.b16 %v641, %v639
      %v732 = vpack.c.b16 %v642, %v640
      %v733 = vpack.c.b16 %v645, %v643
      %v734 = vpack.c.b16 %v646, %v644
      %v735 = vpack.c.b16 %v649, %v647
      %v736 = vpack.c.b16 %v650, %v648
      %v737 = vpack.c.b16 %v653, %v651
      %v738 = vpack.c.b16 %v654, %v652
      %v739 = vpack.c.b16 %v657, %v655
      %v740 = vpack.c.b16 %v658, %v656
      %v741 = vpack.c.b16 %v661, %v659
      %v742 = vpack.c.b16 %v662, %v660
      %v743 = vpack.c.b16 %v665, %v663
      %v744 = vpack.c.b16 %v666, %v664
      %v745 = vpack.c.b16 %v669, %v667
      %v746 = vpack.c.b16 %v670, %v668
      %v747 = vpack.c.b16 %v673, %v671
      %v748 = vpack.c.b16 %v674, %v672
      %v749 = vpack.c.b16 %v677, %v675
      %v750 = vpack.c.b16 %v678, %v676
      %v751 = vpack.c.b16 %v681, %v679
      %v752 = vpack.c.b16 %v682, %v680
      %v753 = vpack.c.b16 %v685, %v683
      %v754 = vpack.c.b16 %v686, %v684
      %v755 = vpack.c.b16 %v689, %v687
      %v756 = vpack.c.b16 %v690, %v688
      %v757 = vpack.c.b16 %v693, %v691
      %v758 = vpack.c.b16 %v694, %v692
      %v812 = vunpack.c.l.b16 %v482
      %v813 = vunpack.c.l.b16 %v483
      %v814 = vunpack.c.l.b16 %v484
      %v815 = vunpack.c.l.b16 %v485
      %v816 = vunpack.c.l.b16 %v486
      %v817 = vunpack.c.l.b16 %v487
      %v818 = vunpack.c.l.b16 %v488
      %v819 = vunpack.c.l.b16 %v489
      %v820 = vunpack.c.l.b16 %v490
      %v821 = vunpack.c.l.b16 %v491
      %v822 = vunpack.c.l.b16 %v492
      %v823 = vunpack.c.l.b16 %v493
      %v824 = vunpack.c.l.b16 %v494
      %v825 = vunpack.c.l.b16 %v495
      %v826 = vunpack.c.l.b16 %v496
      %v827 = vunpack.c.l.b16 %v497
      %v828 = vunpack.c.l.b16 %v498
      %v829 = vunpack.c.l.b16 %v499
      %v830 = vunpack.c.l.b16 %v500
      %v831 = vunpack.c.l.b16 %v501
      %v832 = vunpack.c.l.b16 %v502
      %v833 = vpack.c.b16 %v813, %v812
      %v834 = vpack.c.b16 %v815, %v814
      %v835 = vpack.c.b16 %v817, %v816
      %v836 = vpack.c.b16 %v819, %v818
      %v837 = vpack.c.b16 %v821, %v820
      %v838 = vpack.c.b16 %v823, %v822
      %v839 = vpack.c.b16 %v825, %v824
      %v840 = vpack.c.b16 %v827, %v826
      %v841 = vpack.c.b16 %v829, %v828
      %v842 = vpack.c.b16 %v831, %v830
      %v843 = vpack.c.b16 %v832, %v832
      %vm854 = vcmask 326656
      %v856 = vsel %vm854, %v696, 0
      %v859 = vsel %vm854, %v698, 0
      %v862 = vsel %vm854, %v700, 0
      %v865 = vsel %vm854, %v702, 0
      %v868 = vsel %vm854, %v704, 0
      %v871 = vsel %vm854, %v706, 0
      %v874 = vsel %vm854, %v708, 0
      %v877 = vsel %vm854, %v710, 0
      %v880 = vsel %vm854, %v712, 0
      %v883 = vsel %vm854, %v714, 0
      %v886 = vsel %vm854, %v716, 0
      %v889 = vsel %vm854, %v718, 0
      %v892 = vsel %vm854, %v720, 0
      %v895 = vsel %vm854, %v722, 0
      %v898 = vsel %vm854, %v724, 0
      %v901 = vsel %vm854, %v726, 0
      %v904 = vsel %vm854, %v728, 0
      %v907 = vsel %vm854, %v730, 0
      %v910 = vsel %vm854, %v732, 0
      %v913 = vsel %vm854, %v734, 0
      %v916 = vsel %vm854, %v736, 0
      %v919 = vsel %vm854, %v738, 0
      %v922 = vsel %vm854, %v740, 0
      %v925 = vsel %vm854, %v742, 0
      %v928 = vsel %vm854, %v744, 0
      %v931 = vsel %vm854, %v746, 0
      %v934 = vsel %vm854, %v748, 0
      %v937 = vsel %vm854, %v750, 0
      %v940 = vsel %vm854, %v752, 0
      %v943 = vsel %vm854, %v754, 0
      %v946 = vsel %vm854, %v756, 0
      %v949 = vsel %vm854, %v758, 0
      %vm951 = vcmask 1043456
      %v953 = vsel %vm951, %v843, 0
      %955 = vmatpush.bf16.msra.mxu0 %v840
      %956 = vmatpush.bf16.msra.mxu0 %v839
      %957 = vmatpush.bf16.msra.mxu0 %v838
      %958 = vmatpush.bf16.msra.mxu0 %v837
      %959 = vmatpush.bf16.msra.mxu0 %v836
      %960 = vmatpush.bf16.msra.mxu0 %v835
      %961 = vmatpush.bf16.msra.mxu0 %v834
      %962 = vmatpush.bf16.msra.mxu0 %v833
      %963 = vmatmul.bf16.gmra.mxu0 %v695
      %v964 = vpop.f32.mrf.mxu0
      %v965 = vadd.f32 0.0, %v964
      %v966 = vpop.f32.mrf.mxu0
      %v967 = vadd.f32 0.0, %v966
      %968 = vmatmul.bf16.gmra.mxu0 %v697
      %v969 = vpop.f32.mrf.mxu0
      %v970 = vadd.f32 0.0, %v969
      %v971 = vpop.f32.mrf.mxu0
      %v972 = vadd.f32 0.0, %v971
      %973 = vmatmul.bf16.gmra.mxu0 %v699
      %v974 = vpop.f32.mrf.mxu0
      %v975 = vadd.f32 0.0, %v974
      %v976 = vpop.f32.mrf.mxu0
      %v977 = vadd.f32 0.0, %v976
      %978 = vmatmul.bf16.gmra.mxu0 %v701
      %v979 = vpop.f32.mrf.mxu0
      %v980 = vadd.f32 0.0, %v979
      %v981 = vpop.f32.mrf.mxu0
      %v982 = vadd.f32 0.0, %v981
      %983 = vmatmul.bf16.gmra.mxu0 %v703
      %v984 = vpop.f32.mrf.mxu0
      %v985 = vadd.f32 0.0, %v984
      %v986 = vpop.f32.mrf.mxu0
      %v987 = vadd.f32 0.0, %v986
      %988 = vmatmul.bf16.gmra.mxu0 %v705
      %v989 = vpop.f32.mrf.mxu0
      %v990 = vadd.f32 0.0, %v989
      %v991 = vpop.f32.mrf.mxu0
      %v992 = vadd.f32 0.0, %v991
      %993 = vmatmul.bf16.gmra.mxu0 %v707
      %v994 = vpop.f32.mrf.mxu0
      %v995 = vadd.f32 0.0, %v994
      %v996 = vpop.f32.mrf.mxu0
      %v997 = vadd.f32 0.0, %v996
      %998 = vmatmul.bf16.gmra.mxu0 %v709
      %v999 = vpop.f32.mrf.mxu0
      %v1000 = vadd.f32 0.0, %v999
      %v1001 = vpop.f32.mrf.mxu0
      %v1002 = vadd.f32 0.0, %v1001
      %1003 = vmatmul.bf16.gmra.mxu0 %v711
      %v1004 = vpop.f32.mrf.mxu0
      %v1005 = vadd.f32 0.0, %v1004
      %v1006 = vpop.f32.mrf.mxu0
      %v1007 = vadd.f32 0.0, %v1006
      %1008 = vmatmul.bf16.gmra.mxu0 %v713
      %v1009 = vpop.f32.mrf.mxu0
      %v1010 = vadd.f32 0.0, %v1009
      %v1011 = vpop.f32.mrf.mxu0
      %v1012 = vadd.f32 0.0, %v1011
      %1013 = vmatmul.bf16.gmra.mxu0 %v715
      %v1014 = vpop.f32.mrf.mxu0
      %v1015 = vadd.f32 0.0, %v1014
      %v1016 = vpop.f32.mrf.mxu0
      %v1017 = vadd.f32 0.0, %v1016
      %1018 = vmatmul.bf16.gmra.mxu0 %v717
      %v1019 = vpop.f32.mrf.mxu0
      %v1020 = vadd.f32 0.0, %v1019
      %v1021 = vpop.f32.mrf.mxu0
      %v1022 = vadd.f32 0.0, %v1021
      %1023 = vmatmul.bf16.gmra.mxu0 %v719
      %v1024 = vpop.f32.mrf.mxu0
      %v1025 = vadd.f32 0.0, %v1024
      %v1026 = vpop.f32.mrf.mxu0
      %v1027 = vadd.f32 0.0, %v1026
      %1028 = vmatmul.bf16.gmra.mxu0 %v721
      %v1029 = vpop.f32.mrf.mxu0
      %v1030 = vadd.f32 0.0, %v1029
      %v1031 = vpop.f32.mrf.mxu0
      %v1032 = vadd.f32 0.0, %v1031
      %1033 = vmatmul.bf16.gmra.mxu0 %v723
      %v1034 = vpop.f32.mrf.mxu0
      %v1035 = vadd.f32 0.0, %v1034
      %v1036 = vpop.f32.mrf.mxu0
      %v1037 = vadd.f32 0.0, %v1036
      %1038 = vmatmul.bf16.gmra.mxu0 %v725
      %v1039 = vpop.f32.mrf.mxu0
      %v1040 = vadd.f32 0.0, %v1039
      %v1041 = vpop.f32.mrf.mxu0
      %v1042 = vadd.f32 0.0, %v1041
      %1043 = vmatmul.bf16.gmra.mxu0 %v727
      %v1044 = vpop.f32.mrf.mxu0
      %v1045 = vadd.f32 0.0, %v1044
      %v1046 = vpop.f32.mrf.mxu0
      %v1047 = vadd.f32 0.0, %v1046
      %1048 = vmatmul.bf16.gmra.mxu0 %v729
      %v1049 = vpop.f32.mrf.mxu0
      %v1050 = vadd.f32 0.0, %v1049
      %v1051 = vpop.f32.mrf.mxu0
      %v1052 = vadd.f32 0.0, %v1051
      %1053 = vmatmul.bf16.gmra.mxu0 %v731
      %v1054 = vpop.f32.mrf.mxu0
      %v1055 = vadd.f32 0.0, %v1054
      %v1056 = vpop.f32.mrf.mxu0
      %v1057 = vadd.f32 0.0, %v1056
      %1058 = vmatmul.bf16.gmra.mxu0 %v733
      %v1059 = vpop.f32.mrf.mxu0
      %v1060 = vadd.f32 0.0, %v1059
      %v1061 = vpop.f32.mrf.mxu0
      %v1062 = vadd.f32 0.0, %v1061
      %1063 = vmatmul.bf16.gmra.mxu0 %v735
      %v1064 = vpop.f32.mrf.mxu0
      %v1065 = vadd.f32 0.0, %v1064
      %v1066 = vpop.f32.mrf.mxu0
      %v1067 = vadd.f32 0.0, %v1066
      %1068 = vmatmul.bf16.gmra.mxu0 %v737
      %v1069 = vpop.f32.mrf.mxu0
      %v1070 = vadd.f32 0.0, %v1069
      %v1071 = vpop.f32.mrf.mxu0
      %v1072 = vadd.f32 0.0, %v1071
      %1073 = vmatmul.bf16.gmra.mxu0 %v739
      %v1074 = vpop.f32.mrf.mxu0
      %v1075 = vadd.f32 0.0, %v1074
      %v1076 = vpop.f32.mrf.mxu0
      %v1077 = vadd.f32 0.0, %v1076
      %1078 = vmatmul.bf16.gmra.mxu0 %v741
      %v1079 = vpop.f32.mrf.mxu0
      %v1080 = vadd.f32 0.0, %v1079
      %v1081 = vpop.f32.mrf.mxu0
      %v1082 = vadd.f32 0.0, %v1081
      %1083 = vmatmul.bf16.gmra.mxu0 %v743
      %v1084 = vpop.f32.mrf.mxu0
      %v1085 = vadd.f32 0.0, %v1084
      %v1086 = vpop.f32.mrf.mxu0
      %v1087 = vadd.f32 0.0, %v1086
      %1088 = vmatmul.bf16.gmra.mxu0 %v745
      %v1089 = vpop.f32.mrf.mxu0
      %v1090 = vadd.f32 0.0, %v1089
      %v1091 = vpop.f32.mrf.mxu0
      %v1092 = vadd.f32 0.0, %v1091
      %1093 = vmatmul.bf16.gmra.mxu0 %v747
      %v1094 = vpop.f32.mrf.mxu0
      %v1095 = vadd.f32 0.0, %v1094
      %v1096 = vpop.f32.mrf.mxu0
      %v1097 = vadd.f32 0.0, %v1096
      %1098 = vmatmul.bf16.gmra.mxu0 %v749
      %v1099 = vpop.f32.mrf.mxu0
      %v1100 = vadd.f32 0.0, %v1099
      %v1101 = vpop.f32.mrf.mxu0
      %v1102 = vadd.f32 0.0, %v1101
      %1103 = vmatmul.bf16.gmra.mxu0 %v751
      %v1104 = vpop.f32.mrf.mxu0
      %v1105 = vadd.f32 0.0, %v1104
      %v1106 = vpop.f32.mrf.mxu0
      %v1107 = vadd.f32 0.0, %v1106
      %1108 = vmatmul.bf16.gmra.mxu0 %v753
      %v1109 = vpop.f32.mrf.mxu0
      %v1110 = vadd.f32 0.0, %v1109
      %v1111 = vpop.f32.mrf.mxu0
      %v1112 = vadd.f32 0.0, %v1111
      %1113 = vmatmul.bf16.gmra.mxu0 %v755
      %v1114 = vpop.f32.mrf.mxu0
      %v1115 = vadd.f32 0.0, %v1114
      %v1116 = vpop.f32.mrf.mxu0
      %v1117 = vadd.f32 0.0, %v1116
      %1118 = vmatmul.bf16.gmra.mxu0 %v757
      %v1119 = vpop.f32.mrf.mxu0
      %v1120 = vadd.f32 0.0, %v1119
      %v1121 = vpop.f32.mrf.mxu0
      %v1122 = vadd.f32 0.0, %v1121
      %1123 = vdwg.mxu0
      %1124 = vmatpush.bf16.msra.mxu0 0
      %1125 = vmatpush.bf16.msra.mxu0 0
      %1126 = vmatpush.bf16.msra.mxu0 0
      %1127 = vmatpush.bf16.msra.mxu0 0
      %1128 = vmatpush.bf16.msra.mxu0 0
      %1129 = vmatpush.bf16.msra.mxu0 %v953
      %1130 = vmatpush.bf16.msra.mxu0 %v842
      %1131 = vmatpush.bf16.msra.mxu0 %v841
      %1132 = vmatmul.bf16.gmra.mxu0 %v856
      %v1133 = vpop.f32.mrf.mxu0
      %v1134 = vadd.f32 %v965, %v1133
      %v1135 = vpop.f32.mrf.mxu0
      %v1136 = vadd.f32 %v967, %v1135
      %1137 = vmatmul.bf16.gmra.mxu0 %v859
      %v1138 = vpop.f32.mrf.mxu0
      %v1139 = vadd.f32 %v970, %v1138
      %v1140 = vpop.f32.mrf.mxu0
      %v1141 = vadd.f32 %v972, %v1140
      %1142 = vmatmul.bf16.gmra.mxu0 %v862
      %v1143 = vpop.f32.mrf.mxu0
      %v1144 = vadd.f32 %v975, %v1143
      %v1145 = vpop.f32.mrf.mxu0
      %v1146 = vadd.f32 %v977, %v1145
      %1147 = vmatmul.bf16.gmra.mxu0 %v865
      %v1148 = vpop.f32.mrf.mxu0
      %v1149 = vadd.f32 %v980, %v1148
      %v1150 = vpop.f32.mrf.mxu0
      %v1151 = vadd.f32 %v982, %v1150
      %1152 = vmatmul.bf16.gmra.mxu0 %v868
      %v1153 = vpop.f32.mrf.mxu0
      %v1154 = vadd.f32 %v985, %v1153
      %v1155 = vpop.f32.mrf.mxu0
      %v1156 = vadd.f32 %v987, %v1155
      %1157 = vmatmul.bf16.gmra.mxu0 %v871
      %v1158 = vpop.f32.mrf.mxu0
      %v1159 = vadd.f32 %v990, %v1158
      %v1160 = vpop.f32.mrf.mxu0
      %v1161 = vadd.f32 %v992, %v1160
      %1162 = vmatmul.bf16.gmra.mxu0 %v874
      %v1163 = vpop.f32.mrf.mxu0
      %v1164 = vadd.f32 %v995, %v1163
      %v1165 = vpop.f32.mrf.mxu0
      %v1166 = vadd.f32 %v997, %v1165
      %1167 = vmatmul.bf16.gmra.mxu0 %v877
      %v1168 = vpop.f32.mrf.mxu0
      %v1169 = vadd.f32 %v1000, %v1168
      %v1170 = vpop.f32.mrf.mxu0
      %v1171 = vadd.f32 %v1002, %v1170
      %1172 = vmatmul.bf16.gmra.mxu0 %v880
      %v1173 = vpop.f32.mrf.mxu0
      %v1174 = vadd.f32 %v1005, %v1173
      %v1175 = vpop.f32.mrf.mxu0
      %v1176 = vadd.f32 %v1007, %v1175
      %1177 = vmatmul.bf16.gmra.mxu0 %v883
      %v1178 = vpop.f32.mrf.mxu0
      %v1179 = vadd.f32 %v1010, %v1178
      %v1180 = vpop.f32.mrf.mxu0
      %v1181 = vadd.f32 %v1012, %v1180
      %1182 = vmatmul.bf16.gmra.mxu0 %v886
      %v1183 = vpop.f32.mrf.mxu0
      %v1184 = vadd.f32 %v1015, %v1183
      %v1185 = vpop.f32.mrf.mxu0
      %v1186 = vadd.f32 %v1017, %v1185
      %1187 = vmatmul.bf16.gmra.mxu0 %v889
      %v1188 = vpop.f32.mrf.mxu0
      %v1189 = vadd.f32 %v1020, %v1188
      %v1190 = vpop.f32.mrf.mxu0
      %v1191 = vadd.f32 %v1022, %v1190
      %1192 = vmatmul.bf16.gmra.mxu0 %v892
      %v1193 = vpop.f32.mrf.mxu0
      %v1194 = vadd.f32 %v1025, %v1193
      %v1195 = vpop.f32.mrf.mxu0
      %v1196 = vadd.f32 %v1027, %v1195
      %1197 = vmatmul.bf16.gmra.mxu0 %v895
      %v1198 = vpop.f32.mrf.mxu0
      %v1199 = vadd.f32 %v1030, %v1198
      %v1200 = vpop.f32.mrf.mxu0
      %v1201 = vadd.f32 %v1032, %v1200
      %1202 = vmatmul.bf16.gmra.mxu0 %v898
      %v1203 = vpop.f32.mrf.mxu0
      %v1204 = vadd.f32 %v1035, %v1203
      %v1205 = vpop.f32.mrf.mxu0
      %v1206 = vadd.f32 %v1037, %v1205
      %1207 = vmatmul.bf16.gmra.mxu0 %v901
      %v1208 = vpop.f32.mrf.mxu0
      %v1209 = vadd.f32 %v1040, %v1208
      %v1210 = vpop.f32.mrf.mxu0
      %v1211 = vadd.f32 %v1042, %v1210
      %1212 = vmatmul.bf16.gmra.mxu0 %v904
      %v1213 = vpop.f32.mrf.mxu0
      %v1214 = vadd.f32 %v1045, %v1213
      %v1215 = vpop.f32.mrf.mxu0
      %v1216 = vadd.f32 %v1047, %v1215
      %1217 = vmatmul.bf16.gmra.mxu0 %v907
      %v1218 = vpop.f32.mrf.mxu0
      %v1219 = vadd.f32 %v1050, %v1218
      %v1220 = vpop.f32.mrf.mxu0
      %v1221 = vadd.f32 %v1052, %v1220
      %1222 = vmatmul.bf16.gmra.mxu0 %v910
      %v1223 = vpop.f32.mrf.mxu0
      %v1224 = vadd.f32 %v1055, %v1223
      %v1225 = vpop.f32.mrf.mxu0
      %v1226 = vadd.f32 %v1057, %v1225
      %1227 = vmatmul.bf16.gmra.mxu0 %v913
      %v1228 = vpop.f32.mrf.mxu0
      %v1229 = vadd.f32 %v1060, %v1228
      %v1230 = vpop.f32.mrf.mxu0
      %v1231 = vadd.f32 %v1062, %v1230
      %1232 = vmatmul.bf16.gmra.mxu0 %v916
      %v1233 = vpop.f32.mrf.mxu0
      %v1234 = vadd.f32 %v1065, %v1233
      %v1235 = vpop.f32.mrf.mxu0
      %v1236 = vadd.f32 %v1067, %v1235
      %1237 = vmatmul.bf16.gmra.mxu0 %v919
      %v1238 = vpop.f32.mrf.mxu0
      %v1239 = vadd.f32 %v1070, %v1238
      %v1240 = vpop.f32.mrf.mxu0
      %v1241 = vadd.f32 %v1072, %v1240
      %1242 = vmatmul.bf16.gmra.mxu0 %v922
      %v1243 = vpop.f32.mrf.mxu0
      %v1244 = vadd.f32 %v1075, %v1243
      %v1245 = vpop.f32.mrf.mxu0
      %v1246 = vadd.f32 %v1077, %v1245
      %1247 = vmatmul.bf16.gmra.mxu0 %v925
      %v1248 = vpop.f32.mrf.mxu0
      %v1249 = vadd.f32 %v1080, %v1248
      %v1250 = vpop.f32.mrf.mxu0
      %v1251 = vadd.f32 %v1082, %v1250
      %1252 = vmatmul.bf16.gmra.mxu0 %v928
      %v1253 = vpop.f32.mrf.mxu0
      %v1254 = vadd.f32 %v1085, %v1253
      %v1255 = vpop.f32.mrf.mxu0
      %v1256 = vadd.f32 %v1087, %v1255
      %1257 = vmatmul.bf16.gmra.mxu0 %v931
      %v1258 = vpop.f32.mrf.mxu0
      %v1259 = vadd.f32 %v1090, %v1258
      %v1260 = vpop.f32.mrf.mxu0
      %v1261 = vadd.f32 %v1092, %v1260
      %1262 = vmatmul.bf16.gmra.mxu0 %v934
      %v1263 = vpop.f32.mrf.mxu0
      %v1264 = vadd.f32 %v1095, %v1263
      %v1265 = vpop.f32.mrf.mxu0
      %v1266 = vadd.f32 %v1097, %v1265
      %1267 = vmatmul.bf16.gmra.mxu0 %v937
      %v1268 = vpop.f32.mrf.mxu0
      %v1269 = vadd.f32 %v1100, %v1268
      %v1270 = vpop.f32.mrf.mxu0
      %v1271 = vadd.f32 %v1102, %v1270
      %1272 = vmatmul.bf16.gmra.mxu0 %v940
      %v1273 = vpop.f32.mrf.mxu0
      %v1274 = vadd.f32 %v1105, %v1273
      %v1275 = vpop.f32.mrf.mxu0
      %v1276 = vadd.f32 %v1107, %v1275
      %1277 = vmatmul.bf16.gmra.mxu0 %v943
      %v1278 = vpop.f32.mrf.mxu0
      %v1279 = vadd.f32 %v1110, %v1278
      %v1280 = vpop.f32.mrf.mxu0
      %v1281 = vadd.f32 %v1112, %v1280
      %1282 = vmatmul.bf16.gmra.mxu0 %v946
      %v1283 = vpop.f32.mrf.mxu0
      %v1284 = vadd.f32 %v1115, %v1283
      %v1285 = vpop.f32.mrf.mxu0
      %v1286 = vadd.f32 %v1117, %v1285
      %1287 = vmatmul.bf16.gmra.mxu0 %v949
      %v1288 = vpop.f32.mrf.mxu0
      %v1289 = vadd.f32 %v1120, %v1288
      %v1290 = vpop.f32.mrf.mxu0
      %v1291 = vadd.f32 %v1122, %v1290
      %1292 = vdwg.mxu0
      %v1293 = vld [vmem:[%s5] sm:$0x1]
      %v1294 = vld [vmem:[%s5 + $0x3] sm:$0x1]
      %v1295 = vperm.slane %v1293, 0
      %v1296 = vmul.f32 %v1134, %v1295
      %v1297 = vmul.f32 %v1136, %v1295
      %v1298 = vmul.f32 %v1139, %v1295
      %v1299 = vmul.f32 %v1141, %v1295
      %v1300 = vmul.f32 %v1144, %v1295
      %v1301 = vmul.f32 %v1146, %v1295
      %v1302 = vmul.f32 %v1149, %v1295
      %v1303 = vmul.f32 %v1151, %v1295
      %v1304 = vmul.f32 %v1154, %v1295
      %v1305 = vmul.f32 %v1156, %v1295
      %v1306 = vmul.f32 %v1159, %v1295
      %v1307 = vmul.f32 %v1161, %v1295
      %v1308 = vmul.f32 %v1164, %v1295
      %v1309 = vmul.f32 %v1166, %v1295
      %v1310 = vmul.f32 %v1169, %v1295
      %v1311 = vmul.f32 %v1171, %v1295
      %v1312 = vmul.f32 %v1174, %v1295
      %v1313 = vmul.f32 %v1176, %v1295
      %v1314 = vmul.f32 %v1179, %v1295
      %v1315 = vmul.f32 %v1181, %v1295
      %v1316 = vmul.f32 %v1184, %v1295
      %v1317 = vmul.f32 %v1186, %v1295
      %v1318 = vmul.f32 %v1189, %v1295
      %v1319 = vmul.f32 %v1191, %v1295
      %v1320 = vmul.f32 %v1194, %v1295
      %v1321 = vmul.f32 %v1196, %v1295
      %v1322 = vmul.f32 %v1199, %v1295
      %v1323 = vmul.f32 %v1201, %v1295
      %v1324 = vmul.f32 %v1204, %v1295
      %v1325 = vmul.f32 %v1206, %v1295
      %v1326 = vmul.f32 %v1209, %v1295
      %v1327 = vmul.f32 %v1211, %v1295
      %v1328 = vmul.f32 %v1214, %v1295
      %v1329 = vmul.f32 %v1216, %v1295
      %v1330 = vmul.f32 %v1219, %v1295
      %v1331 = vmul.f32 %v1221, %v1295
      %v1332 = vmul.f32 %v1224, %v1295
      %v1333 = vmul.f32 %v1226, %v1295
      %v1334 = vmul.f32 %v1229, %v1295
      %v1335 = vmul.f32 %v1231, %v1295
      %v1336 = vmul.f32 %v1234, %v1295
      %v1337 = vmul.f32 %v1236, %v1295
      %v1338 = vmul.f32 %v1239, %v1295
      %v1339 = vmul.f32 %v1241, %v1295
      %v1340 = vmul.f32 %v1244, %v1295
      %v1341 = vmul.f32 %v1246, %v1295
      %v1342 = vmul.f32 %v1249, %v1295
      %v1343 = vmul.f32 %v1251, %v1295
      %v1344 = vmul.f32 %v1254, %v1295
      %v1345 = vmul.f32 %v1256, %v1295
      %v1346 = vmul.f32 %v1259, %v1295
      %v1347 = vmul.f32 %v1261, %v1295
      %v1348 = vmul.f32 %v1264, %v1295
      %v1349 = vmul.f32 %v1266, %v1295
      %v1350 = vmul.f32 %v1269, %v1295
      %v1351 = vmul.f32 %v1271, %v1295
      %v1352 = vmul.f32 %v1274, %v1295
      %v1353 = vmul.f32 %v1276, %v1295
      %v1354 = vmul.f32 %v1279, %v1295
      %v1355 = vmul.f32 %v1281, %v1295
      %v1356 = vmul.f32 %v1284, %v1295
      %v1357 = vmul.f32 %v1286, %v1295
      %v1358 = vmul.f32 %v1289, %v1295
      %v1359 = vmul.f32 %v1291, %v1295
      %v1360 = vperm.slane %v1294, 0
      %v1361 = vadd.f32 %v1296, %v1360
      %v1362 = vadd.f32 %v1297, %v1360
      %v1363 = vadd.f32 %v1298, %v1360
      %v1364 = vadd.f32 %v1299, %v1360
      %v1365 = vadd.f32 %v1300, %v1360
      %v1366 = vadd.f32 %v1301, %v1360
      %v1367 = vadd.f32 %v1302, %v1360
      %v1368 = vadd.f32 %v1303, %v1360
      %v1369 = vadd.f32 %v1304, %v1360
      %v1370 = vadd.f32 %v1305, %v1360
      %v1371 = vadd.f32 %v1306, %v1360
      %v1372 = vadd.f32 %v1307, %v1360
      %v1373 = vadd.f32 %v1308, %v1360
      %v1374 = vadd.f32 %v1309, %v1360
      %v1375 = vadd.f32 %v1310, %v1360
      %v1376 = vadd.f32 %v1311, %v1360
      %v1377 = vadd.f32 %v1312, %v1360
      %v1378 = vadd.f32 %v1313, %v1360
      %v1379 = vadd.f32 %v1314, %v1360
      %v1380 = vadd.f32 %v1315, %v1360
      %v1381 = vadd.f32 %v1316, %v1360
      %v1382 = vadd.f32 %v1317, %v1360
      %v1383 = vadd.f32 %v1318, %v1360
      %v1384 = vadd.f32 %v1319, %v1360
      %v1385 = vadd.f32 %v1320, %v1360
      %v1386 = vadd.f32 %v1321, %v1360
      %v1387 = vadd.f32 %v1322, %v1360
      %v1388 = vadd.f32 %v1323, %v1360
      %v1389 = vadd.f32 %v1324, %v1360
      %v1390 = vadd.f32 %v1325, %v1360
      %v1391 = vadd.f32 %v1326, %v1360
      %v1392 = vadd.f32 %v1327, %v1360
      %v1393 = vadd.f32 %v1328, %v1360
      %v1394 = vadd.f32 %v1329, %v1360
      %v1395 = vadd.f32 %v1330, %v1360
      %v1396 = vadd.f32 %v1331, %v1360
      %v1397 = vadd.f32 %v1332, %v1360
      %v1398 = vadd.f32 %v1333, %v1360
      %v1399 = vadd.f32 %v1334, %v1360
      %v1400 = vadd.f32 %v1335, %v1360
      %v1401 = vadd.f32 %v1336, %v1360
      %v1402 = vadd.f32 %v1337, %v1360
      %v1403 = vadd.f32 %v1338, %v1360
      %v1404 = vadd.f32 %v1339, %v1360
      %v1405 = vadd.f32 %v1340, %v1360
      %v1406 = vadd.f32 %v1341, %v1360
      %v1407 = vadd.f32 %v1342, %v1360
      %v1408 = vadd.f32 %v1343, %v1360
      %v1409 = vadd.f32 %v1344, %v1360
      %v1410 = vadd.f32 %v1345, %v1360
      %v1411 = vadd.f32 %v1346, %v1360
      %v1412 = vadd.f32 %v1347, %v1360
      %v1413 = vadd.f32 %v1348, %v1360
      %v1414 = vadd.f32 %v1349, %v1360
      %v1415 = vadd.f32 %v1350, %v1360
      %v1416 = vadd.f32 %v1351, %v1360
      %v1417 = vadd.f32 %v1352, %v1360
      %v1418 = vadd.f32 %v1353, %v1360
      %v1419 = vadd.f32 %v1354, %v1360
      %v1420 = vadd.f32 %v1355, %v1360
      %v1421 = vadd.f32 %v1356, %v1360
      %v1422 = vadd.f32 %v1357, %v1360
      %v1423 = vadd.f32 %v1358, %v1360
      %v1424 = vadd.f32 %v1359, %v1360
      %v1425 = vmax.f32 %v1361, %v1393
      %v1426 = vmax.f32 %v1362, %v1394
      %v1427 = vmax.f32 %v1363, %v1395
      %v1428 = vmax.f32 %v1364, %v1396
      %v1429 = vmax.f32 %v1365, %v1397
      %v1430 = vmax.f32 %v1366, %v1398
      %v1431 = vmax.f32 %v1367, %v1399
      %v1432 = vmax.f32 %v1368, %v1400
      %v1433 = vmax.f32 %v1369, %v1401
      %v1434 = vmax.f32 %v1370, %v1402
      %v1435 = vmax.f32 %v1371, %v1403
      %v1436 = vmax.f32 %v1372, %v1404
      %v1437 = vmax.f32 %v1373, %v1405
      %v1438 = vmax.f32 %v1374, %v1406
      %v1439 = vmax.f32 %v1375, %v1407
      %v1440 = vmax.f32 %v1376, %v1408
      %v1441 = vmax.f32 %v1377, %v1409
      %v1442 = vmax.f32 %v1378, %v1410
      %v1443 = vmax.f32 %v1379, %v1411
      %v1444 = vmax.f32 %v1380, %v1412
      %v1445 = vmax.f32 %v1381, %v1413
      %v1446 = vmax.f32 %v1382, %v1414
      %v1447 = vmax.f32 %v1383, %v1415
      %v1448 = vmax.f32 %v1384, %v1416
      %v1449 = vmax.f32 %v1385, %v1417
      %v1450 = vmax.f32 %v1386, %v1418
      %v1451 = vmax.f32 %v1387, %v1419
      %v1452 = vmax.f32 %v1388, %v1420
      %v1453 = vmax.f32 %v1389, %v1421
      %v1454 = vmax.f32 %v1390, %v1422
      %v1455 = vmax.f32 %v1391, %v1423
      %v1456 = vmax.f32 %v1392, %v1424
      %v1457 = vmax.f32 %v1425, 0.0
      %v1458 = vmax.f32 %v1426, 0.0
      %v1459 = vmax.f32 %v1427, 0.0
      %v1460 = vmax.f32 %v1428, 0.0
      %v1461 = vmax.f32 %v1429, 0.0
      %v1462 = vmax.f32 %v1430, 0.0
      %v1463 = vmax.f32 %v1431, 0.0
      %v1464 = vmax.f32 %v1432, 0.0
      %v1465 = vmax.f32 %v1433, 0.0
      %v1466 = vmax.f32 %v1434, 0.0
      %v1467 = vmax.f32 %v1435, 0.0
      %v1468 = vmax.f32 %v1436, 0.0
      %v1469 = vmax.f32 %v1437, 0.0
      %v1470 = vmax.f32 %v1438, 0.0
      %v1471 = vmax.f32 %v1439, 0.0
      %v1472 = vmax.f32 %v1440, 0.0
      %v1473 = vmax.f32 %v1441, 0.0
      %v1474 = vmax.f32 %v1442, 0.0
      %v1475 = vmax.f32 %v1443, 0.0
      %v1476 = vmax.f32 %v1444, 0.0
      %v1477 = vmax.f32 %v1445, 0.0
      %v1478 = vmax.f32 %v1446, 0.0
      %v1479 = vmax.f32 %v1447, 0.0
      %v1480 = vmax.f32 %v1448, 0.0
      %v1481 = vmax.f32 %v1449, 0.0
      %v1482 = vmax.f32 %v1450, 0.0
      %v1483 = vmax.f32 %v1451, 0.0
      %v1484 = vmax.f32 %v1452, 0.0
      %v1485 = vmax.f32 %v1453, 0.0
      %v1486 = vmax.f32 %v1454, 0.0
      %v1487 = vmax.f32 %v1455, 0.0
      %v1488 = vmax.f32 %v1456, 0.0
      %1489 = vst [vmem:[#allocation2] sm:$0xf] 0
      %1490 = vst [vmem:[#allocation2 + $0x4] sm:$0xf] 0
      %1491 = vst [vmem:[#allocation2 + $0x8] sm:$0xf] 0
      %1492 = vst [vmem:[#allocation2 + $0xc] sm:$0xf] 0
      %1493 = vst [vmem:[#allocation2 + $0x10] sm:$0xf] 0
      %1494 = vst [vmem:[#allocation2 + $0x14] sm:$0xf] 0
      %1495 = vst [vmem:[#allocation2 + $0x18] sm:$0xf] 0
      %1496 = vst [vmem:[#allocation2 + $0x1c] sm:$0xf] 0
      %1497 = vst [vmem:[#allocation3] sm:$0xf] 0
      %1498 = vst [vmem:[#allocation3 + $0x4] sm:$0xf] 0
      %1499 = vst [vmem:[#allocation3 + $0x8] sm:$0xf] 0
      %1500 = vst [vmem:[#allocation3 + $0xc] sm:$0xf] 0
      %1501 = vst [vmem:[#allocation3 + $0x10] sm:$0xf] 0
      %1502 = vst [vmem:[#allocation3 + $0x14] sm:$0xf] 0
      %1503 = vst [vmem:[#allocation3 + $0x18] sm:$0xf] 0
      %1504 = vst [vmem:[#allocation3 + $0x1c] sm:$0xf] 0
      %1505 = vst [vmem:[#allocation2 + $0x60] sm:$0xf] 0
      %1506 = vst [vmem:[#allocation2 + $0x64] sm:$0xf] 0
      %1507 = vst [vmem:[#allocation2 + $0x68] sm:$0xf] 0
      %1508 = vst [vmem:[#allocation2 + $0x6c] sm:$0xf] 0
      %1509 = vst [vmem:[#allocation2 + $0x70] sm:$0xf] 0
      %1510 = vst [vmem:[#allocation2 + $0x74] sm:$0xf] 0
      %1511 = vst [vmem:[#allocation3 + $0x60] sm:$0xf] 0
      %1512 = vst [vmem:[#allocation3 + $0x64] sm:$0xf] 0
      %1513 = vst [vmem:[#allocation3 + $0x68] sm:$0xf] 0
      %1514 = vst [vmem:[#allocation3 + $0x6c] sm:$0xf] 0
      %v1515 = vpack.c.bf16 %v1457, %v1457
      %v1516 = vpack.c.bf16 %v1458, %v1458
      %1517 = vst [vmem:[#allocation2 + $0x20] sm:$0xf] %v1515
      %1518 = vst [vmem:[#allocation2 + $0x24] sm:$0xf] %v1516
      %v1519 = vpack.c.bf16 %v1459, %v1459
      %v1520 = vpack.c.bf16 %v1460, %v1460
      %1521 = vst [vmem:[#allocation3 + $0x20] sm:$0xf] %v1519
      %1522 = vst [vmem:[#allocation3 + $0x24] sm:$0xf] %v1520
      %v1523 = vpack.c.bf16 %v1461, %v1461
      %v1524 = vpack.c.bf16 %v1462, %v1462
      %1525 = vst [vmem:[#allocation2 + $0x28] sm:$0xf] %v1523
      %1526 = vst [vmem:[#allocation2 + $0x2c] sm:$0xf] %v1524
      %v1527 = vpack.c.bf16 %v1463, %v1463
      %v1528 = vpack.c.bf16 %v1464, %v1464
      %1529 = vst [vmem:[#allocation3 + $0x28] sm:$0xf] %v1527
      %1530 = vst [vmem:[#allocation3 + $0x2c] sm:$0xf] %v1528
      %v1531 = vpack.c.bf16 %v1465, %v1465
      %v1532 = vpack.c.bf16 %v1466, %v1466
      %1533 = vst [vmem:[#allocation2 + $0x30] sm:$0xf] %v1531
      %1534 = vst [vmem:[#allocation2 + $0x34] sm:$0xf] %v1532
      %v1535 = vpack.c.bf16 %v1467, %v1467
      %v1536 = vpack.c.bf16 %v1468, %v1468
      %1537 = vst [vmem:[#allocation3 + $0x30] sm:$0xf] %v1535
      %1538 = vst [vmem:[#allocation3 + $0x34] sm:$0xf] %v1536
      %v1539 = vpack.c.bf16 %v1469, %v1469
      %v1540 = vpack.c.bf16 %v1470, %v1470
      %1541 = vst [vmem:[#allocation2 + $0x38] sm:$0xf] %v1539
      %1542 = vst [vmem:[#allocation2 + $0x3c] sm:$0xf] %v1540
      %v1543 = vpack.c.bf16 %v1471, %v1471
      %v1544 = vpack.c.bf16 %v1472, %v1472
      %1545 = vst [vmem:[#allocation3 + $0x38] sm:$0xf] %v1543
      %1546 = vst [vmem:[#allocation3 + $0x3c] sm:$0xf] %v1544
      %v1547 = vpack.c.bf16 %v1473, %v1473
      %v1548 = vpack.c.bf16 %v1474, %v1474
      %1549 = vst [vmem:[#allocation2 + $0x40] sm:$0xf] %v1547
      %1550 = vst [vmem:[#allocation2 + $0x44] sm:$0xf] %v1548
      %v1551 = vpack.c.bf16 %v1475, %v1475
      %v1552 = vpack.c.bf16 %v1476, %v1476
      %1553 = vst [vmem:[#allocation3 + $0x40] sm:$0xf] %v1551
      %1554 = vst [vmem:[#allocation3 + $0x44] sm:$0xf] %v1552
      %v1555 = vpack.c.bf16 %v1477, %v1477
      %v1556 = vpack.c.bf16 %v1478, %v1478
      %1557 = vst [vmem:[#allocation2 + $0x48] sm:$0xf] %v1555
      %1558 = vst [vmem:[#allocation2 + $0x4c] sm:$0xf] %v1556
      %v1559 = vpack.c.bf16 %v1479, %v1479
      %v1560 = vpack.c.bf16 %v1480, %v1480
      %1561 = vst [vmem:[#allocation3 + $0x48] sm:$0xf] %v1559
      %1562 = vst [vmem:[#allocation3 + $0x4c] sm:$0xf] %v1560
      %v1563 = vpack.c.bf16 %v1481, %v1481
      %v1564 = vpack.c.bf16 %v1482, %v1482
      %1565 = vst [vmem:[#allocation2 + $0x50] sm:$0xf] %v1563
      %1566 = vst [vmem:[#allocation2 + $0x54] sm:$0xf] %v1564
      %v1567 = vpack.c.bf16 %v1483, %v1483
      %v1568 = vpack.c.bf16 %v1484, %v1484
      %1569 = vst [vmem:[#allocation3 + $0x50] sm:$0xf] %v1567
      %1570 = vst [vmem:[#allocation3 + $0x54] sm:$0xf] %v1568
      %v1571 = vpack.c.bf16 %v1485, %v1485
      %v1572 = vpack.c.bf16 %v1486, %v1486
      %1573 = vst [vmem:[#allocation2 + $0x58] sm:$0xf] %v1571
      %1574 = vst [vmem:[#allocation2 + $0x5c] sm:$0xf] %v1572
      %v1575 = vpack.c.bf16 %v1487, %v1487
      %v1576 = vpack.c.bf16 %v1488, %v1488
      %1577 = vst [vmem:[#allocation3 + $0x58] sm:$0xf] %v1575
      %1578 = vst [vmem:[#allocation3 + $0x5c] sm:$0xf] %v1576
      %v1579 = vld [vmem:[#allocation2 + $0x8] sm:$0xf]
      %v1580 = vld [vmem:[#allocation2 + $0xc] sm:$0xf]
      %v1581 = vld [vmem:[#allocation2 + $0x10] sm:$0xf]
      %v1582 = vld [vmem:[#allocation2 + $0x14] sm:$0xf]
      %v1583 = vld [vmem:[#allocation2 + $0x18] sm:$0xf]
      %v1584 = vld [vmem:[#allocation2 + $0x1c] sm:$0xf]
      %v1585 = vld [vmem:[#allocation2 + $0x20] sm:$0xf]
      %v1586 = vld [vmem:[#allocation2 + $0x24] sm:$0xf]
      %v1587 = vld [vmem:[#allocation2 + $0x28] sm:$0xf]
      %v1588 = vld [vmem:[#allocation2 + $0x2c] sm:$0xf]
      %v1589 = vld [vmem:[#allocation2 + $0x30] sm:$0xf]
      %v1590 = vld [vmem:[#allocation2 + $0x34] sm:$0xf]
      %v1591 = vld [vmem:[#allocation2 + $0x38] sm:$0xf]
      %v1592 = vld [vmem:[#allocation2 + $0x3c] sm:$0xf]
      %v1593 = vld [vmem:[#allocation2 + $0x40] sm:$0xf]
      %v1594 = vld [vmem:[#allocation2 + $0x44] sm:$0xf]
      %v1595 = vld [vmem:[#allocation3 + $0x8] sm:$0xf]
      %v1596 = vld [vmem:[#allocation3 + $0xc] sm:$0xf]
      %v1597 = vld [vmem:[#allocation3 + $0x10] sm:$0xf]
      %v1598 = vld [vmem:[#allocation3 + $0x14] sm:$0xf]
      %v1599 = vld [vmem:[#allocation3 + $0x18] sm:$0xf]
      %v1600 = vld [vmem:[#allocation3 + $0x1c] sm:$0xf]
      %v1601 = vld [vmem:[#allocation3 + $0x20] sm:$0xf]
      %v1602 = vld [vmem:[#allocation3 + $0x24] sm:$0xf]
      %v1603 = vld [vmem:[#allocation3 + $0x28] sm:$0xf]
      %v1604 = vld [vmem:[#allocation3 + $0x2c] sm:$0xf]
      %v1605 = vld [vmem:[#allocation3 + $0x30] sm:$0xf]
      %v1606 = vld [vmem:[#allocation3 + $0x34] sm:$0xf]
      %v1607 = vld [vmem:[#allocation3 + $0x38] sm:$0xf]
      %v1608 = vld [vmem:[#allocation3 + $0x3c] sm:$0xf]
      %v1609 = vld [vmem:[#allocation3 + $0x40] sm:$0xf]
      %v1610 = vld [vmem:[#allocation3 + $0x44] sm:$0xf]
      %v1611 = vld [vmem:[#allocation2 + $0x48] sm:$0xf]
      %v1612 = vld [vmem:[#allocation2 + $0x4c] sm:$0xf]
      %v1613 = vld [vmem:[#allocation3 + $0x48] sm:$0xf]
      %v1614 = vld [vmem:[#allocation3 + $0x4c] sm:$0xf]
      %v1615 = vld [vmem:[#allocation2 + $0x50] sm:$0xf]
      %v1616 = vld [vmem:[#allocation2 + $0x54] sm:$0xf]
      %v1617 = vld [vmem:[#allocation3 + $0x50] sm:$0xf]
      %v1618 = vld [vmem:[#allocation3 + $0x54] sm:$0xf]
      %v1619 = vld [vmem:[#allocation2 + $0x58] sm:$0xf]
      %v1620 = vld [vmem:[#allocation2 + $0x5c] sm:$0xf]
      %v1621 = vld [vmem:[#allocation3 + $0x58] sm:$0xf]
      %v1622 = vld [vmem:[#allocation3 + $0x5c] sm:$0xf]
      %v1623 = vld [vmem:[#allocation2 + $0x60] sm:$0xf]
      %v1624 = vld [vmem:[#allocation2 + $0x64] sm:$0xf]
      %v1625 = vld [vmem:[#allocation3 + $0x60] sm:$0xf]
      %v1626 = vld [vmem:[#allocation3 + $0x64] sm:$0xf]
      %v1627 = vld [vmem:[#allocation2 + $0x68] sm:$0xf]
      %v1628 = vld [vmem:[#allocation2 + $0x6c] sm:$0xf]
      %v1629 = vld [vmem:[#allocation3 + $0x30] sm:$0xf]
      %v1630 = vld [vmem:[#allocation3 + $0x34] sm:$0xf]
      %v1631 = vld [vmem:[#allocation3 + $0x38] sm:$0xf]
      %v1632 = vld [vmem:[#allocation3 + $0x3c] sm:$0xf]
      %v1633 = vld [vmem:[#allocation3 + $0x40] sm:$0xf]
      %v1634 = vld [vmem:[#allocation3 + $0x44] sm:$0xf]
      %v1635 = vld [vmem:[#allocation3 + $0x48] sm:$0xf]
      %v1636 = vld [vmem:[#allocation3 + $0x4c] sm:$0xf]
      %v1637 = vld [vmem:[#allocation3 + $0x50] sm:$0xf]
      %v1638 = vld [vmem:[#allocation3 + $0x54] sm:$0xf]
      %v1639 = vld [vmem:[#allocation3 + $0x58] sm:$0xf]
      %v1640 = vld [vmem:[#allocation3 + $0x5c] sm:$0xf]
      %v1641 = vld [vmem:[#allocation3 + $0x60] sm:$0xf]
      %v1642 = vld [vmem:[#allocation3 + $0x64] sm:$0xf]
      %v1643 = vld [vmem:[#allocation3 + $0x68] sm:$0xf]
      %v1644 = vld [vmem:[#allocation3 + $0x6c] sm:$0xf]
      %v1645 = vld [vmem:[#allocation2 + $0x38] sm:$0xf]
      %v1646 = vld [vmem:[#allocation2 + $0x3c] sm:$0xf]
      %v1647 = vld [vmem:[#allocation2 + $0x40] sm:$0xf]
      %v1648 = vld [vmem:[#allocation2 + $0x44] sm:$0xf]
      %v1649 = vld [vmem:[#allocation2 + $0x48] sm:$0xf]
      %v1650 = vld [vmem:[#allocation2 + $0x4c] sm:$0xf]
      %v1651 = vld [vmem:[#allocation2 + $0x50] sm:$0xf]
      %v1652 = vld [vmem:[#allocation2 + $0x54] sm:$0xf]
      %v1653 = vld [vmem:[#allocation2 + $0x58] sm:$0xf]
      %v1654 = vld [vmem:[#allocation2 + $0x5c] sm:$0xf]
      %v1655 = vld [vmem:[#allocation2 + $0x60] sm:$0xf]
      %v1656 = vld [vmem:[#allocation2 + $0x64] sm:$0xf]
      %v1657 = vld [vmem:[#allocation2 + $0x68] sm:$0xf]
      %v1658 = vld [vmem:[#allocation2 + $0x6c] sm:$0xf]
      %v1659 = vld [vmem:[#allocation2 + $0x70] sm:$0xf]
      %v1660 = vld [vmem:[#allocation2 + $0x74] sm:$0xf]
      %v1677 = vunpack.c.l.b16 %v1579
      %v1678 = vunpack.c.l.b16 %v1580
      %v1679 = vunpack.c.l.b16 %v1581
      %v1680 = vunpack.c.l.b16 %v1582
      %v1681 = vunpack.c.l.b16 %v1583
      %v1682 = vunpack.c.l.b16 %v1584
      %v1683 = vunpack.c.l.b16 %v1585
      %v1684 = vunpack.c.l.b16 %v1586
      %v1685 = vunpack.c.l.b16 %v1587
      %v1686 = vunpack.c.l.b16 %v1588
      %v1687 = vunpack.c.l.b16 %v1589
      %v1688 = vunpack.c.l.b16 %v1590
      %v1689 = vunpack.c.l.b16 %v1591
      %v1690 = vunpack.c.l.b16 %v1592
      %v1691 = vunpack.c.l.b16 %v1593
      %v1692 = vunpack.c.l.b16 %v1594
      %v1693 = vpack.c.b16 %v1678, %v1677
      %v1694 = vpack.c.b16 %v1680, %v1679
      %v1695 = vpack.c.b16 %v1682, %v1681
      %v1696 = vpack.c.b16 %v1684, %v1683
      %v1697 = vpack.c.b16 %v1686, %v1685
      %v1698 = vpack.c.b16 %v1688, %v1687
      %v1699 = vpack.c.b16 %v1690, %v1689
      %v1700 = vpack.c.b16 %v1692, %v1691
      %v1725 = vunpack.c.l.b16 %v1595
      %v1726 = vunpack.c.l.b16 %v1596
      %v1727 = vunpack.c.l.b16 %v1597
      %v1728 = vunpack.c.l.b16 %v1598
      %v1729 = vunpack.c.l.b16 %v1599
      %v1730 = vunpack.c.l.b16 %v1600
      %v1731 = vunpack.c.l.b16 %v1601
      %v1732 = vunpack.c.l.b16 %v1602
      %v1733 = vunpack.c.l.b16 %v1603
      %v1734 = vunpack.c.l.b16 %v1604
      %v1735 = vunpack.c.l.b16 %v1605
      %v1736 = vunpack.c.l.b16 %v1606
      %v1737 = vunpack.c.l.b16 %v1607
      %v1738 = vunpack.c.l.b16 %v1608
      %v1739 = vunpack.c.l.b16 %v1609
      %v1740 = vunpack.c.l.b16 %v1610
      %v1741 = vpack.c.b16 %v1726, %v1725
      %v1742 = vpack.c.b16 %v1728, %v1727
      %v1743 = vpack.c.b16 %v1730, %v1729
      %v1744 = vpack.c.b16 %v1732, %v1731
      %v1745 = vpack.c.b16 %v1734, %v1733
      %v1746 = vpack.c.b16 %v1736, %v1735
      %v1747 = vpack.c.b16 %v1738, %v1737
      %v1748 = vpack.c.b16 %v1740, %v1739
      %v1759 = vunpack.c.l.b16 %v1611
      %v1760 = vunpack.c.l.b16 %v1612
      %v1761 = vpack.c.b16 %v1760, %v1759
      %v1765 = vunpack.c.l.b16 %v1613
      %v1766 = vunpack.c.l.b16 %v1614
      %v1767 = vpack.c.b16 %v1766, %v1765
      %v1771 = vunpack.c.l.b16 %v1615
      %v1772 = vunpack.c.l.b16 %v1616
      %v1773 = vpack.c.b16 %v1772, %v1771
      %v1777 = vunpack.c.l.b16 %v1617
      %v1778 = vunpack.c.l.b16 %v1618
      %v1779 = vpack.c.b16 %v1778, %v1777
      %v1783 = vunpack.c.l.b16 %v1619
      %v1784 = vunpack.c.l.b16 %v1620
      %v1785 = vpack.c.b16 %v1784, %v1783
      %v1789 = vunpack.c.l.b16 %v1621
      %v1790 = vunpack.c.l.b16 %v1622
      %v1791 = vpack.c.b16 %v1790, %v1789
      %v1795 = vunpack.c.l.b16 %v1623
      %v1796 = vunpack.c.l.b16 %v1624
      %v1797 = vpack.c.b16 %v1796, %v1795
      %v1801 = vunpack.c.l.b16 %v1625
      %v1802 = vunpack.c.l.b16 %v1626
      %v1803 = vpack.c.b16 %v1802, %v1801
      %v1807 = vunpack.c.l.b16 %v1627
      %v1808 = vunpack.c.l.b16 %v1628
      %v1809 = vpack.c.b16 %v1808, %v1807
      %v1827 = vunpack.c.l.b16 %v1629
      %v1828 = vunpack.c.l.b16 %v1630
      %v1829 = vunpack.c.l.b16 %v1631
      %v1830 = vunpack.c.l.b16 %v1632
      %v1831 = vunpack.c.l.b16 %v1633
      %v1832 = vunpack.c.l.b16 %v1634
      %v1833 = vunpack.c.l.b16 %v1635
      %v1834 = vunpack.c.l.b16 %v1636
      %v1835 = vunpack.c.l.b16 %v1637
      %v1836 = vunpack.c.l.b16 %v1638
      %v1837 = vunpack.c.l.b16 %v1639
      %v1838 = vunpack.c.l.b16 %v1640
      %v1839 = vunpack.c.l.b16 %v1641
      %v1840 = vunpack.c.l.b16 %v1642
      %v1841 = vunpack.c.l.b16 %v1643
      %v1842 = vunpack.c.l.b16 %v1644
      %v1843 = vpack.c.b16 %v1828, %v1827
      %v1844 = vpack.c.b16 %v1830, %v1829
      %v1845 = vpack.c.b16 %v1832, %v1831
      %v1846 = vpack.c.b16 %v1834, %v1833
      %v1847 = vpack.c.b16 %v1836, %v1835
      %v1848 = vpack.c.b16 %v1838, %v1837
      %v1849 = vpack.c.b16 %v1840, %v1839
      %v1850 = vpack.c.b16 %v1842, %v1841
      %v1875 = vunpack.c.l.b16 %v1645
      %v1876 = vunpack.c.l.b16 %v1646
      %v1877 = vunpack.c.l.b16 %v1647
      %v1878 = vunpack.c.l.b16 %v1648
      %v1879 = vunpack.c.l.b16 %v1649
      %v1880 = vunpack.c.l.b16 %v1650
      %v1881 = vunpack.c.l.b16 %v1651
      %v1882 = vunpack.c.l.b16 %v1652
      %v1883 = vunpack.c.l.b16 %v1653
      %v1884 = vunpack.c.l.b16 %v1654
      %v1885 = vunpack.c.l.b16 %v1655
      %v1886 = vunpack.c.l.b16 %v1656
      %v1887 = vunpack.c.l.b16 %v1657
      %v1888 = vunpack.c.l.b16 %v1658
      %v1889 = vunpack.c.l.b16 %v1659
      %v1890 = vunpack.c.l.b16 %v1660
      %v1891 = vpack.c.b16 %v1876, %v1875
      %v1892 = vpack.c.b16 %v1878, %v1877
      %v1893 = vpack.c.b16 %v1880, %v1879
      %v1894 = vpack.c.b16 %v1882, %v1881
      %v1895 = vpack.c.b16 %v1884, %v1883
      %v1896 = vpack.c.b16 %v1886, %v1885
      %v1897 = vpack.c.b16 %v1888, %v1887
      %v1898 = vpack.c.b16 %v1890, %v1889
      %v1907 = vld [vmem:[%s3] sm:$0xf]
      %v1908 = vld [vmem:[%s3 + $0x4] sm:$0xf]
      %v1909 = vld [vmem:[%s3 + $0x8] sm:$0xf]
      %v1910 = vld [vmem:[%s3 + $0xc] sm:$0xf]
      %v1911 = vld [vmem:[%s3 + $0x10] sm:$0xf]
      %v1912 = vld [vmem:[%s3 + $0x14] sm:$0xf]
      %v1913 = vld [vmem:[%s3 + $0x18] sm:$0xf]
      %v1914 = vld [vmem:[%s3 + $0x1c] sm:$0xf]
      %v1915 = vld [vmem:[%s3 + $0x20] sm:$0xf]
      %v1916 = vld [vmem:[%s3 + $0x24] sm:$0xf]
      %v1917 = vld [vmem:[%s3 + $0x28] sm:$0xf]
      %v1918 = vld [vmem:[%s3 + $0x2c] sm:$0xf]
      %v1919 = vld [vmem:[%s3 + $0x30] sm:$0xf]
      %v1920 = vld [vmem:[%s3 + $0x34] sm:$0xf]
      %v1921 = vld [vmem:[%s3 + $0x38] sm:$0xf]
      %v1922 = vld [vmem:[%s3 + $0x3c] sm:$0xf]
      %v1923 = vld [vmem:[%s3 + $0x40] sm:$0xf]
      %v1924 = vld [vmem:[%s3 + $0x44] sm:$0xf]
      %v1925 = vld [vmem:[%s3 + $0x48] sm:$0xf]
      %v1926 = vld [vmem:[%s3 + $0x4c] sm:$0xf]
      %v1927 = vld [vmem:[%s3 + $0x50] sm:$0xf]
      %v1928 = vld [vmem:[%s3 + $0x54] sm:$0xf]
      %v1929 = vld [vmem:[%s3 + $0x58] sm:$0xf]
      %v1930 = vld [vmem:[%s3 + $0x5c] sm:$0xf]
      %v1931 = vld [vmem:[%s3 + $0x60] sm:$0xf]
      %v1932 = vld [vmem:[%s3 + $0x64] sm:$0xf]
      %v1933 = vld [vmem:[%s3 + $0x68] sm:$0xf]
      %v1934 = vld [vmem:[%s3 + $0x6c] sm:$0xf]
      %v1935 = vld [vmem:[%s3 + $0x70] sm:$0xf]
      %v1936 = vld [vmem:[%s3 + $0x74] sm:$0xf]
      %v1937 = vld [vmem:[%s3 + $0x78] sm:$0xf]
      %v1938 = vld [vmem:[%s3 + $0x7c] sm:$0xf]
      %v1939 = vld [vmem:[%s3 + $0x80] sm:$0xf]
      %v1940 = vld [vmem:[%s3 + $0x84] sm:$0xf]
      %v1941 = vld [vmem:[%s3 + $0x88] sm:$0xf]
      %v1942 = vld [vmem:[%s3 + $0x8c] sm:$0xf]
      %v1943 = vld [vmem:[%s3 + $0x90] sm:$0xf]
      %v1944 = vld [vmem:[%s3 + $0x94] sm:$0xf]
      %v1945 = vld [vmem:[%s3 + $0x98] sm:$0xf]
      %v1946 = vld [vmem:[%s3 + $0x9c] sm:$0xf]
      %v1947 = vld [vmem:[%s3 + $0xa0] sm:$0xf]
      %v1948 = vld [vmem:[%s3 + $0xa4] sm:$0xf]
      %v1949 = vld [vmem:[%s3 + $0xa8] sm:$0xf]
      %v1950 = vld [vmem:[%s3 + $0xac] sm:$0xf]
      %v1951 = vld [vmem:[%s3 + $0xb0] sm:$0xf]
      %v1952 = vld [vmem:[%s3 + $0xb4] sm:$0xf]
      %v1953 = vld [vmem:[%s3 + $0xb8] sm:$0xf]
      %v1954 = vld [vmem:[%s3 + $0xbc] sm:$0xf]
      %v1955 = vld [vmem:[%s3 + $0xc0] sm:$0xf]
      %v1956 = vld [vmem:[%s3 + $0xc4] sm:$0xf]
      %v1957 = vld [vmem:[%s3 + $0xc8] sm:$0xf]
      %v1958 = vld [vmem:[%s3 + $0xcc] sm:$0xf]
      %v1959 = vld [vmem:[%s3 + $0xd0] sm:$0xf]
      %v1960 = vld [vmem:[%s3 + $0xd4] sm:$0xf]
      %v1961 = vld [vmem:[%s3 + $0xd8] sm:$0xf]
      %v1962 = vld [vmem:[%s3 + $0xdc] sm:$0xf]
      %v1963 = vld [vmem:[%s3 + $0xe0] sm:$0xf]
      %v1964 = vld [vmem:[%s3 + $0xe4] sm:$0xf]
      %v1965 = vld [vmem:[%s3 + $0xe8] sm:$0xf]
      %v1966 = vld [vmem:[%s3 + $0xec] sm:$0xf]
      %v1967 = vld [vmem:[%s3 + $0xf0] sm:$0xf]
      %v1968 = vld [vmem:[%s3 + $0xf4] sm:$0xf]
      %v1969 = vld [vmem:[%s3 + $0xf8] sm:$0xf]
      %v1970 = vld [vmem:[%s3 + $0xfc] sm:$0xf]
      %v1971 = vld [vmem:[%s3 + $0x100] sm:$0xf]
      %v1972 = vld [vmem:[%s3 + $0x104] sm:$0xf]
      %v1973 = vld [vmem:[%s3 + $0x108] sm:$0xf]
      %v1974 = vld [vmem:[%s3 + $0x10c] sm:$0xf]
      %v1975 = vld [vmem:[%s3 + $0x110] sm:$0xf]
      %v1976 = vld [vmem:[%s3 + $0x114] sm:$0xf]
      %v1977 = vld [vmem:[%s3 + $0x118] sm:$0xf]
      %v1978 = vld [vmem:[%s3 + $0x11c] sm:$0xf]
      %v1979 = vld [vmem:[%s3 + $0x120] sm:$0xf]
      %v1980 = vld [vmem:[%s3 + $0x124] sm:$0xf]
      %v1981 = vld [vmem:[%s3 + $0x128] sm:$0xf]
      %v1982 = vld [vmem:[%s3 + $0x12c] sm:$0xf]
      %v1983 = vld [vmem:[%s3 + $0x130] sm:$0xf]
      %v1984 = vld [vmem:[%s3 + $0x134] sm:$0xf]
      %v1985 = vld [vmem:[%s3 + $0x138] sm:$0xf]
      %v1986 = vld [vmem:[%s3 + $0x13c] sm:$0xf]
      %v1987 = vld [vmem:[%s3 + $0x140] sm:$0xf]
      %v1988 = vld [vmem:[%s3 + $0x144] sm:$0xf]
      %v1989 = vld [vmem:[%s3 + $0x148] sm:$0xf]
      %v1990 = vld [vmem:[%s3 + $0x14c] sm:$0xf]
      %v1991 = vld [vmem:[%s3 + $0x150] sm:$0xf]
      %v1992 = vld [vmem:[%s3 + $0x154] sm:$0xf]
      %v1993 = vld [vmem:[%s3 + $0x158] sm:$0xf]
      %v1994 = vld [vmem:[%s3 + $0x15c] sm:$0xf]
      %v1995 = vld [vmem:[%s3 + $0x160] sm:$0xf]
      %v1996 = vld [vmem:[%s3 + $0x164] sm:$0xf]
      %v1997 = vld [vmem:[%s3 + $0x168] sm:$0xf]
      %v1998 = vld [vmem:[%s3 + $0x16c] sm:$0xf]
      %v1999 = vld [vmem:[%s3 + $0x170] sm:$0xf]
      %v2000 = vld [vmem:[%s3 + $0x174] sm:$0xf]
      %v2001 = vld [vmem:[%s3 + $0x178] sm:$0xf]
      %v2002 = vld [vmem:[%s3 + $0x17c] sm:$0xf]
      %v2003 = vld [vmem:[%s3 + $0x180] sm:$0xf]
      %v2004 = vld [vmem:[%s3 + $0x184] sm:$0xf]
      %v2005 = vld [vmem:[%s3 + $0x188] sm:$0xf]
      %v2006 = vld [vmem:[%s3 + $0x18c] sm:$0xf]
      %v2007 = vld [vmem:[%s3 + $0x190] sm:$0xf]
      %v2008 = vld [vmem:[%s3 + $0x194] sm:$0xf]
      %v2009 = vld [vmem:[%s3 + $0x198] sm:$0xf]
      %v2010 = vld [vmem:[%s3 + $0x19c] sm:$0xf]
      %v2011 = vld [vmem:[%s3 + $0x1a0] sm:$0xf]
      %v2012 = vld [vmem:[%s3 + $0x1a4] sm:$0xf]
      %v2013 = vld [vmem:[%s3 + $0x1a8] sm:$0xf]
      %v2014 = vld [vmem:[%s3 + $0x1ac] sm:$0xf]
      %v2015 = vld [vmem:[%s3 + $0x1b0] sm:$0xf]
      %v2016 = vld [vmem:[%s3 + $0x1b4] sm:$0xf]
      %v2017 = vld [vmem:[%s3 + $0x1b8] sm:$0xf]
      %v2018 = vld [vmem:[%s3 + $0x1bc] sm:$0xf]
      %v2019 = vld [vmem:[%s3 + $0x1c0] sm:$0xf]
      %v2020 = vld [vmem:[%s3 + $0x1c4] sm:$0xf]
      %v2021 = vld [vmem:[%s3 + $0x1c8] sm:$0xf]
      %v2022 = vld [vmem:[%s3 + $0x1cc] sm:$0xf]
      %v2023 = vld [vmem:[%s3 + $0x1d0] sm:$0xf]
      %v2024 = vld [vmem:[%s3 + $0x1d4] sm:$0xf]
      %v2025 = vld [vmem:[%s3 + $0x1d8] sm:$0xf]
      %v2026 = vld [vmem:[%s3 + $0x1dc] sm:$0xf]
      %v2027 = vld [vmem:[%s3 + $0x1e0] sm:$0xf]
      %v2028 = vld [vmem:[%s3 + $0x1e4] sm:$0xf]
      %v2029 = vld [vmem:[%s3 + $0x1e8] sm:$0xf]
      %v2030 = vld [vmem:[%s3 + $0x1ec] sm:$0xf]
      %v2031 = vld [vmem:[%s3 + $0x1f0] sm:$0xf]
      %v2032 = vld [vmem:[%s3 + $0x1f4] sm:$0xf]
      %v2033 = vld [vmem:[%s3 + $0x1f8] sm:$0xf]
      %v2034 = vld [vmem:[%s3 + $0x1fc] sm:$0xf]
      %v2035 = vld [vmem:[%s3 + $0x200] sm:$0xf]
      %v2036 = vld [vmem:[%s3 + $0x204] sm:$0xf]
      %v2037 = vld [vmem:[%s3 + $0x208] sm:$0xf]
      %v2038 = vld [vmem:[%s3 + $0x20c] sm:$0xf]
      %v2039 = vld [vmem:[%s3 + $0x210] sm:$0xf]
      %v2040 = vld [vmem:[%s3 + $0x214] sm:$0xf]
      %v2041 = vld [vmem:[%s3 + $0x218] sm:$0xf]
      %v2042 = vld [vmem:[%s3 + $0x21c] sm:$0xf]
      %v2043 = vld [vmem:[%s3 + $0x220] sm:$0xf]
      %v2044 = vld [vmem:[%s3 + $0x224] sm:$0xf]
      %v2045 = vld [vmem:[%s3 + $0x228] sm:$0xf]
      %v2046 = vld [vmem:[%s3 + $0x22c] sm:$0xf]
      %v2047 = vld [vmem:[%s3 + $0x230] sm:$0xf]
      %v2048 = vld [vmem:[%s3 + $0x234] sm:$0xf]
      %v2049 = vld [vmem:[%s3 + $0x238] sm:$0xf]
      %v2050 = vld [vmem:[%s3 + $0x23c] sm:$0xf]
      %v2051 = vld [vmem:[%s3 + $0x240] sm:$0xf]
      %v2052 = vld [vmem:[%s3 + $0x244] sm:$0xf]
      %v2053 = vld [vmem:[%s3 + $0x248] sm:$0xf]
      %v2054 = vld [vmem:[%s3 + $0x24c] sm:$0xf]
      %v2055 = vld [vmem:[%s3 + $0x250] sm:$0xf]
      %v2056 = vld [vmem:[%s3 + $0x254] sm:$0xf]
      %v2057 = vld [vmem:[%s3 + $0x258] sm:$0xf]
      %v2058 = vld [vmem:[%s3 + $0x25c] sm:$0xf]
      %v2059 = vld [vmem:[%s3 + $0x260] sm:$0xf]
      %v2060 = vld [vmem:[%s3 + $0x264] sm:$0xf]
      %v2061 = vld [vmem:[%s3 + $0x268] sm:$0xf]
      %v2062 = vld [vmem:[%s3 + $0x26c] sm:$0xf]
      %v2063 = vld [vmem:[%s3 + $0x270] sm:$0xf]
      %v2064 = vld [vmem:[%s3 + $0x274] sm:$0xf]
      %v2065 = vld [vmem:[%s3 + $0x278] sm:$0xf]
      %v2066 = vld [vmem:[%s3 + $0x27c] sm:$0xf]
      %v2067 = vld [vmem:[%s3 + $0x280] sm:$0xf]
      %v2068 = vld [vmem:[%s3 + $0x284] sm:$0xf]
      %v2069 = vld [vmem:[%s3 + $0x288] sm:$0xf]
      %v2070 = vld [vmem:[%s3 + $0x28c] sm:$0xf]
      %v2071 = vld [vmem:[%s3 + $0x290] sm:$0xf]
      %v2072 = vld [vmem:[%s3 + $0x294] sm:$0xf]
      %v2073 = vld [vmem:[%s3 + $0x298] sm:$0xf]
      %v2074 = vld [vmem:[%s3 + $0x29c] sm:$0xf]
      %v2075 = vld [vmem:[%s3 + $0x2a0] sm:$0xf]
      %v2076 = vld [vmem:[%s3 + $0x2a4] sm:$0xf]
      %v2077 = vld [vmem:[%s3 + $0x2a8] sm:$0xf]
      %v2078 = vld [vmem:[%s3 + $0x2ac] sm:$0xf]
      %v2079 = vld [vmem:[%s3 + $0x2b0] sm:$0xf]
      %v2080 = vld [vmem:[%s3 + $0x2b4] sm:$0xf]
      %v2081 = vld [vmem:[%s3 + $0x2b8] sm:$0xf]
      %v2082 = vld [vmem:[%s3 + $0x2bc] sm:$0xf]
      %v2083 = vld [vmem:[%s3 + $0x2c0] sm:$0xf]
      %v2084 = vld [vmem:[%s3 + $0x2c4] sm:$0xf]
      %v2085 = vld [vmem:[%s3 + $0x2c8] sm:$0xf]
      %v2086 = vld [vmem:[%s3 + $0x2cc] sm:$0xf]
      %v2087 = vld [vmem:[%s3 + $0x2d0] sm:$0xf]
      %v2088 = vld [vmem:[%s3 + $0x2d4] sm:$0xf]
      %v2089 = vld [vmem:[%s3 + $0x2d8] sm:$0xf]
      %v2090 = vld [vmem:[%s3 + $0x2dc] sm:$0xf]
      %v2091 = vld [vmem:[%s3 + $0x2e0] sm:$0xf]
      %v2092 = vld [vmem:[%s3 + $0x2e4] sm:$0xf]
      %v2093 = vld [vmem:[%s3 + $0x2e8] sm:$0xf]
      %v2094 = vld [vmem:[%s3 + $0x2ec] sm:$0xf]
      %v2095 = vld [vmem:[%s3 + $0x2f0] sm:$0xf]
      %v2096 = vld [vmem:[%s3 + $0x2f4] sm:$0xf]
      %v2097 = vld [vmem:[%s3 + $0x2f8] sm:$0xf]
      %v2098 = vld [vmem:[%s3 + $0x2fc] sm:$0xf]
      %v2291 = vunpack.c.l.b16 %v1907
      %v2292 = vunpack.c.l.b16 %v1908
      %v2293 = vunpack.c.l.b16 %v1909
      %v2294 = vunpack.c.l.b16 %v1910
      %v2295 = vunpack.c.l.b16 %v1911
      %v2296 = vunpack.c.l.b16 %v1912
      %v2297 = vunpack.c.l.b16 %v1913
      %v2298 = vunpack.c.l.b16 %v1914
      %v2299 = vunpack.c.l.b16 %v1915
      %v2300 = vunpack.c.l.b16 %v1916
      %v2301 = vunpack.c.l.b16 %v1917
      %v2302 = vunpack.c.l.b16 %v1918
      %v2303 = vunpack.c.l.b16 %v1919
      %v2304 = vunpack.c.l.b16 %v1920
      %v2305 = vunpack.c.l.b16 %v1921
      %v2306 = vunpack.c.l.b16 %v1922
      %v2307 = vunpack.c.l.b16 %v1923
      %v2308 = vunpack.c.l.b16 %v1924
      %v2309 = vunpack.c.l.b16 %v1925
      %v2310 = vunpack.c.l.b16 %v1926
      %v2311 = vunpack.c.l.b16 %v1927
      %v2312 = vunpack.c.l.b16 %v1928
      %v2313 = vunpack.c.l.b16 %v1929
      %v2314 = vunpack.c.l.b16 %v1930
      %v2315 = vunpack.c.l.b16 %v1931
      %v2316 = vunpack.c.l.b16 %v1932
      %v2317 = vunpack.c.l.b16 %v1933
      %v2318 = vunpack.c.l.b16 %v1934
      %v2319 = vunpack.c.l.b16 %v1935
      %v2320 = vunpack.c.l.b16 %v1936
      %v2321 = vunpack.c.l.b16 %v1937
      %v2322 = vunpack.c.l.b16 %v1938
      %v2323 = vunpack.c.l.b16 %v1939
      %v2324 = vunpack.c.l.b16 %v1940
      %v2325 = vunpack.c.l.b16 %v1941
      %v2326 = vunpack.c.l.b16 %v1942
      %v2327 = vunpack.c.l.b16 %v1943
      %v2328 = vunpack.c.l.b16 %v1944
      %v2329 = vunpack.c.l.b16 %v1945
      %v2330 = vunpack.c.l.b16 %v1946
      %v2331 = vunpack.c.l.b16 %v1947
      %v2332 = vunpack.c.l.b16 %v1948
      %v2333 = vunpack.c.l.b16 %v1949
      %v2334 = vunpack.c.l.b16 %v1950
      %v2335 = vunpack.c.l.b16 %v1951
      %v2336 = vunpack.c.l.b16 %v1952
      %v2337 = vunpack.c.l.b16 %v1953
      %v2338 = vunpack.c.l.b16 %v1954
      %v2339 = vunpack.c.l.b16 %v1955
      %v2340 = vunpack.c.l.b16 %v1956
      %v2341 = vunpack.c.l.b16 %v1957
      %v2342 = vunpack.c.l.b16 %v1958
      %v2343 = vunpack.c.l.b16 %v1959
      %v2344 = vunpack.c.l.b16 %v1960
      %v2345 = vunpack.c.l.b16 %v1961
      %v2346 = vunpack.c.l.b16 %v1962
      %v2347 = vunpack.c.l.b16 %v1963
      %v2348 = vunpack.c.l.b16 %v1964
      %v2349 = vunpack.c.l.b16 %v1965
      %v2350 = vunpack.c.l.b16 %v1966
      %v2351 = vunpack.c.l.b16 %v1967
      %v2352 = vunpack.c.l.b16 %v1968
      %v2353 = vunpack.c.l.b16 %v1969
      %v2354 = vunpack.c.l.b16 %v1970
      %v2355 = vunpack.c.l.b16 %v1971
      %v2356 = vunpack.c.l.b16 %v1972
      %v2357 = vunpack.c.l.b16 %v1973
      %v2358 = vunpack.c.l.b16 %v1974
      %v2359 = vunpack.c.l.b16 %v1975
      %v2360 = vunpack.c.l.b16 %v1976
      %v2361 = vunpack.c.l.b16 %v1977
      %v2362 = vunpack.c.l.b16 %v1978
      %v2363 = vunpack.c.l.b16 %v1979
      %v2364 = vunpack.c.l.b16 %v1980
      %v2365 = vunpack.c.l.b16 %v1981
      %v2366 = vunpack.c.l.b16 %v1982
      %v2367 = vunpack.c.l.b16 %v1983
      %v2368 = vunpack.c.l.b16 %v1984
      %v2369 = vunpack.c.l.b16 %v1985
      %v2370 = vunpack.c.l.b16 %v1986
      %v2371 = vunpack.c.l.b16 %v1987
      %v2372 = vunpack.c.l.b16 %v1988
      %v2373 = vunpack.c.l.b16 %v1989
      %v2374 = vunpack.c.l.b16 %v1990
      %v2375 = vunpack.c.l.b16 %v1991
      %v2376 = vunpack.c.l.b16 %v1992
      %v2377 = vunpack.c.l.b16 %v1993
      %v2378 = vunpack.c.l.b16 %v1994
      %v2379 = vunpack.c.l.b16 %v1995
      %v2380 = vunpack.c.l.b16 %v1996
      %v2381 = vunpack.c.l.b16 %v1997
      %v2382 = vunpack.c.l.b16 %v1998
      %v2383 = vunpack.c.l.b16 %v1999
      %v2384 = vunpack.c.l.b16 %v2000
      %v2385 = vunpack.c.l.b16 %v2001
      %v2386 = vunpack.c.l.b16 %v2002
      %v2387 = vunpack.c.l.b16 %v2003
      %v2388 = vunpack.c.l.b16 %v2004
      %v2389 = vunpack.c.l.b16 %v2005
      %v2390 = vunpack.c.l.b16 %v2006
      %v2391 = vunpack.c.l.b16 %v2007
      %v2392 = vunpack.c.l.b16 %v2008
      %v2393 = vunpack.c.l.b16 %v2009
      %v2394 = vunpack.c.l.b16 %v2010
      %v2395 = vunpack.c.l.b16 %v2011
      %v2396 = vunpack.c.l.b16 %v2012
      %v2397 = vunpack.c.l.b16 %v2013
      %v2398 = vunpack.c.l.b16 %v2014
      %v2399 = vunpack.c.l.b16 %v2015
      %v2400 = vunpack.c.l.b16 %v2016
      %v2401 = vunpack.c.l.b16 %v2017
      %v2402 = vunpack.c.l.b16 %v2018
      %v2403 = vunpack.c.l.b16 %v2019
      %v2404 = vunpack.c.l.b16 %v2020
      %v2405 = vunpack.c.l.b16 %v2021
      %v2406 = vunpack.c.l.b16 %v2022
      %v2407 = vunpack.c.l.b16 %v2023
      %v2408 = vunpack.c.l.b16 %v2024
      %v2409 = vunpack.c.l.b16 %v2025
      %v2410 = vunpack.c.l.b16 %v2026
      %v2411 = vunpack.c.l.b16 %v2027
      %v2412 = vunpack.c.l.b16 %v2028
      %v2413 = vunpack.c.l.b16 %v2029
      %v2414 = vunpack.c.l.b16 %v2030
      %v2415 = vunpack.c.l.b16 %v2031
      %v2416 = vunpack.c.l.b16 %v2032
      %v2417 = vunpack.c.l.b16 %v2033
      %v2418 = vunpack.c.l.b16 %v2034
      %v2419 = vunpack.c.l.b16 %v2035
      %v2420 = vunpack.c.l.b16 %v2036
      %v2421 = vunpack.c.l.b16 %v2037
      %v2422 = vunpack.c.l.b16 %v2038
      %v2423 = vunpack.c.l.b16 %v2039
      %v2424 = vunpack.c.l.b16 %v2040
      %v2425 = vunpack.c.l.b16 %v2041
      %v2426 = vunpack.c.l.b16 %v2042
      %v2427 = vunpack.c.l.b16 %v2043
      %v2428 = vunpack.c.l.b16 %v2044
      %v2429 = vunpack.c.l.b16 %v2045
      %v2430 = vunpack.c.l.b16 %v2046
      %v2431 = vunpack.c.l.b16 %v2047
      %v2432 = vunpack.c.l.b16 %v2048
      %v2433 = vunpack.c.l.b16 %v2049
      %v2434 = vunpack.c.l.b16 %v2050
      %v2435 = vunpack.c.l.b16 %v2051
      %v2436 = vunpack.c.l.b16 %v2052
      %v2437 = vunpack.c.l.b16 %v2053
      %v2438 = vunpack.c.l.b16 %v2054
      %v2439 = vunpack.c.l.b16 %v2055
      %v2440 = vunpack.c.l.b16 %v2056
      %v2441 = vunpack.c.l.b16 %v2057
      %v2442 = vunpack.c.l.b16 %v2058
      %v2443 = vunpack.c.l.b16 %v2059
      %v2444 = vunpack.c.l.b16 %v2060
      %v2445 = vunpack.c.l.b16 %v2061
      %v2446 = vunpack.c.l.b16 %v2062
      %v2447 = vunpack.c.l.b16 %v2063
      %v2448 = vunpack.c.l.b16 %v2064
      %v2449 = vunpack.c.l.b16 %v2065
      %v2450 = vunpack.c.l.b16 %v2066
      %v2451 = vunpack.c.l.b16 %v2067
      %v2452 = vunpack.c.l.b16 %v2068
      %v2453 = vunpack.c.l.b16 %v2069
      %v2454 = vunpack.c.l.b16 %v2070
      %v2455 = vunpack.c.l.b16 %v2071
      %v2456 = vunpack.c.l.b16 %v2072
      %v2457 = vunpack.c.l.b16 %v2073
      %v2458 = vunpack.c.l.b16 %v2074
      %v2459 = vunpack.c.l.b16 %v2075
      %v2460 = vunpack.c.l.b16 %v2076
      %v2461 = vunpack.c.l.b16 %v2077
      %v2462 = vunpack.c.l.b16 %v2078
      %v2463 = vunpack.c.l.b16 %v2079
      %v2464 = vunpack.c.l.b16 %v2080
      %v2465 = vunpack.c.l.b16 %v2081
      %v2466 = vunpack.c.l.b16 %v2082
      %v2467 = vunpack.c.l.b16 %v2083
      %v2468 = vunpack.c.l.b16 %v2084
      %v2469 = vunpack.c.l.b16 %v2085
      %v2470 = vunpack.c.l.b16 %v2086
      %v2471 = vunpack.c.l.b16 %v2087
      %v2472 = vunpack.c.l.b16 %v2088
      %v2473 = vunpack.c.l.b16 %v2089
      %v2474 = vunpack.c.l.b16 %v2090
      %v2475 = vunpack.c.l.b16 %v2091
      %v2476 = vunpack.c.l.b16 %v2092
      %v2477 = vunpack.c.l.b16 %v2093
      %v2478 = vunpack.c.l.b16 %v2094
      %v2479 = vunpack.c.l.b16 %v2095
      %v2480 = vunpack.c.l.b16 %v2096
      %v2481 = vunpack.c.l.b16 %v2097
      %v2482 = vunpack.c.l.b16 %v2098
      %v2483 = vpack.c.b16 %v2292, %v2291
      %v2484 = vpack.c.b16 %v2294, %v2293
      %v2485 = vpack.c.b16 %v2296, %v2295
      %v2486 = vpack.c.b16 %v2298, %v2297
      %v2487 = vpack.c.b16 %v2300, %v2299
      %v2488 = vpack.c.b16 %v2302, %v2301
      %v2489 = vpack.c.b16 %v2304, %v2303
      %v2490 = vpack.c.b16 %v2306, %v2305
      %v2491 = vpack.c.b16 %v2308, %v2307
      %v2492 = vpack.c.b16 %v2310, %v2309
      %v2493 = vpack.c.b16 %v2312, %v2311
      %v2494 = vpack.c.b16 %v2314, %v2313
      %v2495 = vpack.c.b16 %v2316, %v2315
      %v2496 = vpack.c.b16 %v2318, %v2317
      %v2497 = vpack.c.b16 %v2320, %v2319
      %v2498 = vpack.c.b16 %v2322, %v2321
      %v2499 = vpack.c.b16 %v2324, %v2323
      %v2500 = vpack.c.b16 %v2326, %v2325
      %v2501 = vpack.c.b16 %v2328, %v2327
      %v2502 = vpack.c.b16 %v2330, %v2329
      %v2503 = vpack.c.b16 %v2332, %v2331
      %v2504 = vpack.c.b16 %v2334, %v2333
      %v2505 = vpack.c.b16 %v2336, %v2335
      %v2506 = vpack.c.b16 %v2338, %v2337
      %v2507 = vpack.c.b16 %v2340, %v2339
      %v2508 = vpack.c.b16 %v2342, %v2341
      %v2509 = vpack.c.b16 %v2344, %v2343
      %v2510 = vpack.c.b16 %v2346, %v2345
      %v2511 = vpack.c.b16 %v2348, %v2347
      %v2512 = vpack.c.b16 %v2350, %v2349
      %v2513 = vpack.c.b16 %v2352, %v2351
      %v2514 = vpack.c.b16 %v2354, %v2353
      %v2515 = vpack.c.b16 %v2356, %v2355
      %v2516 = vpack.c.b16 %v2358, %v2357
      %v2517 = vpack.c.b16 %v2360, %v2359
      %v2518 = vpack.c.b16 %v2362, %v2361
      %v2519 = vpack.c.b16 %v2364, %v2363
      %v2520 = vpack.c.b16 %v2366, %v2365
      %v2521 = vpack.c.b16 %v2368, %v2367
      %v2522 = vpack.c.b16 %v2370, %v2369
      %v2523 = vpack.c.b16 %v2372, %v2371
      %v2524 = vpack.c.b16 %v2374, %v2373
      %v2525 = vpack.c.b16 %v2376, %v2375
      %v2526 = vpack.c.b16 %v2378, %v2377
      %v2527 = vpack.c.b16 %v2380, %v2379
      %v2528 = vpack.c.b16 %v2382, %v2381
      %v2529 = vpack.c.b16 %v2384, %v2383
      %v2530 = vpack.c.b16 %v2386, %v2385
      %v2531 = vpack.c.b16 %v2388, %v2387
      %v2532 = vpack.c.b16 %v2390, %v2389
      %v2533 = vpack.c.b16 %v2392, %v2391
      %v2534 = vpack.c.b16 %v2394, %v2393
      %v2535 = vpack.c.b16 %v2396, %v2395
      %v2536 = vpack.c.b16 %v2398, %v2397
      %v2537 = vpack.c.b16 %v2400, %v2399
      %v2538 = vpack.c.b16 %v2402, %v2401
      %v2539 = vpack.c.b16 %v2404, %v2403
      %v2540 = vpack.c.b16 %v2406, %v2405
      %v2541 = vpack.c.b16 %v2408, %v2407
      %v2542 = vpack.c.b16 %v2410, %v2409
      %v2543 = vpack.c.b16 %v2412, %v2411
      %v2544 = vpack.c.b16 %v2414, %v2413
      %v2545 = vpack.c.b16 %v2416, %v2415
      %v2546 = vpack.c.b16 %v2418, %v2417
      %v2547 = vpack.c.b16 %v2420, %v2419
      %v2548 = vpack.c.b16 %v2422, %v2421
      %v2549 = vpack.c.b16 %v2424, %v2423
      %v2550 = vpack.c.b16 %v2426, %v2425
      %v2551 = vpack.c.b16 %v2428, %v2427
      %v2552 = vpack.c.b16 %v2430, %v2429
      %v2553 = vpack.c.b16 %v2432, %v2431
      %v2554 = vpack.c.b16 %v2434, %v2433
      %v2555 = vpack.c.b16 %v2436, %v2435
      %v2556 = vpack.c.b16 %v2438, %v2437
      %v2557 = vpack.c.b16 %v2440, %v2439
      %v2558 = vpack.c.b16 %v2442, %v2441
      %v2559 = vpack.c.b16 %v2444, %v2443
      %v2560 = vpack.c.b16 %v2446, %v2445
      %v2561 = vpack.c.b16 %v2448, %v2447
      %v2562 = vpack.c.b16 %v2450, %v2449
      %v2563 = vpack.c.b16 %v2452, %v2451
      %v2564 = vpack.c.b16 %v2454, %v2453
      %v2565 = vpack.c.b16 %v2456, %v2455
      %v2566 = vpack.c.b16 %v2458, %v2457
      %v2567 = vpack.c.b16 %v2460, %v2459
      %v2568 = vpack.c.b16 %v2462, %v2461
      %v2569 = vpack.c.b16 %v2464, %v2463
      %v2570 = vpack.c.b16 %v2466, %v2465
      %v2571 = vpack.c.b16 %v2468, %v2467
      %v2572 = vpack.c.b16 %v2470, %v2469
      %v2573 = vpack.c.b16 %v2472, %v2471
      %v2574 = vpack.c.b16 %v2474, %v2473
      %v2575 = vpack.c.b16 %v2476, %v2475
      %v2576 = vpack.c.b16 %v2478, %v2477
      %v2577 = vpack.c.b16 %v2480, %v2479
      %v2578 = vpack.c.b16 %v2482, %v2481
      %2675 = vmatpush.bf16.msra.mxu0 %v2490
      %2676 = vmatpush.bf16.msra.mxu0 %v2489
      %2677 = vmatpush.bf16.msra.mxu0 %v2488
      %2678 = vmatpush.bf16.msra.mxu0 %v2487
      %2679 = vmatpush.bf16.msra.mxu0 %v2486
      %2680 = vmatpush.bf16.msra.mxu0 %v2485
      %2681 = vmatpush.bf16.msra.mxu0 %v2484
      %2682 = vmatpush.bf16.msra.mxu0 %v2483
      %2683 = vmatmul.bf16.gmra.mxu0 %v1693
      %v2684 = vpop.f32.mrf.mxu0
      %v2685 = vadd.f32 0.0, %v2684
      %v2686 = vpop.f32.mrf.mxu0
      %v2687 = vadd.f32 0.0, %v2686
      %2688 = vmatmul.bf16.gmra.mxu0 %v1694
      %v2689 = vpop.f32.mrf.mxu0
      %v2690 = vadd.f32 0.0, %v2689
      %v2691 = vpop.f32.mrf.mxu0
      %v2692 = vadd.f32 0.0, %v2691
      %2693 = vmatmul.bf16.gmra.mxu0 %v1695
      %v2694 = vpop.f32.mrf.mxu0
      %v2695 = vadd.f32 0.0, %v2694
      %v2696 = vpop.f32.mrf.mxu0
      %v2697 = vadd.f32 0.0, %v2696
      %2698 = vmatmul.bf16.gmra.mxu0 %v1696
      %v2699 = vpop.f32.mrf.mxu0
      %v2700 = vadd.f32 0.0, %v2699
      %v2701 = vpop.f32.mrf.mxu0
      %v2702 = vadd.f32 0.0, %v2701
      %2703 = vmatmul.bf16.gmra.mxu0 %v1697
      %v2704 = vpop.f32.mrf.mxu0
      %v2705 = vadd.f32 0.0, %v2704
      %v2706 = vpop.f32.mrf.mxu0
      %v2707 = vadd.f32 0.0, %v2706
      %2708 = vmatmul.bf16.gmra.mxu0 %v1698
      %v2709 = vpop.f32.mrf.mxu0
      %v2710 = vadd.f32 0.0, %v2709
      %v2711 = vpop.f32.mrf.mxu0
      %v2712 = vadd.f32 0.0, %v2711
      %2713 = vmatmul.bf16.gmra.mxu0 %v1699
      %v2714 = vpop.f32.mrf.mxu0
      %v2715 = vadd.f32 0.0, %v2714
      %v2716 = vpop.f32.mrf.mxu0
      %v2717 = vadd.f32 0.0, %v2716
      %2718 = vmatmul.bf16.gmra.mxu0 %v1700
      %v2719 = vpop.f32.mrf.mxu0
      %v2720 = vadd.f32 0.0, %v2719
      %v2721 = vpop.f32.mrf.mxu0
      %v2722 = vadd.f32 0.0, %v2721
      %2723 = vmatmul.bf16.gmra.mxu0 %v1741
      %v2724 = vpop.f32.mrf.mxu0
      %v2725 = vadd.f32 0.0, %v2724
      %v2726 = vpop.f32.mrf.mxu0
      %v2727 = vadd.f32 0.0, %v2726
      %2728 = vmatmul.bf16.gmra.mxu0 %v1742
      %v2729 = vpop.f32.mrf.mxu0
      %v2730 = vadd.f32 0.0, %v2729
      %v2731 = vpop.f32.mrf.mxu0
      %v2732 = vadd.f32 0.0, %v2731
      %2733 = vmatmul.bf16.gmra.mxu0 %v1743
      %v2734 = vpop.f32.mrf.mxu0
      %v2735 = vadd.f32 0.0, %v2734
      %v2736 = vpop.f32.mrf.mxu0
      %v2737 = vadd.f32 0.0, %v2736
      %2738 = vmatmul.bf16.gmra.mxu0 %v1744
      %v2739 = vpop.f32.mrf.mxu0
      %v2740 = vadd.f32 0.0, %v2739
      %v2741 = vpop.f32.mrf.mxu0
      %v2742 = vadd.f32 0.0, %v2741
      %2743 = vmatmul.bf16.gmra.mxu0 %v1745
      %v2744 = vpop.f32.mrf.mxu0
      %v2745 = vadd.f32 0.0, %v2744
      %v2746 = vpop.f32.mrf.mxu0
      %v2747 = vadd.f32 0.0, %v2746
      %2748 = vmatmul.bf16.gmra.mxu0 %v1746
      %v2749 = vpop.f32.mrf.mxu0
      %v2750 = vadd.f32 0.0, %v2749
      %v2751 = vpop.f32.mrf.mxu0
      %v2752 = vadd.f32 0.0, %v2751
      %2753 = vmatmul.bf16.gmra.mxu0 %v1747
      %v2754 = vpop.f32.mrf.mxu0
      %v2755 = vadd.f32 0.0, %v2754
      %v2756 = vpop.f32.mrf.mxu0
      %v2757 = vadd.f32 0.0, %v2756
      %2758 = vmatmul.bf16.gmra.mxu0 %v1748
      %v2759 = vpop.f32.mrf.mxu0
      %v2760 = vadd.f32 0.0, %v2759
      %v2761 = vpop.f32.mrf.mxu0
      %v2762 = vadd.f32 0.0, %v2761
      %2763 = vdwg.mxu0
      %2764 = vmatpush.bf16.msra.mxu0 %v2498
      %2765 = vmatpush.bf16.msra.mxu0 %v2497
      %2766 = vmatpush.bf16.msra.mxu0 %v2496
      %2767 = vmatpush.bf16.msra.mxu0 %v2495
      %2768 = vmatpush.bf16.msra.mxu0 %v2494
      %2769 = vmatpush.bf16.msra.mxu0 %v2493
      %2770 = vmatpush.bf16.msra.mxu0 %v2492
      %2771 = vmatpush.bf16.msra.mxu0 %v2491
      %2772 = vmatmul.bf16.gmra.mxu0 %v1741
      %v2773 = vpop.f32.mrf.mxu0
      %v2774 = vadd.f32 %v2685, %v2773
      %v2775 = vpop.f32.mrf.mxu0
      %v2776 = vadd.f32 %v2687, %v2775
      %2777 = vmatmul.bf16.gmra.mxu0 %v1742
      %v2778 = vpop.f32.mrf.mxu0
      %v2779 = vadd.f32 %v2690, %v2778
      %v2780 = vpop.f32.mrf.mxu0
      %v2781 = vadd.f32 %v2692, %v2780
      %2782 = vmatmul.bf16.gmra.mxu0 %v1743
      %v2783 = vpop.f32.mrf.mxu0
      %v2784 = vadd.f32 %v2695, %v2783
      %v2785 = vpop.f32.mrf.mxu0
      %v2786 = vadd.f32 %v2697, %v2785
      %2787 = vmatmul.bf16.gmra.mxu0 %v1744
      %v2788 = vpop.f32.mrf.mxu0
      %v2789 = vadd.f32 %v2700, %v2788
      %v2790 = vpop.f32.mrf.mxu0
      %v2791 = vadd.f32 %v2702, %v2790
      %2792 = vmatmul.bf16.gmra.mxu0 %v1745
      %v2793 = vpop.f32.mrf.mxu0
      %v2794 = vadd.f32 %v2705, %v2793
      %v2795 = vpop.f32.mrf.mxu0
      %v2796 = vadd.f32 %v2707, %v2795
      %2797 = vmatmul.bf16.gmra.mxu0 %v1746
      %v2798 = vpop.f32.mrf.mxu0
      %v2799 = vadd.f32 %v2710, %v2798
      %v2800 = vpop.f32.mrf.mxu0
      %v2801 = vadd.f32 %v2712, %v2800
      %2802 = vmatmul.bf16.gmra.mxu0 %v1747
      %v2803 = vpop.f32.mrf.mxu0
      %v2804 = vadd.f32 %v2715, %v2803
      %v2805 = vpop.f32.mrf.mxu0
      %v2806 = vadd.f32 %v2717, %v2805
      %2807 = vmatmul.bf16.gmra.mxu0 %v1748
      %v2808 = vpop.f32.mrf.mxu0
      %v2809 = vadd.f32 %v2720, %v2808
      %v2810 = vpop.f32.mrf.mxu0
      %v2811 = vadd.f32 %v2722, %v2810
      %2812 = vmatmul.bf16.gmra.mxu0 %v1694
      %v2813 = vpop.f32.mrf.mxu0
      %v2814 = vadd.f32 %v2725, %v2813
      %v2815 = vpop.f32.mrf.mxu0
      %v2816 = vadd.f32 %v2727, %v2815
      %2817 = vmatmul.bf16.gmra.mxu0 %v1695
      %v2818 = vpop.f32.mrf.mxu0
      %v2819 = vadd.f32 %v2730, %v2818
      %v2820 = vpop.f32.mrf.mxu0
      %v2821 = vadd.f32 %v2732, %v2820
      %2822 = vmatmul.bf16.gmra.mxu0 %v1696
      %v2823 = vpop.f32.mrf.mxu0
      %v2824 = vadd.f32 %v2735, %v2823
      %v2825 = vpop.f32.mrf.mxu0
      %v2826 = vadd.f32 %v2737, %v2825
      %2827 = vmatmul.bf16.gmra.mxu0 %v1697
      %v2828 = vpop.f32.mrf.mxu0
      %v2829 = vadd.f32 %v2740, %v2828
      %v2830 = vpop.f32.mrf.mxu0
      %v2831 = vadd.f32 %v2742, %v2830
      %2832 = vmatmul.bf16.gmra.mxu0 %v1698
      %v2833 = vpop.f32.mrf.mxu0
      %v2834 = vadd.f32 %v2745, %v2833
      %v2835 = vpop.f32.mrf.mxu0
      %v2836 = vadd.f32 %v2747, %v2835
      %2837 = vmatmul.bf16.gmra.mxu0 %v1699
      %v2838 = vpop.f32.mrf.mxu0
      %v2839 = vadd.f32 %v2750, %v2838
      %v2840 = vpop.f32.mrf.mxu0
      %v2841 = vadd.f32 %v2752, %v2840
      %2842 = vmatmul.bf16.gmra.mxu0 %v1700
      %v2843 = vpop.f32.mrf.mxu0
      %v2844 = vadd.f32 %v2755, %v2843
      %v2845 = vpop.f32.mrf.mxu0
      %v2846 = vadd.f32 %v2757, %v2845
      %2847 = vmatmul.bf16.gmra.mxu0 %v1761
      %v2848 = vpop.f32.mrf.mxu0
      %v2849 = vadd.f32 %v2760, %v2848
      %v2850 = vpop.f32.mrf.mxu0
      %v2851 = vadd.f32 %v2762, %v2850
      %2852 = vdwg.mxu0
      %2853 = vmatpush.bf16.msra.mxu0 %v2506
      %2854 = vmatpush.bf16.msra.mxu0 %v2505
      %2855 = vmatpush.bf16.msra.mxu0 %v2504
      %2856 = vmatpush.bf16.msra.mxu0 %v2503
      %2857 = vmatpush.bf16.msra.mxu0 %v2502
      %2858 = vmatpush.bf16.msra.mxu0 %v2501
      %2859 = vmatpush.bf16.msra.mxu0 %v2500
      %2860 = vmatpush.bf16.msra.mxu0 %v2499
      %2861 = vmatmul.bf16.gmra.mxu0 %v1694
      %v2862 = vpop.f32.mrf.mxu0
      %v2863 = vadd.f32 %v2774, %v2862
      %v2864 = vpop.f32.mrf.mxu0
      %v2865 = vadd.f32 %v2776, %v2864
      %2866 = vmatmul.bf16.gmra.mxu0 %v1695
      %v2867 = vpop.f32.mrf.mxu0
      %v2868 = vadd.f32 %v2779, %v2867
      %v2869 = vpop.f32.mrf.mxu0
      %v2870 = vadd.f32 %v2781, %v2869
      %2871 = vmatmul.bf16.gmra.mxu0 %v1696
      %v2872 = vpop.f32.mrf.mxu0
      %v2873 = vadd.f32 %v2784, %v2872
      %v2874 = vpop.f32.mrf.mxu0
      %v2875 = vadd.f32 %v2786, %v2874
      %2876 = vmatmul.bf16.gmra.mxu0 %v1697
      %v2877 = vpop.f32.mrf.mxu0
      %v2878 = vadd.f32 %v2789, %v2877
      %v2879 = vpop.f32.mrf.mxu0
      %v2880 = vadd.f32 %v2791, %v2879
      %2881 = vmatmul.bf16.gmra.mxu0 %v1698
      %v2882 = vpop.f32.mrf.mxu0
      %v2883 = vadd.f32 %v2794, %v2882
      %v2884 = vpop.f32.mrf.mxu0
      %v2885 = vadd.f32 %v2796, %v2884
      %2886 = vmatmul.bf16.gmra.mxu0 %v1699
      %v2887 = vpop.f32.mrf.mxu0
      %v2888 = vadd.f32 %v2799, %v2887
      %v2889 = vpop.f32.mrf.mxu0
      %v2890 = vadd.f32 %v2801, %v2889
      %2891 = vmatmul.bf16.gmra.mxu0 %v1700
      %v2892 = vpop.f32.mrf.mxu0
      %v2893 = vadd.f32 %v2804, %v2892
      %v2894 = vpop.f32.mrf.mxu0
      %v2895 = vadd.f32 %v2806, %v2894
      %2896 = vmatmul.bf16.gmra.mxu0 %v1761
      %v2897 = vpop.f32.mrf.mxu0
      %v2898 = vadd.f32 %v2809, %v2897
      %v2899 = vpop.f32.mrf.mxu0
      %v2900 = vadd.f32 %v2811, %v2899
      %2901 = vmatmul.bf16.gmra.mxu0 %v1742
      %v2902 = vpop.f32.mrf.mxu0
      %v2903 = vadd.f32 %v2814, %v2902
      %v2904 = vpop.f32.mrf.mxu0
      %v2905 = vadd.f32 %v2816, %v2904
      %2906 = vmatmul.bf16.gmra.mxu0 %v1743
      %v2907 = vpop.f32.mrf.mxu0
      %v2908 = vadd.f32 %v2819, %v2907
      %v2909 = vpop.f32.mrf.mxu0
      %v2910 = vadd.f32 %v2821, %v2909
      %2911 = vmatmul.bf16.gmra.mxu0 %v1744
      %v2912 = vpop.f32.mrf.mxu0
      %v2913 = vadd.f32 %v2824, %v2912
      %v2914 = vpop.f32.mrf.mxu0
      %v2915 = vadd.f32 %v2826, %v2914
      %2916 = vmatmul.bf16.gmra.mxu0 %v1745
      %v2917 = vpop.f32.mrf.mxu0
      %v2918 = vadd.f32 %v2829, %v2917
      %v2919 = vpop.f32.mrf.mxu0
      %v2920 = vadd.f32 %v2831, %v2919
      %2921 = vmatmul.bf16.gmra.mxu0 %v1746
      %v2922 = vpop.f32.mrf.mxu0
      %v2923 = vadd.f32 %v2834, %v2922
      %v2924 = vpop.f32.mrf.mxu0
      %v2925 = vadd.f32 %v2836, %v2924
      %2926 = vmatmul.bf16.gmra.mxu0 %v1747
      %v2927 = vpop.f32.mrf.mxu0
      %v2928 = vadd.f32 %v2839, %v2927
      %v2929 = vpop.f32.mrf.mxu0
      %v2930 = vadd.f32 %v2841, %v2929
      %2931 = vmatmul.bf16.gmra.mxu0 %v1748
      %v2932 = vpop.f32.mrf.mxu0
      %v2933 = vadd.f32 %v2844, %v2932
      %v2934 = vpop.f32.mrf.mxu0
      %v2935 = vadd.f32 %v2846, %v2934
      %2936 = vmatmul.bf16.gmra.mxu0 %v1767
      %v2937 = vpop.f32.mrf.mxu0
      %v2938 = vadd.f32 %v2849, %v2937
      %v2939 = vpop.f32.mrf.mxu0
      %v2940 = vadd.f32 %v2851, %v2939
      %2941 = vdwg.mxu0
      %2942 = vmatpush.bf16.msra.mxu0 %v2514
      %2943 = vmatpush.bf16.msra.mxu0 %v2513
      %2944 = vmatpush.bf16.msra.mxu0 %v2512
      %2945 = vmatpush.bf16.msra.mxu0 %v2511
      %2946 = vmatpush.bf16.msra.mxu0 %v2510
      %2947 = vmatpush.bf16.msra.mxu0 %v2509
      %2948 = vmatpush.bf16.msra.mxu0 %v2508
      %2949 = vmatpush.bf16.msra.mxu0 %v2507
      %2950 = vmatmul.bf16.gmra.mxu0 %v1742
      %v2951 = vpop.f32.mrf.mxu0
      %v2952 = vadd.f32 %v2863, %v2951
      %v2953 = vpop.f32.mrf.mxu0
      %v2954 = vadd.f32 %v2865, %v2953
      %2955 = vmatmul.bf16.gmra.mxu0 %v1743
      %v2956 = vpop.f32.mrf.mxu0
      %v2957 = vadd.f32 %v2868, %v2956
      %v2958 = vpop.f32.mrf.mxu0
      %v2959 = vadd.f32 %v2870, %v2958
      %2960 = vmatmul.bf16.gmra.mxu0 %v1744
      %v2961 = vpop.f32.mrf.mxu0
      %v2962 = vadd.f32 %v2873, %v2961
      %v2963 = vpop.f32.mrf.mxu0
      %v2964 = vadd.f32 %v2875, %v2963
      %2965 = vmatmul.bf16.gmra.mxu0 %v1745
      %v2966 = vpop.f32.mrf.mxu0
      %v2967 = vadd.f32 %v2878, %v2966
      %v2968 = vpop.f32.mrf.mxu0
      %v2969 = vadd.f32 %v2880, %v2968
      %2970 = vmatmul.bf16.gmra.mxu0 %v1746
      %v2971 = vpop.f32.mrf.mxu0
      %v2972 = vadd.f32 %v2883, %v2971
      %v2973 = vpop.f32.mrf.mxu0
      %v2974 = vadd.f32 %v2885, %v2973
      %2975 = vmatmul.bf16.gmra.mxu0 %v1747
      %v2976 = vpop.f32.mrf.mxu0
      %v2977 = vadd.f32 %v2888, %v2976
      %v2978 = vpop.f32.mrf.mxu0
      %v2979 = vadd.f32 %v2890, %v2978
      %2980 = vmatmul.bf16.gmra.mxu0 %v1748
      %v2981 = vpop.f32.mrf.mxu0
      %v2982 = vadd.f32 %v2893, %v2981
      %v2983 = vpop.f32.mrf.mxu0
      %v2984 = vadd.f32 %v2895, %v2983
      %2985 = vmatmul.bf16.gmra.mxu0 %v1767
      %v2986 = vpop.f32.mrf.mxu0
      %v2987 = vadd.f32 %v2898, %v2986
      %v2988 = vpop.f32.mrf.mxu0
      %v2989 = vadd.f32 %v2900, %v2988
      %2990 = vmatmul.bf16.gmra.mxu0 %v1695
      %v2991 = vpop.f32.mrf.mxu0
      %v2992 = vadd.f32 %v2903, %v2991
      %v2993 = vpop.f32.mrf.mxu0
      %v2994 = vadd.f32 %v2905, %v2993
      %2995 = vmatmul.bf16.gmra.mxu0 %v1696
      %v2996 = vpop.f32.mrf.mxu0
      %v2997 = vadd.f32 %v2908, %v2996
      %v2998 = vpop.f32.mrf.mxu0
      %v2999 = vadd.f32 %v2910, %v2998
      %3000 = vmatmul.bf16.gmra.mxu0 %v1697
      %v3001 = vpop.f32.mrf.mxu0
      %v3002 = vadd.f32 %v2913, %v3001
      %v3003 = vpop.f32.mrf.mxu0
      %v3004 = vadd.f32 %v2915, %v3003
      %3005 = vmatmul.bf16.gmra.mxu0 %v1698
      %v3006 = vpop.f32.mrf.mxu0
      %v3007 = vadd.f32 %v2918, %v3006
      %v3008 = vpop.f32.mrf.mxu0
      %v3009 = vadd.f32 %v2920, %v3008
      %3010 = vmatmul.bf16.gmra.mxu0 %v1699
      %v3011 = vpop.f32.mrf.mxu0
      %v3012 = vadd.f32 %v2923, %v3011
      %v3013 = vpop.f32.mrf.mxu0
      %v3014 = vadd.f32 %v2925, %v3013
      %3015 = vmatmul.bf16.gmra.mxu0 %v1700
      %v3016 = vpop.f32.mrf.mxu0
      %v3017 = vadd.f32 %v2928, %v3016
      %v3018 = vpop.f32.mrf.mxu0
      %v3019 = vadd.f32 %v2930, %v3018
      %3020 = vmatmul.bf16.gmra.mxu0 %v1761
      %v3021 = vpop.f32.mrf.mxu0
      %v3022 = vadd.f32 %v2933, %v3021
      %v3023 = vpop.f32.mrf.mxu0
      %v3024 = vadd.f32 %v2935, %v3023
      %3025 = vmatmul.bf16.gmra.mxu0 %v1773
      %v3026 = vpop.f32.mrf.mxu0
      %v3027 = vadd.f32 %v2938, %v3026
      %v3028 = vpop.f32.mrf.mxu0
      %v3029 = vadd.f32 %v2940, %v3028
      %3030 = vdwg.mxu0
      %3031 = vmatpush.bf16.msra.mxu0 %v2522
      %3032 = vmatpush.bf16.msra.mxu0 %v2521
      %3033 = vmatpush.bf16.msra.mxu0 %v2520
      %3034 = vmatpush.bf16.msra.mxu0 %v2519
      %3035 = vmatpush.bf16.msra.mxu0 %v2518
      %3036 = vmatpush.bf16.msra.mxu0 %v2517
      %3037 = vmatpush.bf16.msra.mxu0 %v2516
      %3038 = vmatpush.bf16.msra.mxu0 %v2515
      %3039 = vmatmul.bf16.gmra.mxu0 %v1695
      %v3040 = vpop.f32.mrf.mxu0
      %v3041 = vadd.f32 %v2952, %v3040
      %v3042 = vpop.f32.mrf.mxu0
      %v3043 = vadd.f32 %v2954, %v3042
      %3044 = vmatmul.bf16.gmra.mxu0 %v1696
      %v3045 = vpop.f32.mrf.mxu0
      %v3046 = vadd.f32 %v2957, %v3045
      %v3047 = vpop.f32.mrf.mxu0
      %v3048 = vadd.f32 %v2959, %v3047
      %3049 = vmatmul.bf16.gmra.mxu0 %v1697
      %v3050 = vpop.f32.mrf.mxu0
      %v3051 = vadd.f32 %v2962, %v3050
      %v3052 = vpop.f32.mrf.mxu0
      %v3053 = vadd.f32 %v2964, %v3052
      %3054 = vmatmul.bf16.gmra.mxu0 %v1698
      %v3055 = vpop.f32.mrf.mxu0
      %v3056 = vadd.f32 %v2967, %v3055
      %v3057 = vpop.f32.mrf.mxu0
      %v3058 = vadd.f32 %v2969, %v3057
      %3059 = vmatmul.bf16.gmra.mxu0 %v1699
      %v3060 = vpop.f32.mrf.mxu0
      %v3061 = vadd.f32 %v2972, %v3060
      %v3062 = vpop.f32.mrf.mxu0
      %v3063 = vadd.f32 %v2974, %v3062
      %3064 = vmatmul.bf16.gmra.mxu0 %v1700
      %v3065 = vpop.f32.mrf.mxu0
      %v3066 = vadd.f32 %v2977, %v3065
      %v3067 = vpop.f32.mrf.mxu0
      %v3068 = vadd.f32 %v2979, %v3067
      %3069 = vmatmul.bf16.gmra.mxu0 %v1761
      %v3070 = vpop.f32.mrf.mxu0
      %v3071 = vadd.f32 %v2982, %v3070
      %v3072 = vpop.f32.mrf.mxu0
      %v3073 = vadd.f32 %v2984, %v3072
      %3074 = vmatmul.bf16.gmra.mxu0 %v1773
      %v3075 = vpop.f32.mrf.mxu0
      %v3076 = vadd.f32 %v2987, %v3075
      %v3077 = vpop.f32.mrf.mxu0
      %v3078 = vadd.f32 %v2989, %v3077
      %3079 = vmatmul.bf16.gmra.mxu0 %v1743
      %v3080 = vpop.f32.mrf.mxu0
      %v3081 = vadd.f32 %v2992, %v3080
      %v3082 = vpop.f32.mrf.mxu0
      %v3083 = vadd.f32 %v2994, %v3082
      %3084 = vmatmul.bf16.gmra.mxu0 %v1744
      %v3085 = vpop.f32.mrf.mxu0
      %v3086 = vadd.f32 %v2997, %v3085
      %v3087 = vpop.f32.mrf.mxu0
      %v3088 = vadd.f32 %v2999, %v3087
      %3089 = vmatmul.bf16.gmra.mxu0 %v1745
      %v3090 = vpop.f32.mrf.mxu0
      %v3091 = vadd.f32 %v3002, %v3090
      %v3092 = vpop.f32.mrf.mxu0
      %v3093 = vadd.f32 %v3004, %v3092
      %3094 = vmatmul.bf16.gmra.mxu0 %v1746
      %v3095 = vpop.f32.mrf.mxu0
      %v3096 = vadd.f32 %v3007, %v3095
      %v3097 = vpop.f32.mrf.mxu0
      %v3098 = vadd.f32 %v3009, %v3097
      %3099 = vmatmul.bf16.gmra.mxu0 %v1747
      %v3100 = vpop.f32.mrf.mxu0
      %v3101 = vadd.f32 %v3012, %v3100
      %v3102 = vpop.f32.mrf.mxu0
      %v3103 = vadd.f32 %v3014, %v3102
      %3104 = vmatmul.bf16.gmra.mxu0 %v1748
      %v3105 = vpop.f32.mrf.mxu0
      %v3106 = vadd.f32 %v3017, %v3105
      %v3107 = vpop.f32.mrf.mxu0
      %v3108 = vadd.f32 %v3019, %v3107
      %3109 = vmatmul.bf16.gmra.mxu0 %v1767
      %v3110 = vpop.f32.mrf.mxu0
      %v3111 = vadd.f32 %v3022, %v3110
      %v3112 = vpop.f32.mrf.mxu0
      %v3113 = vadd.f32 %v3024, %v3112
      %3114 = vmatmul.bf16.gmra.mxu0 %v1779
      %v3115 = vpop.f32.mrf.mxu0
      %v3116 = vadd.f32 %v3027, %v3115
      %v3117 = vpop.f32.mrf.mxu0
      %v3118 = vadd.f32 %v3029, %v3117
      %3119 = vdwg.mxu0
      %3120 = vmatpush.bf16.msra.mxu0 %v2530
      %3121 = vmatpush.bf16.msra.mxu0 %v2529
      %3122 = vmatpush.bf16.msra.mxu0 %v2528
      %3123 = vmatpush.bf16.msra.mxu0 %v2527
      %3124 = vmatpush.bf16.msra.mxu0 %v2526
      %3125 = vmatpush.bf16.msra.mxu0 %v2525
      %3126 = vmatpush.bf16.msra.mxu0 %v2524
      %3127 = vmatpush.bf16.msra.mxu0 %v2523
      %3128 = vmatmul.bf16.gmra.mxu0 %v1743
      %v3129 = vpop.f32.mrf.mxu0
      %v3130 = vadd.f32 %v3041, %v3129
      %v3131 = vpop.f32.mrf.mxu0
      %v3132 = vadd.f32 %v3043, %v3131
      %3133 = vmatmul.bf16.gmra.mxu0 %v1744
      %v3134 = vpop.f32.mrf.mxu0
      %v3135 = vadd.f32 %v3046, %v3134
      %v3136 = vpop.f32.mrf.mxu0
      %v3137 = vadd.f32 %v3048, %v3136
      %3138 = vmatmul.bf16.gmra.mxu0 %v1745
      %v3139 = vpop.f32.mrf.mxu0
      %v3140 = vadd.f32 %v3051, %v3139
      %v3141 = vpop.f32.mrf.mxu0
      %v3142 = vadd.f32 %v3053, %v3141
      %3143 = vmatmul.bf16.gmra.mxu0 %v1746
      %v3144 = vpop.f32.mrf.mxu0
      %v3145 = vadd.f32 %v3056, %v3144
      %v3146 = vpop.f32.mrf.mxu0
      %v3147 = vadd.f32 %v3058, %v3146
      %3148 = vmatmul.bf16.gmra.mxu0 %v1747
      %v3149 = vpop.f32.mrf.mxu0
      %v3150 = vadd.f32 %v3061, %v3149
      %v3151 = vpop.f32.mrf.mxu0
      %v3152 = vadd.f32 %v3063, %v3151
      %3153 = vmatmul.bf16.gmra.mxu0 %v1748
      %v3154 = vpop.f32.mrf.mxu0
      %v3155 = vadd.f32 %v3066, %v3154
      %v3156 = vpop.f32.mrf.mxu0
      %v3157 = vadd.f32 %v3068, %v3156
      %3158 = vmatmul.bf16.gmra.mxu0 %v1767
      %v3159 = vpop.f32.mrf.mxu0
      %v3160 = vadd.f32 %v3071, %v3159
      %v3161 = vpop.f32.mrf.mxu0
      %v3162 = vadd.f32 %v3073, %v3161
      %3163 = vmatmul.bf16.gmra.mxu0 %v1779
      %v3164 = vpop.f32.mrf.mxu0
      %v3165 = vadd.f32 %v3076, %v3164
      %v3166 = vpop.f32.mrf.mxu0
      %v3167 = vadd.f32 %v3078, %v3166
      %3168 = vmatmul.bf16.gmra.mxu0 %v1696
      %v3169 = vpop.f32.mrf.mxu0
      %v3170 = vadd.f32 %v3081, %v3169
      %v3171 = vpop.f32.mrf.mxu0
      %v3172 = vadd.f32 %v3083, %v3171
      %3173 = vmatmul.bf16.gmra.mxu0 %v1697
      %v3174 = vpop.f32.mrf.mxu0
      %v3175 = vadd.f32 %v3086, %v3174
      %v3176 = vpop.f32.mrf.mxu0
      %v3177 = vadd.f32 %v3088, %v3176
      %3178 = vmatmul.bf16.gmra.mxu0 %v1698
      %v3179 = vpop.f32.mrf.mxu0
      %v3180 = vadd.f32 %v3091, %v3179
      %v3181 = vpop.f32.mrf.mxu0
      %v3182 = vadd.f32 %v3093, %v3181
      %3183 = vmatmul.bf16.gmra.mxu0 %v1699
      %v3184 = vpop.f32.mrf.mxu0
      %v3185 = vadd.f32 %v3096, %v3184
      %v3186 = vpop.f32.mrf.mxu0
      %v3187 = vadd.f32 %v3098, %v3186
      %3188 = vmatmul.bf16.gmra.mxu0 %v1700
      %v3189 = vpop.f32.mrf.mxu0
      %v3190 = vadd.f32 %v3101, %v3189
      %v3191 = vpop.f32.mrf.mxu0
      %v3192 = vadd.f32 %v3103, %v3191
      %3193 = vmatmul.bf16.gmra.mxu0 %v1761
      %v3194 = vpop.f32.mrf.mxu0
      %v3195 = vadd.f32 %v3106, %v3194
      %v3196 = vpop.f32.mrf.mxu0
      %v3197 = vadd.f32 %v3108, %v3196
      %3198 = vmatmul.bf16.gmra.mxu0 %v1773
      %v3199 = vpop.f32.mrf.mxu0
      %v3200 = vadd.f32 %v3111, %v3199
      %v3201 = vpop.f32.mrf.mxu0
      %v3202 = vadd.f32 %v3113, %v3201
      %3203 = vmatmul.bf16.gmra.mxu0 %v1785
      %v3204 = vpop.f32.mrf.mxu0
      %v3205 = vadd.f32 %v3116, %v3204
      %v3206 = vpop.f32.mrf.mxu0
      %v3207 = vadd.f32 %v3118, %v3206
      %3208 = vdwg.mxu0
      %3209 = vmatpush.bf16.msra.mxu0 %v2538
      %3210 = vmatpush.bf16.msra.mxu0 %v2537
      %3211 = vmatpush.bf16.msra.mxu0 %v2536
      %3212 = vmatpush.bf16.msra.mxu0 %v2535
      %3213 = vmatpush.bf16.msra.mxu0 %v2534
      %3214 = vmatpush.bf16.msra.mxu0 %v2533
      %3215 = vmatpush.bf16.msra.mxu0 %v2532
      %3216 = vmatpush.bf16.msra.mxu0 %v2531
      %3217 = vmatmul.bf16.gmra.mxu0 %v1696
      %v3218 = vpop.f32.mrf.mxu0
      %v3219 = vadd.f32 %v3130, %v3218
      %v3220 = vpop.f32.mrf.mxu0
      %v3221 = vadd.f32 %v3132, %v3220
      %3222 = vmatmul.bf16.gmra.mxu0 %v1697
      %v3223 = vpop.f32.mrf.mxu0
      %v3224 = vadd.f32 %v3135, %v3223
      %v3225 = vpop.f32.mrf.mxu0
      %v3226 = vadd.f32 %v3137, %v3225
      %3227 = vmatmul.bf16.gmra.mxu0 %v1698
      %v3228 = vpop.f32.mrf.mxu0
      %v3229 = vadd.f32 %v3140, %v3228
      %v3230 = vpop.f32.mrf.mxu0
      %v3231 = vadd.f32 %v3142, %v3230
      %3232 = vmatmul.bf16.gmra.mxu0 %v1699
      %v3233 = vpop.f32.mrf.mxu0
      %v3234 = vadd.f32 %v3145, %v3233
      %v3235 = vpop.f32.mrf.mxu0
      %v3236 = vadd.f32 %v3147, %v3235
      %3237 = vmatmul.bf16.gmra.mxu0 %v1700
      %v3238 = vpop.f32.mrf.mxu0
      %v3239 = vadd.f32 %v3150, %v3238
      %v3240 = vpop.f32.mrf.mxu0
      %v3241 = vadd.f32 %v3152, %v3240
      %3242 = vmatmul.bf16.gmra.mxu0 %v1761
      %v3243 = vpop.f32.mrf.mxu0
      %v3244 = vadd.f32 %v3155, %v3243
      %v3245 = vpop.f32.mrf.mxu0
      %v3246 = vadd.f32 %v3157, %v3245
      %3247 = vmatmul.bf16.gmra.mxu0 %v1773
      %v3248 = vpop.f32.mrf.mxu0
      %v3249 = vadd.f32 %v3160, %v3248
      %v3250 = vpop.f32.mrf.mxu0
      %v3251 = vadd.f32 %v3162, %v3250
      %3252 = vmatmul.bf16.gmra.mxu0 %v1785
      %v3253 = vpop.f32.mrf.mxu0
      %v3254 = vadd.f32 %v3165, %v3253
      %v3255 = vpop.f32.mrf.mxu0
      %v3256 = vadd.f32 %v3167, %v3255
      %3257 = vmatmul.bf16.gmra.mxu0 %v1744
      %v3258 = vpop.f32.mrf.mxu0
      %v3259 = vadd.f32 %v3170, %v3258
      %v3260 = vpop.f32.mrf.mxu0
      %v3261 = vadd.f32 %v3172, %v3260
      %3262 = vmatmul.bf16.gmra.mxu0 %v1745
      %v3263 = vpop.f32.mrf.mxu0
      %v3264 = vadd.f32 %v3175, %v3263
      %v3265 = vpop.f32.mrf.mxu0
      %v3266 = vadd.f32 %v3177, %v3265
      %3267 = vmatmul.bf16.gmra.mxu0 %v1746
      %v3268 = vpop.f32.mrf.mxu0
      %v3269 = vadd.f32 %v3180, %v3268
      %v3270 = vpop.f32.mrf.mxu0
      %v3271 = vadd.f32 %v3182, %v3270
      %3272 = vmatmul.bf16.gmra.mxu0 %v1747
      %v3273 = vpop.f32.mrf.mxu0
      %v3274 = vadd.f32 %v3185, %v3273
      %v3275 = vpop.f32.mrf.mxu0
      %v3276 = vadd.f32 %v3187, %v3275
      %3277 = vmatmul.bf16.gmra.mxu0 %v1748
      %v3278 = vpop.f32.mrf.mxu0
      %v3279 = vadd.f32 %v3190, %v3278
      %v3280 = vpop.f32.mrf.mxu0
      %v3281 = vadd.f32 %v3192, %v3280
      %3282 = vmatmul.bf16.gmra.mxu0 %v1767
      %v3283 = vpop.f32.mrf.mxu0
      %v3284 = vadd.f32 %v3195, %v3283
      %v3285 = vpop.f32.mrf.mxu0
      %v3286 = vadd.f32 %v3197, %v3285
      %3287 = vmatmul.bf16.gmra.mxu0 %v1779
      %v3288 = vpop.f32.mrf.mxu0
      %v3289 = vadd.f32 %v3200, %v3288
      %v3290 = vpop.f32.mrf.mxu0
      %v3291 = vadd.f32 %v3202, %v3290
      %3292 = vmatmul.bf16.gmra.mxu0 %v1791
      %v3293 = vpop.f32.mrf.mxu0
      %v3294 = vadd.f32 %v3205, %v3293
      %v3295 = vpop.f32.mrf.mxu0
      %v3296 = vadd.f32 %v3207, %v3295
      %3297 = vdwg.mxu0
      %3298 = vmatpush.bf16.msra.mxu0 %v2546
      %3299 = vmatpush.bf16.msra.mxu0 %v2545
      %3300 = vmatpush.bf16.msra.mxu0 %v2544
      %3301 = vmatpush.bf16.msra.mxu0 %v2543
      %3302 = vmatpush.bf16.msra.mxu0 %v2542
      %3303 = vmatpush.bf16.msra.mxu0 %v2541
      %3304 = vmatpush.bf16.msra.mxu0 %v2540
      %3305 = vmatpush.bf16.msra.mxu0 %v2539
      %3306 = vmatmul.bf16.gmra.mxu0 %v1744
      %v3307 = vpop.f32.mrf.mxu0
      %v3308 = vadd.f32 %v3219, %v3307
      %v3309 = vpop.f32.mrf.mxu0
      %v3310 = vadd.f32 %v3221, %v3309
      %3311 = vmatmul.bf16.gmra.mxu0 %v1745
      %v3312 = vpop.f32.mrf.mxu0
      %v3313 = vadd.f32 %v3224, %v3312
      %v3314 = vpop.f32.mrf.mxu0
      %v3315 = vadd.f32 %v3226, %v3314
      %3316 = vmatmul.bf16.gmra.mxu0 %v1746
      %v3317 = vpop.f32.mrf.mxu0
      %v3318 = vadd.f32 %v3229, %v3317
      %v3319 = vpop.f32.mrf.mxu0
      %v3320 = vadd.f32 %v3231, %v3319
      %3321 = vmatmul.bf16.gmra.mxu0 %v1747
      %v3322 = vpop.f32.mrf.mxu0
      %v3323 = vadd.f32 %v3234, %v3322
      %v3324 = vpop.f32.mrf.mxu0
      %v3325 = vadd.f32 %v3236, %v3324
      %3326 = vmatmul.bf16.gmra.mxu0 %v1748
      %v3327 = vpop.f32.mrf.mxu0
      %v3328 = vadd.f32 %v3239, %v3327
      %v3329 = vpop.f32.mrf.mxu0
      %v3330 = vadd.f32 %v3241, %v3329
      %3331 = vmatmul.bf16.gmra.mxu0 %v1767
      %v3332 = vpop.f32.mrf.mxu0
      %v3333 = vadd.f32 %v3244, %v3332
      %v3334 = vpop.f32.mrf.mxu0
      %v3335 = vadd.f32 %v3246, %v3334
      %3336 = vmatmul.bf16.gmra.mxu0 %v1779
      %v3337 = vpop.f32.mrf.mxu0
      %v3338 = vadd.f32 %v3249, %v3337
      %v3339 = vpop.f32.mrf.mxu0
      %v3340 = vadd.f32 %v3251, %v3339
      %3341 = vmatmul.bf16.gmra.mxu0 %v1791
      %v3342 = vpop.f32.mrf.mxu0
      %v3343 = vadd.f32 %v3254, %v3342
      %v3344 = vpop.f32.mrf.mxu0
      %v3345 = vadd.f32 %v3256, %v3344
      %3346 = vmatmul.bf16.gmra.mxu0 %v1697
      %v3347 = vpop.f32.mrf.mxu0
      %v3348 = vadd.f32 %v3259, %v3347
      %v3349 = vpop.f32.mrf.mxu0
      %v3350 = vadd.f32 %v3261, %v3349
      %3351 = vmatmul.bf16.gmra.mxu0 %v1698
      %v3352 = vpop.f32.mrf.mxu0
      %v3353 = vadd.f32 %v3264, %v3352
      %v3354 = vpop.f32.mrf.mxu0
      %v3355 = vadd.f32 %v3266, %v3354
      %3356 = vmatmul.bf16.gmra.mxu0 %v1699
      %v3357 = vpop.f32.mrf.mxu0
      %v3358 = vadd.f32 %v3269, %v3357
      %v3359 = vpop.f32.mrf.mxu0
      %v3360 = vadd.f32 %v3271, %v3359
      %3361 = vmatmul.bf16.gmra.mxu0 %v1700
      %v3362 = vpop.f32.mrf.mxu0
      %v3363 = vadd.f32 %v3274, %v3362
      %v3364 = vpop.f32.mrf.mxu0
      %v3365 = vadd.f32 %v3276, %v3364
      %3366 = vmatmul.bf16.gmra.mxu0 %v1761
      %v3367 = vpop.f32.mrf.mxu0
      %v3368 = vadd.f32 %v3279, %v3367
      %v3369 = vpop.f32.mrf.mxu0
      %v3370 = vadd.f32 %v3281, %v3369
      %3371 = vmatmul.bf16.gmra.mxu0 %v1773
      %v3372 = vpop.f32.mrf.mxu0
      %v3373 = vadd.f32 %v3284, %v3372
      %v3374 = vpop.f32.mrf.mxu0
      %v3375 = vadd.f32 %v3286, %v3374
      %3376 = vmatmul.bf16.gmra.mxu0 %v1785
      %v3377 = vpop.f32.mrf.mxu0
      %v3378 = vadd.f32 %v3289, %v3377
      %v3379 = vpop.f32.mrf.mxu0
      %v3380 = vadd.f32 %v3291, %v3379
      %3381 = vmatmul.bf16.gmra.mxu0 %v1797
      %v3382 = vpop.f32.mrf.mxu0
      %v3383 = vadd.f32 %v3294, %v3382
      %v3384 = vpop.f32.mrf.mxu0
      %v3385 = vadd.f32 %v3296, %v3384
      %3386 = vdwg.mxu0
      %3387 = vmatpush.bf16.msra.mxu0 %v2554
      %3388 = vmatpush.bf16.msra.mxu0 %v2553
      %3389 = vmatpush.bf16.msra.mxu0 %v2552
      %3390 = vmatpush.bf16.msra.mxu0 %v2551
      %3391 = vmatpush.bf16.msra.mxu0 %v2550
      %3392 = vmatpush.bf16.msra.mxu0 %v2549
      %3393 = vmatpush.bf16.msra.mxu0 %v2548
      %3394 = vmatpush.bf16.msra.mxu0 %v2547
      %3395 = vmatmul.bf16.gmra.mxu0 %v1697
      %v3396 = vpop.f32.mrf.mxu0
      %v3397 = vadd.f32 %v3308, %v3396
      %v3398 = vpop.f32.mrf.mxu0
      %v3399 = vadd.f32 %v3310, %v3398
      %3400 = vmatmul.bf16.gmra.mxu0 %v1698
      %v3401 = vpop.f32.mrf.mxu0
      %v3402 = vadd.f32 %v3313, %v3401
      %v3403 = vpop.f32.mrf.mxu0
      %v3404 = vadd.f32 %v3315, %v3403
      %3405 = vmatmul.bf16.gmra.mxu0 %v1699
      %v3406 = vpop.f32.mrf.mxu0
      %v3407 = vadd.f32 %v3318, %v3406
      %v3408 = vpop.f32.mrf.mxu0
      %v3409 = vadd.f32 %v3320, %v3408
      %3410 = vmatmul.bf16.gmra.mxu0 %v1700
      %v3411 = vpop.f32.mrf.mxu0
      %v3412 = vadd.f32 %v3323, %v3411
      %v3413 = vpop.f32.mrf.mxu0
      %v3414 = vadd.f32 %v3325, %v3413
      %3415 = vmatmul.bf16.gmra.mxu0 %v1761
      %v3416 = vpop.f32.mrf.mxu0
      %v3417 = vadd.f32 %v3328, %v3416
      %v3418 = vpop.f32.mrf.mxu0
      %v3419 = vadd.f32 %v3330, %v3418
      %3420 = vmatmul.bf16.gmra.mxu0 %v1773
      %v3421 = vpop.f32.mrf.mxu0
      %v3422 = vadd.f32 %v3333, %v3421
      %v3423 = vpop.f32.mrf.mxu0
      %v3424 = vadd.f32 %v3335, %v3423
      %3425 = vmatmul.bf16.gmra.mxu0 %v1785
      %v3426 = vpop.f32.mrf.mxu0
      %v3427 = vadd.f32 %v3338, %v3426
      %v3428 = vpop.f32.mrf.mxu0
      %v3429 = vadd.f32 %v3340, %v3428
      %3430 = vmatmul.bf16.gmra.mxu0 %v1797
      %v3431 = vpop.f32.mrf.mxu0
      %v3432 = vadd.f32 %v3343, %v3431
      %v3433 = vpop.f32.mrf.mxu0
      %v3434 = vadd.f32 %v3345, %v3433
      %3435 = vmatmul.bf16.gmra.mxu0 %v1745
      %v3436 = vpop.f32.mrf.mxu0
      %v3437 = vadd.f32 %v3348, %v3436
      %v3438 = vpop.f32.mrf.mxu0
      %v3439 = vadd.f32 %v3350, %v3438
      %3440 = vmatmul.bf16.gmra.mxu0 %v1746
      %v3441 = vpop.f32.mrf.mxu0
      %v3442 = vadd.f32 %v3353, %v3441
      %v3443 = vpop.f32.mrf.mxu0
      %v3444 = vadd.f32 %v3355, %v3443
      %3445 = vmatmul.bf16.gmra.mxu0 %v1747
      %v3446 = vpop.f32.mrf.mxu0
      %v3447 = vadd.f32 %v3358, %v3446
      %v3448 = vpop.f32.mrf.mxu0
      %v3449 = vadd.f32 %v3360, %v3448
      %3450 = vmatmul.bf16.gmra.mxu0 %v1748
      %v3451 = vpop.f32.mrf.mxu0
      %v3452 = vadd.f32 %v3363, %v3451
      %v3453 = vpop.f32.mrf.mxu0
      %v3454 = vadd.f32 %v3365, %v3453
      %3455 = vmatmul.bf16.gmra.mxu0 %v1767
      %v3456 = vpop.f32.mrf.mxu0
      %v3457 = vadd.f32 %v3368, %v3456
      %v3458 = vpop.f32.mrf.mxu0
      %v3459 = vadd.f32 %v3370, %v3458
      %3460 = vmatmul.bf16.gmra.mxu0 %v1779
      %v3461 = vpop.f32.mrf.mxu0
      %v3462 = vadd.f32 %v3373, %v3461
      %v3463 = vpop.f32.mrf.mxu0
      %v3464 = vadd.f32 %v3375, %v3463
      %3465 = vmatmul.bf16.gmra.mxu0 %v1791
      %v3466 = vpop.f32.mrf.mxu0
      %v3467 = vadd.f32 %v3378, %v3466
      %v3468 = vpop.f32.mrf.mxu0
      %v3469 = vadd.f32 %v3380, %v3468
      %3470 = vmatmul.bf16.gmra.mxu0 %v1803
      %v3471 = vpop.f32.mrf.mxu0
      %v3472 = vadd.f32 %v3383, %v3471
      %v3473 = vpop.f32.mrf.mxu0
      %v3474 = vadd.f32 %v3385, %v3473
      %3475 = vdwg.mxu0
      %3476 = vmatpush.bf16.msra.mxu0 %v2562
      %3477 = vmatpush.bf16.msra.mxu0 %v2561
      %3478 = vmatpush.bf16.msra.mxu0 %v2560
      %3479 = vmatpush.bf16.msra.mxu0 %v2559
      %3480 = vmatpush.bf16.msra.mxu0 %v2558
      %3481 = vmatpush.bf16.msra.mxu0 %v2557
      %3482 = vmatpush.bf16.msra.mxu0 %v2556
      %3483 = vmatpush.bf16.msra.mxu0 %v2555
      %3484 = vmatmul.bf16.gmra.mxu0 %v1745
      %v3485 = vpop.f32.mrf.mxu0
      %v3486 = vadd.f32 %v3397, %v3485
      %v3487 = vpop.f32.mrf.mxu0
      %v3488 = vadd.f32 %v3399, %v3487
      %3489 = vmatmul.bf16.gmra.mxu0 %v1746
      %v3490 = vpop.f32.mrf.mxu0
      %v3491 = vadd.f32 %v3402, %v3490
      %v3492 = vpop.f32.mrf.mxu0
      %v3493 = vadd.f32 %v3404, %v3492
      %3494 = vmatmul.bf16.gmra.mxu0 %v1747
      %v3495 = vpop.f32.mrf.mxu0
      %v3496 = vadd.f32 %v3407, %v3495
      %v3497 = vpop.f32.mrf.mxu0
      %v3498 = vadd.f32 %v3409, %v3497
      %3499 = vmatmul.bf16.gmra.mxu0 %v1748
      %v3500 = vpop.f32.mrf.mxu0
      %v3501 = vadd.f32 %v3412, %v3500
      %v3502 = vpop.f32.mrf.mxu0
      %v3503 = vadd.f32 %v3414, %v3502
      %3504 = vmatmul.bf16.gmra.mxu0 %v1767
      %v3505 = vpop.f32.mrf.mxu0
      %v3506 = vadd.f32 %v3417, %v3505
      %v3507 = vpop.f32.mrf.mxu0
      %v3508 = vadd.f32 %v3419, %v3507
      %3509 = vmatmul.bf16.gmra.mxu0 %v1779
      %v3510 = vpop.f32.mrf.mxu0
      %v3511 = vadd.f32 %v3422, %v3510
      %v3512 = vpop.f32.mrf.mxu0
      %v3513 = vadd.f32 %v3424, %v3512
      %3514 = vmatmul.bf16.gmra.mxu0 %v1791
      %v3515 = vpop.f32.mrf.mxu0
      %v3516 = vadd.f32 %v3427, %v3515
      %v3517 = vpop.f32.mrf.mxu0
      %v3518 = vadd.f32 %v3429, %v3517
      %3519 = vmatmul.bf16.gmra.mxu0 %v1803
      %v3520 = vpop.f32.mrf.mxu0
      %v3521 = vadd.f32 %v3432, %v3520
      %v3522 = vpop.f32.mrf.mxu0
      %v3523 = vadd.f32 %v3434, %v3522
      %3524 = vmatmul.bf16.gmra.mxu0 %v1698
      %v3525 = vpop.f32.mrf.mxu0
      %v3526 = vadd.f32 %v3437, %v3525
      %v3527 = vpop.f32.mrf.mxu0
      %v3528 = vadd.f32 %v3439, %v3527
      %3529 = vmatmul.bf16.gmra.mxu0 %v1699
      %v3530 = vpop.f32.mrf.mxu0
      %v3531 = vadd.f32 %v3442, %v3530
      %v3532 = vpop.f32.mrf.mxu0
      %v3533 = vadd.f32 %v3444, %v3532
      %3534 = vmatmul.bf16.gmra.mxu0 %v1700
      %v3535 = vpop.f32.mrf.mxu0
      %v3536 = vadd.f32 %v3447, %v3535
      %v3537 = vpop.f32.mrf.mxu0
      %v3538 = vadd.f32 %v3449, %v3537
      %3539 = vmatmul.bf16.gmra.mxu0 %v1761
      %v3540 = vpop.f32.mrf.mxu0
      %v3541 = vadd.f32 %v3452, %v3540
      %v3542 = vpop.f32.mrf.mxu0
      %v3543 = vadd.f32 %v3454, %v3542
      %3544 = vmatmul.bf16.gmra.mxu0 %v1773
      %v3545 = vpop.f32.mrf.mxu0
      %v3546 = vadd.f32 %v3457, %v3545
      %v3547 = vpop.f32.mrf.mxu0
      %v3548 = vadd.f32 %v3459, %v3547
      %3549 = vmatmul.bf16.gmra.mxu0 %v1785
      %v3550 = vpop.f32.mrf.mxu0
      %v3551 = vadd.f32 %v3462, %v3550
      %v3552 = vpop.f32.mrf.mxu0
      %v3553 = vadd.f32 %v3464, %v3552
      %3554 = vmatmul.bf16.gmra.mxu0 %v1797
      %v3555 = vpop.f32.mrf.mxu0
      %v3556 = vadd.f32 %v3467, %v3555
      %v3557 = vpop.f32.mrf.mxu0
      %v3558 = vadd.f32 %v3469, %v3557
      %3559 = vmatmul.bf16.gmra.mxu0 %v1809
      %v3560 = vpop.f32.mrf.mxu0
      %v3561 = vadd.f32 %v3472, %v3560
      %v3562 = vpop.f32.mrf.mxu0
      %v3563 = vadd.f32 %v3474, %v3562
      %3564 = vdwg.mxu0
      %3565 = vmatpush.bf16.msra.mxu0 %v2570
      %3566 = vmatpush.bf16.msra.mxu0 %v2569
      %3567 = vmatpush.bf16.msra.mxu0 %v2568
      %3568 = vmatpush.bf16.msra.mxu0 %v2567
      %3569 = vmatpush.bf16.msra.mxu0 %v2566
      %3570 = vmatpush.bf16.msra.mxu0 %v2565
      %3571 = vmatpush.bf16.msra.mxu0 %v2564
      %3572 = vmatpush.bf16.msra.mxu0 %v2563
      %3573 = vmatmul.bf16.gmra.mxu0 %v1698
      %v3574 = vpop.f32.mrf.mxu0
      %v3575 = vadd.f32 %v3486, %v3574
      %v3576 = vpop.f32.mrf.mxu0
      %v3577 = vadd.f32 %v3488, %v3576
      %3578 = vmatmul.bf16.gmra.mxu0 %v1699
      %v3579 = vpop.f32.mrf.mxu0
      %v3580 = vadd.f32 %v3491, %v3579
      %v3581 = vpop.f32.mrf.mxu0
      %v3582 = vadd.f32 %v3493, %v3581
      %3583 = vmatmul.bf16.gmra.mxu0 %v1700
      %v3584 = vpop.f32.mrf.mxu0
      %v3585 = vadd.f32 %v3496, %v3584
      %v3586 = vpop.f32.mrf.mxu0
      %v3587 = vadd.f32 %v3498, %v3586
      %3588 = vmatmul.bf16.gmra.mxu0 %v1761
      %v3589 = vpop.f32.mrf.mxu0
      %v3590 = vadd.f32 %v3501, %v3589
      %v3591 = vpop.f32.mrf.mxu0
      %v3592 = vadd.f32 %v3503, %v3591
      %3593 = vmatmul.bf16.gmra.mxu0 %v1773
      %v3594 = vpop.f32.mrf.mxu0
      %v3595 = vadd.f32 %v3506, %v3594
      %v3596 = vpop.f32.mrf.mxu0
      %v3597 = vadd.f32 %v3508, %v3596
      %3598 = vmatmul.bf16.gmra.mxu0 %v1785
      %v3599 = vpop.f32.mrf.mxu0
      %v3600 = vadd.f32 %v3511, %v3599
      %v3601 = vpop.f32.mrf.mxu0
      %v3602 = vadd.f32 %v3513, %v3601
      %3603 = vmatmul.bf16.gmra.mxu0 %v1797
      %v3604 = vpop.f32.mrf.mxu0
      %v3605 = vadd.f32 %v3516, %v3604
      %v3606 = vpop.f32.mrf.mxu0
      %v3607 = vadd.f32 %v3518, %v3606
      %3608 = vmatmul.bf16.gmra.mxu0 %v1809
      %v3609 = vpop.f32.mrf.mxu0
      %v3610 = vadd.f32 %v3521, %v3609
      %v3611 = vpop.f32.mrf.mxu0
      %v3612 = vadd.f32 %v3523, %v3611
      %3613 = vmatmul.bf16.gmra.mxu0 %v1843
      %v3614 = vpop.f32.mrf.mxu0
      %v3615 = vadd.f32 %v3526, %v3614
      %v3616 = vpop.f32.mrf.mxu0
      %v3617 = vadd.f32 %v3528, %v3616
      %3618 = vmatmul.bf16.gmra.mxu0 %v1844
      %v3619 = vpop.f32.mrf.mxu0
      %v3620 = vadd.f32 %v3531, %v3619
      %v3621 = vpop.f32.mrf.mxu0
      %v3622 = vadd.f32 %v3533, %v3621
      %3623 = vmatmul.bf16.gmra.mxu0 %v1845
      %v3624 = vpop.f32.mrf.mxu0
      %v3625 = vadd.f32 %v3536, %v3624
      %v3626 = vpop.f32.mrf.mxu0
      %v3627 = vadd.f32 %v3538, %v3626
      %3628 = vmatmul.bf16.gmra.mxu0 %v1846
      %v3629 = vpop.f32.mrf.mxu0
      %v3630 = vadd.f32 %v3541, %v3629
      %v3631 = vpop.f32.mrf.mxu0
      %v3632 = vadd.f32 %v3543, %v3631
      %3633 = vmatmul.bf16.gmra.mxu0 %v1847
      %v3634 = vpop.f32.mrf.mxu0
      %v3635 = vadd.f32 %v3546, %v3634
      %v3636 = vpop.f32.mrf.mxu0
      %v3637 = vadd.f32 %v3548, %v3636
      %3638 = vmatmul.bf16.gmra.mxu0 %v1848
      %v3639 = vpop.f32.mrf.mxu0
      %v3640 = vadd.f32 %v3551, %v3639
      %v3641 = vpop.f32.mrf.mxu0
      %v3642 = vadd.f32 %v3553, %v3641
      %3643 = vmatmul.bf16.gmra.mxu0 %v1849
      %v3644 = vpop.f32.mrf.mxu0
      %v3645 = vadd.f32 %v3556, %v3644
      %v3646 = vpop.f32.mrf.mxu0
      %v3647 = vadd.f32 %v3558, %v3646
      %3648 = vmatmul.bf16.gmra.mxu0 %v1850
      %v3649 = vpop.f32.mrf.mxu0
      %v3650 = vadd.f32 %v3561, %v3649
      %v3651 = vpop.f32.mrf.mxu0
      %v3652 = vadd.f32 %v3563, %v3651
      %3653 = vdwg.mxu0
      %3654 = vmatpush.bf16.msra.mxu0 %v2578
      %3655 = vmatpush.bf16.msra.mxu0 %v2577
      %3656 = vmatpush.bf16.msra.mxu0 %v2576
      %3657 = vmatpush.bf16.msra.mxu0 %v2575
      %3658 = vmatpush.bf16.msra.mxu0 %v2574
      %3659 = vmatpush.bf16.msra.mxu0 %v2573
      %3660 = vmatpush.bf16.msra.mxu0 %v2572
      %3661 = vmatpush.bf16.msra.mxu0 %v2571
      %3662 = vmatmul.bf16.gmra.mxu0 %v1843
      %v3663 = vpop.f32.mrf.mxu0
      %v3664 = vadd.f32 %v3575, %v3663
      %v3665 = vpop.f32.mrf.mxu0
      %v3666 = vadd.f32 %v3577, %v3665
      %3667 = vmatmul.bf16.gmra.mxu0 %v1844
      %v3668 = vpop.f32.mrf.mxu0
      %v3669 = vadd.f32 %v3580, %v3668
      %v3670 = vpop.f32.mrf.mxu0
      %v3671 = vadd.f32 %v3582, %v3670
      %3672 = vmatmul.bf16.gmra.mxu0 %v1845
      %v3673 = vpop.f32.mrf.mxu0
      %v3674 = vadd.f32 %v3585, %v3673
      %v3675 = vpop.f32.mrf.mxu0
      %v3676 = vadd.f32 %v3587, %v3675
      %3677 = vmatmul.bf16.gmra.mxu0 %v1846
      %v3678 = vpop.f32.mrf.mxu0
      %v3679 = vadd.f32 %v3590, %v3678
      %v3680 = vpop.f32.mrf.mxu0
      %v3681 = vadd.f32 %v3592, %v3680
      %3682 = vmatmul.bf16.gmra.mxu0 %v1847
      %v3683 = vpop.f32.mrf.mxu0
      %v3684 = vadd.f32 %v3595, %v3683
      %v3685 = vpop.f32.mrf.mxu0
      %v3686 = vadd.f32 %v3597, %v3685
      %3687 = vmatmul.bf16.gmra.mxu0 %v1848
      %v3688 = vpop.f32.mrf.mxu0
      %v3689 = vadd.f32 %v3600, %v3688
      %v3690 = vpop.f32.mrf.mxu0
      %v3691 = vadd.f32 %v3602, %v3690
      %3692 = vmatmul.bf16.gmra.mxu0 %v1849
      %v3693 = vpop.f32.mrf.mxu0
      %v3694 = vadd.f32 %v3605, %v3693
      %v3695 = vpop.f32.mrf.mxu0
      %v3696 = vadd.f32 %v3607, %v3695
      %3697 = vmatmul.bf16.gmra.mxu0 %v1850
      %v3698 = vpop.f32.mrf.mxu0
      %v3699 = vadd.f32 %v3610, %v3698
      %v3700 = vpop.f32.mrf.mxu0
      %v3701 = vadd.f32 %v3612, %v3700
      %3702 = vmatmul.bf16.gmra.mxu0 %v1891
      %v3703 = vpop.f32.mrf.mxu0
      %v3704 = vadd.f32 %v3615, %v3703
      %v3705 = vpop.f32.mrf.mxu0
      %v3706 = vadd.f32 %v3617, %v3705
      %3707 = vmatmul.bf16.gmra.mxu0 %v1892
      %v3708 = vpop.f32.mrf.mxu0
      %v3709 = vadd.f32 %v3620, %v3708
      %v3710 = vpop.f32.mrf.mxu0
      %v3711 = vadd.f32 %v3622, %v3710
      %3712 = vmatmul.bf16.gmra.mxu0 %v1893
      %v3713 = vpop.f32.mrf.mxu0
      %v3714 = vadd.f32 %v3625, %v3713
      %v3715 = vpop.f32.mrf.mxu0
      %v3716 = vadd.f32 %v3627, %v3715
      %3717 = vmatmul.bf16.gmra.mxu0 %v1894
      %v3718 = vpop.f32.mrf.mxu0
      %v3719 = vadd.f32 %v3630, %v3718
      %v3720 = vpop.f32.mrf.mxu0
      %v3721 = vadd.f32 %v3632, %v3720
      %3722 = vmatmul.bf16.gmra.mxu0 %v1895
      %v3723 = vpop.f32.mrf.mxu0
      %v3724 = vadd.f32 %v3635, %v3723
      %v3725 = vpop.f32.mrf.mxu0
      %v3726 = vadd.f32 %v3637, %v3725
      %3727 = vmatmul.bf16.gmra.mxu0 %v1896
      %v3728 = vpop.f32.mrf.mxu0
      %v3729 = vadd.f32 %v3640, %v3728
      %v3730 = vpop.f32.mrf.mxu0
      %v3731 = vadd.f32 %v3642, %v3730
      %3732 = vmatmul.bf16.gmra.mxu0 %v1897
      %v3733 = vpop.f32.mrf.mxu0
      %v3734 = vadd.f32 %v3645, %v3733
      %v3735 = vpop.f32.mrf.mxu0
      %v3736 = vadd.f32 %v3647, %v3735
      %3737 = vmatmul.bf16.gmra.mxu0 %v1898
      %v3738 = vpop.f32.mrf.mxu0
      %v3739 = vadd.f32 %v3650, %v3738
      %v3740 = vpop.f32.mrf.mxu0
      %v3741 = vadd.f32 %v3652, %v3740
      %3742 = vdwg.mxu0
      %v3743 = vld [vmem:[%s5 + $0x1] sm:$0x1]
      %v3744 = vld [vmem:[%s5 + $0x4] sm:$0x1]
      %v3745 = vperm.slane %v3743, 0
      %v3746 = vmul.f32 %v3664, %v3745
      %v3747 = vmul.f32 %v3666, %v3745
      %v3748 = vmul.f32 %v3669, %v3745
      %v3749 = vmul.f32 %v3671, %v3745
      %v3750 = vmul.f32 %v3674, %v3745
      %v3751 = vmul.f32 %v3676, %v3745
      %v3752 = vmul.f32 %v3679, %v3745
      %v3753 = vmul.f32 %v3681, %v3745
      %v3754 = vmul.f32 %v3684, %v3745
      %v3755 = vmul.f32 %v3686, %v3745
      %v3756 = vmul.f32 %v3689, %v3745
      %v3757 = vmul.f32 %v3691, %v3745
      %v3758 = vmul.f32 %v3694, %v3745
      %v3759 = vmul.f32 %v3696, %v3745
      %v3760 = vmul.f32 %v3699, %v3745
      %v3761 = vmul.f32 %v3701, %v3745
      %v3762 = vmul.f32 %v3704, %v3745
      %v3763 = vmul.f32 %v3706, %v3745
      %v3764 = vmul.f32 %v3709, %v3745
      %v3765 = vmul.f32 %v3711, %v3745
      %v3766 = vmul.f32 %v3714, %v3745
      %v3767 = vmul.f32 %v3716, %v3745
      %v3768 = vmul.f32 %v3719, %v3745
      %v3769 = vmul.f32 %v3721, %v3745
      %v3770 = vmul.f32 %v3724, %v3745
      %v3771 = vmul.f32 %v3726, %v3745
      %v3772 = vmul.f32 %v3729, %v3745
      %v3773 = vmul.f32 %v3731, %v3745
      %v3774 = vmul.f32 %v3734, %v3745
      %v3775 = vmul.f32 %v3736, %v3745
      %v3776 = vmul.f32 %v3739, %v3745
      %v3777 = vmul.f32 %v3741, %v3745
      %v3778 = vperm.slane %v3744, 0
      %v3779 = vadd.f32 %v3746, %v3778
      %v3780 = vadd.f32 %v3747, %v3778
      %v3781 = vadd.f32 %v3748, %v3778
      %v3782 = vadd.f32 %v3749, %v3778
      %v3783 = vadd.f32 %v3750, %v3778
      %v3784 = vadd.f32 %v3751, %v3778
      %v3785 = vadd.f32 %v3752, %v3778
      %v3786 = vadd.f32 %v3753, %v3778
      %v3787 = vadd.f32 %v3754, %v3778
      %v3788 = vadd.f32 %v3755, %v3778
      %v3789 = vadd.f32 %v3756, %v3778
      %v3790 = vadd.f32 %v3757, %v3778
      %v3791 = vadd.f32 %v3758, %v3778
      %v3792 = vadd.f32 %v3759, %v3778
      %v3793 = vadd.f32 %v3760, %v3778
      %v3794 = vadd.f32 %v3761, %v3778
      %v3795 = vadd.f32 %v3762, %v3778
      %v3796 = vadd.f32 %v3763, %v3778
      %v3797 = vadd.f32 %v3764, %v3778
      %v3798 = vadd.f32 %v3765, %v3778
      %v3799 = vadd.f32 %v3766, %v3778
      %v3800 = vadd.f32 %v3767, %v3778
      %v3801 = vadd.f32 %v3768, %v3778
      %v3802 = vadd.f32 %v3769, %v3778
      %v3803 = vadd.f32 %v3770, %v3778
      %v3804 = vadd.f32 %v3771, %v3778
      %v3805 = vadd.f32 %v3772, %v3778
      %v3806 = vadd.f32 %v3773, %v3778
      %v3807 = vadd.f32 %v3774, %v3778
      %v3808 = vadd.f32 %v3775, %v3778
      %v3809 = vadd.f32 %v3776, %v3778
      %v3810 = vadd.f32 %v3777, %v3778
      %v3811 = vmax.f32 %v3779, %v3795
      %v3812 = vmax.f32 %v3780, %v3796
      %v3813 = vmax.f32 %v3781, %v3797
      %v3814 = vmax.f32 %v3782, %v3798
      %v3815 = vmax.f32 %v3783, %v3799
      %v3816 = vmax.f32 %v3784, %v3800
      %v3817 = vmax.f32 %v3785, %v3801
      %v3818 = vmax.f32 %v3786, %v3802
      %v3819 = vmax.f32 %v3787, %v3803
      %v3820 = vmax.f32 %v3788, %v3804
      %v3821 = vmax.f32 %v3789, %v3805
      %v3822 = vmax.f32 %v3790, %v3806
      %v3823 = vmax.f32 %v3791, %v3807
      %v3824 = vmax.f32 %v3792, %v3808
      %v3825 = vmax.f32 %v3793, %v3809
      %v3826 = vmax.f32 %v3794, %v3810
      %v3827 = vmax.f32 %v3811, 0.0
      %v3828 = vmax.f32 %v3812, 0.0
      %v3829 = vmax.f32 %v3813, 0.0
      %v3830 = vmax.f32 %v3814, 0.0
      %v3831 = vmax.f32 %v3815, 0.0
      %v3832 = vmax.f32 %v3816, 0.0
      %v3833 = vmax.f32 %v3817, 0.0
      %v3834 = vmax.f32 %v3818, 0.0
      %v3835 = vmax.f32 %v3819, 0.0
      %v3836 = vmax.f32 %v3820, 0.0
      %v3837 = vmax.f32 %v3821, 0.0
      %v3838 = vmax.f32 %v3822, 0.0
      %v3839 = vmax.f32 %v3823, 0.0
      %v3840 = vmax.f32 %v3824, 0.0
      %v3841 = vmax.f32 %v3825, 0.0
      %v3842 = vmax.f32 %v3826, 0.0
      %3843 = vst [vmem:[#allocation4] sm:$0xf] 0
      %3844 = vst [vmem:[#allocation4 + $0x4] sm:$0xf] 0
      %3845 = vst [vmem:[#allocation4 + $0x8] sm:$0xf] 0
      %3846 = vst [vmem:[#allocation4 + $0xc] sm:$0xf] 0
      %3847 = vst [vmem:[#allocation4 + $0x10] sm:$0xf] 0
      %3848 = vst [vmem:[#allocation4 + $0x14] sm:$0xf] 0
      %3849 = vst [vmem:[#allocation4 + $0x18] sm:$0xf] 0
      %3850 = vst [vmem:[#allocation4 + $0x1c] sm:$0xf] 0
      %3851 = vst [vmem:[#allocation5] sm:$0xf] 0
      %3852 = vst [vmem:[#allocation5 + $0x4] sm:$0xf] 0
      %3853 = vst [vmem:[#allocation5 + $0x8] sm:$0xf] 0
      %3854 = vst [vmem:[#allocation5 + $0xc] sm:$0xf] 0
      %3855 = vst [vmem:[#allocation5 + $0x10] sm:$0xf] 0
      %3856 = vst [vmem:[#allocation5 + $0x14] sm:$0xf] 0
      %3857 = vst [vmem:[#allocation5 + $0x18] sm:$0xf] 0
      %3858 = vst [vmem:[#allocation5 + $0x1c] sm:$0xf] 0
      %3859 = vst [vmem:[#allocation4 + $0x40] sm:$0xf] 0
      %3860 = vst [vmem:[#allocation4 + $0x44] sm:$0xf] 0
      %3861 = vst [vmem:[#allocation4 + $0x48] sm:$0xf] 0
      %3862 = vst [vmem:[#allocation4 + $0x4c] sm:$0xf] 0
      %3863 = vst [vmem:[#allocation4 + $0x50] sm:$0xf] 0
      %3864 = vst [vmem:[#allocation4 + $0x54] sm:$0xf] 0
      %3865 = vst [vmem:[#allocation5 + $0x40] sm:$0xf] 0
      %3866 = vst [vmem:[#allocation5 + $0x44] sm:$0xf] 0
      %3867 = vst [vmem:[#allocation5 + $0x48] sm:$0xf] 0
      %3868 = vst [vmem:[#allocation5 + $0x4c] sm:$0xf] 0
      %v3869 = vpack.c.bf16 %v3827, %v3827
      %v3870 = vpack.c.bf16 %v3828, %v3828
      %3871 = vst [vmem:[#allocation4 + $0x20] sm:$0xf] %v3869
      %3872 = vst [vmem:[#allocation4 + $0x24] sm:$0xf] %v3870
      %v3873 = vpack.c.bf16 %v3829, %v3829
      %v3874 = vpack.c.bf16 %v3830, %v3830
      %3875 = vst [vmem:[#allocation5 + $0x20] sm:$0xf] %v3873
      %3876 = vst [vmem:[#allocation5 + $0x24] sm:$0xf] %v3874
      %v3877 = vpack.c.bf16 %v3831, %v3831
      %v3878 = vpack.c.bf16 %v3832, %v3832
      %3879 = vst [vmem:[#allocation4 + $0x28] sm:$0xf] %v3877
      %3880 = vst [vmem:[#allocation4 + $0x2c] sm:$0xf] %v3878
      %v3881 = vpack.c.bf16 %v3833, %v3833
      %v3882 = vpack.c.bf16 %v3834, %v3834
      %3883 = vst [vmem:[#allocation5 + $0x28] sm:$0xf] %v3881
      %3884 = vst [vmem:[#allocation5 + $0x2c] sm:$0xf] %v3882
      %v3885 = vpack.c.bf16 %v3835, %v3835
      %v3886 = vpack.c.bf16 %v3836, %v3836
      %3887 = vst [vmem:[#allocation4 + $0x30] sm:$0xf] %v3885
      %3888 = vst [vmem:[#allocation4 + $0x34] sm:$0xf] %v3886
      %v3889 = vpack.c.bf16 %v3837, %v3837
      %v3890 = vpack.c.bf16 %v3838, %v3838
      %3891 = vst [vmem:[#allocation5 + $0x30] sm:$0xf] %v3889
      %3892 = vst [vmem:[#allocation5 + $0x34] sm:$0xf] %v3890
      %v3893 = vpack.c.bf16 %v3839, %v3839
      %v3894 = vpack.c.bf16 %v3840, %v3840
      %3895 = vst [vmem:[#allocation4 + $0x38] sm:$0xf] %v3893
      %3896 = vst [vmem:[#allocation4 + $0x3c] sm:$0xf] %v3894
      %v3897 = vpack.c.bf16 %v3841, %v3841
      %v3898 = vpack.c.bf16 %v3842, %v3842
      %3899 = vst [vmem:[#allocation5 + $0x38] sm:$0xf] %v3897
      %3900 = vst [vmem:[#allocation5 + $0x3c] sm:$0xf] %v3898
      %v3901 = vld [vmem:[#allocation4 + $0x8] sm:$0xf]
      %v3902 = vld [vmem:[#allocation4 + $0xc] sm:$0xf]
      %v3903 = vld [vmem:[#allocation4 + $0x10] sm:$0xf]
      %v3904 = vld [vmem:[#allocation4 + $0x14] sm:$0xf]
      %v3905 = vld [vmem:[#allocation4 + $0x18] sm:$0xf]
      %v3906 = vld [vmem:[#allocation4 + $0x1c] sm:$0xf]
      %v3907 = vld [vmem:[#allocation4 + $0x20] sm:$0xf]
      %v3908 = vld [vmem:[#allocation4 + $0x24] sm:$0xf]
      %v3909 = vld [vmem:[#allocation5 + $0x8] sm:$0xf]
      %v3910 = vld [vmem:[#allocation5 + $0xc] sm:$0xf]
      %v3911 = vld [vmem:[#allocation5 + $0x10] sm:$0xf]
      %v3912 = vld [vmem:[#allocation5 + $0x14] sm:$0xf]
      %v3913 = vld [vmem:[#allocation5 + $0x18] sm:$0xf]
      %v3914 = vld [vmem:[#allocation5 + $0x1c] sm:$0xf]
      %v3915 = vld [vmem:[#allocation5 + $0x20] sm:$0xf]
      %v3916 = vld [vmem:[#allocation5 + $0x24] sm:$0xf]
      %v3917 = vld [vmem:[#allocation4 + $0x28] sm:$0xf]
      %v3918 = vld [vmem:[#allocation4 + $0x2c] sm:$0xf]
      %v3919 = vld [vmem:[#allocation5 + $0x28] sm:$0xf]
      %v3920 = vld [vmem:[#allocation5 + $0x2c] sm:$0xf]
      %v3921 = vld [vmem:[#allocation4 + $0x30] sm:$0xf]
      %v3922 = vld [vmem:[#allocation4 + $0x34] sm:$0xf]
      %v3923 = vld [vmem:[#allocation5 + $0x30] sm:$0xf]
      %v3924 = vld [vmem:[#allocation5 + $0x34] sm:$0xf]
      %v3925 = vld [vmem:[#allocation4 + $0x38] sm:$0xf]
      %v3926 = vld [vmem:[#allocation4 + $0x3c] sm:$0xf]
      %v3927 = vld [vmem:[#allocation5 + $0x38] sm:$0xf]
      %v3928 = vld [vmem:[#allocation5 + $0x3c] sm:$0xf]
      %v3929 = vld [vmem:[#allocation4 + $0x40] sm:$0xf]
      %v3930 = vld [vmem:[#allocation4 + $0x44] sm:$0xf]
      %v3931 = vld [vmem:[#allocation5 + $0x40] sm:$0xf]
      %v3932 = vld [vmem:[#allocation5 + $0x44] sm:$0xf]
      %v3933 = vld [vmem:[#allocation4 + $0x48] sm:$0xf]
      %v3934 = vld [vmem:[#allocation4 + $0x4c] sm:$0xf]
      %v3935 = vld [vmem:[#allocation5 + $0x30] sm:$0xf]
      %v3936 = vld [vmem:[#allocation5 + $0x34] sm:$0xf]
      %v3937 = vld [vmem:[#allocation5 + $0x38] sm:$0xf]
      %v3938 = vld [vmem:[#allocation5 + $0x3c] sm:$0xf]
      %v3939 = vld [vmem:[#allocation5 + $0x40] sm:$0xf]
      %v3940 = vld [vmem:[#allocation5 + $0x44] sm:$0xf]
      %v3941 = vld [vmem:[#allocation5 + $0x48] sm:$0xf]
      %v3942 = vld [vmem:[#allocation5 + $0x4c] sm:$0xf]
      %v3943 = vld [vmem:[#allocation4 + $0x38] sm:$0xf]
      %v3944 = vld [vmem:[#allocation4 + $0x3c] sm:$0xf]
      %v3945 = vld [vmem:[#allocation4 + $0x40] sm:$0xf]
      %v3946 = vld [vmem:[#allocation4 + $0x44] sm:$0xf]
      %v3947 = vld [vmem:[#allocation4 + $0x48] sm:$0xf]
      %v3948 = vld [vmem:[#allocation4 + $0x4c] sm:$0xf]
      %v3949 = vld [vmem:[#allocation4 + $0x50] sm:$0xf]
      %v3950 = vld [vmem:[#allocation4 + $0x54] sm:$0xf]
      %v3959 = vunpack.c.l.b16 %v3901
      %v3960 = vunpack.c.l.b16 %v3902
      %v3961 = vunpack.c.l.b16 %v3903
      %v3962 = vunpack.c.l.b16 %v3904
      %v3963 = vunpack.c.l.b16 %v3905
      %v3964 = vunpack.c.l.b16 %v3906
      %v3965 = vunpack.c.l.b16 %v3907
      %v3966 = vunpack.c.l.b16 %v3908
      %v3967 = vpack.c.b16 %v3960, %v3959
      %v3968 = vpack.c.b16 %v3962, %v3961
      %v3969 = vpack.c.b16 %v3964, %v3963
      %v3970 = vpack.c.b16 %v3966, %v3965
      %v3983 = vunpack.c.l.b16 %v3909
      %v3984 = vunpack.c.l.b16 %v3910
      %v3985 = vunpack.c.l.b16 %v3911
      %v3986 = vunpack.c.l.b16 %v3912
      %v3987 = vunpack.c.l.b16 %v3913
      %v3988 = vunpack.c.l.b16 %v3914
      %v3989 = vunpack.c.l.b16 %v3915
      %v3990 = vunpack.c.l.b16 %v3916
      %v3991 = vpack.c.b16 %v3984, %v3983
      %v3992 = vpack.c.b16 %v3986, %v3985
      %v3993 = vpack.c.b16 %v3988, %v3987
      %v3994 = vpack.c.b16 %v3990, %v3989
      %v4001 = vunpack.c.l.b16 %v3917
      %v4002 = vunpack.c.l.b16 %v3918
      %v4003 = vpack.c.b16 %v4002, %v4001
      %v4007 = vunpack.c.l.b16 %v3919
      %v4008 = vunpack.c.l.b16 %v3920
      %v4009 = vpack.c.b16 %v4008, %v4007
      %v4013 = vunpack.c.l.b16 %v3921
      %v4014 = vunpack.c.l.b16 %v3922
      %v4015 = vpack.c.b16 %v4014, %v4013
      %v4019 = vunpack.c.l.b16 %v3923
      %v4020 = vunpack.c.l.b16 %v3924
      %v4021 = vpack.c.b16 %v4020, %v4019
      %v4025 = vunpack.c.l.b16 %v3925
      %v4026 = vunpack.c.l.b16 %v3926
      %v4027 = vpack.c.b16 %v4026, %v4025
      %v4031 = vunpack.c.l.b16 %v3927
      %v4032 = vunpack.c.l.b16 %v3928
      %v4033 = vpack.c.b16 %v4032, %v4031
      %v4037 = vunpack.c.l.b16 %v3929
      %v4038 = vunpack.c.l.b16 %v3930
      %v4039 = vpack.c.b16 %v4038, %v4037
      %v4043 = vunpack.c.l.b16 %v3931
      %v4044 = vunpack.c.l.b16 %v3932
      %v4045 = vpack.c.b16 %v4044, %v4043
      %v4049 = vunpack.c.l.b16 %v3933
      %v4050 = vunpack.c.l.b16 %v3934
      %v4051 = vpack.c.b16 %v4050, %v4049
      %v4061 = vunpack.c.l.b16 %v3935
      %v4062 = vunpack.c.l.b16 %v3936
      %v4063 = vunpack.c.l.b16 %v3937
      %v4064 = vunpack.c.l.b16 %v3938
      %v4065 = vunpack.c.l.b16 %v3939
      %v4066 = vunpack.c.l.b16 %v3940
      %v4067 = vunpack.c.l.b16 %v3941
      %v4068 = vunpack.c.l.b16 %v3942
      %v4069 = vpack.c.b16 %v4062, %v4061
      %v4070 = vpack.c.b16 %v4064, %v4063
      %v4071 = vpack.c.b16 %v4066, %v4065
      %v4072 = vpack.c.b16 %v4068, %v4067
      %v4085 = vunpack.c.l.b16 %v3943
      %v4086 = vunpack.c.l.b16 %v3944
      %v4087 = vunpack.c.l.b16 %v3945
      %v4088 = vunpack.c.l.b16 %v3946
      %v4089 = vunpack.c.l.b16 %v3947
      %v4090 = vunpack.c.l.b16 %v3948
      %v4091 = vunpack.c.l.b16 %v3949
      %v4092 = vunpack.c.l.b16 %v3950
      %v4093 = vpack.c.b16 %v4086, %v4085
      %v4094 = vpack.c.b16 %v4088, %v4087
      %v4095 = vpack.c.b16 %v4090, %v4089
      %v4096 = vpack.c.b16 %v4092, %v4091
      %v4101 = vld [vmem:[%s4] sm:$0xf]
      %v4102 = vld [vmem:[%s4 + $0x4] sm:$0xf]
      %v4103 = vld [vmem:[%s4 + $0x8] sm:$0xf]
      %v4104 = vld [vmem:[%s4 + $0xc] sm:$0xf]
      %v4105 = vld [vmem:[%s4 + $0x10] sm:$0xf]
      %v4106 = vld [vmem:[%s4 + $0x14] sm:$0xf]
      %v4107 = vld [vmem:[%s4 + $0x18] sm:$0xf]
      %v4108 = vld [vmem:[%s4 + $0x1c] sm:$0xf]
      %v4109 = vld [vmem:[%s4 + $0x20] sm:$0xf]
      %v4110 = vld [vmem:[%s4 + $0x24] sm:$0xf]
      %v4111 = vld [vmem:[%s4 + $0x28] sm:$0xf]
      %v4112 = vld [vmem:[%s4 + $0x2c] sm:$0xf]
      %v4113 = vld [vmem:[%s4 + $0x30] sm:$0xf]
      %v4114 = vld [vmem:[%s4 + $0x34] sm:$0xf]
      %v4115 = vld [vmem:[%s4 + $0x38] sm:$0xf]
      %v4116 = vld [vmem:[%s4 + $0x3c] sm:$0xf]
      %v4117 = vld [vmem:[%s4 + $0x40] sm:$0xf]
      %v4118 = vld [vmem:[%s4 + $0x44] sm:$0xf]
      %v4119 = vld [vmem:[%s4 + $0x48] sm:$0xf]
      %v4120 = vld [vmem:[%s4 + $0x4c] sm:$0xf]
      %v4121 = vld [vmem:[%s4 + $0x50] sm:$0xf]
      %v4122 = vld [vmem:[%s4 + $0x54] sm:$0xf]
      %v4123 = vld [vmem:[%s4 + $0x58] sm:$0xf]
      %v4124 = vld [vmem:[%s4 + $0x5c] sm:$0xf]
      %v4125 = vld [vmem:[%s4 + $0x60] sm:$0xf]
      %v4126 = vld [vmem:[%s4 + $0x64] sm:$0xf]
      %v4127 = vld [vmem:[%s4 + $0x68] sm:$0xf]
      %v4128 = vld [vmem:[%s4 + $0x6c] sm:$0xf]
      %v4129 = vld [vmem:[%s4 + $0x70] sm:$0xf]
      %v4130 = vld [vmem:[%s4 + $0x74] sm:$0xf]
      %v4131 = vld [vmem:[%s4 + $0x78] sm:$0xf]
      %v4132 = vld [vmem:[%s4 + $0x7c] sm:$0xf]
      %v4133 = vld [vmem:[%s4 + $0x80] sm:$0xf]
      %v4134 = vld [vmem:[%s4 + $0x84] sm:$0xf]
      %v4135 = vld [vmem:[%s4 + $0x88] sm:$0xf]
      %v4136 = vld [vmem:[%s4 + $0x8c] sm:$0xf]
      %v4137 = vld [vmem:[%s4 + $0x90] sm:$0xf]
      %v4138 = vld [vmem:[%s4 + $0x94] sm:$0xf]
      %v4139 = vld [vmem:[%s4 + $0x98] sm:$0xf]
      %v4140 = vld [vmem:[%s4 + $0x9c] sm:$0xf]
      %v4141 = vld [vmem:[%s4 + $0xa0] sm:$0xf]
      %v4142 = vld [vmem:[%s4 + $0xa4] sm:$0xf]
      %v4143 = vld [vmem:[%s4 + $0xa8] sm:$0xf]
      %v4144 = vld [vmem:[%s4 + $0xac] sm:$0xf]
      %v4145 = vld [vmem:[%s4 + $0xb0] sm:$0xf]
      %v4146 = vld [vmem:[%s4 + $0xb4] sm:$0xf]
      %v4147 = vld [vmem:[%s4 + $0xb8] sm:$0xf]
      %v4148 = vld [vmem:[%s4 + $0xbc] sm:$0xf]
      %v4149 = vld [vmem:[%s4 + $0xc0] sm:$0xf]
      %v4150 = vld [vmem:[%s4 + $0xc4] sm:$0xf]
      %v4151 = vld [vmem:[%s4 + $0xc8] sm:$0xf]
      %v4152 = vld [vmem:[%s4 + $0xcc] sm:$0xf]
      %v4153 = vld [vmem:[%s4 + $0xd0] sm:$0xf]
      %v4154 = vld [vmem:[%s4 + $0xd4] sm:$0xf]
      %v4155 = vld [vmem:[%s4 + $0xd8] sm:$0xf]
      %v4156 = vld [vmem:[%s4 + $0xdc] sm:$0xf]
      %v4157 = vld [vmem:[%s4 + $0xe0] sm:$0xf]
      %v4158 = vld [vmem:[%s4 + $0xe4] sm:$0xf]
      %v4159 = vld [vmem:[%s4 + $0xe8] sm:$0xf]
      %v4160 = vld [vmem:[%s4 + $0xec] sm:$0xf]
      %v4161 = vld [vmem:[%s4 + $0xf0] sm:$0xf]
      %v4162 = vld [vmem:[%s4 + $0xf4] sm:$0xf]
      %v4163 = vld [vmem:[%s4 + $0xf8] sm:$0xf]
      %v4164 = vld [vmem:[%s4 + $0xfc] sm:$0xf]
      %v4165 = vld [vmem:[%s4 + $0x100] sm:$0xf]
      %v4166 = vld [vmem:[%s4 + $0x104] sm:$0xf]
      %v4167 = vld [vmem:[%s4 + $0x108] sm:$0xf]
      %v4168 = vld [vmem:[%s4 + $0x10c] sm:$0xf]
      %v4169 = vld [vmem:[%s4 + $0x110] sm:$0xf]
      %v4170 = vld [vmem:[%s4 + $0x114] sm:$0xf]
      %v4171 = vld [vmem:[%s4 + $0x118] sm:$0xf]
      %v4172 = vld [vmem:[%s4 + $0x11c] sm:$0xf]
      %v4173 = vld [vmem:[%s4 + $0x120] sm:$0xf]
      %v4174 = vld [vmem:[%s4 + $0x124] sm:$0xf]
      %v4175 = vld [vmem:[%s4 + $0x128] sm:$0xf]
      %v4176 = vld [vmem:[%s4 + $0x12c] sm:$0xf]
      %v4177 = vld [vmem:[%s4 + $0x130] sm:$0xf]
      %v4178 = vld [vmem:[%s4 + $0x134] sm:$0xf]
      %v4179 = vld [vmem:[%s4 + $0x138] sm:$0xf]
      %v4180 = vld [vmem:[%s4 + $0x13c] sm:$0xf]
      %v4181 = vld [vmem:[%s4 + $0x140] sm:$0xf]
      %v4182 = vld [vmem:[%s4 + $0x144] sm:$0xf]
      %v4183 = vld [vmem:[%s4 + $0x148] sm:$0xf]
      %v4184 = vld [vmem:[%s4 + $0x14c] sm:$0xf]
      %v4185 = vld [vmem:[%s4 + $0x150] sm:$0xf]
      %v4186 = vld [vmem:[%s4 + $0x154] sm:$0xf]
      %v4187 = vld [vmem:[%s4 + $0x158] sm:$0xf]
      %v4188 = vld [vmem:[%s4 + $0x15c] sm:$0xf]
      %v4189 = vld [vmem:[%s4 + $0x160] sm:$0xf]
      %v4190 = vld [vmem:[%s4 + $0x164] sm:$0xf]
      %v4191 = vld [vmem:[%s4 + $0x168] sm:$0xf]
      %v4192 = vld [vmem:[%s4 + $0x16c] sm:$0xf]
      %v4193 = vld [vmem:[%s4 + $0x170] sm:$0xf]
      %v4194 = vld [vmem:[%s4 + $0x174] sm:$0xf]
      %v4195 = vld [vmem:[%s4 + $0x178] sm:$0xf]
      %v4196 = vld [vmem:[%s4 + $0x17c] sm:$0xf]
      %v4197 = vld [vmem:[%s4 + $0x180] sm:$0xf]
      %v4198 = vld [vmem:[%s4 + $0x184] sm:$0xf]
      %v4199 = vld [vmem:[%s4 + $0x188] sm:$0xf]
      %v4200 = vld [vmem:[%s4 + $0x18c] sm:$0xf]
      %v4201 = vld [vmem:[%s4 + $0x190] sm:$0xf]
      %v4202 = vld [vmem:[%s4 + $0x194] sm:$0xf]
      %v4203 = vld [vmem:[%s4 + $0x198] sm:$0xf]
      %v4204 = vld [vmem:[%s4 + $0x19c] sm:$0xf]
      %v4205 = vld [vmem:[%s4 + $0x1a0] sm:$0xf]
      %v4206 = vld [vmem:[%s4 + $0x1a4] sm:$0xf]
      %v4207 = vld [vmem:[%s4 + $0x1a8] sm:$0xf]
      %v4208 = vld [vmem:[%s4 + $0x1ac] sm:$0xf]
      %v4209 = vld [vmem:[%s4 + $0x1b0] sm:$0xf]
      %v4210 = vld [vmem:[%s4 + $0x1b4] sm:$0xf]
      %v4211 = vld [vmem:[%s4 + $0x1b8] sm:$0xf]
      %v4212 = vld [vmem:[%s4 + $0x1bc] sm:$0xf]
      %v4213 = vld [vmem:[%s4 + $0x1c0] sm:$0xf]
      %v4214 = vld [vmem:[%s4 + $0x1c4] sm:$0xf]
      %v4215 = vld [vmem:[%s4 + $0x1c8] sm:$0xf]
      %v4216 = vld [vmem:[%s4 + $0x1cc] sm:$0xf]
      %v4217 = vld [vmem:[%s4 + $0x1d0] sm:$0xf]
      %v4218 = vld [vmem:[%s4 + $0x1d4] sm:$0xf]
      %v4219 = vld [vmem:[%s4 + $0x1d8] sm:$0xf]
      %v4220 = vld [vmem:[%s4 + $0x1dc] sm:$0xf]
      %v4221 = vld [vmem:[%s4 + $0x1e0] sm:$0xf]
      %v4222 = vld [vmem:[%s4 + $0x1e4] sm:$0xf]
      %v4223 = vld [vmem:[%s4 + $0x1e8] sm:$0xf]
      %v4224 = vld [vmem:[%s4 + $0x1ec] sm:$0xf]
      %v4225 = vld [vmem:[%s4 + $0x1f0] sm:$0xf]
      %v4226 = vld [vmem:[%s4 + $0x1f4] sm:$0xf]
      %v4227 = vld [vmem:[%s4 + $0x1f8] sm:$0xf]
      %v4228 = vld [vmem:[%s4 + $0x1fc] sm:$0xf]
      %v4229 = vld [vmem:[%s4 + $0x200] sm:$0xf]
      %v4230 = vld [vmem:[%s4 + $0x204] sm:$0xf]
      %v4231 = vld [vmem:[%s4 + $0x208] sm:$0xf]
      %v4232 = vld [vmem:[%s4 + $0x20c] sm:$0xf]
      %v4233 = vld [vmem:[%s4 + $0x210] sm:$0xf]
      %v4234 = vld [vmem:[%s4 + $0x214] sm:$0xf]
      %v4235 = vld [vmem:[%s4 + $0x218] sm:$0xf]
      %v4236 = vld [vmem:[%s4 + $0x21c] sm:$0xf]
      %v4237 = vld [vmem:[%s4 + $0x220] sm:$0xf]
      %v4238 = vld [vmem:[%s4 + $0x224] sm:$0xf]
      %v4239 = vld [vmem:[%s4 + $0x228] sm:$0xf]
      %v4240 = vld [vmem:[%s4 + $0x22c] sm:$0xf]
      %v4241 = vld [vmem:[%s4 + $0x230] sm:$0xf]
      %v4242 = vld [vmem:[%s4 + $0x234] sm:$0xf]
      %v4243 = vld [vmem:[%s4 + $0x238] sm:$0xf]
      %v4244 = vld [vmem:[%s4 + $0x23c] sm:$0xf]
      %v4245 = vld [vmem:[%s4 + $0x240] sm:$0xf]
      %v4246 = vld [vmem:[%s4 + $0x244] sm:$0xf]
      %v4247 = vld [vmem:[%s4 + $0x248] sm:$0xf]
      %v4248 = vld [vmem:[%s4 + $0x24c] sm:$0xf]
      %v4249 = vld [vmem:[%s4 + $0x250] sm:$0xf]
      %v4250 = vld [vmem:[%s4 + $0x254] sm:$0xf]
      %v4251 = vld [vmem:[%s4 + $0x258] sm:$0xf]
      %v4252 = vld [vmem:[%s4 + $0x25c] sm:$0xf]
      %v4253 = vld [vmem:[%s4 + $0x260] sm:$0xf]
      %v4254 = vld [vmem:[%s4 + $0x264] sm:$0xf]
      %v4255 = vld [vmem:[%s4 + $0x268] sm:$0xf]
      %v4256 = vld [vmem:[%s4 + $0x26c] sm:$0xf]
      %v4257 = vld [vmem:[%s4 + $0x270] sm:$0xf]
      %v4258 = vld [vmem:[%s4 + $0x274] sm:$0xf]
      %v4259 = vld [vmem:[%s4 + $0x278] sm:$0xf]
      %v4260 = vld [vmem:[%s4 + $0x27c] sm:$0xf]
      %v4261 = vld [vmem:[%s4 + $0x280] sm:$0xf]
      %v4262 = vld [vmem:[%s4 + $0x284] sm:$0xf]
      %v4263 = vld [vmem:[%s4 + $0x288] sm:$0xf]
      %v4264 = vld [vmem:[%s4 + $0x28c] sm:$0xf]
      %v4265 = vld [vmem:[%s4 + $0x290] sm:$0xf]
      %v4266 = vld [vmem:[%s4 + $0x294] sm:$0xf]
      %v4267 = vld [vmem:[%s4 + $0x298] sm:$0xf]
      %v4268 = vld [vmem:[%s4 + $0x29c] sm:$0xf]
      %v4269 = vld [vmem:[%s4 + $0x2a0] sm:$0xf]
      %v4270 = vld [vmem:[%s4 + $0x2a4] sm:$0xf]
      %v4271 = vld [vmem:[%s4 + $0x2a8] sm:$0xf]
      %v4272 = vld [vmem:[%s4 + $0x2ac] sm:$0xf]
      %v4273 = vld [vmem:[%s4 + $0x2b0] sm:$0xf]
      %v4274 = vld [vmem:[%s4 + $0x2b4] sm:$0xf]
      %v4275 = vld [vmem:[%s4 + $0x2b8] sm:$0xf]
      %v4276 = vld [vmem:[%s4 + $0x2bc] sm:$0xf]
      %v4277 = vld [vmem:[%s4 + $0x2c0] sm:$0xf]
      %v4278 = vld [vmem:[%s4 + $0x2c4] sm:$0xf]
      %v4279 = vld [vmem:[%s4 + $0x2c8] sm:$0xf]
      %v4280 = vld [vmem:[%s4 + $0x2cc] sm:$0xf]
      %v4281 = vld [vmem:[%s4 + $0x2d0] sm:$0xf]
      %v4282 = vld [vmem:[%s4 + $0x2d4] sm:$0xf]
      %v4283 = vld [vmem:[%s4 + $0x2d8] sm:$0xf]
      %v4284 = vld [vmem:[%s4 + $0x2dc] sm:$0xf]
      %v4285 = vld [vmem:[%s4 + $0x2e0] sm:$0xf]
      %v4286 = vld [vmem:[%s4 + $0x2e4] sm:$0xf]
      %v4287 = vld [vmem:[%s4 + $0x2e8] sm:$0xf]
      %v4288 = vld [vmem:[%s4 + $0x2ec] sm:$0xf]
      %v4289 = vld [vmem:[%s4 + $0x2f0] sm:$0xf]
      %v4290 = vld [vmem:[%s4 + $0x2f4] sm:$0xf]
      %v4291 = vld [vmem:[%s4 + $0x2f8] sm:$0xf]
      %v4292 = vld [vmem:[%s4 + $0x2fc] sm:$0xf]
      %v4485 = vunpack.c.l.b16 %v4101
      %v4486 = vunpack.c.l.b16 %v4102
      %v4487 = vunpack.c.l.b16 %v4103
      %v4488 = vunpack.c.l.b16 %v4104
      %v4489 = vunpack.c.l.b16 %v4105
      %v4490 = vunpack.c.l.b16 %v4106
      %v4491 = vunpack.c.l.b16 %v4107
      %v4492 = vunpack.c.l.b16 %v4108
      %v4493 = vunpack.c.l.b16 %v4109
      %v4494 = vunpack.c.l.b16 %v4110
      %v4495 = vunpack.c.l.b16 %v4111
      %v4496 = vunpack.c.l.b16 %v4112
      %v4497 = vunpack.c.l.b16 %v4113
      %v4498 = vunpack.c.l.b16 %v4114
      %v4499 = vunpack.c.l.b16 %v4115
      %v4500 = vunpack.c.l.b16 %v4116
      %v4501 = vunpack.c.l.b16 %v4117
      %v4502 = vunpack.c.l.b16 %v4118
      %v4503 = vunpack.c.l.b16 %v4119
      %v4504 = vunpack.c.l.b16 %v4120
      %v4505 = vunpack.c.l.b16 %v4121
      %v4506 = vunpack.c.l.b16 %v4122
      %v4507 = vunpack.c.l.b16 %v4123
      %v4508 = vunpack.c.l.b16 %v4124
      %v4509 = vunpack.c.l.b16 %v4125
      %v4510 = vunpack.c.l.b16 %v4126
      %v4511 = vunpack.c.l.b16 %v4127
      %v4512 = vunpack.c.l.b16 %v4128
      %v4513 = vunpack.c.l.b16 %v4129
      %v4514 = vunpack.c.l.b16 %v4130
      %v4515 = vunpack.c.l.b16 %v4131
      %v4516 = vunpack.c.l.b16 %v4132
      %v4517 = vunpack.c.l.b16 %v4133
      %v4518 = vunpack.c.l.b16 %v4134
      %v4519 = vunpack.c.l.b16 %v4135
      %v4520 = vunpack.c.l.b16 %v4136
      %v4521 = vunpack.c.l.b16 %v4137
      %v4522 = vunpack.c.l.b16 %v4138
      %v4523 = vunpack.c.l.b16 %v4139
      %v4524 = vunpack.c.l.b16 %v4140
      %v4525 = vunpack.c.l.b16 %v4141
      %v4526 = vunpack.c.l.b16 %v4142
      %v4527 = vunpack.c.l.b16 %v4143
      %v4528 = vunpack.c.l.b16 %v4144
      %v4529 = vunpack.c.l.b16 %v4145
      %v4530 = vunpack.c.l.b16 %v4146
      %v4531 = vunpack.c.l.b16 %v4147
      %v4532 = vunpack.c.l.b16 %v4148
      %v4533 = vunpack.c.l.b16 %v4149
      %v4534 = vunpack.c.l.b16 %v4150
      %v4535 = vunpack.c.l.b16 %v4151
      %v4536 = vunpack.c.l.b16 %v4152
      %v4537 = vunpack.c.l.b16 %v4153
      %v4538 = vunpack.c.l.b16 %v4154
      %v4539 = vunpack.c.l.b16 %v4155
      %v4540 = vunpack.c.l.b16 %v4156
      %v4541 = vunpack.c.l.b16 %v4157
      %v4542 = vunpack.c.l.b16 %v4158
      %v4543 = vunpack.c.l.b16 %v4159
      %v4544 = vunpack.c.l.b16 %v4160
      %v4545 = vunpack.c.l.b16 %v4161
      %v4546 = vunpack.c.l.b16 %v4162
      %v4547 = vunpack.c.l.b16 %v4163
      %v4548 = vunpack.c.l.b16 %v4164
      %v4549 = vunpack.c.l.b16 %v4165
      %v4550 = vunpack.c.l.b16 %v4166
      %v4551 = vunpack.c.l.b16 %v4167
      %v4552 = vunpack.c.l.b16 %v4168
      %v4553 = vunpack.c.l.b16 %v4169
      %v4554 = vunpack.c.l.b16 %v4170
      %v4555 = vunpack.c.l.b16 %v4171
      %v4556 = vunpack.c.l.b16 %v4172
      %v4557 = vunpack.c.l.b16 %v4173
      %v4558 = vunpack.c.l.b16 %v4174
      %v4559 = vunpack.c.l.b16 %v4175
      %v4560 = vunpack.c.l.b16 %v4176
      %v4561 = vunpack.c.l.b16 %v4177
      %v4562 = vunpack.c.l.b16 %v4178
      %v4563 = vunpack.c.l.b16 %v4179
      %v4564 = vunpack.c.l.b16 %v4180
      %v4565 = vunpack.c.l.b16 %v4181
      %v4566 = vunpack.c.l.b16 %v4182
      %v4567 = vunpack.c.l.b16 %v4183
      %v4568 = vunpack.c.l.b16 %v4184
      %v4569 = vunpack.c.l.b16 %v4185
      %v4570 = vunpack.c.l.b16 %v4186
      %v4571 = vunpack.c.l.b16 %v4187
      %v4572 = vunpack.c.l.b16 %v4188
      %v4573 = vunpack.c.l.b16 %v4189
      %v4574 = vunpack.c.l.b16 %v4190
      %v4575 = vunpack.c.l.b16 %v4191
      %v4576 = vunpack.c.l.b16 %v4192
      %v4577 = vunpack.c.l.b16 %v4193
      %v4578 = vunpack.c.l.b16 %v4194
      %v4579 = vunpack.c.l.b16 %v4195
      %v4580 = vunpack.c.l.b16 %v4196
      %v4581 = vunpack.c.l.b16 %v4197
      %v4582 = vunpack.c.l.b16 %v4198
      %v4583 = vunpack.c.l.b16 %v4199
      %v4584 = vunpack.c.l.b16 %v4200
      %v4585 = vunpack.c.l.b16 %v4201
      %v4586 = vunpack.c.l.b16 %v4202
      %v4587 = vunpack.c.l.b16 %v4203
      %v4588 = vunpack.c.l.b16 %v4204
      %v4589 = vunpack.c.l.b16 %v4205
      %v4590 = vunpack.c.l.b16 %v4206
      %v4591 = vunpack.c.l.b16 %v4207
      %v4592 = vunpack.c.l.b16 %v4208
      %v4593 = vunpack.c.l.b16 %v4209
      %v4594 = vunpack.c.l.b16 %v4210
      %v4595 = vunpack.c.l.b16 %v4211
      %v4596 = vunpack.c.l.b16 %v4212
      %v4597 = vunpack.c.l.b16 %v4213
      %v4598 = vunpack.c.l.b16 %v4214
      %v4599 = vunpack.c.l.b16 %v4215
      %v4600 = vunpack.c.l.b16 %v4216
      %v4601 = vunpack.c.l.b16 %v4217
      %v4602 = vunpack.c.l.b16 %v4218
      %v4603 = vunpack.c.l.b16 %v4219
      %v4604 = vunpack.c.l.b16 %v4220
      %v4605 = vunpack.c.l.b16 %v4221
      %v4606 = vunpack.c.l.b16 %v4222
      %v4607 = vunpack.c.l.b16 %v4223
      %v4608 = vunpack.c.l.b16 %v4224
      %v4609 = vunpack.c.l.b16 %v4225
      %v4610 = vunpack.c.l.b16 %v4226
      %v4611 = vunpack.c.l.b16 %v4227
      %v4612 = vunpack.c.l.b16 %v4228
      %v4613 = vunpack.c.l.b16 %v4229
      %v4614 = vunpack.c.l.b16 %v4230
      %v4615 = vunpack.c.l.b16 %v4231
      %v4616 = vunpack.c.l.b16 %v4232
      %v4617 = vunpack.c.l.b16 %v4233
      %v4618 = vunpack.c.l.b16 %v4234
      %v4619 = vunpack.c.l.b16 %v4235
      %v4620 = vunpack.c.l.b16 %v4236
      %v4621 = vunpack.c.l.b16 %v4237
      %v4622 = vunpack.c.l.b16 %v4238
      %v4623 = vunpack.c.l.b16 %v4239
      %v4624 = vunpack.c.l.b16 %v4240
      %v4625 = vunpack.c.l.b16 %v4241
      %v4626 = vunpack.c.l.b16 %v4242
      %v4627 = vunpack.c.l.b16 %v4243
      %v4628 = vunpack.c.l.b16 %v4244
      %v4629 = vunpack.c.l.b16 %v4245
      %v4630 = vunpack.c.l.b16 %v4246
      %v4631 = vunpack.c.l.b16 %v4247
      %v4632 = vunpack.c.l.b16 %v4248
      %v4633 = vunpack.c.l.b16 %v4249
      %v4634 = vunpack.c.l.b16 %v4250
      %v4635 = vunpack.c.l.b16 %v4251
      %v4636 = vunpack.c.l.b16 %v4252
      %v4637 = vunpack.c.l.b16 %v4253
      %v4638 = vunpack.c.l.b16 %v4254
      %v4639 = vunpack.c.l.b16 %v4255
      %v4640 = vunpack.c.l.b16 %v4256
      %v4641 = vunpack.c.l.b16 %v4257
      %v4642 = vunpack.c.l.b16 %v4258
      %v4643 = vunpack.c.l.b16 %v4259
      %v4644 = vunpack.c.l.b16 %v4260
      %v4645 = vunpack.c.l.b16 %v4261
      %v4646 = vunpack.c.l.b16 %v4262
      %v4647 = vunpack.c.l.b16 %v4263
      %v4648 = vunpack.c.l.b16 %v4264
      %v4649 = vunpack.c.l.b16 %v4265
      %v4650 = vunpack.c.l.b16 %v4266
      %v4651 = vunpack.c.l.b16 %v4267
      %v4652 = vunpack.c.l.b16 %v4268
      %v4653 = vunpack.c.l.b16 %v4269
      %v4654 = vunpack.c.l.b16 %v4270
      %v4655 = vunpack.c.l.b16 %v4271
      %v4656 = vunpack.c.l.b16 %v4272
      %v4657 = vunpack.c.l.b16 %v4273
      %v4658 = vunpack.c.l.b16 %v4274
      %v4659 = vunpack.c.l.b16 %v4275
      %v4660 = vunpack.c.l.b16 %v4276
      %v4661 = vunpack.c.l.b16 %v4277
      %v4662 = vunpack.c.l.b16 %v4278
      %v4663 = vunpack.c.l.b16 %v4279
      %v4664 = vunpack.c.l.b16 %v4280
      %v4665 = vunpack.c.l.b16 %v4281
      %v4666 = vunpack.c.l.b16 %v4282
      %v4667 = vunpack.c.l.b16 %v4283
      %v4668 = vunpack.c.l.b16 %v4284
      %v4669 = vunpack.c.l.b16 %v4285
      %v4670 = vunpack.c.l.b16 %v4286
      %v4671 = vunpack.c.l.b16 %v4287
      %v4672 = vunpack.c.l.b16 %v4288
      %v4673 = vunpack.c.l.b16 %v4289
      %v4674 = vunpack.c.l.b16 %v4290
      %v4675 = vunpack.c.l.b16 %v4291
      %v4676 = vunpack.c.l.b16 %v4292
      %v4677 = vpack.c.b16 %v4486, %v4485
      %v4678 = vpack.c.b16 %v4488, %v4487
      %v4679 = vpack.c.b16 %v4490, %v4489
      %v4680 = vpack.c.b16 %v4492, %v4491
      %v4681 = vpack.c.b16 %v4494, %v4493
      %v4682 = vpack.c.b16 %v4496, %v4495
      %v4683 = vpack.c.b16 %v4498, %v4497
      %v4684 = vpack.c.b16 %v4500, %v4499
      %v4685 = vpack.c.b16 %v4502, %v4501
      %v4686 = vpack.c.b16 %v4504, %v4503
      %v4687 = vpack.c.b16 %v4506, %v4505
      %v4688 = vpack.c.b16 %v4508, %v4507
      %v4689 = vpack.c.b16 %v4510, %v4509
      %v4690 = vpack.c.b16 %v4512, %v4511
      %v4691 = vpack.c.b16 %v4514, %v4513
      %v4692 = vpack.c.b16 %v4516, %v4515
      %v4693 = vpack.c.b16 %v4518, %v4517
      %v4694 = vpack.c.b16 %v4520, %v4519
      %v4695 = vpack.c.b16 %v4522, %v4521
      %v4696 = vpack.c.b16 %v4524, %v4523
      %v4697 = vpack.c.b16 %v4526, %v4525
      %v4698 = vpack.c.b16 %v4528, %v4527
      %v4699 = vpack.c.b16 %v4530, %v4529
      %v4700 = vpack.c.b16 %v4532, %v4531
      %v4701 = vpack.c.b16 %v4534, %v4533
      %v4702 = vpack.c.b16 %v4536, %v4535
      %v4703 = vpack.c.b16 %v4538, %v4537
      %v4704 = vpack.c.b16 %v4540, %v4539
      %v4705 = vpack.c.b16 %v4542, %v4541
      %v4706 = vpack.c.b16 %v4544, %v4543
      %v4707 = vpack.c.b16 %v4546, %v4545
      %v4708 = vpack.c.b16 %v4548, %v4547
      %v4709 = vpack.c.b16 %v4550, %v4549
      %v4710 = vpack.c.b16 %v4552, %v4551
      %v4711 = vpack.c.b16 %v4554, %v4553
      %v4712 = vpack.c.b16 %v4556, %v4555
      %v4713 = vpack.c.b16 %v4558, %v4557
      %v4714 = vpack.c.b16 %v4560, %v4559
      %v4715 = vpack.c.b16 %v4562, %v4561
      %v4716 = vpack.c.b16 %v4564, %v4563
      %v4717 = vpack.c.b16 %v4566, %v4565
      %v4718 = vpack.c.b16 %v4568, %v4567
      %v4719 = vpack.c.b16 %v4570, %v4569
      %v4720 = vpack.c.b16 %v4572, %v4571
      %v4721 = vpack.c.b16 %v4574, %v4573
      %v4722 = vpack.c.b16 %v4576, %v4575
      %v4723 = vpack.c.b16 %v4578, %v4577
      %v4724 = vpack.c.b16 %v4580, %v4579
      %v4725 = vpack.c.b16 %v4582, %v4581
      %v4726 = vpack.c.b16 %v4584, %v4583
      %v4727 = vpack.c.b16 %v4586, %v4585
      %v4728 = vpack.c.b16 %v4588, %v4587
      %v4729 = vpack.c.b16 %v4590, %v4589
      %v4730 = vpack.c.b16 %v4592, %v4591
      %v4731 = vpack.c.b16 %v4594, %v4593
      %v4732 = vpack.c.b16 %v4596, %v4595
      %v4733 = vpack.c.b16 %v4598, %v4597
      %v4734 = vpack.c.b16 %v4600, %v4599
      %v4735 = vpack.c.b16 %v4602, %v4601
      %v4736 = vpack.c.b16 %v4604, %v4603
      %v4737 = vpack.c.b16 %v4606, %v4605
      %v4738 = vpack.c.b16 %v4608, %v4607
      %v4739 = vpack.c.b16 %v4610, %v4609
      %v4740 = vpack.c.b16 %v4612, %v4611
      %v4741 = vpack.c.b16 %v4614, %v4613
      %v4742 = vpack.c.b16 %v4616, %v4615
      %v4743 = vpack.c.b16 %v4618, %v4617
      %v4744 = vpack.c.b16 %v4620, %v4619
      %v4745 = vpack.c.b16 %v4622, %v4621
      %v4746 = vpack.c.b16 %v4624, %v4623
      %v4747 = vpack.c.b16 %v4626, %v4625
      %v4748 = vpack.c.b16 %v4628, %v4627
      %v4749 = vpack.c.b16 %v4630, %v4629
      %v4750 = vpack.c.b16 %v4632, %v4631
      %v4751 = vpack.c.b16 %v4634, %v4633
      %v4752 = vpack.c.b16 %v4636, %v4635
      %v4753 = vpack.c.b16 %v4638, %v4637
      %v4754 = vpack.c.b16 %v4640, %v4639
      %v4755 = vpack.c.b16 %v4642, %v4641
      %v4756 = vpack.c.b16 %v4644, %v4643
      %v4757 = vpack.c.b16 %v4646, %v4645
      %v4758 = vpack.c.b16 %v4648, %v4647
      %v4759 = vpack.c.b16 %v4650, %v4649
      %v4760 = vpack.c.b16 %v4652, %v4651
      %v4761 = vpack.c.b16 %v4654, %v4653
      %v4762 = vpack.c.b16 %v4656, %v4655
      %v4763 = vpack.c.b16 %v4658, %v4657
      %v4764 = vpack.c.b16 %v4660, %v4659
      %v4765 = vpack.c.b16 %v4662, %v4661
      %v4766 = vpack.c.b16 %v4664, %v4663
      %v4767 = vpack.c.b16 %v4666, %v4665
      %v4768 = vpack.c.b16 %v4668, %v4667
      %v4769 = vpack.c.b16 %v4670, %v4669
      %v4770 = vpack.c.b16 %v4672, %v4671
      %v4771 = vpack.c.b16 %v4674, %v4673
      %v4772 = vpack.c.b16 %v4676, %v4675
      %4869 = vmatpush.bf16.msra.mxu0 %v4684
      %4870 = vmatpush.bf16.msra.mxu0 %v4683
      %4871 = vmatpush.bf16.msra.mxu0 %v4682
      %4872 = vmatpush.bf16.msra.mxu0 %v4681
      %4873 = vmatpush.bf16.msra.mxu0 %v4680
      %4874 = vmatpush.bf16.msra.mxu0 %v4679
      %4875 = vmatpush.bf16.msra.mxu0 %v4678
      %4876 = vmatpush.bf16.msra.mxu0 %v4677
      %4877 = vmatmul.bf16.gmra.mxu0 %v3967
      %v4878 = vpop.f32.mrf.mxu0
      %v4879 = vadd.f32 0.0, %v4878
      %v4880 = vpop.f32.mrf.mxu0
      %v4881 = vadd.f32 0.0, %v4880
      %4882 = vmatmul.bf16.gmra.mxu0 %v3968
      %v4883 = vpop.f32.mrf.mxu0
      %v4884 = vadd.f32 0.0, %v4883
      %v4885 = vpop.f32.mrf.mxu0
      %v4886 = vadd.f32 0.0, %v4885
      %4887 = vmatmul.bf16.gmra.mxu0 %v3969
      %v4888 = vpop.f32.mrf.mxu0
      %v4889 = vadd.f32 0.0, %v4888
      %v4890 = vpop.f32.mrf.mxu0
      %v4891 = vadd.f32 0.0, %v4890
      %4892 = vmatmul.bf16.gmra.mxu0 %v3970
      %v4893 = vpop.f32.mrf.mxu0
      %v4894 = vadd.f32 0.0, %v4893
      %v4895 = vpop.f32.mrf.mxu0
      %v4896 = vadd.f32 0.0, %v4895
      %4897 = vmatmul.bf16.gmra.mxu0 %v3991
      %v4898 = vpop.f32.mrf.mxu0
      %v4899 = vadd.f32 0.0, %v4898
      %v4900 = vpop.f32.mrf.mxu0
      %v4901 = vadd.f32 0.0, %v4900
      %4902 = vmatmul.bf16.gmra.mxu0 %v3992
      %v4903 = vpop.f32.mrf.mxu0
      %v4904 = vadd.f32 0.0, %v4903
      %v4905 = vpop.f32.mrf.mxu0
      %v4906 = vadd.f32 0.0, %v4905
      %4907 = vmatmul.bf16.gmra.mxu0 %v3993
      %v4908 = vpop.f32.mrf.mxu0
      %v4909 = vadd.f32 0.0, %v4908
      %v4910 = vpop.f32.mrf.mxu0
      %v4911 = vadd.f32 0.0, %v4910
      %4912 = vmatmul.bf16.gmra.mxu0 %v3994
      %v4913 = vpop.f32.mrf.mxu0
      %v4914 = vadd.f32 0.0, %v4913
      %v4915 = vpop.f32.mrf.mxu0
      %v4916 = vadd.f32 0.0, %v4915
      %4917 = vdwg.mxu0
      %4918 = vmatpush.bf16.msra.mxu0 %v4692
      %4919 = vmatpush.bf16.msra.mxu0 %v4691
      %4920 = vmatpush.bf16.msra.mxu0 %v4690
      %4921 = vmatpush.bf16.msra.mxu0 %v4689
      %4922 = vmatpush.bf16.msra.mxu0 %v4688
      %4923 = vmatpush.bf16.msra.mxu0 %v4687
      %4924 = vmatpush.bf16.msra.mxu0 %v4686
      %4925 = vmatpush.bf16.msra.mxu0 %v4685
      %4926 = vmatmul.bf16.gmra.mxu0 %v3991
      %v4927 = vpop.f32.mrf.mxu0
      %v4928 = vadd.f32 %v4879, %v4927
      %v4929 = vpop.f32.mrf.mxu0
      %v4930 = vadd.f32 %v4881, %v4929
      %4931 = vmatmul.bf16.gmra.mxu0 %v3992
      %v4932 = vpop.f32.mrf.mxu0
      %v4933 = vadd.f32 %v4884, %v4932
      %v4934 = vpop.f32.mrf.mxu0
      %v4935 = vadd.f32 %v4886, %v4934
      %4936 = vmatmul.bf16.gmra.mxu0 %v3993
      %v4937 = vpop.f32.mrf.mxu0
      %v4938 = vadd.f32 %v4889, %v4937
      %v4939 = vpop.f32.mrf.mxu0
      %v4940 = vadd.f32 %v4891, %v4939
      %4941 = vmatmul.bf16.gmra.mxu0 %v3994
      %v4942 = vpop.f32.mrf.mxu0
      %v4943 = vadd.f32 %v4894, %v4942
      %v4944 = vpop.f32.mrf.mxu0
      %v4945 = vadd.f32 %v4896, %v4944
      %4946 = vmatmul.bf16.gmra.mxu0 %v3968
      %v4947 = vpop.f32.mrf.mxu0
      %v4948 = vadd.f32 %v4899, %v4947
      %v4949 = vpop.f32.mrf.mxu0
      %v4950 = vadd.f32 %v4901, %v4949
      %4951 = vmatmul.bf16.gmra.mxu0 %v3969
      %v4952 = vpop.f32.mrf.mxu0
      %v4953 = vadd.f32 %v4904, %v4952
      %v4954 = vpop.f32.mrf.mxu0
      %v4955 = vadd.f32 %v4906, %v4954
      %4956 = vmatmul.bf16.gmra.mxu0 %v3970
      %v4957 = vpop.f32.mrf.mxu0
      %v4958 = vadd.f32 %v4909, %v4957
      %v4959 = vpop.f32.mrf.mxu0
      %v4960 = vadd.f32 %v4911, %v4959
      %4961 = vmatmul.bf16.gmra.mxu0 %v4003
      %v4962 = vpop.f32.mrf.mxu0
      %v4963 = vadd.f32 %v4914, %v4962
      %v4964 = vpop.f32.mrf.mxu0
      %v4965 = vadd.f32 %v4916, %v4964
      %4966 = vdwg.mxu0
      %4967 = vmatpush.bf16.msra.mxu0 %v4700
      %4968 = vmatpush.bf16.msra.mxu0 %v4699
      %4969 = vmatpush.bf16.msra.mxu0 %v4698
      %4970 = vmatpush.bf16.msra.mxu0 %v4697
      %4971 = vmatpush.bf16.msra.mxu0 %v4696
      %4972 = vmatpush.bf16.msra.mxu0 %v4695
      %4973 = vmatpush.bf16.msra.mxu0 %v4694
      %4974 = vmatpush.bf16.msra.mxu0 %v4693
      %4975 = vmatmul.bf16.gmra.mxu0 %v3968
      %v4976 = vpop.f32.mrf.mxu0
      %v4977 = vadd.f32 %v4928, %v4976
      %v4978 = vpop.f32.mrf.mxu0
      %v4979 = vadd.f32 %v4930, %v4978
      %4980 = vmatmul.bf16.gmra.mxu0 %v3969
      %v4981 = vpop.f32.mrf.mxu0
      %v4982 = vadd.f32 %v4933, %v4981
      %v4983 = vpop.f32.mrf.mxu0
      %v4984 = vadd.f32 %v4935, %v4983
      %4985 = vmatmul.bf16.gmra.mxu0 %v3970
      %v4986 = vpop.f32.mrf.mxu0
      %v4987 = vadd.f32 %v4938, %v4986
      %v4988 = vpop.f32.mrf.mxu0
      %v4989 = vadd.f32 %v4940, %v4988
      %4990 = vmatmul.bf16.gmra.mxu0 %v4003
      %v4991 = vpop.f32.mrf.mxu0
      %v4992 = vadd.f32 %v4943, %v4991
      %v4993 = vpop.f32.mrf.mxu0
      %v4994 = vadd.f32 %v4945, %v4993
      %4995 = vmatmul.bf16.gmra.mxu0 %v3992
      %v4996 = vpop.f32.mrf.mxu0
      %v4997 = vadd.f32 %v4948, %v4996
      %v4998 = vpop.f32.mrf.mxu0
      %v4999 = vadd.f32 %v4950, %v4998
      %5000 = vmatmul.bf16.gmra.mxu0 %v3993
      %v5001 = vpop.f32.mrf.mxu0
      %v5002 = vadd.f32 %v4953, %v5001
      %v5003 = vpop.f32.mrf.mxu0
      %v5004 = vadd.f32 %v4955, %v5003
      %5005 = vmatmul.bf16.gmra.mxu0 %v3994
      %v5006 = vpop.f32.mrf.mxu0
      %v5007 = vadd.f32 %v4958, %v5006
      %v5008 = vpop.f32.mrf.mxu0
      %v5009 = vadd.f32 %v4960, %v5008
      %5010 = vmatmul.bf16.gmra.mxu0 %v4009
      %v5011 = vpop.f32.mrf.mxu0
      %v5012 = vadd.f32 %v4963, %v5011
      %v5013 = vpop.f32.mrf.mxu0
      %v5014 = vadd.f32 %v4965, %v5013
      %5015 = vdwg.mxu0
      %5016 = vmatpush.bf16.msra.mxu0 %v4708
      %5017 = vmatpush.bf16.msra.mxu0 %v4707
      %5018 = vmatpush.bf16.msra.mxu0 %v4706
      %5019 = vmatpush.bf16.msra.mxu0 %v4705
      %5020 = vmatpush.bf16.msra.mxu0 %v4704
      %5021 = vmatpush.bf16.msra.mxu0 %v4703
      %5022 = vmatpush.bf16.msra.mxu0 %v4702
      %5023 = vmatpush.bf16.msra.mxu0 %v4701
      %5024 = vmatmul.bf16.gmra.mxu0 %v3992
      %v5025 = vpop.f32.mrf.mxu0
      %v5026 = vadd.f32 %v4977, %v5025
      %v5027 = vpop.f32.mrf.mxu0
      %v5028 = vadd.f32 %v4979, %v5027
      %5029 = vmatmul.bf16.gmra.mxu0 %v3993
      %v5030 = vpop.f32.mrf.mxu0
      %v5031 = vadd.f32 %v4982, %v5030
      %v5032 = vpop.f32.mrf.mxu0
      %v5033 = vadd.f32 %v4984, %v5032
      %5034 = vmatmul.bf16.gmra.mxu0 %v3994
      %v5035 = vpop.f32.mrf.mxu0
      %v5036 = vadd.f32 %v4987, %v5035
      %v5037 = vpop.f32.mrf.mxu0
      %v5038 = vadd.f32 %v4989, %v5037
      %5039 = vmatmul.bf16.gmra.mxu0 %v4009
      %v5040 = vpop.f32.mrf.mxu0
      %v5041 = vadd.f32 %v4992, %v5040
      %v5042 = vpop.f32.mrf.mxu0
      %v5043 = vadd.f32 %v4994, %v5042
      %5044 = vmatmul.bf16.gmra.mxu0 %v3969
      %v5045 = vpop.f32.mrf.mxu0
      %v5046 = vadd.f32 %v4997, %v5045
      %v5047 = vpop.f32.mrf.mxu0
      %v5048 = vadd.f32 %v4999, %v5047
      %5049 = vmatmul.bf16.gmra.mxu0 %v3970
      %v5050 = vpop.f32.mrf.mxu0
      %v5051 = vadd.f32 %v5002, %v5050
      %v5052 = vpop.f32.mrf.mxu0
      %v5053 = vadd.f32 %v5004, %v5052
      %5054 = vmatmul.bf16.gmra.mxu0 %v4003
      %v5055 = vpop.f32.mrf.mxu0
      %v5056 = vadd.f32 %v5007, %v5055
      %v5057 = vpop.f32.mrf.mxu0
      %v5058 = vadd.f32 %v5009, %v5057
      %5059 = vmatmul.bf16.gmra.mxu0 %v4015
      %v5060 = vpop.f32.mrf.mxu0
      %v5061 = vadd.f32 %v5012, %v5060
      %v5062 = vpop.f32.mrf.mxu0
      %v5063 = vadd.f32 %v5014, %v5062
      %5064 = vdwg.mxu0
      %5065 = vmatpush.bf16.msra.mxu0 %v4716
      %5066 = vmatpush.bf16.msra.mxu0 %v4715
      %5067 = vmatpush.bf16.msra.mxu0 %v4714
      %5068 = vmatpush.bf16.msra.mxu0 %v4713
      %5069 = vmatpush.bf16.msra.mxu0 %v4712
      %5070 = vmatpush.bf16.msra.mxu0 %v4711
      %5071 = vmatpush.bf16.msra.mxu0 %v4710
      %5072 = vmatpush.bf16.msra.mxu0 %v4709
      %5073 = vmatmul.bf16.gmra.mxu0 %v3969
      %v5074 = vpop.f32.mrf.mxu0
      %v5075 = vadd.f32 %v5026, %v5074
      %v5076 = vpop.f32.mrf.mxu0
      %v5077 = vadd.f32 %v5028, %v5076
      %5078 = vmatmul.bf16.gmra.mxu0 %v3970
      %v5079 = vpop.f32.mrf.mxu0
      %v5080 = vadd.f32 %v5031, %v5079
      %v5081 = vpop.f32.mrf.mxu0
      %v5082 = vadd.f32 %v5033, %v5081
      %5083 = vmatmul.bf16.gmra.mxu0 %v4003
      %v5084 = vpop.f32.mrf.mxu0
      %v5085 = vadd.f32 %v5036, %v5084
      %v5086 = vpop.f32.mrf.mxu0
      %v5087 = vadd.f32 %v5038, %v5086
      %5088 = vmatmul.bf16.gmra.mxu0 %v4015
      %v5089 = vpop.f32.mrf.mxu0
      %v5090 = vadd.f32 %v5041, %v5089
      %v5091 = vpop.f32.mrf.mxu0
      %v5092 = vadd.f32 %v5043, %v5091
      %5093 = vmatmul.bf16.gmra.mxu0 %v3993
      %v5094 = vpop.f32.mrf.mxu0
      %v5095 = vadd.f32 %v5046, %v5094
      %v5096 = vpop.f32.mrf.mxu0
      %v5097 = vadd.f32 %v5048, %v5096
      %5098 = vmatmul.bf16.gmra.mxu0 %v3994
      %v5099 = vpop.f32.mrf.mxu0
      %v5100 = vadd.f32 %v5051, %v5099
      %v5101 = vpop.f32.mrf.mxu0
      %v5102 = vadd.f32 %v5053, %v5101
      %5103 = vmatmul.bf16.gmra.mxu0 %v4009
      %v5104 = vpop.f32.mrf.mxu0
      %v5105 = vadd.f32 %v5056, %v5104
      %v5106 = vpop.f32.mrf.mxu0
      %v5107 = vadd.f32 %v5058, %v5106
      %5108 = vmatmul.bf16.gmra.mxu0 %v4021
      %v5109 = vpop.f32.mrf.mxu0
      %v5110 = vadd.f32 %v5061, %v5109
      %v5111 = vpop.f32.mrf.mxu0
      %v5112 = vadd.f32 %v5063, %v5111
      %5113 = vdwg.mxu0
      %5114 = vmatpush.bf16.msra.mxu0 %v4724
      %5115 = vmatpush.bf16.msra.mxu0 %v4723
      %5116 = vmatpush.bf16.msra.mxu0 %v4722
      %5117 = vmatpush.bf16.msra.mxu0 %v4721
      %5118 = vmatpush.bf16.msra.mxu0 %v4720
      %5119 = vmatpush.bf16.msra.mxu0 %v4719
      %5120 = vmatpush.bf16.msra.mxu0 %v4718
      %5121 = vmatpush.bf16.msra.mxu0 %v4717
      %5122 = vmatmul.bf16.gmra.mxu0 %v3993
      %v5123 = vpop.f32.mrf.mxu0
      %v5124 = vadd.f32 %v5075, %v5123
      %v5125 = vpop.f32.mrf.mxu0
      %v5126 = vadd.f32 %v5077, %v5125
      %5127 = vmatmul.bf16.gmra.mxu0 %v3994
      %v5128 = vpop.f32.mrf.mxu0
      %v5129 = vadd.f32 %v5080, %v5128
      %v5130 = vpop.f32.mrf.mxu0
      %v5131 = vadd.f32 %v5082, %v5130
      %5132 = vmatmul.bf16.gmra.mxu0 %v4009
      %v5133 = vpop.f32.mrf.mxu0
      %v5134 = vadd.f32 %v5085, %v5133
      %v5135 = vpop.f32.mrf.mxu0
      %v5136 = vadd.f32 %v5087, %v5135
      %5137 = vmatmul.bf16.gmra.mxu0 %v4021
      %v5138 = vpop.f32.mrf.mxu0
      %v5139 = vadd.f32 %v5090, %v5138
      %v5140 = vpop.f32.mrf.mxu0
      %v5141 = vadd.f32 %v5092, %v5140
      %5142 = vmatmul.bf16.gmra.mxu0 %v3970
      %v5143 = vpop.f32.mrf.mxu0
      %v5144 = vadd.f32 %v5095, %v5143
      %v5145 = vpop.f32.mrf.mxu0
      %v5146 = vadd.f32 %v5097, %v5145
      %5147 = vmatmul.bf16.gmra.mxu0 %v4003
      %v5148 = vpop.f32.mrf.mxu0
      %v5149 = vadd.f32 %v5100, %v5148
      %v5150 = vpop.f32.mrf.mxu0
      %v5151 = vadd.f32 %v5102, %v5150
      %5152 = vmatmul.bf16.gmra.mxu0 %v4015
      %v5153 = vpop.f32.mrf.mxu0
      %v5154 = vadd.f32 %v5105, %v5153
      %v5155 = vpop.f32.mrf.mxu0
      %v5156 = vadd.f32 %v5107, %v5155
      %5157 = vmatmul.bf16.gmra.mxu0 %v4027
      %v5158 = vpop.f32.mrf.mxu0
      %v5159 = vadd.f32 %v5110, %v5158
      %v5160 = vpop.f32.mrf.mxu0
      %v5161 = vadd.f32 %v5112, %v5160
      %5162 = vdwg.mxu0
      %5163 = vmatpush.bf16.msra.mxu0 %v4732
      %5164 = vmatpush.bf16.msra.mxu0 %v4731
      %5165 = vmatpush.bf16.msra.mxu0 %v4730
      %5166 = vmatpush.bf16.msra.mxu0 %v4729
      %5167 = vmatpush.bf16.msra.mxu0 %v4728
      %5168 = vmatpush.bf16.msra.mxu0 %v4727
      %5169 = vmatpush.bf16.msra.mxu0 %v4726
      %5170 = vmatpush.bf16.msra.mxu0 %v4725
      %5171 = vmatmul.bf16.gmra.mxu0 %v3970
      %v5172 = vpop.f32.mrf.mxu0
      %v5173 = vadd.f32 %v5124, %v5172
      %v5174 = vpop.f32.mrf.mxu0
      %v5175 = vadd.f32 %v5126, %v5174
      %5176 = vmatmul.bf16.gmra.mxu0 %v4003
      %v5177 = vpop.f32.mrf.mxu0
      %v5178 = vadd.f32 %v5129, %v5177
      %v5179 = vpop.f32.mrf.mxu0
      %v5180 = vadd.f32 %v5131, %v5179
      %5181 = vmatmul.bf16.gmra.mxu0 %v4015
      %v5182 = vpop.f32.mrf.mxu0
      %v5183 = vadd.f32 %v5134, %v5182
      %v5184 = vpop.f32.mrf.mxu0
      %v5185 = vadd.f32 %v5136, %v5184
      %5186 = vmatmul.bf16.gmra.mxu0 %v4027
      %v5187 = vpop.f32.mrf.mxu0
      %v5188 = vadd.f32 %v5139, %v5187
      %v5189 = vpop.f32.mrf.mxu0
      %v5190 = vadd.f32 %v5141, %v5189
      %5191 = vmatmul.bf16.gmra.mxu0 %v3994
      %v5192 = vpop.f32.mrf.mxu0
      %v5193 = vadd.f32 %v5144, %v5192
      %v5194 = vpop.f32.mrf.mxu0
      %v5195 = vadd.f32 %v5146, %v5194
      %5196 = vmatmul.bf16.gmra.mxu0 %v4009
      %v5197 = vpop.f32.mrf.mxu0
      %v5198 = vadd.f32 %v5149, %v5197
      %v5199 = vpop.f32.mrf.mxu0
      %v5200 = vadd.f32 %v5151, %v5199
      %5201 = vmatmul.bf16.gmra.mxu0 %v4021
      %v5202 = vpop.f32.mrf.mxu0
      %v5203 = vadd.f32 %v5154, %v5202
      %v5204 = vpop.f32.mrf.mxu0
      %v5205 = vadd.f32 %v5156, %v5204
      %5206 = vmatmul.bf16.gmra.mxu0 %v4033
      %v5207 = vpop.f32.mrf.mxu0
      %v5208 = vadd.f32 %v5159, %v5207
      %v5209 = vpop.f32.mrf.mxu0
      %v5210 = vadd.f32 %v5161, %v5209
      %5211 = vdwg.mxu0
      %5212 = vmatpush.bf16.msra.mxu0 %v4740
      %5213 = vmatpush.bf16.msra.mxu0 %v4739
      %5214 = vmatpush.bf16.msra.mxu0 %v4738
      %5215 = vmatpush.bf16.msra.mxu0 %v4737
      %5216 = vmatpush.bf16.msra.mxu0 %v4736
      %5217 = vmatpush.bf16.msra.mxu0 %v4735
      %5218 = vmatpush.bf16.msra.mxu0 %v4734
      %5219 = vmatpush.bf16.msra.mxu0 %v4733
      %5220 = vmatmul.bf16.gmra.mxu0 %v3994
      %v5221 = vpop.f32.mrf.mxu0
      %v5222 = vadd.f32 %v5173, %v5221
      %v5223 = vpop.f32.mrf.mxu0
      %v5224 = vadd.f32 %v5175, %v5223
      %5225 = vmatmul.bf16.gmra.mxu0 %v4009
      %v5226 = vpop.f32.mrf.mxu0
      %v5227 = vadd.f32 %v5178, %v5226
      %v5228 = vpop.f32.mrf.mxu0
      %v5229 = vadd.f32 %v5180, %v5228
      %5230 = vmatmul.bf16.gmra.mxu0 %v4021
      %v5231 = vpop.f32.mrf.mxu0
      %v5232 = vadd.f32 %v5183, %v5231
      %v5233 = vpop.f32.mrf.mxu0
      %v5234 = vadd.f32 %v5185, %v5233
      %5235 = vmatmul.bf16.gmra.mxu0 %v4033
      %v5236 = vpop.f32.mrf.mxu0
      %v5237 = vadd.f32 %v5188, %v5236
      %v5238 = vpop.f32.mrf.mxu0
      %v5239 = vadd.f32 %v5190, %v5238
      %5240 = vmatmul.bf16.gmra.mxu0 %v4003
      %v5241 = vpop.f32.mrf.mxu0
      %v5242 = vadd.f32 %v5193, %v5241
      %v5243 = vpop.f32.mrf.mxu0
      %v5244 = vadd.f32 %v5195, %v5243
      %5245 = vmatmul.bf16.gmra.mxu0 %v4015
      %v5246 = vpop.f32.mrf.mxu0
      %v5247 = vadd.f32 %v5198, %v5246
      %v5248 = vpop.f32.mrf.mxu0
      %v5249 = vadd.f32 %v5200, %v5248
      %5250 = vmatmul.bf16.gmra.mxu0 %v4027
      %v5251 = vpop.f32.mrf.mxu0
      %v5252 = vadd.f32 %v5203, %v5251
      %v5253 = vpop.f32.mrf.mxu0
      %v5254 = vadd.f32 %v5205, %v5253
      %5255 = vmatmul.bf16.gmra.mxu0 %v4039
      %v5256 = vpop.f32.mrf.mxu0
      %v5257 = vadd.f32 %v5208, %v5256
      %v5258 = vpop.f32.mrf.mxu0
      %v5259 = vadd.f32 %v5210, %v5258
      %5260 = vdwg.mxu0
      %5261 = vmatpush.bf16.msra.mxu0 %v4748
      %5262 = vmatpush.bf16.msra.mxu0 %v4747
      %5263 = vmatpush.bf16.msra.mxu0 %v4746
      %5264 = vmatpush.bf16.msra.mxu0 %v4745
      %5265 = vmatpush.bf16.msra.mxu0 %v4744
      %5266 = vmatpush.bf16.msra.mxu0 %v4743
      %5267 = vmatpush.bf16.msra.mxu0 %v4742
      %5268 = vmatpush.bf16.msra.mxu0 %v4741
      %5269 = vmatmul.bf16.gmra.mxu0 %v4003
      %v5270 = vpop.f32.mrf.mxu0
      %v5271 = vadd.f32 %v5222, %v5270
      %v5272 = vpop.f32.mrf.mxu0
      %v5273 = vadd.f32 %v5224, %v5272
      %5274 = vmatmul.bf16.gmra.mxu0 %v4015
      %v5275 = vpop.f32.mrf.mxu0
      %v5276 = vadd.f32 %v5227, %v5275
      %v5277 = vpop.f32.mrf.mxu0
      %v5278 = vadd.f32 %v5229, %v5277
      %5279 = vmatmul.bf16.gmra.mxu0 %v4027
      %v5280 = vpop.f32.mrf.mxu0
      %v5281 = vadd.f32 %v5232, %v5280
      %v5282 = vpop.f32.mrf.mxu0
      %v5283 = vadd.f32 %v5234, %v5282
      %5284 = vmatmul.bf16.gmra.mxu0 %v4039
      %v5285 = vpop.f32.mrf.mxu0
      %v5286 = vadd.f32 %v5237, %v5285
      %v5287 = vpop.f32.mrf.mxu0
      %v5288 = vadd.f32 %v5239, %v5287
      %5289 = vmatmul.bf16.gmra.mxu0 %v4009
      %v5290 = vpop.f32.mrf.mxu0
      %v5291 = vadd.f32 %v5242, %v5290
      %v5292 = vpop.f32.mrf.mxu0
      %v5293 = vadd.f32 %v5244, %v5292
      %5294 = vmatmul.bf16.gmra.mxu0 %v4021
      %v5295 = vpop.f32.mrf.mxu0
      %v5296 = vadd.f32 %v5247, %v5295
      %v5297 = vpop.f32.mrf.mxu0
      %v5298 = vadd.f32 %v5249, %v5297
      %5299 = vmatmul.bf16.gmra.mxu0 %v4033
      %v5300 = vpop.f32.mrf.mxu0
      %v5301 = vadd.f32 %v5252, %v5300
      %v5302 = vpop.f32.mrf.mxu0
      %v5303 = vadd.f32 %v5254, %v5302
      %5304 = vmatmul.bf16.gmra.mxu0 %v4045
      %v5305 = vpop.f32.mrf.mxu0
      %v5306 = vadd.f32 %v5257, %v5305
      %v5307 = vpop.f32.mrf.mxu0
      %v5308 = vadd.f32 %v5259, %v5307
      %5309 = vdwg.mxu0
      %5310 = vmatpush.bf16.msra.mxu0 %v4756
      %5311 = vmatpush.bf16.msra.mxu0 %v4755
      %5312 = vmatpush.bf16.msra.mxu0 %v4754
      %5313 = vmatpush.bf16.msra.mxu0 %v4753
      %5314 = vmatpush.bf16.msra.mxu0 %v4752
      %5315 = vmatpush.bf16.msra.mxu0 %v4751
      %5316 = vmatpush.bf16.msra.mxu0 %v4750
      %5317 = vmatpush.bf16.msra.mxu0 %v4749
      %5318 = vmatmul.bf16.gmra.mxu0 %v4009
      %v5319 = vpop.f32.mrf.mxu0
      %v5320 = vadd.f32 %v5271, %v5319
      %v5321 = vpop.f32.mrf.mxu0
      %v5322 = vadd.f32 %v5273, %v5321
      %5323 = vmatmul.bf16.gmra.mxu0 %v4021
      %v5324 = vpop.f32.mrf.mxu0
      %v5325 = vadd.f32 %v5276, %v5324
      %v5326 = vpop.f32.mrf.mxu0
      %v5327 = vadd.f32 %v5278, %v5326
      %5328 = vmatmul.bf16.gmra.mxu0 %v4033
      %v5329 = vpop.f32.mrf.mxu0
      %v5330 = vadd.f32 %v5281, %v5329
      %v5331 = vpop.f32.mrf.mxu0
      %v5332 = vadd.f32 %v5283, %v5331
      %5333 = vmatmul.bf16.gmra.mxu0 %v4045
      %v5334 = vpop.f32.mrf.mxu0
      %v5335 = vadd.f32 %v5286, %v5334
      %v5336 = vpop.f32.mrf.mxu0
      %v5337 = vadd.f32 %v5288, %v5336
      %5338 = vmatmul.bf16.gmra.mxu0 %v4015
      %v5339 = vpop.f32.mrf.mxu0
      %v5340 = vadd.f32 %v5291, %v5339
      %v5341 = vpop.f32.mrf.mxu0
      %v5342 = vadd.f32 %v5293, %v5341
      %5343 = vmatmul.bf16.gmra.mxu0 %v4027
      %v5344 = vpop.f32.mrf.mxu0
      %v5345 = vadd.f32 %v5296, %v5344
      %v5346 = vpop.f32.mrf.mxu0
      %v5347 = vadd.f32 %v5298, %v5346
      %5348 = vmatmul.bf16.gmra.mxu0 %v4039
      %v5349 = vpop.f32.mrf.mxu0
      %v5350 = vadd.f32 %v5301, %v5349
      %v5351 = vpop.f32.mrf.mxu0
      %v5352 = vadd.f32 %v5303, %v5351
      %5353 = vmatmul.bf16.gmra.mxu0 %v4051
      %v5354 = vpop.f32.mrf.mxu0
      %v5355 = vadd.f32 %v5306, %v5354
      %v5356 = vpop.f32.mrf.mxu0
      %v5357 = vadd.f32 %v5308, %v5356
      %5358 = vdwg.mxu0
      %5359 = vmatpush.bf16.msra.mxu0 %v4764
      %5360 = vmatpush.bf16.msra.mxu0 %v4763
      %5361 = vmatpush.bf16.msra.mxu0 %v4762
      %5362 = vmatpush.bf16.msra.mxu0 %v4761
      %5363 = vmatpush.bf16.msra.mxu0 %v4760
      %5364 = vmatpush.bf16.msra.mxu0 %v4759
      %5365 = vmatpush.bf16.msra.mxu0 %v4758
      %5366 = vmatpush.bf16.msra.mxu0 %v4757
      %5367 = vmatmul.bf16.gmra.mxu0 %v4015
      %v5368 = vpop.f32.mrf.mxu0
      %v5369 = vadd.f32 %v5320, %v5368
      %v5370 = vpop.f32.mrf.mxu0
      %v5371 = vadd.f32 %v5322, %v5370
      %5372 = vmatmul.bf16.gmra.mxu0 %v4027
      %v5373 = vpop.f32.mrf.mxu0
      %v5374 = vadd.f32 %v5325, %v5373
      %v5375 = vpop.f32.mrf.mxu0
      %v5376 = vadd.f32 %v5327, %v5375
      %5377 = vmatmul.bf16.gmra.mxu0 %v4039
      %v5378 = vpop.f32.mrf.mxu0
      %v5379 = vadd.f32 %v5330, %v5378
      %v5380 = vpop.f32.mrf.mxu0
      %v5381 = vadd.f32 %v5332, %v5380
      %5382 = vmatmul.bf16.gmra.mxu0 %v4051
      %v5383 = vpop.f32.mrf.mxu0
      %v5384 = vadd.f32 %v5335, %v5383
      %v5385 = vpop.f32.mrf.mxu0
      %v5386 = vadd.f32 %v5337, %v5385
      %5387 = vmatmul.bf16.gmra.mxu0 %v4069
      %v5388 = vpop.f32.mrf.mxu0
      %v5389 = vadd.f32 %v5340, %v5388
      %v5390 = vpop.f32.mrf.mxu0
      %v5391 = vadd.f32 %v5342, %v5390
      %5392 = vmatmul.bf16.gmra.mxu0 %v4070
      %v5393 = vpop.f32.mrf.mxu0
      %v5394 = vadd.f32 %v5345, %v5393
      %v5395 = vpop.f32.mrf.mxu0
      %v5396 = vadd.f32 %v5347, %v5395
      %5397 = vmatmul.bf16.gmra.mxu0 %v4071
      %v5398 = vpop.f32.mrf.mxu0
      %v5399 = vadd.f32 %v5350, %v5398
      %v5400 = vpop.f32.mrf.mxu0
      %v5401 = vadd.f32 %v5352, %v5400
      %5402 = vmatmul.bf16.gmra.mxu0 %v4072
      %v5403 = vpop.f32.mrf.mxu0
      %v5404 = vadd.f32 %v5355, %v5403
      %v5405 = vpop.f32.mrf.mxu0
      %v5406 = vadd.f32 %v5357, %v5405
      %5407 = vdwg.mxu0
      %5408 = vmatpush.bf16.msra.mxu0 %v4772
      %5409 = vmatpush.bf16.msra.mxu0 %v4771
      %5410 = vmatpush.bf16.msra.mxu0 %v4770
      %5411 = vmatpush.bf16.msra.mxu0 %v4769
      %5412 = vmatpush.bf16.msra.mxu0 %v4768
      %5413 = vmatpush.bf16.msra.mxu0 %v4767
      %5414 = vmatpush.bf16.msra.mxu0 %v4766
      %5415 = vmatpush.bf16.msra.mxu0 %v4765
      %5416 = vmatmul.bf16.gmra.mxu0 %v4069
      %v5417 = vpop.f32.mrf.mxu0
      %v5418 = vadd.f32 %v5369, %v5417
      %v5419 = vpop.f32.mrf.mxu0
      %v5420 = vadd.f32 %v5371, %v5419
      %5421 = vmatmul.bf16.gmra.mxu0 %v4070
      %v5422 = vpop.f32.mrf.mxu0
      %v5423 = vadd.f32 %v5374, %v5422
      %v5424 = vpop.f32.mrf.mxu0
      %v5425 = vadd.f32 %v5376, %v5424
      %5426 = vmatmul.bf16.gmra.mxu0 %v4071
      %v5427 = vpop.f32.mrf.mxu0
      %v5428 = vadd.f32 %v5379, %v5427
      %v5429 = vpop.f32.mrf.mxu0
      %v5430 = vadd.f32 %v5381, %v5429
      %5431 = vmatmul.bf16.gmra.mxu0 %v4072
      %v5432 = vpop.f32.mrf.mxu0
      %v5433 = vadd.f32 %v5384, %v5432
      %v5434 = vpop.f32.mrf.mxu0
      %v5435 = vadd.f32 %v5386, %v5434
      %5436 = vmatmul.bf16.gmra.mxu0 %v4093
      %v5437 = vpop.f32.mrf.mxu0
      %v5438 = vadd.f32 %v5389, %v5437
      %v5439 = vpop.f32.mrf.mxu0
      %v5440 = vadd.f32 %v5391, %v5439
      %5441 = vmatmul.bf16.gmra.mxu0 %v4094
      %v5442 = vpop.f32.mrf.mxu0
      %v5443 = vadd.f32 %v5394, %v5442
      %v5444 = vpop.f32.mrf.mxu0
      %v5445 = vadd.f32 %v5396, %v5444
      %5446 = vmatmul.bf16.gmra.mxu0 %v4095
      %v5447 = vpop.f32.mrf.mxu0
      %v5448 = vadd.f32 %v5399, %v5447
      %v5449 = vpop.f32.mrf.mxu0
      %v5450 = vadd.f32 %v5401, %v5449
      %5451 = vmatmul.bf16.gmra.mxu0 %v4096
      %v5452 = vpop.f32.mrf.mxu0
      %v5453 = vadd.f32 %v5404, %v5452
      %v5454 = vpop.f32.mrf.mxu0
      %v5455 = vadd.f32 %v5406, %v5454
      %5456 = vdwg.mxu0
      %v5457 = vld [vmem:[%s5 + $0x2] sm:$0x1]
      %v5458 = vld [vmem:[%s5 + $0x5] sm:$0x1]
      %v5459 = vperm.slane %v5457, 0
      %v5460 = vmul.f32 %v5418, %v5459
      %v5461 = vmul.f32 %v5420, %v5459
      %v5462 = vmul.f32 %v5423, %v5459
      %v5463 = vmul.f32 %v5425, %v5459
      %v5464 = vmul.f32 %v5428, %v5459
      %v5465 = vmul.f32 %v5430, %v5459
      %v5466 = vmul.f32 %v5433, %v5459
      %v5467 = vmul.f32 %v5435, %v5459
      %v5468 = vmul.f32 %v5438, %v5459
      %v5469 = vmul.f32 %v5440, %v5459
      %v5470 = vmul.f32 %v5443, %v5459
      %v5471 = vmul.f32 %v5445, %v5459
      %v5472 = vmul.f32 %v5448, %v5459
      %v5473 = vmul.f32 %v5450, %v5459
      %v5474 = vmul.f32 %v5453, %v5459
      %v5475 = vmul.f32 %v5455, %v5459
      %v5476 = vperm.slane %v5458, 0
      %v5477 = vadd.f32 %v5460, %v5476
      %v5478 = vadd.f32 %v5461, %v5476
      %v5479 = vadd.f32 %v5462, %v5476
      %v5480 = vadd.f32 %v5463, %v5476
      %v5481 = vadd.f32 %v5464, %v5476
      %v5482 = vadd.f32 %v5465, %v5476
      %v5483 = vadd.f32 %v5466, %v5476
      %v5484 = vadd.f32 %v5467, %v5476
      %v5485 = vadd.f32 %v5468, %v5476
      %v5486 = vadd.f32 %v5469, %v5476
      %v5487 = vadd.f32 %v5470, %v5476
      %v5488 = vadd.f32 %v5471, %v5476
      %v5489 = vadd.f32 %v5472, %v5476
      %v5490 = vadd.f32 %v5473, %v5476
      %v5491 = vadd.f32 %v5474, %v5476
      %v5492 = vadd.f32 %v5475, %v5476
      %v5493 = vmax.f32 %v5477, %v5485
      %v5494 = vmax.f32 %v5478, %v5486
      %v5495 = vmax.f32 %v5479, %v5487
      %v5496 = vmax.f32 %v5480, %v5488
      %v5497 = vmax.f32 %v5481, %v5489
      %v5498 = vmax.f32 %v5482, %v5490
      %v5499 = vmax.f32 %v5483, %v5491
      %v5500 = vmax.f32 %v5484, %v5492
      %v5501 = vmax.f32 %v5493, 0.0
      %v5502 = vmax.f32 %v5494, 0.0
      %v5503 = vmax.f32 %v5495, 0.0
      %v5504 = vmax.f32 %v5496, 0.0
      %v5505 = vmax.f32 %v5497, 0.0
      %v5506 = vmax.f32 %v5498, 0.0
      %v5507 = vmax.f32 %v5499, 0.0
      %v5508 = vmax.f32 %v5500, 0.0
      %v5509 = vpack.c.bf16 %v5502, %v5501
      %v5510 = vpack.c.bf16 %v5504, %v5503
      %v5511 = vpack.c.bf16 %v5506, %v5505
      %v5512 = vpack.c.bf16 %v5508, %v5507
      %v5513 = vld [vmem:[%s6] sm:$0xff]
      %v5514 = vld [vmem:[%s6 + $0x8] sm:$0xff]
      %v5515 = vld [vmem:[%s6 + $0x10] sm:$0xff]
      %v5516 = vld [vmem:[%s6 + $0x18] sm:$0xff]
      %v5517 = vld [vmem:[%s6 + $0x20] sm:$0xff]
      %v5518 = vld [vmem:[%s6 + $0x28] sm:$0xff]
      %v5519 = vld [vmem:[%s6 + $0x30] sm:$0xff]
      %v5520 = vld [vmem:[%s6 + $0x38] sm:$0xff]
      %v5521 = vld [vmem:[%s6 + $0x40] sm:$0xff]
      %v5522 = vld [vmem:[%s6 + $0x48] sm:$0xff]
      %v5523 = vld [vmem:[%s6 + $0x50] sm:$0xff]
      %v5524 = vld [vmem:[%s6 + $0x58] sm:$0xff]
      %v5525 = vld [vmem:[%s6 + $0x60] sm:$0xff]
      %v5526 = vld [vmem:[%s6 + $0x68] sm:$0xff]
      %v5527 = vld [vmem:[%s6 + $0x70] sm:$0xff]
      %v5528 = vld [vmem:[%s6 + $0x78] sm:$0xff]
      %v5529 = vld [vmem:[%s6 + $0x80] sm:$0xff]
      %v5530 = vld [vmem:[%s6 + $0x88] sm:$0xff]
      %v5531 = vld [vmem:[%s6 + $0x90] sm:$0xff]
      %v5532 = vld [vmem:[%s6 + $0x98] sm:$0xff]
      %v5533 = vld [vmem:[%s6 + $0xa0] sm:$0xff]
      %v5534 = vld [vmem:[%s6 + $0xa8] sm:$0xff]
      %v5535 = vld [vmem:[%s6 + $0xb0] sm:$0xff]
      %v5536 = vld [vmem:[%s6 + $0xb8] sm:$0xff]
      %v5537 = vld [vmem:[%s6 + $0xc0] sm:$0xff]
      %v5538 = vld [vmem:[%s6 + $0xc8] sm:$0xff]
      %v5539 = vld [vmem:[%s6 + $0xd0] sm:$0xff]
      %v5540 = vld [vmem:[%s6 + $0xd8] sm:$0xff]
      %v5541 = vld [vmem:[%s6 + $0xe0] sm:$0xff]
      %v5542 = vld [vmem:[%s6 + $0xe8] sm:$0xff]
      %v5543 = vld [vmem:[%s6 + $0xf0] sm:$0xff]
      %v5544 = vld [vmem:[%s6 + $0xf8] sm:$0xff]
      %v5545 = vld [vmem:[%s6 + $0x100] sm:$0xff]
      %v5546 = vld [vmem:[%s6 + $0x108] sm:$0xff]
      %v5547 = vld [vmem:[%s6 + $0x110] sm:$0xff]
      %v5548 = vld [vmem:[%s6 + $0x118] sm:$0xff]
      %v5549 = vld [vmem:[%s6 + $0x120] sm:$0xff]
      %v5550 = vld [vmem:[%s6 + $0x128] sm:$0xff]
      %v5551 = vld [vmem:[%s6 + $0x130] sm:$0xff]
      %v5552 = vld [vmem:[%s6 + $0x138] sm:$0xff]
      %v5553 = vld [vmem:[%s6 + $0x140] sm:$0xff]
      %v5554 = vld [vmem:[%s6 + $0x148] sm:$0xff]
      %v5555 = vld [vmem:[%s6 + $0x150] sm:$0xff]
      %v5556 = vld [vmem:[%s6 + $0x158] sm:$0xff]
      %v5557 = vld [vmem:[%s6 + $0x160] sm:$0xff]
      %v5558 = vld [vmem:[%s6 + $0x168] sm:$0xff]
      %v5559 = vld [vmem:[%s6 + $0x170] sm:$0xff]
      %v5560 = vld [vmem:[%s6 + $0x178] sm:$0xff]
      %v5561 = vld [vmem:[%s6 + $0x180] sm:$0xff]
      %v5562 = vld [vmem:[%s6 + $0x188] sm:$0xff]
      %v5563 = vld [vmem:[%s6 + $0x190] sm:$0xff]
      %v5564 = vld [vmem:[%s6 + $0x198] sm:$0xff]
      %v5565 = vld [vmem:[%s6 + $0x1a0] sm:$0xff]
      %v5566 = vld [vmem:[%s6 + $0x1a8] sm:$0xff]
      %v5567 = vld [vmem:[%s6 + $0x1b0] sm:$0xff]
      %v5568 = vld [vmem:[%s6 + $0x1b8] sm:$0xff]
      %v5569 = vld [vmem:[%s6 + $0x1c0] sm:$0xff]
      %v5570 = vld [vmem:[%s6 + $0x1c8] sm:$0xff]
      %v5571 = vld [vmem:[%s6 + $0x1d0] sm:$0xff]
      %v5572 = vld [vmem:[%s6 + $0x1d8] sm:$0xff]
      %v5573 = vld [vmem:[%s6 + $0x1e0] sm:$0xff]
      %v5574 = vld [vmem:[%s6 + $0x1e8] sm:$0xff]
      %v5575 = vld [vmem:[%s6 + $0x1f0] sm:$0xff]
      %v5576 = vld [vmem:[%s6 + $0x1f8] sm:$0xff]
      %v5577 = vld [vmem:[%s6 + $0x200] sm:$0xff]
      %v5578 = vld [vmem:[%s6 + $0x208] sm:$0xff]
      %v5579 = vld [vmem:[%s6 + $0x210] sm:$0xff]
      %v5580 = vld [vmem:[%s6 + $0x218] sm:$0xff]
      %v5581 = vld [vmem:[%s6 + $0x220] sm:$0xff]
      %v5582 = vld [vmem:[%s6 + $0x228] sm:$0xff]
      %v5583 = vld [vmem:[%s6 + $0x230] sm:$0xff]
      %v5584 = vld [vmem:[%s6 + $0x238] sm:$0xff]
      %v5585 = vld [vmem:[%s6 + $0x240] sm:$0xff]
      %v5586 = vld [vmem:[%s6 + $0x248] sm:$0xff]
      %v5587 = vld [vmem:[%s6 + $0x250] sm:$0xff]
      %v5588 = vld [vmem:[%s6 + $0x258] sm:$0xff]
      %v5589 = vld [vmem:[%s6 + $0x260] sm:$0xff]
      %v5590 = vld [vmem:[%s6 + $0x268] sm:$0xff]
      %v5591 = vld [vmem:[%s6 + $0x270] sm:$0xff]
      %v5592 = vld [vmem:[%s6 + $0x278] sm:$0xff]
      %v5593 = vld [vmem:[%s6 + $0x280] sm:$0xff]
      %v5594 = vld [vmem:[%s6 + $0x288] sm:$0xff]
      %v5595 = vld [vmem:[%s6 + $0x290] sm:$0xff]
      %v5596 = vld [vmem:[%s6 + $0x298] sm:$0xff]
      %v5597 = vld [vmem:[%s6 + $0x2a0] sm:$0xff]
      %v5598 = vld [vmem:[%s6 + $0x2a8] sm:$0xff]
      %v5599 = vld [vmem:[%s6 + $0x2b0] sm:$0xff]
      %v5600 = vld [vmem:[%s6 + $0x2b8] sm:$0xff]
      %v5601 = vld [vmem:[%s6 + $0x2c0] sm:$0xff]
      %v5602 = vld [vmem:[%s6 + $0x2c8] sm:$0xff]
      %v5603 = vld [vmem:[%s6 + $0x2d0] sm:$0xff]
      %v5604 = vld [vmem:[%s6 + $0x2d8] sm:$0xff]
      %v5605 = vld [vmem:[%s6 + $0x2e0] sm:$0xff]
      %v5606 = vld [vmem:[%s6 + $0x2e8] sm:$0xff]
      %v5607 = vld [vmem:[%s6 + $0x2f0] sm:$0xff]
      %v5608 = vld [vmem:[%s6 + $0x2f8] sm:$0xff]
      %v5609 = vld [vmem:[%s6 + $0x300] sm:$0xff]
      %v5610 = vld [vmem:[%s6 + $0x308] sm:$0xff]
      %v5611 = vld [vmem:[%s6 + $0x310] sm:$0xff]
      %v5612 = vld [vmem:[%s6 + $0x318] sm:$0xff]
      %v5613 = vld [vmem:[%s6 + $0x320] sm:$0xff]
      %v5614 = vld [vmem:[%s6 + $0x328] sm:$0xff]
      %v5615 = vld [vmem:[%s6 + $0x330] sm:$0xff]
      %v5616 = vld [vmem:[%s6 + $0x338] sm:$0xff]
      %v5617 = vld [vmem:[%s6 + $0x340] sm:$0xff]
      %v5618 = vld [vmem:[%s6 + $0x348] sm:$0xff]
      %v5619 = vld [vmem:[%s6 + $0x350] sm:$0xff]
      %v5620 = vld [vmem:[%s6 + $0x358] sm:$0xff]
      %v5621 = vld [vmem:[%s6 + $0x360] sm:$0xff]
      %v5622 = vld [vmem:[%s6 + $0x368] sm:$0xff]
      %v5623 = vld [vmem:[%s6 + $0x370] sm:$0xff]
      %v5624 = vld [vmem:[%s6 + $0x378] sm:$0xff]
      %v5625 = vld [vmem:[%s6 + $0x380] sm:$0xff]
      %v5626 = vld [vmem:[%s6 + $0x388] sm:$0xff]
      %v5627 = vld [vmem:[%s6 + $0x390] sm:$0xff]
      %v5628 = vld [vmem:[%s6 + $0x398] sm:$0xff]
      %v5629 = vld [vmem:[%s6 + $0x3a0] sm:$0xff]
      %v5630 = vld [vmem:[%s6 + $0x3a8] sm:$0xff]
      %v5631 = vld [vmem:[%s6 + $0x3b0] sm:$0xff]
      %v5632 = vld [vmem:[%s6 + $0x3b8] sm:$0xff]
      %v5633 = vld [vmem:[%s6 + $0x3c0] sm:$0xff]
      %v5634 = vld [vmem:[%s6 + $0x3c8] sm:$0xff]
      %v5635 = vld [vmem:[%s6 + $0x3d0] sm:$0xff]
      %v5636 = vld [vmem:[%s6 + $0x3d8] sm:$0xff]
      %v5637 = vld [vmem:[%s6 + $0x3e0] sm:$0xff]
      %v5638 = vld [vmem:[%s6 + $0x3e8] sm:$0xff]
      %v5639 = vld [vmem:[%s6 + $0x3f0] sm:$0xff]
      %v5640 = vld [vmem:[%s6 + $0x3f8] sm:$0xff]
      %v5769 = vunpack.c.l.b16 %v5513
      %v5770 = vunpack.c.h.b16 %v5513
      %v5771 = vunpack.c.l.b16 %v5514
      %v5772 = vunpack.c.h.b16 %v5514
      %v5773 = vunpack.c.l.b16 %v5515
      %v5774 = vunpack.c.h.b16 %v5515
      %v5775 = vunpack.c.l.b16 %v5516
      %v5776 = vunpack.c.h.b16 %v5516
      %v5777 = vunpack.c.l.b16 %v5517
      %v5778 = vunpack.c.h.b16 %v5517
      %v5779 = vunpack.c.l.b16 %v5518
      %v5780 = vunpack.c.h.b16 %v5518
      %v5781 = vunpack.c.l.b16 %v5519
      %v5782 = vunpack.c.h.b16 %v5519
      %v5783 = vunpack.c.l.b16 %v5520
      %v5784 = vunpack.c.h.b16 %v5520
      %v5785 = vunpack.c.l.b16 %v5521
      %v5786 = vunpack.c.h.b16 %v5521
      %v5787 = vunpack.c.l.b16 %v5522
      %v5788 = vunpack.c.h.b16 %v5522
      %v5789 = vunpack.c.l.b16 %v5523
      %v5790 = vunpack.c.h.b16 %v5523
      %v5791 = vunpack.c.l.b16 %v5524
      %v5792 = vunpack.c.h.b16 %v5524
      %v5793 = vunpack.c.l.b16 %v5525
      %v5794 = vunpack.c.h.b16 %v5525
      %v5795 = vunpack.c.l.b16 %v5526
      %v5796 = vunpack.c.h.b16 %v5526
      %v5797 = vunpack.c.l.b16 %v5527
      %v5798 = vunpack.c.h.b16 %v5527
      %v5799 = vunpack.c.l.b16 %v5528
      %v5800 = vunpack.c.h.b16 %v5528
      %v5801 = vunpack.c.l.b16 %v5529
      %v5802 = vunpack.c.h.b16 %v5529
      %v5803 = vunpack.c.l.b16 %v5530
      %v5804 = vunpack.c.h.b16 %v5530
      %v5805 = vunpack.c.l.b16 %v5531
      %v5806 = vunpack.c.h.b16 %v5531
      %v5807 = vunpack.c.l.b16 %v5532
      %v5808 = vunpack.c.h.b16 %v5532
      %v5809 = vunpack.c.l.b16 %v5533
      %v5810 = vunpack.c.h.b16 %v5533
      %v5811 = vunpack.c.l.b16 %v5534
      %v5812 = vunpack.c.h.b16 %v5534
      %v5813 = vunpack.c.l.b16 %v5535
      %v5814 = vunpack.c.h.b16 %v5535
      %v5815 = vunpack.c.l.b16 %v5536
      %v5816 = vunpack.c.h.b16 %v5536
      %v5817 = vunpack.c.l.b16 %v5537
      %v5818 = vunpack.c.h.b16 %v5537
      %v5819 = vunpack.c.l.b16 %v5538
      %v5820 = vunpack.c.h.b16 %v5538
      %v5821 = vunpack.c.l.b16 %v5539
      %v5822 = vunpack.c.h.b16 %v5539
      %v5823 = vunpack.c.l.b16 %v5540
      %v5824 = vunpack.c.h.b16 %v5540
      %v5825 = vunpack.c.l.b16 %v5541
      %v5826 = vunpack.c.h.b16 %v5541
      %v5827 = vunpack.c.l.b16 %v5542
      %v5828 = vunpack.c.h.b16 %v5542
      %v5829 = vunpack.c.l.b16 %v5543
      %v5830 = vunpack.c.h.b16 %v5543
      %v5831 = vunpack.c.l.b16 %v5544
      %v5832 = vunpack.c.h.b16 %v5544
      %v5833 = vunpack.c.l.b16 %v5545
      %v5834 = vunpack.c.h.b16 %v5545
      %v5835 = vunpack.c.l.b16 %v5546
      %v5836 = vunpack.c.h.b16 %v5546
      %v5837 = vunpack.c.l.b16 %v5547
      %v5838 = vunpack.c.h.b16 %v5547
      %v5839 = vunpack.c.l.b16 %v5548
      %v5840 = vunpack.c.h.b16 %v5548
      %v5841 = vunpack.c.l.b16 %v5549
      %v5842 = vunpack.c.h.b16 %v5549
      %v5843 = vunpack.c.l.b16 %v5550
      %v5844 = vunpack.c.h.b16 %v5550
      %v5845 = vunpack.c.l.b16 %v5551
      %v5846 = vunpack.c.h.b16 %v5551
      %v5847 = vunpack.c.l.b16 %v5552
      %v5848 = vunpack.c.h.b16 %v5552
      %v5849 = vunpack.c.l.b16 %v5553
      %v5850 = vunpack.c.h.b16 %v5553
      %v5851 = vunpack.c.l.b16 %v5554
      %v5852 = vunpack.c.h.b16 %v5554
      %v5853 = vunpack.c.l.b16 %v5555
      %v5854 = vunpack.c.h.b16 %v5555
      %v5855 = vunpack.c.l.b16 %v5556
      %v5856 = vunpack.c.h.b16 %v5556
      %v5857 = vunpack.c.l.b16 %v5557
      %v5858 = vunpack.c.h.b16 %v5557
      %v5859 = vunpack.c.l.b16 %v5558
      %v5860 = vunpack.c.h.b16 %v5558
      %v5861 = vunpack.c.l.b16 %v5559
      %v5862 = vunpack.c.h.b16 %v5559
      %v5863 = vunpack.c.l.b16 %v5560
      %v5864 = vunpack.c.h.b16 %v5560
      %v5865 = vunpack.c.l.b16 %v5561
      %v5866 = vunpack.c.h.b16 %v5561
      %v5867 = vunpack.c.l.b16 %v5562
      %v5868 = vunpack.c.h.b16 %v5562
      %v5869 = vunpack.c.l.b16 %v5563
      %v5870 = vunpack.c.h.b16 %v5563
      %v5871 = vunpack.c.l.b16 %v5564
      %v5872 = vunpack.c.h.b16 %v5564
      %v5873 = vunpack.c.l.b16 %v5565
      %v5874 = vunpack.c.h.b16 %v5565
      %v5875 = vunpack.c.l.b16 %v5566
      %v5876 = vunpack.c.h.b16 %v5566
      %v5877 = vunpack.c.l.b16 %v5567
      %v5878 = vunpack.c.h.b16 %v5567
      %v5879 = vunpack.c.l.b16 %v5568
      %v5880 = vunpack.c.h.b16 %v5568
      %v5881 = vunpack.c.l.b16 %v5569
      %v5882 = vunpack.c.h.b16 %v5569
      %v5883 = vunpack.c.l.b16 %v5570
      %v5884 = vunpack.c.h.b16 %v5570
      %v5885 = vunpack.c.l.b16 %v5571
      %v5886 = vunpack.c.h.b16 %v5571
      %v5887 = vunpack.c.l.b16 %v5572
      %v5888 = vunpack.c.h.b16 %v5572
      %v5889 = vunpack.c.l.b16 %v5573
      %v5890 = vunpack.c.h.b16 %v5573
      %v5891 = vunpack.c.l.b16 %v5574
      %v5892 = vunpack.c.h.b16 %v5574
      %v5893 = vunpack.c.l.b16 %v5575
      %v5894 = vunpack.c.h.b16 %v5575
      %v5895 = vunpack.c.l.b16 %v5576
      %v5896 = vunpack.c.h.b16 %v5576
      %v5897 = vunpack.c.l.b16 %v5577
      %v5898 = vunpack.c.h.b16 %v5577
      %v5899 = vunpack.c.l.b16 %v5578
      %v5900 = vunpack.c.h.b16 %v5578
      %v5901 = vunpack.c.l.b16 %v5579
      %v5902 = vunpack.c.h.b16 %v5579
      %v5903 = vunpack.c.l.b16 %v5580
      %v5904 = vunpack.c.h.b16 %v5580
      %v5905 = vunpack.c.l.b16 %v5581
      %v5906 = vunpack.c.h.b16 %v5581
      %v5907 = vunpack.c.l.b16 %v5582
      %v5908 = vunpack.c.h.b16 %v5582
      %v5909 = vunpack.c.l.b16 %v5583
      %v5910 = vunpack.c.h.b16 %v5583
      %v5911 = vunpack.c.l.b16 %v5584
      %v5912 = vunpack.c.h.b16 %v5584
      %v5913 = vunpack.c.l.b16 %v5585
      %v5914 = vunpack.c.h.b16 %v5585
      %v5915 = vunpack.c.l.b16 %v5586
      %v5916 = vunpack.c.h.b16 %v5586
      %v5917 = vunpack.c.l.b16 %v5587
      %v5918 = vunpack.c.h.b16 %v5587
      %v5919 = vunpack.c.l.b16 %v5588
      %v5920 = vunpack.c.h.b16 %v5588
      %v5921 = vunpack.c.l.b16 %v5589
      %v5922 = vunpack.c.h.b16 %v5589
      %v5923 = vunpack.c.l.b16 %v5590
      %v5924 = vunpack.c.h.b16 %v5590
      %v5925 = vunpack.c.l.b16 %v5591
      %v5926 = vunpack.c.h.b16 %v5591
      %v5927 = vunpack.c.l.b16 %v5592
      %v5928 = vunpack.c.h.b16 %v5592
      %v5929 = vunpack.c.l.b16 %v5593
      %v5930 = vunpack.c.h.b16 %v5593
      %v5931 = vunpack.c.l.b16 %v5594
      %v5932 = vunpack.c.h.b16 %v5594
      %v5933 = vunpack.c.l.b16 %v5595
      %v5934 = vunpack.c.h.b16 %v5595
      %v5935 = vunpack.c.l.b16 %v5596
      %v5936 = vunpack.c.h.b16 %v5596
      %v5937 = vunpack.c.l.b16 %v5597
      %v5938 = vunpack.c.h.b16 %v5597
      %v5939 = vunpack.c.l.b16 %v5598
      %v5940 = vunpack.c.h.b16 %v5598
      %v5941 = vunpack.c.l.b16 %v5599
      %v5942 = vunpack.c.h.b16 %v5599
      %v5943 = vunpack.c.l.b16 %v5600
      %v5944 = vunpack.c.h.b16 %v5600
      %v5945 = vunpack.c.l.b16 %v5601
      %v5946 = vunpack.c.h.b16 %v5601
      %v5947 = vunpack.c.l.b16 %v5602
      %v5948 = vunpack.c.h.b16 %v5602
      %v5949 = vunpack.c.l.b16 %v5603
      %v5950 = vunpack.c.h.b16 %v5603
      %v5951 = vunpack.c.l.b16 %v5604
      %v5952 = vunpack.c.h.b16 %v5604
      %v5953 = vunpack.c.l.b16 %v5605
      %v5954 = vunpack.c.h.b16 %v5605
      %v5955 = vunpack.c.l.b16 %v5606
      %v5956 = vunpack.c.h.b16 %v5606
      %v5957 = vunpack.c.l.b16 %v5607
      %v5958 = vunpack.c.h.b16 %v5607
      %v5959 = vunpack.c.l.b16 %v5608
      %v5960 = vunpack.c.h.b16 %v5608
      %v5961 = vunpack.c.l.b16 %v5609
      %v5962 = vunpack.c.h.b16 %v5609
      %v5963 = vunpack.c.l.b16 %v5610
      %v5964 = vunpack.c.h.b16 %v5610
      %v5965 = vunpack.c.l.b16 %v5611
      %v5966 = vunpack.c.h.b16 %v5611
      %v5967 = vunpack.c.l.b16 %v5612
      %v5968 = vunpack.c.h.b16 %v5612
      %v5969 = vunpack.c.l.b16 %v5613
      %v5970 = vunpack.c.h.b16 %v5613
      %v5971 = vunpack.c.l.b16 %v5614
      %v5972 = vunpack.c.h.b16 %v5614
      %v5973 = vunpack.c.l.b16 %v5615
      %v5974 = vunpack.c.h.b16 %v5615
      %v5975 = vunpack.c.l.b16 %v5616
      %v5976 = vunpack.c.h.b16 %v5616
      %v5977 = vunpack.c.l.b16 %v5617
      %v5978 = vunpack.c.h.b16 %v5617
      %v5979 = vunpack.c.l.b16 %v5618
      %v5980 = vunpack.c.h.b16 %v5618
      %v5981 = vunpack.c.l.b16 %v5619
      %v5982 = vunpack.c.h.b16 %v5619
      %v5983 = vunpack.c.l.b16 %v5620
      %v5984 = vunpack.c.h.b16 %v5620
      %v5985 = vunpack.c.l.b16 %v5621
      %v5986 = vunpack.c.h.b16 %v5621
      %v5987 = vunpack.c.l.b16 %v5622
      %v5988 = vunpack.c.h.b16 %v5622
      %v5989 = vunpack.c.l.b16 %v5623
      %v5990 = vunpack.c.h.b16 %v5623
      %v5991 = vunpack.c.l.b16 %v5624
      %v5992 = vunpack.c.h.b16 %v5624
      %v5993 = vunpack.c.l.b16 %v5625
      %v5994 = vunpack.c.h.b16 %v5625
      %v5995 = vunpack.c.l.b16 %v5626
      %v5996 = vunpack.c.h.b16 %v5626
      %v5997 = vunpack.c.l.b16 %v5627
      %v5998 = vunpack.c.h.b16 %v5627
      %v5999 = vunpack.c.l.b16 %v5628
      %v6000 = vunpack.c.h.b16 %v5628
      %v6001 = vunpack.c.l.b16 %v5629
      %v6002 = vunpack.c.h.b16 %v5629
      %v6003 = vunpack.c.l.b16 %v5630
      %v6004 = vunpack.c.h.b16 %v5630
      %v6005 = vunpack.c.l.b16 %v5631
      %v6006 = vunpack.c.h.b16 %v5631
      %v6007 = vunpack.c.l.b16 %v5632
      %v6008 = vunpack.c.h.b16 %v5632
      %v6009 = vunpack.c.l.b16 %v5633
      %v6010 = vunpack.c.h.b16 %v5633
      %v6011 = vunpack.c.l.b16 %v5634
      %v6012 = vunpack.c.h.b16 %v5634
      %v6013 = vunpack.c.l.b16 %v5635
      %v6014 = vunpack.c.h.b16 %v5635
      %v6015 = vunpack.c.l.b16 %v5636
      %v6016 = vunpack.c.h.b16 %v5636
      %v6017 = vunpack.c.l.b16 %v5637
      %v6018 = vunpack.c.h.b16 %v5637
      %v6019 = vunpack.c.l.b16 %v5638
      %v6020 = vunpack.c.h.b16 %v5638
      %v6021 = vunpack.c.l.b16 %v5639
      %v6022 = vunpack.c.h.b16 %v5639
      %v6023 = vunpack.c.l.b16 %v5640
      %v6024 = vunpack.c.h.b16 %v5640
      %v6025 = vpack.c.b16 %v5773, %v5769
      %v6026 = vpack.c.b16 %v5774, %v5770
      %v6027 = vpack.c.b16 %v5775, %v5771
      %v6028 = vpack.c.b16 %v5776, %v5772
      %v6029 = vpack.c.b16 %v5781, %v5777
      %v6030 = vpack.c.b16 %v5782, %v5778
      %v6031 = vpack.c.b16 %v5783, %v5779
      %v6032 = vpack.c.b16 %v5784, %v5780
      %v6033 = vpack.c.b16 %v5789, %v5785
      %v6034 = vpack.c.b16 %v5790, %v5786
      %v6035 = vpack.c.b16 %v5791, %v5787
      %v6036 = vpack.c.b16 %v5792, %v5788
      %v6037 = vpack.c.b16 %v5797, %v5793
      %v6038 = vpack.c.b16 %v5798, %v5794
      %v6039 = vpack.c.b16 %v5799, %v5795
      %v6040 = vpack.c.b16 %v5800, %v5796
      %v6041 = vpack.c.b16 %v5805, %v5801
      %v6042 = vpack.c.b16 %v5806, %v5802
      %v6043 = vpack.c.b16 %v5807, %v5803
      %v6044 = vpack.c.b16 %v5808, %v5804
      %v6045 = vpack.c.b16 %v5813, %v5809
      %v6046 = vpack.c.b16 %v5814, %v5810
      %v6047 = vpack.c.b16 %v5815, %v5811
      %v6048 = vpack.c.b16 %v5816, %v5812
      %v6049 = vpack.c.b16 %v5821, %v5817
      %v6050 = vpack.c.b16 %v5822, %v5818
      %v6051 = vpack.c.b16 %v5823, %v5819
      %v6052 = vpack.c.b16 %v5824, %v5820
      %v6053 = vpack.c.b16 %v5829, %v5825
      %v6054 = vpack.c.b16 %v5830, %v5826
      %v6055 = vpack.c.b16 %v5831, %v5827
      %v6056 = vpack.c.b16 %v5832, %v5828
      %v6057 = vpack.c.b16 %v5837, %v5833
      %v6058 = vpack.c.b16 %v5838, %v5834
      %v6059 = vpack.c.b16 %v5839, %v5835
      %v6060 = vpack.c.b16 %v5840, %v5836
      %v6061 = vpack.c.b16 %v5845, %v5841
      %v6062 = vpack.c.b16 %v5846, %v5842
      %v6063 = vpack.c.b16 %v5847, %v5843
      %v6064 = vpack.c.b16 %v5848, %v5844
      %v6065 = vpack.c.b16 %v5853, %v5849
      %v6066 = vpack.c.b16 %v5854, %v5850
      %v6067 = vpack.c.b16 %v5855, %v5851
      %v6068 = vpack.c.b16 %v5856, %v5852
      %v6069 = vpack.c.b16 %v5861, %v5857
      %v6070 = vpack.c.b16 %v5862, %v5858
      %v6071 = vpack.c.b16 %v5863, %v5859
      %v6072 = vpack.c.b16 %v5864, %v5860
      %v6073 = vpack.c.b16 %v5869, %v5865
      %v6074 = vpack.c.b16 %v5870, %v5866
      %v6075 = vpack.c.b16 %v5871, %v5867
      %v6076 = vpack.c.b16 %v5872, %v5868
      %v6077 = vpack.c.b16 %v5877, %v5873
      %v6078 = vpack.c.b16 %v5878, %v5874
      %v6079 = vpack.c.b16 %v5879, %v5875
      %v6080 = vpack.c.b16 %v5880, %v5876
      %v6081 = vpack.c.b16 %v5885, %v5881
      %v6082 = vpack.c.b16 %v5886, %v5882
      %v6083 = vpack.c.b16 %v5887, %v5883
      %v6084 = vpack.c.b16 %v5888, %v5884
      %v6085 = vpack.c.b16 %v5893, %v5889
      %v6086 = vpack.c.b16 %v5894, %v5890
      %v6087 = vpack.c.b16 %v5895, %v5891
      %v6088 = vpack.c.b16 %v5896, %v5892
      %v6089 = vpack.c.b16 %v5901, %v5897
      %v6090 = vpack.c.b16 %v5902, %v5898
      %v6091 = vpack.c.b16 %v5903, %v5899
      %v6092 = vpack.c.b16 %v5904, %v5900
      %v6093 = vpack.c.b16 %v5909, %v5905
      %v6094 = vpack.c.b16 %v5910, %v5906
      %v6095 = vpack.c.b16 %v5911, %v5907
      %v6096 = vpack.c.b16 %v5912, %v5908
      %v6097 = vpack.c.b16 %v5917, %v5913
      %v6098 = vpack.c.b16 %v5918, %v5914
      %v6099 = vpack.c.b16 %v5919, %v5915
      %v6100 = vpack.c.b16 %v5920, %v5916
      %v6101 = vpack.c.b16 %v5925, %v5921
      %v6102 = vpack.c.b16 %v5926, %v5922
      %v6103 = vpack.c.b16 %v5927, %v5923
      %v6104 = vpack.c.b16 %v5928, %v5924
      %v6105 = vpack.c.b16 %v5933, %v5929
      %v6106 = vpack.c.b16 %v5934, %v5930
      %v6107 = vpack.c.b16 %v5935, %v5931
      %v6108 = vpack.c.b16 %v5936, %v5932
      %v6109 = vpack.c.b16 %v5941, %v5937
      %v6110 = vpack.c.b16 %v5942, %v5938
      %v6111 = vpack.c.b16 %v5943, %v5939
      %v6112 = vpack.c.b16 %v5944, %v5940
      %v6113 = vpack.c.b16 %v5949, %v5945
      %v6114 = vpack.c.b16 %v5950, %v5946
      %v6115 = vpack.c.b16 %v5951, %v5947
      %v6116 = vpack.c.b16 %v5952, %v5948
      %v6117 = vpack.c.b16 %v5957, %v5953
      %v6118 = vpack.c.b16 %v5958, %v5954
      %v6119 = vpack.c.b16 %v5959, %v5955
      %v6120 = vpack.c.b16 %v5960, %v5956
      %v6121 = vpack.c.b16 %v5965, %v5961
      %v6122 = vpack.c.b16 %v5966, %v5962
      %v6123 = vpack.c.b16 %v5967, %v5963
      %v6124 = vpack.c.b16 %v5968, %v5964
      %v6125 = vpack.c.b16 %v5973, %v5969
      %v6126 = vpack.c.b16 %v5974, %v5970
      %v6127 = vpack.c.b16 %v5975, %v5971
      %v6128 = vpack.c.b16 %v5976, %v5972
      %v6129 = vpack.c.b16 %v5981, %v5977
      %v6130 = vpack.c.b16 %v5982, %v5978
      %v6131 = vpack.c.b16 %v5983, %v5979
      %v6132 = vpack.c.b16 %v5984, %v5980
      %v6133 = vpack.c.b16 %v5989, %v5985
      %v6134 = vpack.c.b16 %v5990, %v5986
      %v6135 = vpack.c.b16 %v5991, %v5987
      %v6136 = vpack.c.b16 %v5992, %v5988
      %v6137 = vpack.c.b16 %v5997, %v5993
      %v6138 = vpack.c.b16 %v5998, %v5994
      %v6139 = vpack.c.b16 %v5999, %v5995
      %v6140 = vpack.c.b16 %v6000, %v5996
      %v6141 = vpack.c.b16 %v6005, %v6001
      %v6142 = vpack.c.b16 %v6006, %v6002
      %v6143 = vpack.c.b16 %v6007, %v6003
      %v6144 = vpack.c.b16 %v6008, %v6004
      %v6145 = vpack.c.b16 %v6013, %v6009
      %v6146 = vpack.c.b16 %v6014, %v6010
      %v6147 = vpack.c.b16 %v6015, %v6011
      %v6148 = vpack.c.b16 %v6016, %v6012
      %v6149 = vpack.c.b16 %v6021, %v6017
      %v6150 = vpack.c.b16 %v6022, %v6018
      %v6151 = vpack.c.b16 %v6023, %v6019
      %v6152 = vpack.c.b16 %v6024, %v6020
      %6281 = vmatpush.bf16.msra.mxu0 %v6053
      %6282 = vmatpush.bf16.msra.mxu0 %v6049
      %6283 = vmatpush.bf16.msra.mxu0 %v6045
      %6284 = vmatpush.bf16.msra.mxu0 %v6041
      %6285 = vmatpush.bf16.msra.mxu0 %v6037
      %6286 = vmatpush.bf16.msra.mxu0 %v6033
      %6287 = vmatpush.bf16.msra.mxu0 %v6029
      %6288 = vmatpush.bf16.msra.mxu0 %v6025
      %6289 = vmatmul.bf16.gmra.mxu0 %v5509
      %v6290 = vpop.f32.mrf.mxu0
      %v6291 = vadd.f32 0.0, %v6290
      %v6292 = vpop.f32.mrf.mxu0
      %v6293 = vadd.f32 0.0, %v6292
      %6294 = vdwg.mxu0
      %6295 = vmatpush.bf16.msra.mxu0 %v6085
      %6296 = vmatpush.bf16.msra.mxu0 %v6081
      %6297 = vmatpush.bf16.msra.mxu0 %v6077
      %6298 = vmatpush.bf16.msra.mxu0 %v6073
      %6299 = vmatpush.bf16.msra.mxu0 %v6069
      %6300 = vmatpush.bf16.msra.mxu0 %v6065
      %6301 = vmatpush.bf16.msra.mxu0 %v6061
      %6302 = vmatpush.bf16.msra.mxu0 %v6057
      %6303 = vmatmul.bf16.gmra.mxu0 %v5510
      %v6304 = vpop.f32.mrf.mxu0
      %v6305 = vadd.f32 %v6291, %v6304
      %v6306 = vpop.f32.mrf.mxu0
      %v6307 = vadd.f32 %v6293, %v6306
      %6308 = vdwg.mxu0
      %6309 = vmatpush.bf16.msra.mxu0 %v6117
      %6310 = vmatpush.bf16.msra.mxu0 %v6113
      %6311 = vmatpush.bf16.msra.mxu0 %v6109
      %6312 = vmatpush.bf16.msra.mxu0 %v6105
      %6313 = vmatpush.bf16.msra.mxu0 %v6101
      %6314 = vmatpush.bf16.msra.mxu0 %v6097
      %6315 = vmatpush.bf16.msra.mxu0 %v6093
      %6316 = vmatpush.bf16.msra.mxu0 %v6089
      %6317 = vmatmul.bf16.gmra.mxu0 %v5511
      %v6318 = vpop.f32.mrf.mxu0
      %v6319 = vadd.f32 %v6305, %v6318
      %v6320 = vpop.f32.mrf.mxu0
      %v6321 = vadd.f32 %v6307, %v6320
      %6322 = vdwg.mxu0
      %6323 = vmatpush.bf16.msra.mxu0 %v6149
      %6324 = vmatpush.bf16.msra.mxu0 %v6145
      %6325 = vmatpush.bf16.msra.mxu0 %v6141
      %6326 = vmatpush.bf16.msra.mxu0 %v6137
      %6327 = vmatpush.bf16.msra.mxu0 %v6133
      %6328 = vmatpush.bf16.msra.mxu0 %v6129
      %6329 = vmatpush.bf16.msra.mxu0 %v6125
      %6330 = vmatpush.bf16.msra.mxu0 %v6121
      %6331 = vmatmul.bf16.gmra.mxu0 %v5512
      %v6332 = vpop.f32.mrf.mxu0
      %v6333 = vadd.f32 %v6319, %v6332
      %v6334 = vpop.f32.mrf.mxu0
      %v6335 = vadd.f32 %v6321, %v6334
      %6336 = vdwg.mxu0
      %6337 = vmatpush.bf16.msra.mxu0 %v6054
      %6338 = vmatpush.bf16.msra.mxu0 %v6050
      %6339 = vmatpush.bf16.msra.mxu0 %v6046
      %6340 = vmatpush.bf16.msra.mxu0 %v6042
      %6341 = vmatpush.bf16.msra.mxu0 %v6038
      %6342 = vmatpush.bf16.msra.mxu0 %v6034
      %6343 = vmatpush.bf16.msra.mxu0 %v6030
      %6344 = vmatpush.bf16.msra.mxu0 %v6026
      %6345 = vmatmul.bf16.gmra.mxu0 %v5509
      %v6346 = vpop.f32.mrf.mxu0
      %v6347 = vadd.f32 0.0, %v6346
      %v6348 = vpop.f32.mrf.mxu0
      %v6349 = vadd.f32 0.0, %v6348
      %6350 = vdwg.mxu0
      %6351 = vmatpush.bf16.msra.mxu0 %v6086
      %6352 = vmatpush.bf16.msra.mxu0 %v6082
      %6353 = vmatpush.bf16.msra.mxu0 %v6078
      %6354 = vmatpush.bf16.msra.mxu0 %v6074
      %6355 = vmatpush.bf16.msra.mxu0 %v6070
      %6356 = vmatpush.bf16.msra.mxu0 %v6066
      %6357 = vmatpush.bf16.msra.mxu0 %v6062
      %6358 = vmatpush.bf16.msra.mxu0 %v6058
      %6359 = vmatmul.bf16.gmra.mxu0 %v5510
      %v6360 = vpop.f32.mrf.mxu0
      %v6361 = vadd.f32 %v6347, %v6360
      %v6362 = vpop.f32.mrf.mxu0
      %v6363 = vadd.f32 %v6349, %v6362
      %6364 = vdwg.mxu0
      %6365 = vmatpush.bf16.msra.mxu0 %v6118
      %6366 = vmatpush.bf16.msra.mxu0 %v6114
      %6367 = vmatpush.bf16.msra.mxu0 %v6110
      %6368 = vmatpush.bf16.msra.mxu0 %v6106
      %6369 = vmatpush.bf16.msra.mxu0 %v6102
      %6370 = vmatpush.bf16.msra.mxu0 %v6098
      %6371 = vmatpush.bf16.msra.mxu0 %v6094
      %6372 = vmatpush.bf16.msra.mxu0 %v6090
      %6373 = vmatmul.bf16.gmra.mxu0 %v5511
      %v6374 = vpop.f32.mrf.mxu0
      %v6375 = vadd.f32 %v6361, %v6374
      %v6376 = vpop.f32.mrf.mxu0
      %v6377 = vadd.f32 %v6363, %v6376
      %6378 = vdwg.mxu0
      %6379 = vmatpush.bf16.msra.mxu0 %v6150
      %6380 = vmatpush.bf16.msra.mxu0 %v6146
      %6381 = vmatpush.bf16.msra.mxu0 %v6142
      %6382 = vmatpush.bf16.msra.mxu0 %v6138
      %6383 = vmatpush.bf16.msra.mxu0 %v6134
      %6384 = vmatpush.bf16.msra.mxu0 %v6130
      %6385 = vmatpush.bf16.msra.mxu0 %v6126
      %6386 = vmatpush.bf16.msra.mxu0 %v6122
      %6387 = vmatmul.bf16.gmra.mxu0 %v5512
      %v6388 = vpop.f32.mrf.mxu0
      %v6389 = vadd.f32 %v6375, %v6388
      %v6390 = vpop.f32.mrf.mxu0
      %v6391 = vadd.f32 %v6377, %v6390
      %6392 = vdwg.mxu0
      %6393 = vmatpush.bf16.msra.mxu0 %v6055
      %6394 = vmatpush.bf16.msra.mxu0 %v6051
      %6395 = vmatpush.bf16.msra.mxu0 %v6047
      %6396 = vmatpush.bf16.msra.mxu0 %v6043
      %6397 = vmatpush.bf16.msra.mxu0 %v6039
      %6398 = vmatpush.bf16.msra.mxu0 %v6035
      %6399 = vmatpush.bf16.msra.mxu0 %v6031
      %6400 = vmatpush.bf16.msra.mxu0 %v6027
      %6401 = vmatmul.bf16.gmra.mxu0 %v5509
      %v6402 = vpop.f32.mrf.mxu0
      %v6403 = vadd.f32 0.0, %v6402
      %v6404 = vpop.f32.mrf.mxu0
      %v6405 = vadd.f32 0.0, %v6404
      %6406 = vdwg.mxu0
      %6407 = vmatpush.bf16.msra.mxu0 %v6087
      %6408 = vmatpush.bf16.msra.mxu0 %v6083
      %6409 = vmatpush.bf16.msra.mxu0 %v6079
      %6410 = vmatpush.bf16.msra.mxu0 %v6075
      %6411 = vmatpush.bf16.msra.mxu0 %v6071
      %6412 = vmatpush.bf16.msra.mxu0 %v6067
      %6413 = vmatpush.bf16.msra.mxu0 %v6063
      %6414 = vmatpush.bf16.msra.mxu0 %v6059
      %6415 = vmatmul.bf16.gmra.mxu0 %v5510
      %v6416 = vpop.f32.mrf.mxu0
      %v6417 = vadd.f32 %v6403, %v6416
      %v6418 = vpop.f32.mrf.mxu0
      %v6419 = vadd.f32 %v6405, %v6418
      %6420 = vdwg.mxu0
      %6421 = vmatpush.bf16.msra.mxu0 %v6119
      %6422 = vmatpush.bf16.msra.mxu0 %v6115
      %6423 = vmatpush.bf16.msra.mxu0 %v6111
      %6424 = vmatpush.bf16.msra.mxu0 %v6107
      %6425 = vmatpush.bf16.msra.mxu0 %v6103
      %6426 = vmatpush.bf16.msra.mxu0 %v6099
      %6427 = vmatpush.bf16.msra.mxu0 %v6095
      %6428 = vmatpush.bf16.msra.mxu0 %v6091
      %6429 = vmatmul.bf16.gmra.mxu0 %v5511
      %v6430 = vpop.f32.mrf.mxu0
      %v6431 = vadd.f32 %v6417, %v6430
      %v6432 = vpop.f32.mrf.mxu0
      %v6433 = vadd.f32 %v6419, %v6432
      %6434 = vdwg.mxu0
      %6435 = vmatpush.bf16.msra.mxu0 %v6151
      %6436 = vmatpush.bf16.msra.mxu0 %v6147
      %6437 = vmatpush.bf16.msra.mxu0 %v6143
      %6438 = vmatpush.bf16.msra.mxu0 %v6139
      %6439 = vmatpush.bf16.msra.mxu0 %v6135
      %6440 = vmatpush.bf16.msra.mxu0 %v6131
      %6441 = vmatpush.bf16.msra.mxu0 %v6127
      %6442 = vmatpush.bf16.msra.mxu0 %v6123
      %6443 = vmatmul.bf16.gmra.mxu0 %v5512
      %v6444 = vpop.f32.mrf.mxu0
      %v6445 = vadd.f32 %v6431, %v6444
      %v6446 = vpop.f32.mrf.mxu0
      %v6447 = vadd.f32 %v6433, %v6446
      %6448 = vdwg.mxu0
      %6449 = vmatpush.bf16.msra.mxu0 %v6056
      %6450 = vmatpush.bf16.msra.mxu0 %v6052
      %6451 = vmatpush.bf16.msra.mxu0 %v6048
      %6452 = vmatpush.bf16.msra.mxu0 %v6044
      %6453 = vmatpush.bf16.msra.mxu0 %v6040
      %6454 = vmatpush.bf16.msra.mxu0 %v6036
      %6455 = vmatpush.bf16.msra.mxu0 %v6032
      %6456 = vmatpush.bf16.msra.mxu0 %v6028
      %6457 = vmatmul.bf16.gmra.mxu0 %v5509
      %v6458 = vpop.f32.mrf.mxu0
      %v6459 = vadd.f32 0.0, %v6458
      %v6460 = vpop.f32.mrf.mxu0
      %v6461 = vadd.f32 0.0, %v6460
      %6462 = vdwg.mxu0
      %6463 = vmatpush.bf16.msra.mxu0 %v6088
      %6464 = vmatpush.bf16.msra.mxu0 %v6084
      %6465 = vmatpush.bf16.msra.mxu0 %v6080
      %6466 = vmatpush.bf16.msra.mxu0 %v6076
      %6467 = vmatpush.bf16.msra.mxu0 %v6072
      %6468 = vmatpush.bf16.msra.mxu0 %v6068
      %6469 = vmatpush.bf16.msra.mxu0 %v6064
      %6470 = vmatpush.bf16.msra.mxu0 %v6060
      %6471 = vmatmul.bf16.gmra.mxu0 %v5510
      %v6472 = vpop.f32.mrf.mxu0
      %v6473 = vadd.f32 %v6459, %v6472
      %v6474 = vpop.f32.mrf.mxu0
      %v6475 = vadd.f32 %v6461, %v6474
      %6476 = vdwg.mxu0
      %6477 = vmatpush.bf16.msra.mxu0 %v6120
      %6478 = vmatpush.bf16.msra.mxu0 %v6116
      %6479 = vmatpush.bf16.msra.mxu0 %v6112
      %6480 = vmatpush.bf16.msra.mxu0 %v6108
      %6481 = vmatpush.bf16.msra.mxu0 %v6104
      %6482 = vmatpush.bf16.msra.mxu0 %v6100
      %6483 = vmatpush.bf16.msra.mxu0 %v6096
      %6484 = vmatpush.bf16.msra.mxu0 %v6092
      %6485 = vmatmul.bf16.gmra.mxu0 %v5511
      %v6486 = vpop.f32.mrf.mxu0
      %v6487 = vadd.f32 %v6473, %v6486
      %v6488 = vpop.f32.mrf.mxu0
      %v6489 = vadd.f32 %v6475, %v6488
      %6490 = vdwg.mxu0
      %6491 = vmatpush.bf16.msra.mxu0 %v6152
      %6492 = vmatpush.bf16.msra.mxu0 %v6148
      %6493 = vmatpush.bf16.msra.mxu0 %v6144
      %6494 = vmatpush.bf16.msra.mxu0 %v6140
      %6495 = vmatpush.bf16.msra.mxu0 %v6136
      %6496 = vmatpush.bf16.msra.mxu0 %v6132
      %6497 = vmatpush.bf16.msra.mxu0 %v6128
      %6498 = vmatpush.bf16.msra.mxu0 %v6124
      %6499 = vmatmul.bf16.gmra.mxu0 %v5512
      %v6500 = vpop.f32.mrf.mxu0
      %v6501 = vadd.f32 %v6487, %v6500
      %v6502 = vpop.f32.mrf.mxu0
      %v6503 = vadd.f32 %v6489, %v6502
      %6504 = vdwg.mxu0
      %v6505 = vld [vmem:[%s7] ss:$2 sm:$0xf]
      %v6507 = vperm.slane %v6505, 0
      %v6508 = vperm.slane %v6505, 1
      %v6509 = vperm.slane %v6505, 2
      %v6510 = vperm.slane %v6505, 3
      %v6515 = vmul.f32 %v6333, %v6507
      %v6516 = vmul.f32 %v6389, %v6508
      %v6517 = vmul.f32 %v6445, %v6509
      %v6518 = vmul.f32 %v6501, %v6510
      %v6519 = vmul.f32 %v6335, %v6507
      %v6520 = vmul.f32 %v6391, %v6508
      %v6521 = vmul.f32 %v6447, %v6509
      %v6522 = vmul.f32 %v6503, %v6510
      %s6523 = scalar_lea.vmem %s7, 1
      %v6524 = vld [vmem:[%s6523] ss:$2 sm:$0xf]
      %v6526 = vperm.slane %v6524, 0
      %v6527 = vperm.slane %v6524, 1
      %v6528 = vperm.slane %v6524, 2
      %v6529 = vperm.slane %v6524, 3
      %v6534 = vadd.f32 %v6515, %v6526
      %v6535 = vadd.f32 %v6516, %v6527
      %v6536 = vadd.f32 %v6517, %v6528
      %v6537 = vadd.f32 %v6518, %v6529
      %v6538 = vadd.f32 %v6519, %v6526
      %v6539 = vadd.f32 %v6520, %v6527
      %v6540 = vadd.f32 %v6521, %v6528
      %v6541 = vadd.f32 %v6522, %v6529
      %v6542 = vmax.f32 %v6534, 0.0
      %v6543 = vmax.f32 %v6535, 0.0
      %v6544 = vmax.f32 %v6536, 0.0
      %v6545 = vmax.f32 %v6537, 0.0
      %v6546 = vmax.f32 %v6538, 0.0
      %v6547 = vmax.f32 %v6539, 0.0
      %v6548 = vmax.f32 %v6540, 0.0
      %v6549 = vmax.f32 %v6541, 0.0
      %v6550 = vld [vmem:[%s408] sm:$0xff]
      %v6551 = vld [vmem:[%s408 + $0x8] sm:$0xff]
      %v6552 = vld [vmem:[%s8] sm:$0x1]
      %v6553 = vperm.slane %v6552, 0
      %v6554 = vmul.f32 %v6550, %v6553
      %v6555 = vmul.f32 %v6551, %v6553
      %v6556 = vld [vmem:[%s8 + $0x1] sm:$0x1]
      %v6557 = vperm.slane %v6556, 0
      %v6558 = vadd.f32 %v6554, %v6557
      %v6559 = vadd.f32 %v6555, %v6557
      %v6560 = vmax.f32 %v6558, 0.0
      %v6561 = vmax.f32 %v6559, 0.0
      %v6562 = vpack.c.bf16 %v6546, %v6542
      %v6563 = vpack.c.bf16 %v6547, %v6543
      %v6564 = vpack.c.bf16 %v6548, %v6544
      %v6565 = vpack.c.bf16 %v6549, %v6545
      %v6566 = vld [vmem:[%s9] sm:$0xff]
      %v6567 = vld [vmem:[%s9 + $0x8] sm:$0xff]
      %v6568 = vld [vmem:[%s9 + $0x10] sm:$0xff]
      %v6569 = vld [vmem:[%s9 + $0x18] sm:$0xff]
      %v6570 = vld [vmem:[%s9 + $0x20] sm:$0xff]
      %v6571 = vld [vmem:[%s9 + $0x28] sm:$0xff]
      %v6572 = vld [vmem:[%s9 + $0x30] sm:$0xff]
      %v6573 = vld [vmem:[%s9 + $0x38] sm:$0xff]
      %v6574 = vld [vmem:[%s9 + $0x40] sm:$0xff]
      %v6575 = vld [vmem:[%s9 + $0x48] sm:$0xff]
      %v6576 = vld [vmem:[%s9 + $0x50] sm:$0xff]
      %v6577 = vld [vmem:[%s9 + $0x58] sm:$0xff]
      %v6578 = vld [vmem:[%s9 + $0x60] sm:$0xff]
      %v6579 = vld [vmem:[%s9 + $0x68] sm:$0xff]
      %v6580 = vld [vmem:[%s9 + $0x70] sm:$0xff]
      %v6581 = vld [vmem:[%s9 + $0x78] sm:$0xff]
      %v6582 = vld [vmem:[%s9 + $0x80] sm:$0xff]
      %v6583 = vld [vmem:[%s9 + $0x88] sm:$0xff]
      %v6584 = vld [vmem:[%s9 + $0x90] sm:$0xff]
      %v6585 = vld [vmem:[%s9 + $0x98] sm:$0xff]
      %v6586 = vld [vmem:[%s9 + $0xa0] sm:$0xff]
      %v6587 = vld [vmem:[%s9 + $0xa8] sm:$0xff]
      %v6588 = vld [vmem:[%s9 + $0xb0] sm:$0xff]
      %v6589 = vld [vmem:[%s9 + $0xb8] sm:$0xff]
      %v6590 = vld [vmem:[%s9 + $0xc0] sm:$0xff]
      %v6591 = vld [vmem:[%s9 + $0xc8] sm:$0xff]
      %v6592 = vld [vmem:[%s9 + $0xd0] sm:$0xff]
      %v6593 = vld [vmem:[%s9 + $0xd8] sm:$0xff]
      %v6594 = vld [vmem:[%s9 + $0xe0] sm:$0xff]
      %v6595 = vld [vmem:[%s9 + $0xe8] sm:$0xff]
      %v6596 = vld [vmem:[%s9 + $0xf0] sm:$0xff]
      %v6597 = vld [vmem:[%s9 + $0xf8] sm:$0xff]
      %v6598 = vld [vmem:[%s9 + $0x100] sm:$0xff]
      %v6599 = vld [vmem:[%s9 + $0x108] sm:$0xff]
      %v6600 = vld [vmem:[%s9 + $0x110] sm:$0xff]
      %v6601 = vld [vmem:[%s9 + $0x118] sm:$0xff]
      %v6602 = vld [vmem:[%s9 + $0x120] sm:$0xff]
      %v6603 = vld [vmem:[%s9 + $0x128] sm:$0xff]
      %v6604 = vld [vmem:[%s9 + $0x130] sm:$0xff]
      %v6605 = vld [vmem:[%s9 + $0x138] sm:$0xff]
      %v6606 = vld [vmem:[%s9 + $0x140] sm:$0xff]
      %v6607 = vld [vmem:[%s9 + $0x148] sm:$0xff]
      %v6608 = vld [vmem:[%s9 + $0x150] sm:$0xff]
      %v6609 = vld [vmem:[%s9 + $0x158] sm:$0xff]
      %v6610 = vld [vmem:[%s9 + $0x160] sm:$0xff]
      %v6611 = vld [vmem:[%s9 + $0x168] sm:$0xff]
      %v6612 = vld [vmem:[%s9 + $0x170] sm:$0xff]
      %v6613 = vld [vmem:[%s9 + $0x178] sm:$0xff]
      %v6614 = vld [vmem:[%s9 + $0x180] sm:$0xff]
      %v6615 = vld [vmem:[%s9 + $0x188] sm:$0xff]
      %v6616 = vld [vmem:[%s9 + $0x190] sm:$0xff]
      %v6617 = vld [vmem:[%s9 + $0x198] sm:$0xff]
      %v6618 = vld [vmem:[%s9 + $0x1a0] sm:$0xff]
      %v6619 = vld [vmem:[%s9 + $0x1a8] sm:$0xff]
      %v6620 = vld [vmem:[%s9 + $0x1b0] sm:$0xff]
      %v6621 = vld [vmem:[%s9 + $0x1b8] sm:$0xff]
      %v6622 = vld [vmem:[%s9 + $0x1c0] sm:$0xff]
      %v6623 = vld [vmem:[%s9 + $0x1c8] sm:$0xff]
      %v6624 = vld [vmem:[%s9 + $0x1d0] sm:$0xff]
      %v6625 = vld [vmem:[%s9 + $0x1d8] sm:$0xff]
      %v6626 = vld [vmem:[%s9 + $0x1e0] sm:$0xff]
      %v6627 = vld [vmem:[%s9 + $0x1e8] sm:$0xff]
      %v6628 = vld [vmem:[%s9 + $0x1f0] sm:$0xff]
      %v6629 = vld [vmem:[%s9 + $0x1f8] sm:$0xff]
      %v6630 = vld [vmem:[%s10] ss:$8 sm:$0x3]
      %6632 = vset.pattern.permute.xlu0 0
      %6633 = vperm.xlu0 %6632, %v6560
      %v6634 = vpop.permute.xlu0 %6633
      %6637 = vset.pattern.permute.xlu0 0
      %6638 = vperm.xlu0 %6637, %v6561
      %v6639 = vpop.permute.xlu0 %6638
      %v6642 = vperm.slane %v6630, 0
      %v6643 = vperm.slane %v6630, 1
      %v6646 = vmul.f32 %v6634, %v6642
      %v6647 = vmul.f32 %v6634, %v6643
      %v6648 = vmul.f32 %v6639, %v6642
      %v6649 = vmul.f32 %v6639, %v6643
      %v6714 = vunpack.c.l.b16 %v6566
      %v6715 = vunpack.c.h.b16 %v6566
      %v6716 = vunpack.c.l.b16 %v6567
      %v6717 = vunpack.c.h.b16 %v6567
      %v6718 = vunpack.c.l.b16 %v6568
      %v6719 = vunpack.c.h.b16 %v6568
      %v6720 = vunpack.c.l.b16 %v6569
      %v6721 = vunpack.c.h.b16 %v6569
      %v6722 = vunpack.c.l.b16 %v6570
      %v6723 = vunpack.c.h.b16 %v6570
      %v6724 = vunpack.c.l.b16 %v6571
      %v6725 = vunpack.c.h.b16 %v6571
      %v6726 = vunpack.c.l.b16 %v6572
      %v6727 = vunpack.c.h.b16 %v6572
      %v6728 = vunpack.c.l.b16 %v6573
      %v6729 = vunpack.c.h.b16 %v6573
      %v6730 = vunpack.c.l.b16 %v6574
      %v6731 = vunpack.c.h.b16 %v6574
      %v6732 = vunpack.c.l.b16 %v6575
      %v6733 = vunpack.c.h.b16 %v6575
      %v6734 = vunpack.c.l.b16 %v6576
      %v6735 = vunpack.c.h.b16 %v6576
      %v6736 = vunpack.c.l.b16 %v6577
      %v6737 = vunpack.c.h.b16 %v6577
      %v6738 = vunpack.c.l.b16 %v6578
      %v6739 = vunpack.c.h.b16 %v6578
      %v6740 = vunpack.c.l.b16 %v6579
      %v6741 = vunpack.c.h.b16 %v6579
      %v6742 = vunpack.c.l.b16 %v6580
      %v6743 = vunpack.c.h.b16 %v6580
      %v6744 = vunpack.c.l.b16 %v6581
      %v6745 = vunpack.c.h.b16 %v6581
      %v6746 = vunpack.c.l.b16 %v6582
      %v6747 = vunpack.c.h.b16 %v6582
      %v6748 = vunpack.c.l.b16 %v6583
      %v6749 = vunpack.c.h.b16 %v6583
      %v6750 = vunpack.c.l.b16 %v6584
      %v6751 = vunpack.c.h.b16 %v6584
      %v6752 = vunpack.c.l.b16 %v6585
      %v6753 = vunpack.c.h.b16 %v6585
      %v6754 = vunpack.c.l.b16 %v6586
      %v6755 = vunpack.c.h.b16 %v6586
      %v6756 = vunpack.c.l.b16 %v6587
      %v6757 = vunpack.c.h.b16 %v6587
      %v6758 = vunpack.c.l.b16 %v6588
      %v6759 = vunpack.c.h.b16 %v6588
      %v6760 = vunpack.c.l.b16 %v6589
      %v6761 = vunpack.c.h.b16 %v6589
      %v6762 = vunpack.c.l.b16 %v6590
      %v6763 = vunpack.c.h.b16 %v6590
      %v6764 = vunpack.c.l.b16 %v6591
      %v6765 = vunpack.c.h.b16 %v6591
      %v6766 = vunpack.c.l.b16 %v6592
      %v6767 = vunpack.c.h.b16 %v6592
      %v6768 = vunpack.c.l.b16 %v6593
      %v6769 = vunpack.c.h.b16 %v6593
      %v6770 = vunpack.c.l.b16 %v6594
      %v6771 = vunpack.c.h.b16 %v6594
      %v6772 = vunpack.c.l.b16 %v6595
      %v6773 = vunpack.c.h.b16 %v6595
      %v6774 = vunpack.c.l.b16 %v6596
      %v6775 = vunpack.c.h.b16 %v6596
      %v6776 = vunpack.c.l.b16 %v6597
      %v6777 = vunpack.c.h.b16 %v6597
      %v6778 = vunpack.c.l.b16 %v6598
      %v6779 = vunpack.c.h.b16 %v6598
      %v6780 = vunpack.c.l.b16 %v6599
      %v6781 = vunpack.c.h.b16 %v6599
      %v6782 = vunpack.c.l.b16 %v6600
      %v6783 = vunpack.c.h.b16 %v6600
      %v6784 = vunpack.c.l.b16 %v6601
      %v6785 = vunpack.c.h.b16 %v6601
      %v6786 = vunpack.c.l.b16 %v6602
      %v6787 = vunpack.c.h.b16 %v6602
      %v6788 = vunpack.c.l.b16 %v6603
      %v6789 = vunpack.c.h.b16 %v6603
      %v6790 = vunpack.c.l.b16 %v6604
      %v6791 = vunpack.c.h.b16 %v6604
      %v6792 = vunpack.c.l.b16 %v6605
      %v6793 = vunpack.c.h.b16 %v6605
      %v6794 = vunpack.c.l.b16 %v6606
      %v6795 = vunpack.c.h.b16 %v6606
      %v6796 = vunpack.c.l.b16 %v6607
      %v6797 = vunpack.c.h.b16 %v6607
      %v6798 = vunpack.c.l.b16 %v6608
      %v6799 = vunpack.c.h.b16 %v6608
      %v6800 = vunpack.c.l.b16 %v6609
      %v6801 = vunpack.c.h.b16 %v6609
      %v6802 = vunpack.c.l.b16 %v6610
      %v6803 = vunpack.c.h.b16 %v6610
      %v6804 = vunpack.c.l.b16 %v6611
      %v6805 = vunpack.c.h.b16 %v6611
      %v6806 = vunpack.c.l.b16 %v6612
      %v6807 = vunpack.c.h.b16 %v6612
      %v6808 = vunpack.c.l.b16 %v6613
      %v6809 = vunpack.c.h.b16 %v6613
      %v6810 = vunpack.c.l.b16 %v6614
      %v6811 = vunpack.c.h.b16 %v6614
      %v6812 = vunpack.c.l.b16 %v6615
      %v6813 = vunpack.c.h.b16 %v6615
      %v6814 = vunpack.c.l.b16 %v6616
      %v6815 = vunpack.c.h.b16 %v6616
      %v6816 = vunpack.c.l.b16 %v6617
      %v6817 = vunpack.c.h.b16 %v6617
      %v6818 = vunpack.c.l.b16 %v6618
      %v6819 = vunpack.c.h.b16 %v6618
      %v6820 = vunpack.c.l.b16 %v6619
      %v6821 = vunpack.c.h.b16 %v6619
      %v6822 = vunpack.c.l.b16 %v6620
      %v6823 = vunpack.c.h.b16 %v6620
      %v6824 = vunpack.c.l.b16 %v6621
      %v6825 = vunpack.c.h.b16 %v6621
      %v6826 = vunpack.c.l.b16 %v6622
      %v6827 = vunpack.c.h.b16 %v6622
      %v6828 = vunpack.c.l.b16 %v6623
      %v6829 = vunpack.c.h.b16 %v6623
      %v6830 = vunpack.c.l.b16 %v6624
      %v6831 = vunpack.c.h.b16 %v6624
      %v6832 = vunpack.c.l.b16 %v6625
      %v6833 = vunpack.c.h.b16 %v6625
      %v6834 = vunpack.c.l.b16 %v6626
      %v6835 = vunpack.c.h.b16 %v6626
      %v6836 = vunpack.c.l.b16 %v6627
      %v6837 = vunpack.c.h.b16 %v6627
      %v6838 = vunpack.c.l.b16 %v6628
      %v6839 = vunpack.c.h.b16 %v6628
      %v6840 = vunpack.c.l.b16 %v6629
      %v6841 = vunpack.c.h.b16 %v6629
      %v6842 = vpack.c.b16 %v6716, %v6714
      %v6843 = vpack.c.b16 %v6717, %v6715
      %v6844 = vpack.c.b16 %v6720, %v6718
      %v6845 = vpack.c.b16 %v6721, %v6719
      %v6846 = vpack.c.b16 %v6724, %v6722
      %v6847 = vpack.c.b16 %v6725, %v6723
      %v6848 = vpack.c.b16 %v6728, %v6726
      %v6849 = vpack.c.b16 %v6729, %v6727
      %v6850 = vpack.c.b16 %v6732, %v6730
      %v6851 = vpack.c.b16 %v6733, %v6731
      %v6852 = vpack.c.b16 %v6736, %v6734
      %v6853 = vpack.c.b16 %v6737, %v6735
      %v6854 = vpack.c.b16 %v6740, %v6738
      %v6855 = vpack.c.b16 %v6741, %v6739
      %v6856 = vpack.c.b16 %v6744, %v6742
      %v6857 = vpack.c.b16 %v6745, %v6743
      %v6858 = vpack.c.b16 %v6748, %v6746
      %v6859 = vpack.c.b16 %v6749, %v6747
      %v6860 = vpack.c.b16 %v6752, %v6750
      %v6861 = vpack.c.b16 %v6753, %v6751
      %v6862 = vpack.c.b16 %v6756, %v6754
      %v6863 = vpack.c.b16 %v6757, %v6755
      %v6864 = vpack.c.b16 %v6760, %v6758
      %v6865 = vpack.c.b16 %v6761, %v6759
      %v6866 = vpack.c.b16 %v6764, %v6762
      %v6867 = vpack.c.b16 %v6765, %v6763
      %v6868 = vpack.c.b16 %v6768, %v6766
      %v6869 = vpack.c.b16 %v6769, %v6767
      %v6870 = vpack.c.b16 %v6772, %v6770
      %v6871 = vpack.c.b16 %v6773, %v6771
      %v6872 = vpack.c.b16 %v6776, %v6774
      %v6873 = vpack.c.b16 %v6777, %v6775
      %v6874 = vpack.c.b16 %v6780, %v6778
      %v6875 = vpack.c.b16 %v6781, %v6779
      %v6876 = vpack.c.b16 %v6784, %v6782
      %v6877 = vpack.c.b16 %v6785, %v6783
      %v6878 = vpack.c.b16 %v6788, %v6786
      %v6879 = vpack.c.b16 %v6789, %v6787
      %v6880 = vpack.c.b16 %v6792, %v6790
      %v6881 = vpack.c.b16 %v6793, %v6791
      %v6882 = vpack.c.b16 %v6796, %v6794
      %v6883 = vpack.c.b16 %v6797, %v6795
      %v6884 = vpack.c.b16 %v6800, %v6798
      %v6885 = vpack.c.b16 %v6801, %v6799
      %v6886 = vpack.c.b16 %v6804, %v6802
      %v6887 = vpack.c.b16 %v6805, %v6803
      %v6888 = vpack.c.b16 %v6808, %v6806
      %v6889 = vpack.c.b16 %v6809, %v6807
      %v6890 = vpack.c.b16 %v6812, %v6810
      %v6891 = vpack.c.b16 %v6813, %v6811
      %v6892 = vpack.c.b16 %v6816, %v6814
      %v6893 = vpack.c.b16 %v6817, %v6815
      %v6894 = vpack.c.b16 %v6820, %v6818
      %v6895 = vpack.c.b16 %v6821, %v6819
      %v6896 = vpack.c.b16 %v6824, %v6822
      %v6897 = vpack.c.b16 %v6825, %v6823
      %v6898 = vpack.c.b16 %v6828, %v6826
      %v6899 = vpack.c.b16 %v6829, %v6827
      %v6900 = vpack.c.b16 %v6832, %v6830
      %v6901 = vpack.c.b16 %v6833, %v6831
      %v6902 = vpack.c.b16 %v6836, %v6834
      %v6903 = vpack.c.b16 %v6837, %v6835
      %v6904 = vpack.c.b16 %v6840, %v6838
      %v6905 = vpack.c.b16 %v6841, %v6839
      %6970 = vmatpush.bf16.msra.mxu0 %v6856
      %6971 = vmatpush.bf16.msra.mxu0 %v6854
      %6972 = vmatpush.bf16.msra.mxu0 %v6852
      %6973 = vmatpush.bf16.msra.mxu0 %v6850
      %6974 = vmatpush.bf16.msra.mxu0 %v6848
      %6975 = vmatpush.bf16.msra.mxu0 %v6846
      %6976 = vmatpush.bf16.msra.mxu0 %v6844
      %6977 = vmatpush.bf16.msra.mxu0 %v6842
      %6978 = vmatmul.bf16.gmra.mxu0 %v6562
      %v6979 = vpop.f32.mrf.mxu0
      %v6980 = vadd.f32 %v6646, %v6979
      %v6981 = vpop.f32.mrf.mxu0
      %v6982 = vadd.f32 %v6648, %v6981
      %6983 = vdwg.mxu0
      %6984 = vmatpush.bf16.msra.mxu0 %v6872
      %6985 = vmatpush.bf16.msra.mxu0 %v6870
      %6986 = vmatpush.bf16.msra.mxu0 %v6868
      %6987 = vmatpush.bf16.msra.mxu0 %v6866
      %6988 = vmatpush.bf16.msra.mxu0 %v6864
      %6989 = vmatpush.bf16.msra.mxu0 %v6862
      %6990 = vmatpush.bf16.msra.mxu0 %v6860
      %6991 = vmatpush.bf16.msra.mxu0 %v6858
      %6992 = vmatmul.bf16.gmra.mxu0 %v6563
      %v6993 = vpop.f32.mrf.mxu0
      %v6994 = vadd.f32 %v6980, %v6993
      %v6995 = vpop.f32.mrf.mxu0
      %v6996 = vadd.f32 %v6982, %v6995
      %6997 = vdwg.mxu0
      %6998 = vmatpush.bf16.msra.mxu0 %v6888
      %6999 = vmatpush.bf16.msra.mxu0 %v6886
      %7000 = vmatpush.bf16.msra.mxu0 %v6884
      %7001 = vmatpush.bf16.msra.mxu0 %v6882
      %7002 = vmatpush.bf16.msra.mxu0 %v6880
      %7003 = vmatpush.bf16.msra.mxu0 %v6878
      %7004 = vmatpush.bf16.msra.mxu0 %v6876
      %7005 = vmatpush.bf16.msra.mxu0 %v6874
      %7006 = vmatmul.bf16.gmra.mxu0 %v6564
      %v7007 = vpop.f32.mrf.mxu0
      %v7008 = vadd.f32 %v6994, %v7007
      %v7009 = vpop.f32.mrf.mxu0
      %v7010 = vadd.f32 %v6996, %v7009
      %7011 = vdwg.mxu0
      %7012 = vmatpush.bf16.msra.mxu0 %v6904
      %7013 = vmatpush.bf16.msra.mxu0 %v6902
      %7014 = vmatpush.bf16.msra.mxu0 %v6900
      %7015 = vmatpush.bf16.msra.mxu0 %v6898
      %7016 = vmatpush.bf16.msra.mxu0 %v6896
      %7017 = vmatpush.bf16.msra.mxu0 %v6894
      %7018 = vmatpush.bf16.msra.mxu0 %v6892
      %7019 = vmatpush.bf16.msra.mxu0 %v6890
      %7020 = vmatmul.bf16.gmra.mxu0 %v6565
      %v7021 = vpop.f32.mrf.mxu0
      %v7022 = vadd.f32 %v7008, %v7021
      %v7023 = vpop.f32.mrf.mxu0
      %v7024 = vadd.f32 %v7010, %v7023
      %7025 = vdwg.mxu0
      %7026 = vmatpush.bf16.msra.mxu0 %v6857
      %7027 = vmatpush.bf16.msra.mxu0 %v6855
      %7028 = vmatpush.bf16.msra.mxu0 %v6853
      %7029 = vmatpush.bf16.msra.mxu0 %v6851
      %7030 = vmatpush.bf16.msra.mxu0 %v6849
      %7031 = vmatpush.bf16.msra.mxu0 %v6847
      %7032 = vmatpush.bf16.msra.mxu0 %v6845
      %7033 = vmatpush.bf16.msra.mxu0 %v6843
      %7034 = vmatmul.bf16.gmra.mxu0 %v6562
      %v7035 = vpop.f32.mrf.mxu0
      %v7036 = vadd.f32 %v6647, %v7035
      %v7037 = vpop.f32.mrf.mxu0
      %v7038 = vadd.f32 %v6649, %v7037
      %7039 = vdwg.mxu0
      %7040 = vmatpush.bf16.msra.mxu0 %v6873
      %7041 = vmatpush.bf16.msra.mxu0 %v6871
      %7042 = vmatpush.bf16.msra.mxu0 %v6869
      %7043 = vmatpush.bf16.msra.mxu0 %v6867
      %7044 = vmatpush.bf16.msra.mxu0 %v6865
      %7045 = vmatpush.bf16.msra.mxu0 %v6863
      %7046 = vmatpush.bf16.msra.mxu0 %v6861
      %7047 = vmatpush.bf16.msra.mxu0 %v6859
      %7048 = vmatmul.bf16.gmra.mxu0 %v6563
      %v7049 = vpop.f32.mrf.mxu0
      %v7050 = vadd.f32 %v7036, %v7049
      %v7051 = vpop.f32.mrf.mxu0
      %v7052 = vadd.f32 %v7038, %v7051
      %7053 = vdwg.mxu0
      %7054 = vmatpush.bf16.msra.mxu0 %v6889
      %7055 = vmatpush.bf16.msra.mxu0 %v6887
      %7056 = vmatpush.bf16.msra.mxu0 %v6885
      %7057 = vmatpush.bf16.msra.mxu0 %v6883
      %7058 = vmatpush.bf16.msra.mxu0 %v6881
      %7059 = vmatpush.bf16.msra.mxu0 %v6879
      %7060 = vmatpush.bf16.msra.mxu0 %v6877
      %7061 = vmatpush.bf16.msra.mxu0 %v6875
      %7062 = vmatmul.bf16.gmra.mxu0 %v6564
      %v7063 = vpop.f32.mrf.mxu0
      %v7064 = vadd.f32 %v7050, %v7063
      %v7065 = vpop.f32.mrf.mxu0
      %v7066 = vadd.f32 %v7052, %v7065
      %7067 = vdwg.mxu0
      %7068 = vmatpush.bf16.msra.mxu0 %v6905
      %7069 = vmatpush.bf16.msra.mxu0 %v6903
      %7070 = vmatpush.bf16.msra.mxu0 %v6901
      %7071 = vmatpush.bf16.msra.mxu0 %v6899
      %7072 = vmatpush.bf16.msra.mxu0 %v6897
      %7073 = vmatpush.bf16.msra.mxu0 %v6895
      %7074 = vmatpush.bf16.msra.mxu0 %v6893
      %7075 = vmatpush.bf16.msra.mxu0 %v6891
      %7076 = vmatmul.bf16.gmra.mxu0 %v6565
      %v7077 = vpop.f32.mrf.mxu0
      %v7078 = vadd.f32 %v7064, %v7077
      %v7079 = vpop.f32.mrf.mxu0
      %v7080 = vadd.f32 %v7066, %v7079
      %7081 = vdwg.mxu0
      %s7082 = scalar_lea.vmem %s10, 1
      %v7083 = vld [vmem:[%s7082] ss:$8 sm:$0x3]
      %7084 = vset.pattern.permute.xlu0 1
      %7085 = vperm.xlu0 %7084, %v6560
      %v7086 = vpop.permute.xlu0 %7085
      %7088 = vset.pattern.permute.xlu0 1
      %7089 = vperm.xlu0 %7088, %v6561
      %v7090 = vpop.permute.xlu0 %7089
      %v7093 = vperm.slane %v7083, 0
      %v7094 = vperm.slane %v7083, 1
      %v7097 = vmul.f32 %v7086, %v7093
      %v7098 = vmul.f32 %v7086, %v7094
      %v7099 = vmul.f32 %v7090, %v7093
      %v7100 = vmul.f32 %v7090, %v7094
      %v7101 = vadd.f32 %v7022, %v7097
      %v7102 = vadd.f32 %v7078, %v7098
      %v7103 = vadd.f32 %v7024, %v7099
      %v7104 = vadd.f32 %v7080, %v7100
      %s7105 = scalar_lea.vmem %s10, 2
      %v7106 = vld [vmem:[%s7105] ss:$8 sm:$0x3]
      %7107 = vset.pattern.permute.xlu0 2
      %7108 = vperm.xlu0 %7107, %v6560
      %v7109 = vpop.permute.xlu0 %7108
      %7111 = vset.pattern.permute.xlu0 2
      %7112 = vperm.xlu0 %7111, %v6561
      %v7113 = vpop.permute.xlu0 %7112
      %v7116 = vperm.slane %v7106, 0
      %v7117 = vperm.slane %v7106, 1
      %v7120 = vmul.f32 %v7109, %v7116
      %v7121 = vmul.f32 %v7109, %v7117
      %v7122 = vmul.f32 %v7113, %v7116
      %v7123 = vmul.f32 %v7113, %v7117
      %v7124 = vadd.f32 %v7101, %v7120
      %v7125 = vadd.f32 %v7102, %v7121
      %v7126 = vadd.f32 %v7103, %v7122
      %v7127 = vadd.f32 %v7104, %v7123
      %s7128 = scalar_lea.vmem %s10, 3
      %v7129 = vld [vmem:[%s7128] ss:$8 sm:$0x3]
      %7130 = vset.pattern.permute.xlu0 3
      %7131 = vperm.xlu0 %7130, %v6560
      %v7132 = vpop.permute.xlu0 %7131
      %7134 = vset.pattern.permute.xlu0 3
      %7135 = vperm.xlu0 %7134, %v6561
      %v7136 = vpop.permute.xlu0 %7135
      %v7139 = vperm.slane %v7129, 0
      %v7140 = vperm.slane %v7129, 1
      %v7143 = vmul.f32 %v7132, %v7139
      %v7144 = vmul.f32 %v7132, %v7140
      %v7145 = vmul.f32 %v7136, %v7139
      %v7146 = vmul.f32 %v7136, %v7140
      %v7147 = vadd.f32 %v7124, %v7143
      %v7148 = vadd.f32 %v7125, %v7144
      %v7149 = vadd.f32 %v7126, %v7145
      %v7150 = vadd.f32 %v7127, %v7146
      %s7151 = scalar_lea.vmem %s10, 4
      %v7152 = vld [vmem:[%s7151] ss:$8 sm:$0x3]
      %v7154 = vperm.slane %v7152, 0
      %v7155 = vperm.slane %v7152, 1
      %v7158 = vadd.f32 %v7147, %v7154
      %v7159 = vadd.f32 %v7148, %v7155
      %v7160 = vadd.f32 %v7149, %v7154
      %v7161 = vadd.f32 %v7150, %v7155
      %7162 = vst [vmem:[%s415] sm:$0xff] %v7158
      %7163 = vst [vmem:[%s415 + $0x8] sm:$0xff] %v7159
      %7164 = vst [vmem:[%s415 + $0x10] sm:$0xff] %v7160
      %7165 = vst [vmem:[%s415 + $0x18] sm:$0xff] %v7161
      %s7166 = smul.u32 2, %s22
      %p7167 = scmp.lt.s32.totalorder %s7166, 3
      %s7168 = scalar_select %p7167, %s7166, 3
      %s7169 = smul.addr %s7168, 2
      %s7170 = smul.addr %s7169, 8
      %s7171 = scalar_lea.vmem %s11, %s7170
      // Predicated region
      $region65: #{_lambda_.1} parent=63 // pred_check
        %p7172 = pneg %p281
      $region66: #{_lambda_.1} parent=63 // pred_check_branch
        %7174 = sbr.rel (%p7172) target = $region68
      $region67: #{_lambda_.1} parent=63 // pred_region
        %s7175 = smul.u32 2, %s22
      $region68: #{_lambda_.1} parent=63 // pred_fallthru
        _
    $region64: #{_lambda_.1} parent=5 // pred_fallthru
      _
    %p7176 = scmp.le.s32.totalorder 2, %s17
    // Predicated region
    $region69: #{_lambda_.1} parent=5 // pred_check
      %p7177 = pneg %p7176
    $region70: #{_lambda_.1} parent=5 // pred_check_branch
      %7179 = sbr.rel (%p7177) target = $region72
    $region71: #{_lambda_.1} parent=5 // pred_region
      %s7180 = ssub.s32 %s17, 2
      // Predicated region
      $region73: #{_lambda_.1} parent=71 // pred_check
        %p7181 = pneg %p287
      $region74: #{_lambda_.1} parent=71 // pred_check_branch
        %7183 = sbr.rel (%p7181) target = $region76
      $region75: #{_lambda_.1} parent=71 // pred_region
        %s7184 = smul.u32 2, %s23
        %p7185 = scmp.lt.s32.totalorder %s7184, 3
        %s7186 = scalar_select %p7185, %s7184, 3
        %s7187 = smul.addr %s7186, 2
        %s7188 = smul.addr %s7187, 8
        %s7189 = scalar_lea.vmem %s11, %s7188
      $region76: #{_lambda_.1} parent=71 // pred_fallthru
        _
    $region72: #{_lambda_.1} parent=5 // pred_fallthru
      _
  $region6: #{_lambda_.1} parent=0 // loop_footer
    %s21 = sadd.s32 1, %s17
  $region7: #{_lambda_.1} parent=0 // loop_footer_branch
    %16 = sbr.rel target = $region3
  $region8: #{_lambda_.1} parent=0 // loop_exit
    _

</llo_original>
